<compile_context>
chip_gen: v7x
topology: tpu7x:2x2x1
jax: 0.10.0
libtpu: 0.0.40
codegen_flags: <defaults>
</compile_context>

<pallas_src>
import functools

import numpy as np

import jax
import jax.numpy as jnp
from jax.experimental import pallas as pl
from jax.experimental.pallas import tpu as pltpu


# --------------------- tiny boundary masks (per image) --------------------- #

def _same_conv_masks(H, W):
    """(9, H*W, 1) 0/1 masks: tap t=(kh*3+kw) valid at output position p."""
    m = np.zeros((9, H * W, 1), np.float32)
    for kh in range(3):
        for kw in range(3):
            dh, dw = kh - 1, kw - 1
            for oh in range(H):
                for ow in range(W):
                    if 0 <= oh + dh < H and 0 <= ow + dw < W:
                        m[kh * 3 + kw, oh * W + ow, 0] = 1.0
    return m


# ------------------------------ fused kernel ------------------------------- #

def _env_kernel(cols1a_ref, mask_ref,
                w1a_ref, b1a_ref, w1b_ref, b1b_ref, w2_ref, b2_ref,
                wdc_ref, bdc_ref, wr1_ref, br1_ref, wr2_ref, br2_ref,
                wf1_ref, bf1_ref, wf2_ref, bf2_ref,
                img_ref, rew_ref,
                pad1_ref, pad2_ref, r1_ref, r2_ref, *, geom):
    (H1, W1, Hp1, Wp1, Hp2, Wp2, PAD1, PAD2) = geom
    n1 = H1 * W1          # encoder spatial positions (same grid for 3 convs)
    np1 = Hp1 * Wp1       # reward-head grid after first pool
    f32, bf16 = jnp.float32, jnp.bfloat16

    # zero the halo rows of the padded scratches once per grid step
    z1 = jnp.zeros((PAD1, 64), bf16)
    pad1_ref[pl.ds(0, PAD1), :] = z1
    pad1_ref[pl.ds(PAD1 + n1, PAD1), :] = z1
    z2 = jnp.zeros((PAD2, 64), bf16)
    pad2_ref[pl.ds(0, PAD2), :] = z2
    pad2_ref[pl.ds(PAD2 + np1, PAD2), :] = z2

    def same_conv3x3(pad_ref, n, W, PAD, w_ref, b_ref, masked):
        # im2col in VMEM: 9 shifted static-slice reads of the padded scratch,
        # lane-concatenated into (n, 576), then ONE K=576 MXU matmul.
        taps = []
        for kh in range(3):
            for kw in range(3):
                off = (kh - 1) * W + (kw - 1)
                v = pad_ref[pl.ds(PAD + off, n), :]          # (n, 64) bf16
                if masked:
                    v = v * mask_ref[kh * 3 + kw]            # zero-padding mask
                taps.append(v)
        cols = jnp.concatenate(taps, axis=1)                 # (n, 576) bf16
        return jnp.dot(cols, w_ref[...], preferred_element_type=f32) + b_ref[...]

    def pool2x2_relu(src_ref, Wsrc, Hpo, Wpo):
        # 2x2/stride-2 maxpool (+ReLU) over the interior (valid-conv) positions
        # of the 'same'-grid conv output held in src_ref; pure VPU.
        outs = []
        for a in range(Hpo):
            for b in range(Wpo):
                vals = [src_ref[pl.ds((2 * a + 1 + di) * Wsrc + (2 * b + 1 + dj), 1), :]
                        for di in (0, 1) for dj in (0, 1)]
                m = jnp.maximum(jnp.maximum(vals[0], vals[1]),
                                jnp.maximum(vals[2], vals[3]))
                outs.append(jnp.maximum(m, 0.0))             # (1, 64) f32
        return outs

    # ----------------------------- encoder ---------------------------------
    # conv1a (k=4, s=4, p=1): single matmul on the pre-built im2col
    c = jnp.dot(cols1a_ref[...], w1a_ref[...], preferred_element_type=f32) + b1a_ref[...]
    c = jnp.maximum(c, 0.0)                                   # (n1, 64) f32

    # conv1b: 3x3 'same'
    pad1_ref[pl.ds(PAD1, n1), :] = c.astype(bf16)
    c1 = jnp.maximum(same_conv3x3(pad1_ref, n1, W1, PAD1, w1b_ref, b1b_ref, True), 0.0)

    # conv2: 3x3 'same' + ReLU, then residual add (out = relu(conv2(c1)) + c1)
    pad1_ref[pl.ds(PAD1, n1), :] = c1.astype(bf16)
    c2 = jnp.maximum(same_conv3x3(pad1_ref, n1, W1, PAD1, w2_ref, b2_ref, True), 0.0) + c1

    # ------------------------ deconv (k=4, s=4) -----------------------------
    # Non-overlapping: each input pixel emits a 4x4 patch.  Computed transposed
    # so the output store is lane-dense: (16, n1) instead of (n1, 16).
    dec_t = jnp.dot(wdc_ref[...], c2.T.astype(bf16), preferred_element_type=f32)
    img_ref[...] = dec_t + bdc_ref[...]

    # ---------------------------- reward head --------------------------------
    # rc1 (valid 3x3) computed on the 'same' grid; only interior rows are used
    # downstream, so no boundary mask is needed.
    pad1_ref[pl.ds(PAD1, n1), :] = c2.astype(bf16)
    r1_ref[...] = same_conv3x3(pad1_ref, n1, W1, PAD1, wr1_ref, br1_ref, False)

    # maxpool 2x2 + relu  ->  interior of pad2 scratch (input of rc2)
    pooled1 = pool2x2_relu(r1_ref, W1, Hp1, Wp1)
    for p, v in enumerate(pooled1):
        pad2_ref[pl.ds(PAD2 + p, 1), :] = v.astype(bf16)

    # rc2 (valid 3x3) on the pooled grid, single K=576 matmul
    r2_ref[...] = same_conv3x3(pad2_ref, np1, Wp1, PAD2, wr2_ref, br2_ref, False)

    # maxpool 2x2 + relu, fused with fc1 (+relu) and fc2
    pooled2 = pool2x2_relu(r2_ref, Wp1, Hp2, Wp2)             # S values of (1, 64)
    h = None
    for s, v in enumerate(pooled2):
        part = jnp.dot(v.astype(bf16), wf1_ref[s], preferred_element_type=f32)
        h = part if h is None else h + part
    h = jnp.maximum(h + bf1_ref[...], 0.0)                    # (1, 128)
    # fc2 (N=1): VPU multiply + lane reduction instead of an N=1 matmul
    rew_ref[...] = jnp.sum(h * wf2_ref[...], axis=1, keepdims=True) + bf2_ref[...]


# ------------------------------- parameters -------------------------------- #

def _geometry(H, W):
    H1 = (H + 2 - 4) // 4 + 1
    W1 = (W + 2 - 4) // 4 + 1
    Hp1, Wp1 = (H1 - 2) // 2, (W1 - 2) // 2
    Hp2, Wp2 = (Hp1 - 2) // 2, (Wp1 - 2) // 2
    return H1, W1, Hp1, Wp1, Hp2, Wp2


def init_params(key, input_shape, n_actions):
    """Random PyTorch-layout weights, pre-converted to kernel layout."""
    C, H, W = input_shape
    n_planes = C + n_actions
    H1, W1, Hp1, Wp1, Hp2, Wp2 = _geometry(H, W)
    S = Hp2 * Wp2
    assert S >= 1, "input too small for the reward head"

    keys = jax.random.split(key, 16)
    f32, bf16 = jnp.float32, jnp.bfloat16

    def w(k, shape, scale=0.05):
        return (scale * jax.random.normal(k, shape)).astype(f32)

    c1a_w = w(keys[0], (64, n_planes, 4, 4)); c1a_b = w(keys[1], (64,))
    c1b_w = w(keys[2], (64, 64, 3, 3));       c1b_b = w(keys[3], (64,))
    c2_w  = w(keys[4], (64, 64, 3, 3));       c2_b  = w(keys[5], (64,))
    dc_w  = w(keys[6], (64, 1, 4, 4));        dc_b  = w(keys[7], (1,))
    rc1_w = w(keys[8], (64, 64, 3, 3));       rc1_b = w(keys[9], (64,))
    rc2_w = w(keys[10], (64, 64, 3, 3));      rc2_b = w(keys[11], (64,))
    fc1_w = w(keys[12], (128, 64 * S));       fc1_b = w(keys[13], (128,))
    fc2_w = w(keys[14], (1, 128));            fc2_b = w(keys[15], (1,))

    def conv_mat(wt):   # (Cout,Cin,kh,kw) -> (kh*kw*Cin, Cout), tap-major rows
        Cout, Ci, kh, kw = wt.shape
        return jnp.transpose(wt, (2, 3, 1, 0)).reshape(kh * kw * Ci, Cout)

    def row(b):
        return b.reshape(1, -1).astype(f32)

    return {
        'w1a': conv_mat(c1a_w).astype(bf16), 'b1a': row(c1a_b),
        'w1b': conv_mat(c1b_w).astype(bf16), 'b1b': row(c1b_b),
        'w2':  conv_mat(c2_w).astype(bf16),  'b2':  row(c2_b),
        # ConvTranspose2d weight (Cin=64, Cout=1, 4, 4) -> (16, 64), row = i*4+j
        'wdc': jnp.transpose(dc_w, (1, 2, 3, 0)).reshape(16, 64).astype(bf16),
        'bdc': dc_b.reshape(1, 1).astype(f32),
        'wr1': conv_mat(rc1_w).astype(bf16), 'br1': row(rc1_b),
        'wr2': conv_mat(rc2_w).astype(bf16), 'br2': row(rc2_b),
        # fc1 (128, 64*S) with NCHW-flatten input index c*S + s  ->  (S, 64, 128)
        'wf1': jnp.transpose(fc1_w.reshape(128, 64, S), (2, 1, 0)).astype(bf16),
        'bf1': row(fc1_b),
        'wf2': fc2_w.reshape(1, 128).astype(f32),
        'bf2': fc2_b.reshape(1, 1).astype(f32),
        # per-image boundary masks for the two 'same' 3x3 convs (tiny, hoisted)
        'mask': jnp.asarray(_same_conv_masks(H1, W1), bf16),
    }


# -------------------------------- forward ---------------------------------- #

def environment_model_forward(params, imgs, actions, *, n_actions):
    B, C, H, W = imgs.shape
    Cin = C + n_actions
    H1, W1, Hp1, Wp1, Hp2, Wp2 = _geometry(H, W)
    n1, np1 = H1 * W1, Hp1 * Wp1
    PAD1, PAD2 = W1 + 1, Wp1 + 1
    geom = (H1, W1, Hp1, Wp1, Hp2, Wp2, PAD1, PAD2)

    # action planes (whole plane = 1.0 for the chosen action), concat, -> NHWC
    act = jax.nn.one_hot(actions, n_actions, dtype=imgs.dtype)
    act_planes = jnp.broadcast_to(act[:, :, None, None], (B, n_actions, H, W))
    comb = jnp.concatenate([imgs, act_planes], axis=1)
    x = jnp.transpose(comb, (0, 2, 3, 1))

    # conv1a (k=4, s=4, p=1) im2col on the raw input (input-sized, no blowup)
    xp = jnp.pad(x, ((0, 0), (1, 1), (1, 1), (0, 0)))
    patches = [xp[:, i:i + 4 * H1:4, j:j + 4 * W1:4, :]
               for i in range(4) for j in range(4)]
    cols1a = jnp.stack(patches, axis=3).reshape(B, n1, 16 * Cin).astype(jnp.bfloat16)

    ins = (cols1a, params['mask'],
           params['w1a'], params['b1a'], params['w1b'], params['b1b'],
           params['w2'], params['b2'], params['wdc'], params['bdc'],
           params['wr1'], params['br1'], params['wr2'], params['br2'],
           params['wf1'], params['bf1'], params['wf2'], params['bf2'])

    def full(shape):
        return pl.BlockSpec(shape, lambda b, _n=len(shape): (0,) * _n)

    in_specs = [pl.BlockSpec((None, n1, 16 * Cin), lambda b: (b, 0, 0))]
    in_specs += [full(a.shape) for a in ins[1:]]

    kernel = functools.partial(_env_kernel, geom=geom)

    dec_t, rew = pl.pallas_call(
        kernel,
        grid=(B,),
        in_specs=in_specs,
        out_specs=(pl.BlockSpec((None, 16, n1), lambda b: (b, 0, 0)),
                   pl.BlockSpec((None, 1, 1), lambda b: (b, 0, 0))),
        out_shape=(jax.ShapeDtypeStruct((B, 16, n1), jnp.float32),
                   jax.ShapeDtypeStruct((B, 1, 1), jnp.float32)),
        scratch_shapes=[
            pltpu.VMEM((n1 + 2 * PAD1, 64), jnp.bfloat16),   # padded encoder grid
            pltpu.VMEM((np1 + 2 * PAD2, 64), jnp.bfloat16),  # padded pooled grid
            pltpu.VMEM((n1, 64), jnp.float32),               # rc1 'same' output
            pltpu.VMEM((np1, 64), jnp.float32),              # rc2 'same' output
        ],
        compiler_params=pltpu.CompilerParams(
            dimension_semantics=("parallel",),
            vmem_limit_bytes=16 * 1024 * 1024,               # footprint ~2 MiB/core
        ),
    )(*ins)

    # pixel-shuffle the transposed deconv patches into the NCHW frame (~13 KB)
    img = dec_t.reshape(B, 4, 4, H1, W1)
    img = jnp.transpose(img, (0, 3, 1, 4, 2)).reshape(B, 1, 4 * H1, 4 * W1)
    return img, rew.reshape(B, 1)


# --------------------------------- driver ----------------------------------- #

if __name__ == "__main__":
    key = jax.random.PRNGKey(0)
    k_img, k_act, k_param = jax.random.split(key, 3)

    # smallest shapes for which the reward head does not collapse
    input_shape = (4, 40, 40)      # (C, H, W)
    n_actions = 4
    B = 2

    imgs = jax.random.normal(k_img, (B,) + input_shape, dtype=jnp.float32)
    actions = jax.random.randint(k_act, (B,), 0, n_actions)
    params = init_params(k_param, input_shape, n_actions)

    fwd = jax.jit(functools.partial(environment_model_forward, n_actions=n_actions))
    img_out, rew_out = fwd(params, imgs, actions)
    jax.block_until_ready((img_out, rew_out))

    assert img_out.shape == (B, 1, input_shape[1], input_shape[2]), img_out.shape
    assert rew_out.shape == (B, 1), rew_out.shape
    assert bool(jnp.isfinite(img_out).all()) and bool(jnp.isfinite(rew_out).all())
    print("KERNEL_OK")
</pallas_src>

<mosaic_0001>
module attributes {stable_mosaic.version = 11 : i64} {
  func.func @_env_kernel(%arg0: i32, %arg1: memref<1x100x128xbf16, #tpu.memory_space<vmem>>, %arg2: memref<9x100x1xbf16, #tpu.memory_space<vmem>>, %arg3: memref<128x64xbf16, #tpu.memory_space<vmem>>, %arg4: memref<1x64xf32, #tpu.memory_space<vmem>>, %arg5: memref<576x64xbf16, #tpu.memory_space<vmem>>, %arg6: memref<1x64xf32, #tpu.memory_space<vmem>>, %arg7: memref<576x64xbf16, #tpu.memory_space<vmem>>, %arg8: memref<1x64xf32, #tpu.memory_space<vmem>>, %arg9: memref<16x64xbf16, #tpu.memory_space<vmem>>, %arg10: memref<1x1xf32, #tpu.memory_space<vmem>>, %arg11: memref<576x64xbf16, #tpu.memory_space<vmem>>, %arg12: memref<1x64xf32, #tpu.memory_space<vmem>>, %arg13: memref<576x64xbf16, #tpu.memory_space<vmem>>, %arg14: memref<1x64xf32, #tpu.memory_space<vmem>>, %arg15: memref<1x64x128xbf16, #tpu.memory_space<vmem>>, %arg16: memref<1x128xf32, #tpu.memory_space<vmem>>, %arg17: memref<1x128xf32, #tpu.memory_space<vmem>>, %arg18: memref<1x1xf32, #tpu.memory_space<vmem>>, %arg19: memref<1x16x100xf32, #tpu.memory_space<vmem>>, %arg20: memref<1x1x1xf32, #tpu.memory_space<vmem>>, %arg21: memref<122x64xbf16, #tpu.memory_space<vmem>>, %arg22: memref<26x64xbf16, #tpu.memory_space<vmem>>, %arg23: memref<100x64xf32, #tpu.memory_space<vmem>>, %arg24: memref<16x64xf32, #tpu.memory_space<vmem>>) attributes {dimension_semantics = [#tpu.dimension_semantics<parallel>], iteration_bounds = array<i64: 2>, scalar_prefetch = 0 : i64, scratch_operands = 4 : i64, tpu.core_type = #tpu.core_type<tc>, window_params = [{transform_indices = @transform_0, window_bounds = array<i64: 1, 100, 128>}, {pipeline_mode = #tpu.pipeline_mode<synchronous>, transform_indices = @transform_1, window_bounds = array<i64: 9, 100, 1>}, {pipeline_mode = #tpu.pipeline_mode<synchronous>, transform_indices = @transform_2, window_bounds = array<i64: 128, 64>}, {pipeline_mode = #tpu.pipeline_mode<synchronous>, transform_indices = @transform_3, window_bounds = array<i64: 1, 64>}, {pipeline_mode = #tpu.pipeline_mode<synchronous>, transform_indices = @transform_4, window_bounds = array<i64: 576, 64>}, {pipeline_mode = #tpu.pipeline_mode<synchronous>, transform_indices = @transform_5, window_bounds = array<i64: 1, 64>}, {pipeline_mode = #tpu.pipeline_mode<synchronous>, transform_indices = @transform_6, window_bounds = array<i64: 576, 64>}, {pipeline_mode = #tpu.pipeline_mode<synchronous>, transform_indices = @transform_7, window_bounds = array<i64: 1, 64>}, {pipeline_mode = #tpu.pipeline_mode<synchronous>, transform_indices = @transform_8, window_bounds = array<i64: 16, 64>}, {pipeline_mode = #tpu.pipeline_mode<synchronous>, transform_indices = @transform_9, window_bounds = array<i64: 1, 1>}, {pipeline_mode = #tpu.pipeline_mode<synchronous>, transform_indices = @transform_10, window_bounds = array<i64: 576, 64>}, {pipeline_mode = #tpu.pipeline_mode<synchronous>, transform_indices = @transform_11, window_bounds = array<i64: 1, 64>}, {pipeline_mode = #tpu.pipeline_mode<synchronous>, transform_indices = @transform_12, window_bounds = array<i64: 576, 64>}, {pipeline_mode = #tpu.pipeline_mode<synchronous>, transform_indices = @transform_13, window_bounds = array<i64: 1, 64>}, {pipeline_mode = #tpu.pipeline_mode<synchronous>, transform_indices = @transform_14, window_bounds = array<i64: 1, 64, 128>}, {pipeline_mode = #tpu.pipeline_mode<synchronous>, transform_indices = @transform_15, window_bounds = array<i64: 1, 128>}, {pipeline_mode = #tpu.pipeline_mode<synchronous>, transform_indices = @transform_16, window_bounds = array<i64: 1, 128>}, {pipeline_mode = #tpu.pipeline_mode<synchronous>, transform_indices = @transform_17, window_bounds = array<i64: 1, 1>}, {transform_indices = @transform_18, window_bounds = array<i64: 1, 16, 100>}, {transform_indices = @transform_19, window_bounds = array<i64: 1, 1, 1>}]} {
    %cst = arith.constant 0.000000e+00 : bf16
    %0 = vector.broadcast %cst : bf16 to vector<11x64xbf16>
    %c0 = arith.constant 0 : index
    %c0_0 = arith.constant 0 : index
    %1 = vector.load %arg21[%c0, %c0_0] : memref<122x64xbf16, #tpu.memory_space<vmem>>, vector<11x64xbf16>
    tpu.vector_store %arg21[%c0, %c0_0], %0 {strides = array<i32>} : memref<122x64xbf16, #tpu.memory_space<vmem>>, vector<11x64xbf16>,
    %c111 = arith.constant 111 : index
    %c0_1 = arith.constant 0 : index
    %2 = vector.load %arg21[%c111, %c0_1] : memref<122x64xbf16, #tpu.memory_space<vmem>>, vector<11x64xbf16>
    tpu.vector_store %arg21[%c111, %c0_1], %0 {strides = array<i32>} : memref<122x64xbf16, #tpu.memory_space<vmem>>, vector<11x64xbf16>,
    %cst_2 = arith.constant 0.000000e+00 : bf16
    %3 = vector.broadcast %cst_2 : bf16 to vector<5x64xbf16>
    %c0_3 = arith.constant 0 : index
    %c0_4 = arith.constant 0 : index
    %4 = vector.load %arg22[%c0_3, %c0_4] : memref<26x64xbf16, #tpu.memory_space<vmem>>, vector<5x64xbf16>
    tpu.vector_store %arg22[%c0_3, %c0_4], %3 {strides = array<i32>} : memref<26x64xbf16, #tpu.memory_space<vmem>>, vector<5x64xbf16>,
    %c21 = arith.constant 21 : index
    %c0_5 = arith.constant 0 : index
    %5 = vector.load %arg22[%c21, %c0_5] : memref<26x64xbf16, #tpu.memory_space<vmem>>, vector<5x64xbf16>
    tpu.vector_store %arg22[%c21, %c0_5], %3 {strides = array<i32>} : memref<26x64xbf16, #tpu.memory_space<vmem>>, vector<5x64xbf16>,
    %c0_6 = arith.constant 0 : index
    %c0_7 = arith.constant 0 : index
    %c0_8 = arith.constant 0 : index
    %6 = vector.load %arg1[%c0_6, %c0_7, %c0_8] : memref<1x100x128xbf16, #tpu.memory_space<vmem>>, vector<1x100x128xbf16>
    %7 = vector.shape_cast %6 : vector<1x100x128xbf16> to vector<100x128xbf16>
    %c0_9 = arith.constant 0 : index
    %c0_10 = arith.constant 0 : index
    %8 = vector.load %arg3[%c0_9, %c0_10] : memref<128x64xbf16, #tpu.memory_space<vmem>>, vector<128x64xbf16>
    %cst_11 = arith.constant dense<0.000000e+00> : vector<100x64xf32>
    %9 = tpu.matmul %7, %8, %cst_11 {dimension_numbers = #tpu.dot_dimension_numbers<[1], [0], [0], [1], [0, 0, 1, 1], [], []>} : vector<100x128xbf16>, vector<128x64xbf16>, vector<100x64xf32> -> vector<100x64xf32>
    %c0_12 = arith.constant 0 : index
    %c0_13 = arith.constant 0 : index
    %10 = vector.load %arg4[%c0_12, %c0_13] : memref<1x64xf32, #tpu.memory_space<vmem>>, vector<1x64xf32>
    %11 = vector.broadcast %10 : vector<1x64xf32> to vector<100x64xf32>
    %12 = arith.addf %9, %11 : vector<100x64xf32>
    %cst_14 = arith.constant 0.000000e+00 : f32
    %13 = vector.broadcast %cst_14 : f32 to vector<100x64xf32>
    %14 = arith.maximumf %12, %13 : vector<100x64xf32>
    %15 = arith.truncf %14 : vector<100x64xf32> to vector<100x64xbf16>
    %c11 = arith.constant 11 : index
    %c0_15 = arith.constant 0 : index
    %16 = vector.load %arg21[%c11, %c0_15] : memref<122x64xbf16, #tpu.memory_space<vmem>>, vector<100x64xbf16>
    tpu.vector_store %arg21[%c11, %c0_15], %15 {strides = array<i32>} : memref<122x64xbf16, #tpu.memory_space<vmem>>, vector<100x64xbf16>,
    %c0_16 = arith.constant 0 : index
    %c0_17 = arith.constant 0 : index
    %17 = vector.load %arg21[%c0_16, %c0_17] : memref<122x64xbf16, #tpu.memory_space<vmem>>, vector<100x64xbf16>
    %c0_18 = arith.constant 0 : index
    %c0_19 = arith.constant 0 : index
    %c0_20 = arith.constant 0 : index
    %18 = vector.load %arg2[%c0_18, %c0_19, %c0_20] : memref<9x100x1xbf16, #tpu.memory_space<vmem>>, vector<1x100x1xbf16>
    %19 = vector.shape_cast %18 : vector<1x100x1xbf16> to vector<100x1xbf16>
    %20 = vector.broadcast %19 : vector<100x1xbf16> to vector<100x64xbf16>
    %21 = arith.mulf %17, %20 : vector<100x64xbf16>
    %c1 = arith.constant 1 : index
    %c0_21 = arith.constant 0 : index
    %22 = vector.load %arg21[%c1, %c0_21] : memref<122x64xbf16, #tpu.memory_space<vmem>>, vector<100x64xbf16>
    %c1_22 = arith.constant 1 : index
    %c0_23 = arith.constant 0 : index
    %c0_24 = arith.constant 0 : index
    %23 = vector.load %arg2[%c1_22, %c0_23, %c0_24] : memref<9x100x1xbf16, #tpu.memory_space<vmem>>, vector<1x100x1xbf16>
    %24 = vector.shape_cast %23 : vector<1x100x1xbf16> to vector<100x1xbf16>
    %25 = vector.broadcast %24 : vector<100x1xbf16> to vector<100x64xbf16>
    %26 = arith.mulf %22, %25 : vector<100x64xbf16>
    %c2 = arith.constant 2 : index
    %c0_25 = arith.constant 0 : index
    %27 = vector.load %arg21[%c2, %c0_25] : memref<122x64xbf16, #tpu.memory_space<vmem>>, vector<100x64xbf16>
    %c2_26 = arith.constant 2 : index
    %c0_27 = arith.constant 0 : index
    %c0_28 = arith.constant 0 : index
    %28 = vector.load %arg2[%c2_26, %c0_27, %c0_28] : memref<9x100x1xbf16, #tpu.memory_space<vmem>>, vector<1x100x1xbf16>
    %29 = vector.shape_cast %28 : vector<1x100x1xbf16> to vector<100x1xbf16>
    %30 = vector.broadcast %29 : vector<100x1xbf16> to vector<100x64xbf16>
    %31 = arith.mulf %27, %30 : vector<100x64xbf16>
    %c10 = arith.constant 10 : index
    %c0_29 = arith.constant 0 : index
    %32 = vector.load %arg21[%c10, %c0_29] : memref<122x64xbf16, #tpu.memory_space<vmem>>, vector<100x64xbf16>
    %c3 = arith.constant 3 : index
    %c0_30 = arith.constant 0 : index
    %c0_31 = arith.constant 0 : index
    %33 = vector.load %arg2[%c3, %c0_30, %c0_31] : memref<9x100x1xbf16, #tpu.memory_space<vmem>>, vector<1x100x1xbf16>
    %34 = vector.shape_cast %33 : vector<1x100x1xbf16> to vector<100x1xbf16>
    %35 = vector.broadcast %34 : vector<100x1xbf16> to vector<100x64xbf16>
    %36 = arith.mulf %32, %35 : vector<100x64xbf16>
    %c11_32 = arith.constant 11 : index
    %c0_33 = arith.constant 0 : index
    %37 = vector.load %arg21[%c11_32, %c0_33] : memref<122x64xbf16, #tpu.memory_space<vmem>>, vector<100x64xbf16>
    %c4 = arith.constant 4 : index
    %c0_34 = arith.constant 0 : index
    %c0_35 = arith.constant 0 : index
    %38 = vector.load %arg2[%c4, %c0_34, %c0_35] : memref<9x100x1xbf16, #tpu.memory_space<vmem>>, vector<1x100x1xbf16>
    %39 = vector.shape_cast %38 : vector<1x100x1xbf16> to vector<100x1xbf16>
    %40 = vector.broadcast %39 : vector<100x1xbf16> to vector<100x64xbf16>
    %41 = arith.mulf %37, %40 : vector<100x64xbf16>
    %c12 = arith.constant 12 : index
    %c0_36 = arith.constant 0 : index
    %42 = vector.load %arg21[%c12, %c0_36] : memref<122x64xbf16, #tpu.memory_space<vmem>>, vector<100x64xbf16>
    %c5 = arith.constant 5 : index
    %c0_37 = arith.constant 0 : index
    %c0_38 = arith.constant 0 : index
    %43 = vector.load %arg2[%c5, %c0_37, %c0_38] : memref<9x100x1xbf16, #tpu.memory_space<vmem>>, vector<1x100x1xbf16>
    %44 = vector.shape_cast %43 : vector<1x100x1xbf16> to vector<100x1xbf16>
    %45 = vector.broadcast %44 : vector<100x1xbf16> to vector<100x64xbf16>
    %46 = arith.mulf %42, %45 : vector<100x64xbf16>
    %c20 = arith.constant 20 : index
    %c0_39 = arith.constant 0 : index
    %47 = vector.load %arg21[%c20, %c0_39] : memref<122x64xbf16, #tpu.memory_space<vmem>>, vector<100x64xbf16>
    %c6 = arith.constant 6 : index
    %c0_40 = arith.constant 0 : index
    %c0_41 = arith.constant 0 : index
    %48 = vector.load %arg2[%c6, %c0_40, %c0_41] : memref<9x100x1xbf16, #tpu.memory_space<vmem>>, vector<1x100x1xbf16>
    %49 = vector.shape_cast %48 : vector<1x100x1xbf16> to vector<100x1xbf16>
    %50 = vector.broadcast %49 : vector<100x1xbf16> to vector<100x64xbf16>
    %51 = arith.mulf %47, %50 : vector<100x64xbf16>
    %c21_42 = arith.constant 21 : index
    %c0_43 = arith.constant 0 : index
    %52 = vector.load %arg21[%c21_42, %c0_43] : memref<122x64xbf16, #tpu.memory_space<vmem>>, vector<100x64xbf16>
    %c7 = arith.constant 7 : index
    %c0_44 = arith.constant 0 : index
    %c0_45 = arith.constant 0 : index
    %53 = vector.load %arg2[%c7, %c0_44, %c0_45] : memref<9x100x1xbf16, #tpu.memory_space<vmem>>, vector<1x100x1xbf16>
    %54 = vector.shape_cast %53 : vector<1x100x1xbf16> to vector<100x1xbf16>
    %55 = vector.broadcast %54 : vector<100x1xbf16> to vector<100x64xbf16>
    %56 = arith.mulf %52, %55 : vector<100x64xbf16>
    %c22 = arith.constant 22 : index
    %c0_46 = arith.constant 0 : index
    %57 = vector.load %arg21[%c22, %c0_46] : memref<122x64xbf16, #tpu.memory_space<vmem>>, vector<100x64xbf16>
    %c8 = arith.constant 8 : index
    %c0_47 = arith.constant 0 : index
    %c0_48 = arith.constant 0 : index
    %58 = vector.load %arg2[%c8, %c0_47, %c0_48] : memref<9x100x1xbf16, #tpu.memory_space<vmem>>, vector<1x100x1xbf16>
    %59 = vector.shape_cast %58 : vector<1x100x1xbf16> to vector<100x1xbf16>
    %60 = vector.broadcast %59 : vector<100x1xbf16> to vector<100x64xbf16>
    %61 = arith.mulf %57, %60 : vector<100x64xbf16>
    %62 = tpu.concatenate %21, %26, %31, %36, %41, %46, %51, %56, %61 in 1 : vector<100x64xbf16>, vector<100x64xbf16>, vector<100x64xbf16>, vector<100x64xbf16>, vector<100x64xbf16>, vector<100x64xbf16>, vector<100x64xbf16>, vector<100x64xbf16>, vector<100x64xbf16> -> vector<100x576xbf16>
    %c0_49 = arith.constant 0 : index
    %c0_50 = arith.constant 0 : index
    %63 = vector.load %arg5[%c0_49, %c0_50] : memref<576x64xbf16, #tpu.memory_space<vmem>>, vector<576x64xbf16>
    %cst_51 = arith.constant dense<0.000000e+00> : vector<100x64xf32>
    %64 = tpu.matmul %62, %63, %cst_51 {dimension_numbers = #tpu.dot_dimension_numbers<[1], [0], [0], [1], [0, 0, 1, 1], [], []>} : vector<100x576xbf16>, vector<576x64xbf16>, vector<100x64xf32> -> vector<100x64xf32>
    %c0_52 = arith.constant 0 : index
    %c0_53 = arith.constant 0 : index
    %65 = vector.load %arg6[%c0_52, %c0_53] : memref<1x64xf32, #tpu.memory_space<vmem>>, vector<1x64xf32>
    %66 = vector.broadcast %65 : vector<1x64xf32> to vector<100x64xf32>
    %67 = arith.addf %64, %66 : vector<100x64xf32>
    %cst_54 = arith.constant 0.000000e+00 : f32
    %68 = vector.broadcast %cst_54 : f32 to vector<100x64xf32>
    %69 = arith.maximumf %67, %68 : vector<100x64xf32>
    %70 = arith.truncf %69 : vector<100x64xf32> to vector<100x64xbf16>
    %c11_55 = arith.constant 11 : index
    %c0_56 = arith.constant 0 : index
    %71 = vector.load %arg21[%c11_55, %c0_56] : memref<122x64xbf16, #tpu.memory_space<vmem>>, vector<100x64xbf16>
    tpu.vector_store %arg21[%c11_55, %c0_56], %70 {strides = array<i32>} : memref<122x64xbf16, #tpu.memory_space<vmem>>, vector<100x64xbf16>,
    %c0_57 = arith.constant 0 : index
    %c0_58 = arith.constant 0 : index
    %72 = vector.load %arg21[%c0_57, %c0_58] : memref<122x64xbf16, #tpu.memory_space<vmem>>, vector<100x64xbf16>
    %c0_59 = arith.constant 0 : index
    %c0_60 = arith.constant 0 : index
    %c0_61 = arith.constant 0 : index
    %73 = vector.load %arg2[%c0_59, %c0_60, %c0_61] : memref<9x100x1xbf16, #tpu.memory_space<vmem>>, vector<1x100x1xbf16>
    %74 = vector.shape_cast %73 : vector<1x100x1xbf16> to vector<100x1xbf16>
    %75 = vector.broadcast %74 : vector<100x1xbf16> to vector<100x64xbf16>
    %76 = arith.mulf %72, %75 : vector<100x64xbf16>
    %c1_62 = arith.constant 1 : index
    %c0_63 = arith.constant 0 : index
    %77 = vector.load %arg21[%c1_62, %c0_63] : memref<122x64xbf16, #tpu.memory_space<vmem>>, vector<100x64xbf16>
    %c1_64 = arith.constant 1 : index
    %c0_65 = arith.constant 0 : index
    %c0_66 = arith.constant 0 : index
    %78 = vector.load %arg2[%c1_64, %c0_65, %c0_66] : memref<9x100x1xbf16, #tpu.memory_space<vmem>>, vector<1x100x1xbf16>
    %79 = vector.shape_cast %78 : vector<1x100x1xbf16> to vector<100x1xbf16>
    %80 = vector.broadcast %79 : vector<100x1xbf16> to vector<100x64xbf16>
    %81 = arith.mulf %77, %80 : vector<100x64xbf16>
    %c2_67 = arith.constant 2 : index
    %c0_68 = arith.constant 0 : index
    %82 = vector.load %arg21[%c2_67, %c0_68] : memref<122x64xbf16, #tpu.memory_space<vmem>>, vector<100x64xbf16>
    %c2_69 = arith.constant 2 : index
    %c0_70 = arith.constant 0 : index
    %c0_71 = arith.constant 0 : index
    %83 = vector.load %arg2[%c2_69, %c0_70, %c0_71] : memref<9x100x1xbf16, #tpu.memory_space<vmem>>, vector<1x100x1xbf16>
    %84 = vector.shape_cast %83 : vector<1x100x1xbf16> to vector<100x1xbf16>
    %85 = vector.broadcast %84 : vector<100x1xbf16> to vector<100x64xbf16>
    %86 = arith.mulf %82, %85 : vector<100x64xbf16>
    %c10_72 = arith.constant 10 : index
    %c0_73 = arith.constant 0 : index
    %87 = vector.load %arg21[%c10_72, %c0_73] : memref<122x64xbf16, #tpu.memory_space<vmem>>, vector<100x64xbf16>
    %c3_74 = arith.constant 3 : index
    %c0_75 = arith.constant 0 : index
    %c0_76 = arith.constant 0 : index
    %88 = vector.load %arg2[%c3_74, %c0_75, %c0_76] : memref<9x100x1xbf16, #tpu.memory_space<vmem>>, vector<1x100x1xbf16>
    %89 = vector.shape_cast %88 : vector<1x100x1xbf16> to vector<100x1xbf16>
    %90 = vector.broadcast %89 : vector<100x1xbf16> to vector<100x64xbf16>
    %91 = arith.mulf %87, %90 : vector<100x64xbf16>
    %c11_77 = arith.constant 11 : index
    %c0_78 = arith.constant 0 : index
    %92 = vector.load %arg21[%c11_77, %c0_78] : memref<122x64xbf16, #tpu.memory_space<vmem>>, vector<100x64xbf16>
    %c4_79 = arith.constant 4 : index
    %c0_80 = arith.constant 0 : index
    %c0_81 = arith.constant 0 : index
    %93 = vector.load %arg2[%c4_79, %c0_80, %c0_81] : memref<9x100x1xbf16, #tpu.memory_space<vmem>>, vector<1x100x1xbf16>
    %94 = vector.shape_cast %93 : vector<1x100x1xbf16> to vector<100x1xbf16>
    %95 = vector.broadcast %94 : vector<100x1xbf16> to vector<100x64xbf16>
    %96 = arith.mulf %92, %95 : vector<100x64xbf16>
    %c12_82 = arith.constant 12 : index
    %c0_83 = arith.constant 0 : index
    %97 = vector.load %arg21[%c12_82, %c0_83] : memref<122x64xbf16, #tpu.memory_space<vmem>>, vector<100x64xbf16>
    %c5_84 = arith.constant 5 : index
    %c0_85 = arith.constant 0 : index
    %c0_86 = arith.constant 0 : index
    %98 = vector.load %arg2[%c5_84, %c0_85, %c0_86] : memref<9x100x1xbf16, #tpu.memory_space<vmem>>, vector<1x100x1xbf16>
    %99 = vector.shape_cast %98 : vector<1x100x1xbf16> to vector<100x1xbf16>
    %100 = vector.broadcast %99 : vector<100x1xbf16> to vector<100x64xbf16>
    %101 = arith.mulf %97, %100 : vector<100x64xbf16>
    %c20_87 = arith.constant 20 : index
    %c0_88 = arith.constant 0 : index
    %102 = vector.load %arg21[%c20_87, %c0_88] : memref<122x64xbf16, #tpu.memory_space<vmem>>, vector<100x64xbf16>
    %c6_89 = arith.constant 6 : index
    %c0_90 = arith.constant 0 : index
    %c0_91 = arith.constant 0 : index
    %103 = vector.load %arg2[%c6_89, %c0_90, %c0_91] : memref<9x100x1xbf16, #tpu.memory_space<vmem>>, vector<1x100x1xbf16>
    %104 = vector.shape_cast %103 : vector<1x100x1xbf16> to vector<100x1xbf16>
    %105 = vector.broadcast %104 : vector<100x1xbf16> to vector<100x64xbf16>
    %106 = arith.mulf %102, %105 : vector<100x64xbf16>
    %c21_92 = arith.constant 21 : index
    %c0_93 = arith.constant 0 : index
    %107 = vector.load %arg21[%c21_92, %c0_93] : memref<122x64xbf16, #tpu.memory_space<vmem>>, vector<100x64xbf16>
    %c7_94 = arith.constant 7 : index
    %c0_95 = arith.constant 0 : index
    %c0_96 = arith.constant 0 : index
    %108 = vector.load %arg2[%c7_94, %c0_95, %c0_96] : memref<9x100x1xbf16, #tpu.memory_space<vmem>>, vector<1x100x1xbf16>
    %109 = vector.shape_cast %108 : vector<1x100x1xbf16> to vector<100x1xbf16>
    %110 = vector.broadcast %109 : vector<100x1xbf16> to vector<100x64xbf16>
    %111 = arith.mulf %107, %110 : vector<100x64xbf16>
    %c22_97 = arith.constant 22 : index
    %c0_98 = arith.constant 0 : index
    %112 = vector.load %arg21[%c22_97, %c0_98] : memref<122x64xbf16, #tpu.memory_space<vmem>>, vector<100x64xbf16>
    %c8_99 = arith.constant 8 : index
    %c0_100 = arith.constant 0 : index
    %c0_101 = arith.constant 0 : index
    %113 = vector.load %arg2[%c8_99, %c0_100, %c0_101] : memref<9x100x1xbf16, #tpu.memory_space<vmem>>, vector<1x100x1xbf16>
    %114 = vector.shape_cast %113 : vector<1x100x1xbf16> to vector<100x1xbf16>
    %115 = vector.broadcast %114 : vector<100x1xbf16> to vector<100x64xbf16>
    %116 = arith.mulf %112, %115 : vector<100x64xbf16>
    %117 = tpu.concatenate %76, %81, %86, %91, %96, %101, %106, %111, %116 in 1 : vector<100x64xbf16>, vector<100x64xbf16>, vector<100x64xbf16>, vector<100x64xbf16>, vector<100x64xbf16>, vector<100x64xbf16>, vector<100x64xbf16>, vector<100x64xbf16>, vector<100x64xbf16> -> vector<100x576xbf16>
    %c0_102 = arith.constant 0 : index
    %c0_103 = arith.constant 0 : index
    %118 = vector.load %arg7[%c0_102, %c0_103] : memref<576x64xbf16, #tpu.memory_space<vmem>>, vector<576x64xbf16>
    %cst_104 = arith.constant dense<0.000000e+00> : vector<100x64xf32>
    %119 = tpu.matmul %117, %118, %cst_104 {dimension_numbers = #tpu.dot_dimension_numbers<[1], [0], [0], [1], [0, 0, 1, 1], [], []>} : vector<100x576xbf16>, vector<576x64xbf16>, vector<100x64xf32> -> vector<100x64xf32>
    %c0_105 = arith.constant 0 : index
    %c0_106 = arith.constant 0 : index
    %120 = vector.load %arg8[%c0_105, %c0_106] : memref<1x64xf32, #tpu.memory_space<vmem>>, vector<1x64xf32>
    %121 = vector.broadcast %120 : vector<1x64xf32> to vector<100x64xf32>
    %122 = arith.addf %119, %121 : vector<100x64xf32>
    %cst_107 = arith.constant 0.000000e+00 : f32
    %123 = vector.broadcast %cst_107 : f32 to vector<100x64xf32>
    %124 = arith.maximumf %122, %123 : vector<100x64xf32>
    %125 = arith.addf %124, %69 : vector<100x64xf32>
    %c0_108 = arith.constant 0 : index
    %c0_109 = arith.constant 0 : index
    %126 = vector.load %arg9[%c0_108, %c0_109] : memref<16x64xbf16, #tpu.memory_space<vmem>>, vector<16x64xbf16>
    %127 = tpu.transpose %125, [1, 0] : vector<100x64xf32> -> vector<64x100xf32>
    %128 = arith.truncf %127 : vector<64x100xf32> to vector<64x100xbf16>
    %cst_110 = arith.constant dense<0.000000e+00> : vector<16x100xf32>
    %129 = tpu.matmul %126, %128, %cst_110 {dimension_numbers = #tpu.dot_dimension_numbers<[1], [0], [0], [1], [0, 0, 1, 1], [], []>} : vector<16x64xbf16>, vector<64x100xbf16>, vector<16x100xf32> -> vector<16x100xf32>
    %c0_111 = arith.constant 0 : index
    %c0_112 = arith.constant 0 : index
    %130 = vector.load %arg10[%c0_111, %c0_112] : memref<1x1xf32, #tpu.memory_space<vmem>>, vector<1x1xf32>
    %131 = vector.broadcast %130 : vector<1x1xf32> to vector<16x100xf32>
    %132 = arith.addf %129, %131 : vector<16x100xf32>
    %c0_113 = arith.constant 0 : index
    %c0_114 = arith.constant 0 : index
    %c0_115 = arith.constant 0 : index
    %133 = vector.load %arg19[%c0_113, %c0_114, %c0_115] : memref<1x16x100xf32, #tpu.memory_space<vmem>>, vector<1x16x100xf32>
    %134 = vector.shape_cast %133 : vector<1x16x100xf32> to vector<16x100xf32>
    %135 = vector.shape_cast %132 : vector<16x100xf32> to vector<1x16x100xf32>
    tpu.vector_store %arg19[%c0_113, %c0_114, %c0_115], %135 {strides = array<i32>} : memref<1x16x100xf32, #tpu.memory_space<vmem>>, vector<1x16x100xf32>,
    %136 = arith.truncf %125 : vector<100x64xf32> to vector<100x64xbf16>
    %c11_116 = arith.constant 11 : index
    %c0_117 = arith.constant 0 : index
    %137 = vector.load %arg21[%c11_116, %c0_117] : memref<122x64xbf16, #tpu.memory_space<vmem>>, vector<100x64xbf16>
    tpu.vector_store %arg21[%c11_116, %c0_117], %136 {strides = array<i32>} : memref<122x64xbf16, #tpu.memory_space<vmem>>, vector<100x64xbf16>,
    %c0_118 = arith.constant 0 : index
    %c0_119 = arith.constant 0 : index
    %138 = vector.load %arg21[%c0_118, %c0_119] : memref<122x64xbf16, #tpu.memory_space<vmem>>, vector<100x64xbf16>
    %c1_120 = arith.constant 1 : index
    %c0_121 = arith.constant 0 : index
    %139 = vector.load %arg21[%c1_120, %c0_121] : memref<122x64xbf16, #tpu.memory_space<vmem>>, vector<100x64xbf16>
    %c2_122 = arith.constant 2 : index
    %c0_123 = arith.constant 0 : index
    %140 = vector.load %arg21[%c2_122, %c0_123] : memref<122x64xbf16, #tpu.memory_space<vmem>>, vector<100x64xbf16>
    %c10_124 = arith.constant 10 : index
    %c0_125 = arith.constant 0 : index
    %141 = vector.load %arg21[%c10_124, %c0_125] : memref<122x64xbf16, #tpu.memory_space<vmem>>, vector<100x64xbf16>
    %c11_126 = arith.constant 11 : index
    %c0_127 = arith.constant 0 : index
    %142 = vector.load %arg21[%c11_126, %c0_127] : memref<122x64xbf16, #tpu.memory_space<vmem>>, vector<100x64xbf16>
    %c12_128 = arith.constant 12 : index
    %c0_129 = arith.constant 0 : index
    %143 = vector.load %arg21[%c12_128, %c0_129] : memref<122x64xbf16, #tpu.memory_space<vmem>>, vector<100x64xbf16>
    %c20_130 = arith.constant 20 : index
    %c0_131 = arith.constant 0 : index
    %144 = vector.load %arg21[%c20_130, %c0_131] : memref<122x64xbf16, #tpu.memory_space<vmem>>, vector<100x64xbf16>
    %c21_132 = arith.constant 21 : index
    %c0_133 = arith.constant 0 : index
    %145 = vector.load %arg21[%c21_132, %c0_133] : memref<122x64xbf16, #tpu.memory_space<vmem>>, vector<100x64xbf16>
    %c22_134 = arith.constant 22 : index
    %c0_135 = arith.constant 0 : index
    %146 = vector.load %arg21[%c22_134, %c0_135] : memref<122x64xbf16, #tpu.memory_space<vmem>>, vector<100x64xbf16>
    %147 = tpu.concatenate %138, %139, %140, %141, %142, %143, %144, %145, %146 in 1 : vector<100x64xbf16>, vector<100x64xbf16>, vector<100x64xbf16>, vector<100x64xbf16>, vector<100x64xbf16>, vector<100x64xbf16>, vector<100x64xbf16>, vector<100x64xbf16>, vector<100x64xbf16> -> vector<100x576xbf16>
    %c0_136 = arith.constant 0 : index
    %c0_137 = arith.constant 0 : index
    %148 = vector.load %arg11[%c0_136, %c0_137] : memref<576x64xbf16, #tpu.memory_space<vmem>>, vector<576x64xbf16>
    %cst_138 = arith.constant dense<0.000000e+00> : vector<100x64xf32>
    %149 = tpu.matmul %147, %148, %cst_138 {dimension_numbers = #tpu.dot_dimension_numbers<[1], [0], [0], [1], [0, 0, 1, 1], [], []>} : vector<100x576xbf16>, vector<576x64xbf16>, vector<100x64xf32> -> vector<100x64xf32>
    %c0_139 = arith.constant 0 : index
    %c0_140 = arith.constant 0 : index
    %150 = vector.load %arg12[%c0_139, %c0_140] : memref<1x64xf32, #tpu.memory_space<vmem>>, vector<1x64xf32>
    %151 = vector.broadcast %150 : vector<1x64xf32> to vector<100x64xf32>
    %152 = arith.addf %149, %151 : vector<100x64xf32>
    %c0_141 = arith.constant 0 : index
    %c0_142 = arith.constant 0 : index
    %153 = vector.load %arg23[%c0_141, %c0_142] : memref<100x64xf32, #tpu.memory_space<vmem>>, vector<100x64xf32>
    tpu.vector_store %arg23[%c0_141, %c0_142], %152 {strides = array<i32>} : memref<100x64xf32, #tpu.memory_space<vmem>>, vector<100x64xf32>,
    %c11_143 = arith.constant 11 : index
    %c0_144 = arith.constant 0 : index
    %154 = vector.load %arg23[%c11_143, %c0_144] : memref<100x64xf32, #tpu.memory_space<vmem>>, vector<1x64xf32>
    %c12_145 = arith.constant 12 : index
    %c0_146 = arith.constant 0 : index
    %155 = vector.load %arg23[%c12_145, %c0_146] : memref<100x64xf32, #tpu.memory_space<vmem>>, vector<1x64xf32>
    %c21_147 = arith.constant 21 : index
    %c0_148 = arith.constant 0 : index
    %156 = vector.load %arg23[%c21_147, %c0_148] : memref<100x64xf32, #tpu.memory_space<vmem>>, vector<1x64xf32>
    %c22_149 = arith.constant 22 : index
    %c0_150 = arith.constant 0 : index
    %157 = vector.load %arg23[%c22_149, %c0_150] : memref<100x64xf32, #tpu.memory_space<vmem>>, vector<1x64xf32>
    %158 = arith.maximumf %154, %155 : vector<1x64xf32>
    %159 = arith.maximumf %156, %157 : vector<1x64xf32>
    %160 = arith.maximumf %158, %159 : vector<1x64xf32>
    %cst_151 = arith.constant 0.000000e+00 : f32
    %161 = vector.broadcast %cst_151 : f32 to vector<1x64xf32>
    %162 = arith.maximumf %160, %161 : vector<1x64xf32>
    %c13 = arith.constant 13 : index
    %c0_152 = arith.constant 0 : index
    %163 = vector.load %arg23[%c13, %c0_152] : memref<100x64xf32, #tpu.memory_space<vmem>>, vector<1x64xf32>
    %c14 = arith.constant 14 : index
    %c0_153 = arith.constant 0 : index
    %164 = vector.load %arg23[%c14, %c0_153] : memref<100x64xf32, #tpu.memory_space<vmem>>, vector<1x64xf32>
    %c23 = arith.constant 23 : index
    %c0_154 = arith.constant 0 : index
    %165 = vector.load %arg23[%c23, %c0_154] : memref<100x64xf32, #tpu.memory_space<vmem>>, vector<1x64xf32>
    %c24 = arith.constant 24 : index
    %c0_155 = arith.constant 0 : index
    %166 = vector.load %arg23[%c24, %c0_155] : memref<100x64xf32, #tpu.memory_space<vmem>>, vector<1x64xf32>
    %167 = arith.maximumf %163, %164 : vector<1x64xf32>
    %168 = arith.maximumf %165, %166 : vector<1x64xf32>
    %169 = arith.maximumf %167, %168 : vector<1x64xf32>
    %cst_156 = arith.constant 0.000000e+00 : f32
    %170 = vector.broadcast %cst_156 : f32 to vector<1x64xf32>
    %171 = arith.maximumf %169, %170 : vector<1x64xf32>
    %c15 = arith.constant 15 : index
    %c0_157 = arith.constant 0 : index
    %172 = vector.load %arg23[%c15, %c0_157] : memref<100x64xf32, #tpu.memory_space<vmem>>, vector<1x64xf32>
    %c16 = arith.constant 16 : index
    %c0_158 = arith.constant 0 : index
    %173 = vector.load %arg23[%c16, %c0_158] : memref<100x64xf32, #tpu.memory_space<vmem>>, vector<1x64xf32>
    %c25 = arith.constant 25 : index
    %c0_159 = arith.constant 0 : index
    %174 = vector.load %arg23[%c25, %c0_159] : memref<100x64xf32, #tpu.memory_space<vmem>>, vector<1x64xf32>
    %c26 = arith.constant 26 : index
    %c0_160 = arith.constant 0 : index
    %175 = vector.load %arg23[%c26, %c0_160] : memref<100x64xf32, #tpu.memory_space<vmem>>, vector<1x64xf32>
    %176 = arith.maximumf %172, %173 : vector<1x64xf32>
    %177 = arith.maximumf %174, %175 : vector<1x64xf32>
    %178 = arith.maximumf %176, %177 : vector<1x64xf32>
    %cst_161 = arith.constant 0.000000e+00 : f32
    %179 = vector.broadcast %cst_161 : f32 to vector<1x64xf32>
    %180 = arith.maximumf %178, %179 : vector<1x64xf32>
    %c17 = arith.constant 17 : index
    %c0_162 = arith.constant 0 : index
    %181 = vector.load %arg23[%c17, %c0_162] : memref<100x64xf32, #tpu.memory_space<vmem>>, vector<1x64xf32>
    %c18 = arith.constant 18 : index
    %c0_163 = arith.constant 0 : index
    %182 = vector.load %arg23[%c18, %c0_163] : memref<100x64xf32, #tpu.memory_space<vmem>>, vector<1x64xf32>
    %c27 = arith.constant 27 : index
    %c0_164 = arith.constant 0 : index
    %183 = vector.load %arg23[%c27, %c0_164] : memref<100x64xf32, #tpu.memory_space<vmem>>, vector<1x64xf32>
    %c28 = arith.constant 28 : index
    %c0_165 = arith.constant 0 : index
    %184 = vector.load %arg23[%c28, %c0_165] : memref<100x64xf32, #tpu.memory_space<vmem>>, vector<1x64xf32>
    %185 = arith.maximumf %181, %182 : vector<1x64xf32>
    %186 = arith.maximumf %183, %184 : vector<1x64xf32>
    %187 = arith.maximumf %185, %186 : vector<1x64xf32>
    %cst_166 = arith.constant 0.000000e+00 : f32
    %188 = vector.broadcast %cst_166 : f32 to vector<1x64xf32>
    %189 = arith.maximumf %187, %188 : vector<1x64xf32>
    %c31 = arith.constant 31 : index
    %c0_167 = arith.constant 0 : index
    %190 = vector.load %arg23[%c31, %c0_167] : memref<100x64xf32, #tpu.memory_space<vmem>>, vector<1x64xf32>
    %c32 = arith.constant 32 : index
    %c0_168 = arith.constant 0 : index
    %191 = vector.load %arg23[%c32, %c0_168] : memref<100x64xf32, #tpu.memory_space<vmem>>, vector<1x64xf32>
    %c41 = arith.constant 41 : index
    %c0_169 = arith.constant 0 : index
    %192 = vector.load %arg23[%c41, %c0_169] : memref<100x64xf32, #tpu.memory_space<vmem>>, vector<1x64xf32>
    %c42 = arith.constant 42 : index
    %c0_170 = arith.constant 0 : index
    %193 = vector.load %arg23[%c42, %c0_170] : memref<100x64xf32, #tpu.memory_space<vmem>>, vector<1x64xf32>
    %194 = arith.maximumf %190, %191 : vector<1x64xf32>
    %195 = arith.maximumf %192, %193 : vector<1x64xf32>
    %196 = arith.maximumf %194, %195 : vector<1x64xf32>
    %cst_171 = arith.constant 0.000000e+00 : f32
    %197 = vector.broadcast %cst_171 : f32 to vector<1x64xf32>
    %198 = arith.maximumf %196, %197 : vector<1x64xf32>
    %c33 = arith.constant 33 : index
    %c0_172 = arith.constant 0 : index
    %199 = vector.load %arg23[%c33, %c0_172] : memref<100x64xf32, #tpu.memory_space<vmem>>, vector<1x64xf32>
    %c34 = arith.constant 34 : index
    %c0_173 = arith.constant 0 : index
    %200 = vector.load %arg23[%c34, %c0_173] : memref<100x64xf32, #tpu.memory_space<vmem>>, vector<1x64xf32>
    %c43 = arith.constant 43 : index
    %c0_174 = arith.constant 0 : index
    %201 = vector.load %arg23[%c43, %c0_174] : memref<100x64xf32, #tpu.memory_space<vmem>>, vector<1x64xf32>
    %c44 = arith.constant 44 : index
    %c0_175 = arith.constant 0 : index
    %202 = vector.load %arg23[%c44, %c0_175] : memref<100x64xf32, #tpu.memory_space<vmem>>, vector<1x64xf32>
    %203 = arith.maximumf %199, %200 : vector<1x64xf32>
    %204 = arith.maximumf %201, %202 : vector<1x64xf32>
    %205 = arith.maximumf %203, %204 : vector<1x64xf32>
    %cst_176 = arith.constant 0.000000e+00 : f32
    %206 = vector.broadcast %cst_176 : f32 to vector<1x64xf32>
    %207 = arith.maximumf %205, %206 : vector<1x64xf32>
    %c35 = arith.constant 35 : index
    %c0_177 = arith.constant 0 : index
    %208 = vector.load %arg23[%c35, %c0_177] : memref<100x64xf32, #tpu.memory_space<vmem>>, vector<1x64xf32>
    %c36 = arith.constant 36 : index
    %c0_178 = arith.constant 0 : index
    %209 = vector.load %arg23[%c36, %c0_178] : memref<100x64xf32, #tpu.memory_space<vmem>>, vector<1x64xf32>
    %c45 = arith.constant 45 : index
    %c0_179 = arith.constant 0 : index
    %210 = vector.load %arg23[%c45, %c0_179] : memref<100x64xf32, #tpu.memory_space<vmem>>, vector<1x64xf32>
    %c46 = arith.constant 46 : index
    %c0_180 = arith.constant 0 : index
    %211 = vector.load %arg23[%c46, %c0_180] : memref<100x64xf32, #tpu.memory_space<vmem>>, vector<1x64xf32>
    %212 = arith.maximumf %208, %209 : vector<1x64xf32>
    %213 = arith.maximumf %210, %211 : vector<1x64xf32>
    %214 = arith.maximumf %212, %213 : vector<1x64xf32>
    %cst_181 = arith.constant 0.000000e+00 : f32
    %215 = vector.broadcast %cst_181 : f32 to vector<1x64xf32>
    %216 = arith.maximumf %214, %215 : vector<1x64xf32>
    %c37 = arith.constant 37 : index
    %c0_182 = arith.constant 0 : index
    %217 = vector.load %arg23[%c37, %c0_182] : memref<100x64xf32, #tpu.memory_space<vmem>>, vector<1x64xf32>
    %c38 = arith.constant 38 : index
    %c0_183 = arith.constant 0 : index
    %218 = vector.load %arg23[%c38, %c0_183] : memref<100x64xf32, #tpu.memory_space<vmem>>, vector<1x64xf32>
    %c47 = arith.constant 47 : index
    %c0_184 = arith.constant 0 : index
    %219 = vector.load %arg23[%c47, %c0_184] : memref<100x64xf32, #tpu.memory_space<vmem>>, vector<1x64xf32>
    %c48 = arith.constant 48 : index
    %c0_185 = arith.constant 0 : index
    %220 = vector.load %arg23[%c48, %c0_185] : memref<100x64xf32, #tpu.memory_space<vmem>>, vector<1x64xf32>
    %221 = arith.maximumf %217, %218 : vector<1x64xf32>
    %222 = arith.maximumf %219, %220 : vector<1x64xf32>
    %223 = arith.maximumf %221, %222 : vector<1x64xf32>
    %cst_186 = arith.constant 0.000000e+00 : f32
    %224 = vector.broadcast %cst_186 : f32 to vector<1x64xf32>
    %225 = arith.maximumf %223, %224 : vector<1x64xf32>
    %c51 = arith.constant 51 : index
    %c0_187 = arith.constant 0 : index
    %226 = vector.load %arg23[%c51, %c0_187] : memref<100x64xf32, #tpu.memory_space<vmem>>, vector<1x64xf32>
    %c52 = arith.constant 52 : index
    %c0_188 = arith.constant 0 : index
    %227 = vector.load %arg23[%c52, %c0_188] : memref<100x64xf32, #tpu.memory_space<vmem>>, vector<1x64xf32>
    %c61 = arith.constant 61 : index
    %c0_189 = arith.constant 0 : index
    %228 = vector.load %arg23[%c61, %c0_189] : memref<100x64xf32, #tpu.memory_space<vmem>>, vector<1x64xf32>
    %c62 = arith.constant 62 : index
    %c0_190 = arith.constant 0 : index
    %229 = vector.load %arg23[%c62, %c0_190] : memref<100x64xf32, #tpu.memory_space<vmem>>, vector<1x64xf32>
    %230 = arith.maximumf %226, %227 : vector<1x64xf32>
    %231 = arith.maximumf %228, %229 : vector<1x64xf32>
    %232 = arith.maximumf %230, %231 : vector<1x64xf32>
    %cst_191 = arith.constant 0.000000e+00 : f32
    %233 = vector.broadcast %cst_191 : f32 to vector<1x64xf32>
    %234 = arith.maximumf %232, %233 : vector<1x64xf32>
    %c53 = arith.constant 53 : index
    %c0_192 = arith.constant 0 : index
    %235 = vector.load %arg23[%c53, %c0_192] : memref<100x64xf32, #tpu.memory_space<vmem>>, vector<1x64xf32>
    %c54 = arith.constant 54 : index
    %c0_193 = arith.constant 0 : index
    %236 = vector.load %arg23[%c54, %c0_193] : memref<100x64xf32, #tpu.memory_space<vmem>>, vector<1x64xf32>
    %c63 = arith.constant 63 : index
    %c0_194 = arith.constant 0 : index
    %237 = vector.load %arg23[%c63, %c0_194] : memref<100x64xf32, #tpu.memory_space<vmem>>, vector<1x64xf32>
    %c64 = arith.constant 64 : index
    %c0_195 = arith.constant 0 : index
    %238 = vector.load %arg23[%c64, %c0_195] : memref<100x64xf32, #tpu.memory_space<vmem>>, vector<1x64xf32>
    %239 = arith.maximumf %235, %236 : vector<1x64xf32>
    %240 = arith.maximumf %237, %238 : vector<1x64xf32>
    %241 = arith.maximumf %239, %240 : vector<1x64xf32>
    %cst_196 = arith.constant 0.000000e+00 : f32
    %242 = vector.broadcast %cst_196 : f32 to vector<1x64xf32>
    %243 = arith.maximumf %241, %242 : vector<1x64xf32>
    %c55 = arith.constant 55 : index
    %c0_197 = arith.constant 0 : index
    %244 = vector.load %arg23[%c55, %c0_197] : memref<100x64xf32, #tpu.memory_space<vmem>>, vector<1x64xf32>
    %c56 = arith.constant 56 : index
    %c0_198 = arith.constant 0 : index
    %245 = vector.load %arg23[%c56, %c0_198] : memref<100x64xf32, #tpu.memory_space<vmem>>, vector<1x64xf32>
    %c65 = arith.constant 65 : index
    %c0_199 = arith.constant 0 : index
    %246 = vector.load %arg23[%c65, %c0_199] : memref<100x64xf32, #tpu.memory_space<vmem>>, vector<1x64xf32>
    %c66 = arith.constant 66 : index
    %c0_200 = arith.constant 0 : index
    %247 = vector.load %arg23[%c66, %c0_200] : memref<100x64xf32, #tpu.memory_space<vmem>>, vector<1x64xf32>
    %248 = arith.maximumf %244, %245 : vector<1x64xf32>
    %249 = arith.maximumf %246, %247 : vector<1x64xf32>
    %250 = arith.maximumf %248, %249 : vector<1x64xf32>
    %cst_201 = arith.constant 0.000000e+00 : f32
    %251 = vector.broadcast %cst_201 : f32 to vector<1x64xf32>
    %252 = arith.maximumf %250, %251 : vector<1x64xf32>
    %c57 = arith.constant 57 : index
    %c0_202 = arith.constant 0 : index
    %253 = vector.load %arg23[%c57, %c0_202] : memref<100x64xf32, #tpu.memory_space<vmem>>, vector<1x64xf32>
    %c58 = arith.constant 58 : index
    %c0_203 = arith.constant 0 : index
    %254 = vector.load %arg23[%c58, %c0_203] : memref<100x64xf32, #tpu.memory_space<vmem>>, vector<1x64xf32>
    %c67 = arith.constant 67 : index
    %c0_204 = arith.constant 0 : index
    %255 = vector.load %arg23[%c67, %c0_204] : memref<100x64xf32, #tpu.memory_space<vmem>>, vector<1x64xf32>
    %c68 = arith.constant 68 : index
    %c0_205 = arith.constant 0 : index
    %256 = vector.load %arg23[%c68, %c0_205] : memref<100x64xf32, #tpu.memory_space<vmem>>, vector<1x64xf32>
    %257 = arith.maximumf %253, %254 : vector<1x64xf32>
    %258 = arith.maximumf %255, %256 : vector<1x64xf32>
    %259 = arith.maximumf %257, %258 : vector<1x64xf32>
    %cst_206 = arith.constant 0.000000e+00 : f32
    %260 = vector.broadcast %cst_206 : f32 to vector<1x64xf32>
    %261 = arith.maximumf %259, %260 : vector<1x64xf32>
    %c71 = arith.constant 71 : index
    %c0_207 = arith.constant 0 : index
    %262 = vector.load %arg23[%c71, %c0_207] : memref<100x64xf32, #tpu.memory_space<vmem>>, vector<1x64xf32>
    %c72 = arith.constant 72 : index
    %c0_208 = arith.constant 0 : index
    %263 = vector.load %arg23[%c72, %c0_208] : memref<100x64xf32, #tpu.memory_space<vmem>>, vector<1x64xf32>
    %c81 = arith.constant 81 : index
    %c0_209 = arith.constant 0 : index
    %264 = vector.load %arg23[%c81, %c0_209] : memref<100x64xf32, #tpu.memory_space<vmem>>, vector<1x64xf32>
    %c82 = arith.constant 82 : index
    %c0_210 = arith.constant 0 : index
    %265 = vector.load %arg23[%c82, %c0_210] : memref<100x64xf32, #tpu.memory_space<vmem>>, vector<1x64xf32>
    %266 = arith.maximumf %262, %263 : vector<1x64xf32>
    %267 = arith.maximumf %264, %265 : vector<1x64xf32>
    %268 = arith.maximumf %266, %267 : vector<1x64xf32>
    %cst_211 = arith.constant 0.000000e+00 : f32
    %269 = vector.broadcast %cst_211 : f32 to vector<1x64xf32>
    %270 = arith.maximumf %268, %269 : vector<1x64xf32>
    %c73 = arith.constant 73 : index
    %c0_212 = arith.constant 0 : index
    %271 = vector.load %arg23[%c73, %c0_212] : memref<100x64xf32, #tpu.memory_space<vmem>>, vector<1x64xf32>
    %c74 = arith.constant 74 : index
    %c0_213 = arith.constant 0 : index
    %272 = vector.load %arg23[%c74, %c0_213] : memref<100x64xf32, #tpu.memory_space<vmem>>, vector<1x64xf32>
    %c83 = arith.constant 83 : index
    %c0_214 = arith.constant 0 : index
    %273 = vector.load %arg23[%c83, %c0_214] : memref<100x64xf32, #tpu.memory_space<vmem>>, vector<1x64xf32>
    %c84 = arith.constant 84 : index
    %c0_215 = arith.constant 0 : index
    %274 = vector.load %arg23[%c84, %c0_215] : memref<100x64xf32, #tpu.memory_space<vmem>>, vector<1x64xf32>
    %275 = arith.maximumf %271, %272 : vector<1x64xf32>
    %276 = arith.maximumf %273, %274 : vector<1x64xf32>
    %277 = arith.maximumf %275, %276 : vector<1x64xf32>
    %cst_216 = arith.constant 0.000000e+00 : f32
    %278 = vector.broadcast %cst_216 : f32 to vector<1x64xf32>
    %279 = arith.maximumf %277, %278 : vector<1x64xf32>
    %c75 = arith.constant 75 : index
    %c0_217 = arith.constant 0 : index
    %280 = vector.load %arg23[%c75, %c0_217] : memref<100x64xf32, #tpu.memory_space<vmem>>, vector<1x64xf32>
    %c76 = arith.constant 76 : index
    %c0_218 = arith.constant 0 : index
    %281 = vector.load %arg23[%c76, %c0_218] : memref<100x64xf32, #tpu.memory_space<vmem>>, vector<1x64xf32>
    %c85 = arith.constant 85 : index
    %c0_219 = arith.constant 0 : index
    %282 = vector.load %arg23[%c85, %c0_219] : memref<100x64xf32, #tpu.memory_space<vmem>>, vector<1x64xf32>
    %c86 = arith.constant 86 : index
    %c0_220 = arith.constant 0 : index
    %283 = vector.load %arg23[%c86, %c0_220] : memref<100x64xf32, #tpu.memory_space<vmem>>, vector<1x64xf32>
    %284 = arith.maximumf %280, %281 : vector<1x64xf32>
    %285 = arith.maximumf %282, %283 : vector<1x64xf32>
    %286 = arith.maximumf %284, %285 : vector<1x64xf32>
    %cst_221 = arith.constant 0.000000e+00 : f32
    %287 = vector.broadcast %cst_221 : f32 to vector<1x64xf32>
    %288 = arith.maximumf %286, %287 : vector<1x64xf32>
    %c77 = arith.constant 77 : index
    %c0_222 = arith.constant 0 : index
    %289 = vector.load %arg23[%c77, %c0_222] : memref<100x64xf32, #tpu.memory_space<vmem>>, vector<1x64xf32>
    %c78 = arith.constant 78 : index
    %c0_223 = arith.constant 0 : index
    %290 = vector.load %arg23[%c78, %c0_223] : memref<100x64xf32, #tpu.memory_space<vmem>>, vector<1x64xf32>
    %c87 = arith.constant 87 : index
    %c0_224 = arith.constant 0 : index
    %291 = vector.load %arg23[%c87, %c0_224] : memref<100x64xf32, #tpu.memory_space<vmem>>, vector<1x64xf32>
    %c88 = arith.constant 88 : index
    %c0_225 = arith.constant 0 : index
    %292 = vector.load %arg23[%c88, %c0_225] : memref<100x64xf32, #tpu.memory_space<vmem>>, vector<1x64xf32>
    %293 = arith.maximumf %289, %290 : vector<1x64xf32>
    %294 = arith.maximumf %291, %292 : vector<1x64xf32>
    %295 = arith.maximumf %293, %294 : vector<1x64xf32>
    %cst_226 = arith.constant 0.000000e+00 : f32
    %296 = vector.broadcast %cst_226 : f32 to vector<1x64xf32>
    %297 = arith.maximumf %295, %296 : vector<1x64xf32>
    %298 = arith.truncf %162 : vector<1x64xf32> to vector<1x64xbf16>
    %c5_227 = arith.constant 5 : index
    %c0_228 = arith.constant 0 : index
    %299 = vector.load %arg22[%c5_227, %c0_228] : memref<26x64xbf16, #tpu.memory_space<vmem>>, vector<1x64xbf16>
    tpu.vector_store %arg22[%c5_227, %c0_228], %298 {strides = array<i32>} : memref<26x64xbf16, #tpu.memory_space<vmem>>, vector<1x64xbf16>,
    %300 = arith.truncf %171 : vector<1x64xf32> to vector<1x64xbf16>
    %c6_229 = arith.constant 6 : index
    %c0_230 = arith.constant 0 : index
    %301 = vector.load %arg22[%c6_229, %c0_230] : memref<26x64xbf16, #tpu.memory_space<vmem>>, vector<1x64xbf16>
    tpu.vector_store %arg22[%c6_229, %c0_230], %300 {strides = array<i32>} : memref<26x64xbf16, #tpu.memory_space<vmem>>, vector<1x64xbf16>,
    %302 = arith.truncf %180 : vector<1x64xf32> to vector<1x64xbf16>
    %c7_231 = arith.constant 7 : index
    %c0_232 = arith.constant 0 : index
    %303 = vector.load %arg22[%c7_231, %c0_232] : memref<26x64xbf16, #tpu.memory_space<vmem>>, vector<1x64xbf16>
    tpu.vector_store %arg22[%c7_231, %c0_232], %302 {strides = array<i32>} : memref<26x64xbf16, #tpu.memory_space<vmem>>, vector<1x64xbf16>,
    %304 = arith.truncf %189 : vector<1x64xf32> to vector<1x64xbf16>
    %c8_233 = arith.constant 8 : index
    %c0_234 = arith.constant 0 : index
    %305 = vector.load %arg22[%c8_233, %c0_234] : memref<26x64xbf16, #tpu.memory_space<vmem>>, vector<1x64xbf16>
    tpu.vector_store %arg22[%c8_233, %c0_234], %304 {strides = array<i32>} : memref<26x64xbf16, #tpu.memory_space<vmem>>, vector<1x64xbf16>,
    %306 = arith.truncf %198 : vector<1x64xf32> to vector<1x64xbf16>
    %c9 = arith.constant 9 : index
    %c0_235 = arith.constant 0 : index
    %307 = vector.load %arg22[%c9, %c0_235] : memref<26x64xbf16, #tpu.memory_space<vmem>>, vector<1x64xbf16>
    tpu.vector_store %arg22[%c9, %c0_235], %306 {strides = array<i32>} : memref<26x64xbf16, #tpu.memory_space<vmem>>, vector<1x64xbf16>,
    %308 = arith.truncf %207 : vector<1x64xf32> to vector<1x64xbf16>
    %c10_236 = arith.constant 10 : index
    %c0_237 = arith.constant 0 : index
    %309 = vector.load %arg22[%c10_236, %c0_237] : memref<26x64xbf16, #tpu.memory_space<vmem>>, vector<1x64xbf16>
    tpu.vector_store %arg22[%c10_236, %c0_237], %308 {strides = array<i32>} : memref<26x64xbf16, #tpu.memory_space<vmem>>, vector<1x64xbf16>,
    %310 = arith.truncf %216 : vector<1x64xf32> to vector<1x64xbf16>
    %c11_238 = arith.constant 11 : index
    %c0_239 = arith.constant 0 : index
    %311 = vector.load %arg22[%c11_238, %c0_239] : memref<26x64xbf16, #tpu.memory_space<vmem>>, vector<1x64xbf16>
    tpu.vector_store %arg22[%c11_238, %c0_239], %310 {strides = array<i32>} : memref<26x64xbf16, #tpu.memory_space<vmem>>, vector<1x64xbf16>,
    %312 = arith.truncf %225 : vector<1x64xf32> to vector<1x64xbf16>
    %c12_240 = arith.constant 12 : index
    %c0_241 = arith.constant 0 : index
    %313 = vector.load %arg22[%c12_240, %c0_241] : memref<26x64xbf16, #tpu.memory_space<vmem>>, vector<1x64xbf16>
    tpu.vector_store %arg22[%c12_240, %c0_241], %312 {strides = array<i32>} : memref<26x64xbf16, #tpu.memory_space<vmem>>, vector<1x64xbf16>,
    %314 = arith.truncf %234 : vector<1x64xf32> to vector<1x64xbf16>
    %c13_242 = arith.constant 13 : index
    %c0_243 = arith.constant 0 : index
    %315 = vector.load %arg22[%c13_242, %c0_243] : memref<26x64xbf16, #tpu.memory_space<vmem>>, vector<1x64xbf16>
    tpu.vector_store %arg22[%c13_242, %c0_243], %314 {strides = array<i32>} : memref<26x64xbf16, #tpu.memory_space<vmem>>, vector<1x64xbf16>,
    %316 = arith.truncf %243 : vector<1x64xf32> to vector<1x64xbf16>
    %c14_244 = arith.constant 14 : index
    %c0_245 = arith.constant 0 : index
    %317 = vector.load %arg22[%c14_244, %c0_245] : memref<26x64xbf16, #tpu.memory_space<vmem>>, vector<1x64xbf16>
    tpu.vector_store %arg22[%c14_244, %c0_245], %316 {strides = array<i32>} : memref<26x64xbf16, #tpu.memory_space<vmem>>, vector<1x64xbf16>,
    %318 = arith.truncf %252 : vector<1x64xf32> to vector<1x64xbf16>
    %c15_246 = arith.constant 15 : index
    %c0_247 = arith.constant 0 : index
    %319 = vector.load %arg22[%c15_246, %c0_247] : memref<26x64xbf16, #tpu.memory_space<vmem>>, vector<1x64xbf16>
    tpu.vector_store %arg22[%c15_246, %c0_247], %318 {strides = array<i32>} : memref<26x64xbf16, #tpu.memory_space<vmem>>, vector<1x64xbf16>,
    %320 = arith.truncf %261 : vector<1x64xf32> to vector<1x64xbf16>
    %c16_248 = arith.constant 16 : index
    %c0_249 = arith.constant 0 : index
    %321 = vector.load %arg22[%c16_248, %c0_249] : memref<26x64xbf16, #tpu.memory_space<vmem>>, vector<1x64xbf16>
    tpu.vector_store %arg22[%c16_248, %c0_249], %320 {strides = array<i32>} : memref<26x64xbf16, #tpu.memory_space<vmem>>, vector<1x64xbf16>,
    %322 = arith.truncf %270 : vector<1x64xf32> to vector<1x64xbf16>
    %c17_250 = arith.constant 17 : index
    %c0_251 = arith.constant 0 : index
    %323 = vector.load %arg22[%c17_250, %c0_251] : memref<26x64xbf16, #tpu.memory_space<vmem>>, vector<1x64xbf16>
    tpu.vector_store %arg22[%c17_250, %c0_251], %322 {strides = array<i32>} : memref<26x64xbf16, #tpu.memory_space<vmem>>, vector<1x64xbf16>,
    %324 = arith.truncf %279 : vector<1x64xf32> to vector<1x64xbf16>
    %c18_252 = arith.constant 18 : index
    %c0_253 = arith.constant 0 : index
    %325 = vector.load %arg22[%c18_252, %c0_253] : memref<26x64xbf16, #tpu.memory_space<vmem>>, vector<1x64xbf16>
    tpu.vector_store %arg22[%c18_252, %c0_253], %324 {strides = array<i32>} : memref<26x64xbf16, #tpu.memory_space<vmem>>, vector<1x64xbf16>,
    %326 = arith.truncf %288 : vector<1x64xf32> to vector<1x64xbf16>
    %c19 = arith.constant 19 : index
    %c0_254 = arith.constant 0 : index
    %327 = vector.load %arg22[%c19, %c0_254] : memref<26x64xbf16, #tpu.memory_space<vmem>>, vector<1x64xbf16>
    tpu.vector_store %arg22[%c19, %c0_254], %326 {strides = array<i32>} : memref<26x64xbf16, #tpu.memory_space<vmem>>, vector<1x64xbf16>,
    %328 = arith.truncf %297 : vector<1x64xf32> to vector<1x64xbf16>
    %c20_255 = arith.constant 20 : index
    %c0_256 = arith.constant 0 : index
    %329 = vector.load %arg22[%c20_255, %c0_256] : memref<26x64xbf16, #tpu.memory_space<vmem>>, vector<1x64xbf16>
    tpu.vector_store %arg22[%c20_255, %c0_256], %328 {strides = array<i32>} : memref<26x64xbf16, #tpu.memory_space<vmem>>, vector<1x64xbf16>,
    %c0_257 = arith.constant 0 : index
    %c0_258 = arith.constant 0 : index
    %330 = vector.load %arg22[%c0_257, %c0_258] : memref<26x64xbf16, #tpu.memory_space<vmem>>, vector<16x64xbf16>
    %c1_259 = arith.constant 1 : index
    %c0_260 = arith.constant 0 : index
    %331 = vector.load %arg22[%c1_259, %c0_260] : memref<26x64xbf16, #tpu.memory_space<vmem>>, vector<16x64xbf16>
    %c2_261 = arith.constant 2 : index
    %c0_262 = arith.constant 0 : index
    %332 = vector.load %arg22[%c2_261, %c0_262] : memref<26x64xbf16, #tpu.memory_space<vmem>>, vector<16x64xbf16>
    %c4_263 = arith.constant 4 : index
    %c0_264 = arith.constant 0 : index
    %333 = vector.load %arg22[%c4_263, %c0_264] : memref<26x64xbf16, #tpu.memory_space<vmem>>, vector<16x64xbf16>
    %c5_265 = arith.constant 5 : index
    %c0_266 = arith.constant 0 : index
    %334 = vector.load %arg22[%c5_265, %c0_266] : memref<26x64xbf16, #tpu.memory_space<vmem>>, vector<16x64xbf16>
    %c6_267 = arith.constant 6 : index
    %c0_268 = arith.constant 0 : index
    %335 = vector.load %arg22[%c6_267, %c0_268] : memref<26x64xbf16, #tpu.memory_space<vmem>>, vector<16x64xbf16>
    %c8_269 = arith.constant 8 : index
    %c0_270 = arith.constant 0 : index
    %336 = vector.load %arg22[%c8_269, %c0_270] : memref<26x64xbf16, #tpu.memory_space<vmem>>, vector<16x64xbf16>
    %c9_271 = arith.constant 9 : index
    %c0_272 = arith.constant 0 : index
    %337 = vector.load %arg22[%c9_271, %c0_272] : memref<26x64xbf16, #tpu.memory_space<vmem>>, vector<16x64xbf16>
    %c10_273 = arith.constant 10 : index
    %c0_274 = arith.constant 0 : index
    %338 = vector.load %arg22[%c10_273, %c0_274] : memref<26x64xbf16, #tpu.memory_space<vmem>>, vector<16x64xbf16>
    %339 = tpu.concatenate %330, %331, %332, %333, %334, %335, %336, %337, %338 in 1 : vector<16x64xbf16>, vector<16x64xbf16>, vector<16x64xbf16>, vector<16x64xbf16>, vector<16x64xbf16>, vector<16x64xbf16>, vector<16x64xbf16>, vector<16x64xbf16>, vector<16x64xbf16> -> vector<16x576xbf16>
    %c0_275 = arith.constant 0 : index
    %c0_276 = arith.constant 0 : index
    %340 = vector.load %arg13[%c0_275, %c0_276] : memref<576x64xbf16, #tpu.memory_space<vmem>>, vector<576x64xbf16>
    %cst_277 = arith.constant dense<0.000000e+00> : vector<16x64xf32>
    %341 = tpu.matmul %339, %340, %cst_277 {dimension_numbers = #tpu.dot_dimension_numbers<[1], [0], [0], [1], [0, 0, 1, 1], [], []>} : vector<16x576xbf16>, vector<576x64xbf16>, vector<16x64xf32> -> vector<16x64xf32>
    %c0_278 = arith.constant 0 : index
    %c0_279 = arith.constant 0 : index
    %342 = vector.load %arg14[%c0_278, %c0_279] : memref<1x64xf32, #tpu.memory_space<vmem>>, vector<1x64xf32>
    %343 = vector.broadcast %342 : vector<1x64xf32> to vector<16x64xf32>
    %344 = arith.addf %341, %343 : vector<16x64xf32>
    %c0_280 = arith.constant 0 : index
    %c0_281 = arith.constant 0 : index
    %345 = vector.load %arg24[%c0_280, %c0_281] : memref<16x64xf32, #tpu.memory_space<vmem>>, vector<16x64xf32>
    tpu.vector_store %arg24[%c0_280, %c0_281], %344 {strides = array<i32>} : memref<16x64xf32, #tpu.memory_space<vmem>>, vector<16x64xf32>,
    %c5_282 = arith.constant 5 : index
    %c0_283 = arith.constant 0 : index
    %346 = vector.load %arg24[%c5_282, %c0_283] : memref<16x64xf32, #tpu.memory_space<vmem>>, vector<1x64xf32>
    %c6_284 = arith.constant 6 : index
    %c0_285 = arith.constant 0 : index
    %347 = vector.load %arg24[%c6_284, %c0_285] : memref<16x64xf32, #tpu.memory_space<vmem>>, vector<1x64xf32>
    %c9_286 = arith.constant 9 : index
    %c0_287 = arith.constant 0 : index
    %348 = vector.load %arg24[%c9_286, %c0_287] : memref<16x64xf32, #tpu.memory_space<vmem>>, vector<1x64xf32>
    %c10_288 = arith.constant 10 : index
    %c0_289 = arith.constant 0 : index
    %349 = vector.load %arg24[%c10_288, %c0_289] : memref<16x64xf32, #tpu.memory_space<vmem>>, vector<1x64xf32>
    %350 = arith.maximumf %346, %347 : vector<1x64xf32>
    %351 = arith.maximumf %348, %349 : vector<1x64xf32>
    %352 = arith.maximumf %350, %351 : vector<1x64xf32>
    %cst_290 = arith.constant 0.000000e+00 : f32
    %353 = vector.broadcast %cst_290 : f32 to vector<1x64xf32>
    %354 = arith.maximumf %352, %353 : vector<1x64xf32>
    %355 = arith.truncf %354 : vector<1x64xf32> to vector<1x64xbf16>
    %c0_291 = arith.constant 0 : index
    %c0_292 = arith.constant 0 : index
    %c0_293 = arith.constant 0 : index
    %356 = vector.load %arg15[%c0_291, %c0_292, %c0_293] : memref<1x64x128xbf16, #tpu.memory_space<vmem>>, vector<1x64x128xbf16>
    %357 = vector.shape_cast %356 : vector<1x64x128xbf16> to vector<64x128xbf16>
    %cst_294 = arith.constant dense<0.000000e+00> : vector<1x128xf32>
    %358 = tpu.matmul %355, %357, %cst_294 {dimension_numbers = #tpu.dot_dimension_numbers<[1], [0], [0], [1], [0, 0, 1, 1], [], []>} : vector<1x64xbf16>, vector<64x128xbf16>, vector<1x128xf32> -> vector<1x128xf32>
    %c0_295 = arith.constant 0 : index
    %c0_296 = arith.constant 0 : index
    %359 = vector.load %arg16[%c0_295, %c0_296] : memref<1x128xf32, #tpu.memory_space<vmem>>, vector<1x128xf32>
    %360 = arith.addf %358, %359 : vector<1x128xf32>
    %cst_297 = arith.constant 0.000000e+00 : f32
    %361 = vector.broadcast %cst_297 : f32 to vector<1x128xf32>
    %362 = arith.maximumf %360, %361 : vector<1x128xf32>
    %c0_298 = arith.constant 0 : index
    %c0_299 = arith.constant 0 : index
    %363 = vector.load %arg17[%c0_298, %c0_299] : memref<1x128xf32, #tpu.memory_space<vmem>>, vector<1x128xf32>
    %364 = arith.mulf %362, %363 : vector<1x128xf32>
    %cst_300 = arith.constant dense<0.000000e+00> : vector<1xf32>
    %365 = vector.multi_reduction <add>, %364, %cst_300 [1] : vector<1x128xf32> to vector<1xf32>
    %366 = vector.shape_cast %365 : vector<1xf32> to vector<1x1xf32>
    %c0_301 = arith.constant 0 : index
    %c0_302 = arith.constant 0 : index
    %367 = vector.load %arg18[%c0_301, %c0_302] : memref<1x1xf32, #tpu.memory_space<vmem>>, vector<1x1xf32>
    %368 = arith.addf %366, %367 : vector<1x1xf32>
    %c0_303 = arith.constant 0 : index
    %c0_304 = arith.constant 0 : index
    %c0_305 = arith.constant 0 : index
    %369 = vector.load %arg20[%c0_303, %c0_304, %c0_305] : memref<1x1x1xf32, #tpu.memory_space<vmem>>, vector<1x1x1xf32>
    %370 = vector.shape_cast %369 : vector<1x1x1xf32> to vector<1x1xf32>
    %371 = vector.shape_cast %368 : vector<1x1xf32> to vector<1x1x1xf32>
    tpu.vector_store %arg20[%c0_303, %c0_304, %c0_305], %371 {strides = array<i32>} : memref<1x1x1xf32, #tpu.memory_space<vmem>>, vector<1x1x1xf32>,
    return
  }
  func.func @transform_0(%arg0: i32) -> (i32, i32, i32) {
    %c0_i32 = arith.constant 0 : i32
    %c0_i32_0 = arith.constant 0 : i32
    %c0_i32_1 = arith.constant 0 : i32
    return %arg0, %c0_i32, %c0_i32_0 : i32, i32, i32
  }
  func.func @transform_1(%arg0: i32) -> (i32, i32, i32) {
    %c0_i32 = arith.constant 0 : i32
    %c0_i32_0 = arith.constant 0 : i32
    %c0_i32_1 = arith.constant 0 : i32
    %c0_i32_2 = arith.constant 0 : i32
    return %c0_i32, %c0_i32_0, %c0_i32_1 : i32, i32, i32
  }
  func.func @transform_2(%arg0: i32) -> (i32, i32) {
    %c0_i32 = arith.constant 0 : i32
    %c0_i32_0 = arith.constant 0 : i32
    %c0_i32_1 = arith.constant 0 : i32
    return %c0_i32, %c0_i32_0 : i32, i32
  }
  func.func @transform_3(%arg0: i32) -> (i32, i32) {
    %c0_i32 = arith.constant 0 : i32
    %c0_i32_0 = arith.constant 0 : i32
    %c0_i32_1 = arith.constant 0 : i32
    return %c0_i32, %c0_i32_0 : i32, i32
  }
  func.func @transform_4(%arg0: i32) -> (i32, i32) {
    %c0_i32 = arith.constant 0 : i32
    %c0_i32_0 = arith.constant 0 : i32
    %c0_i32_1 = arith.constant 0 : i32
    return %c0_i32, %c0_i32_0 : i32, i32
  }
  func.func @transform_5(%arg0: i32) -> (i32, i32) {
    %c0_i32 = arith.constant 0 : i32
    %c0_i32_0 = arith.constant 0 : i32
    %c0_i32_1 = arith.constant 0 : i32
    return %c0_i32, %c0_i32_0 : i32, i32
  }
  func.func @transform_6(%arg0: i32) -> (i32, i32) {
    %c0_i32 = arith.constant 0 : i32
    %c0_i32_0 = arith.constant 0 : i32
    %c0_i32_1 = arith.constant 0 : i32
    return %c0_i32, %c0_i32_0 : i32, i32
  }
  func.func @transform_7(%arg0: i32) -> (i32, i32) {
    %c0_i32 = arith.constant 0 : i32
    %c0_i32_0 = arith.constant 0 : i32
    %c0_i32_1 = arith.constant 0 : i32
    return %c0_i32, %c0_i32_0 : i32, i32
  }
  func.func @transform_8(%arg0: i32) -> (i32, i32) {
    %c0_i32 = arith.constant 0 : i32
    %c0_i32_0 = arith.constant 0 : i32
    %c0_i32_1 = arith.constant 0 : i32
    return %c0_i32, %c0_i32_0 : i32, i32
  }
  func.func @transform_9(%arg0: i32) -> (i32, i32) {
    %c0_i32 = arith.constant 0 : i32
    %c0_i32_0 = arith.constant 0 : i32
    %c0_i32_1 = arith.constant 0 : i32
    return %c0_i32, %c0_i32_0 : i32, i32
  }
  func.func @transform_10(%arg0: i32) -> (i32, i32) {
    %c0_i32 = arith.constant 0 : i32
    %c0_i32_0 = arith.constant 0 : i32
    %c0_i32_1 = arith.constant 0 : i32
    return %c0_i32, %c0_i32_0 : i32, i32
  }
  func.func @transform_11(%arg0: i32) -> (i32, i32) {
    %c0_i32 = arith.constant 0 : i32
    %c0_i32_0 = arith.constant 0 : i32
    %c0_i32_1 = arith.constant 0 : i32
    return %c0_i32, %c0_i32_0 : i32, i32
  }
  func.func @transform_12(%arg0: i32) -> (i32, i32) {
    %c0_i32 = arith.constant 0 : i32
    %c0_i32_0 = arith.constant 0 : i32
    %c0_i32_1 = arith.constant 0 : i32
    return %c0_i32, %c0_i32_0 : i32, i32
  }
  func.func @transform_13(%arg0: i32) -> (i32, i32) {
    %c0_i32 = arith.constant 0 : i32
    %c0_i32_0 = arith.constant 0 : i32
    %c0_i32_1 = arith.constant 0 : i32
    return %c0_i32, %c0_i32_0 : i32, i32
  }
  func.func @transform_14(%arg0: i32) -> (i32, i32, i32) {
    %c0_i32 = arith.constant 0 : i32
    %c0_i32_0 = arith.constant 0 : i32
    %c0_i32_1 = arith.constant 0 : i32
    %c0_i32_2 = arith.constant 0 : i32
    return %c0_i32, %c0_i32_0, %c0_i32_1 : i32, i32, i32
  }
  func.func @transform_15(%arg0: i32) -> (i32, i32) {
    %c0_i32 = arith.constant 0 : i32
    %c0_i32_0 = arith.constant 0 : i32
    %c0_i32_1 = arith.constant 0 : i32
    return %c0_i32, %c0_i32_0 : i32, i32
  }
  func.func @transform_16(%arg0: i32) -> (i32, i32) {
    %c0_i32 = arith.constant 0 : i32
    %c0_i32_0 = arith.constant 0 : i32
    %c0_i32_1 = arith.constant 0 : i32
    return %c0_i32, %c0_i32_0 : i32, i32
  }
  func.func @transform_17(%arg0: i32) -> (i32, i32) {
    %c0_i32 = arith.constant 0 : i32
    %c0_i32_0 = arith.constant 0 : i32
    %c0_i32_1 = arith.constant 0 : i32
    return %c0_i32, %c0_i32_0 : i32, i32
  }
  func.func @transform_18(%arg0: i32) -> (i32, i32, i32) {
    %c0_i32 = arith.constant 0 : i32
    %c0_i32_0 = arith.constant 0 : i32
    %c0_i32_1 = arith.constant 0 : i32
    return %arg0, %c0_i32, %c0_i32_0 : i32, i32, i32
  }
  func.func @transform_19(%arg0: i32) -> (i32, i32, i32) {
    %c0_i32 = arith.constant 0 : i32
    %c0_i32_0 = arith.constant 0 : i32
    %c0_i32_1 = arith.constant 0 : i32
    return %arg0, %c0_i32, %c0_i32_0 : i32, i32, i32
  }
}

</mosaic_0001>

<llo_original>
// kernel: environment_model_forward.1
$region0: #{environment_model_forward.1}
  #allocation0 [shape = 'u32[]', space=smem, size = 0x4, offset = 0x4, fixed_abs, tag = 'smem constant byte address 0x4 - core index']
  #allocation1 [shape = 'u32[144,128]{1,0:T(1,128)}', space=vmem, size = 0x12000, scoped, tag = 'internal scratch']
  #allocation2 [shape = 'bf16[122,64]{1,0:T(8,128)(2,1)}', space=vmem, size = 0x8000, scoped, tag = 'scratch operand']
  #allocation3 [shape = 'bf16[26,64]{1,0:T(8,128)(2,1)}', space=vmem, size = 0x2000, scoped, tag = 'scratch operand']
  #allocation4 [shape = 'f32[100,64]{1,0:T(8,128)}', space=vmem, size = 0xd000, scoped, tag = 'scratch operand']
  #allocation5 [shape = 'f32[16,64]{1,0:T(8,128)}', space=vmem, size = 0x2000, scoped, tag = 'scratch operand']
  #allocation6 [shape = 'f32[1,1]{1,0:T(1,128)S(1)}', space=vmem, size = 0x200, scoped, tag = 'scoped memory for environment_model_forward.1']
  #allocation7 [shape = 'f32[1,1]{1,0:T(1,128)S(1)}', space=vmem, size = 0x200, scoped, tag = 'scoped memory for environment_model_forward.1']
  %s0 = inlined_call_operand.vmem [shape: bf16[2,100,128], index: 0, kind: input, shape index: {}]
  %s1 = inlined_call_operand.vmem [shape: bf16[9,100,1], index: 1, kind: input, shape index: {}]
  %s2 = inlined_call_operand.vmem [shape: bf16[128,64], index: 2, kind: input, shape index: {}]
  %s3 = inlined_call_operand.vmem [shape: f32[1,64], index: 3, kind: input, shape index: {}]
  %s4 = inlined_call_operand.vmem [shape: bf16[576,64], index: 4, kind: input, shape index: {}]
  %s5 = inlined_call_operand.vmem [shape: f32[1,64], index: 5, kind: input, shape index: {}]
  %s6 = inlined_call_operand.vmem [shape: bf16[576,64], index: 6, kind: input, shape index: {}]
  %s7 = inlined_call_operand.vmem [shape: f32[1,64], index: 7, kind: input, shape index: {}]
  %s8 = inlined_call_operand.vmem [shape: bf16[16,64], index: 8, kind: input, shape index: {}]
  %s9 = inlined_call_operand.<no memory space> [shape: f32[1,1], index: 9, kind: input, shape index: {}]
  %s10 = inlined_call_operand.vmem [shape: bf16[576,64], index: 10, kind: input, shape index: {}]
  %s11 = inlined_call_operand.vmem [shape: f32[1,64], index: 11, kind: input, shape index: {}]
  %s12 = inlined_call_operand.vmem [shape: bf16[576,64], index: 12, kind: input, shape index: {}]
  %s13 = inlined_call_operand.vmem [shape: f32[1,64], index: 13, kind: input, shape index: {}]
  %s14 = inlined_call_operand.vmem [shape: bf16[1,64,128], index: 14, kind: input, shape index: {}]
  %s15 = inlined_call_operand.vmem [shape: f32[1,128], index: 15, kind: input, shape index: {}]
  %s16 = inlined_call_operand.vmem [shape: f32[1,128], index: 16, kind: input, shape index: {}]
  %s17 = inlined_call_operand.<no memory space> [shape: f32[1,1], index: 17, kind: input, shape index: {}]
  %s18 = inlined_call_operand.vmem [shape: f32[2,16,100], index: 18, kind: output, shape index: {0}]
  %s19 = inlined_call_operand.vmem [shape: f32[2,1,1], index: 19, kind: output, shape index: {1}]
  %20 = xla_tuple %s18, %s19
  %s21 = sld [smem:[#allocation0]]
  $region113: #{environment_model_forward.1} parent=0
    _
  %s23 = ssub.s32 1, %s21
  %s24 = scalar_select 0, %s23, %s21
  %v25 = vstv %s9
  %26 = vst [vmem:[#allocation6] sm:$0x1] %v25
  %v27 = vstv %s17
  %28 = vst [vmem:[#allocation7] sm:$0x1] %v27
  loop: start=0, step=1, limit=4
  $region2: #{environment_model_forward.1} parent=0 // loop_pre_header
    _
  $region3: #{environment_model_forward.1} parent=0 // loop_header
    %s30 = sphi 0, %s34
    %p31 = scmp.ge.s32.totalorder %s30, 4
    %s40 = sphi 0, %s42
    %s43 = sphi 0, %s40
    %s44 = sphi 0, %s43
    %s60 = sphi 0, %s44
    %s64 = sphi 0, %s64
    %s66 = sphi 0, %s64
    %s67 = sphi 0, %s66
    %s81 = sphi 0, %s67
    %s85 = sphi 0, %s85
    %s87 = sphi 0, %s85
    %s88 = sphi 0, %s87
    %s102 = sphi 0, %s88
    %s106 = sphi 0, %s106
    %s108 = sphi 0, %s106
    %s109 = sphi 0, %s108
    %s123 = sphi 0, %s109
    %s127 = sphi 0, %s127
    %s129 = sphi 0, %s127
    %s130 = sphi 0, %s129
    %s144 = sphi 0, %s130
    %s148 = sphi 0, %s148
    %s150 = sphi 0, %s148
    %s151 = sphi 0, %s150
    %s165 = sphi 0, %s151
    %s169 = sphi 0, %s169
    %s171 = sphi 0, %s169
    %s172 = sphi 0, %s171
    %s186 = sphi 0, %s172
    %s190 = sphi 0, %s190
    %s192 = sphi 0, %s190
    %s193 = sphi 0, %s192
    %s207 = sphi 0, %s193
    %s211 = sphi 0, %s211
    %s213 = sphi 0, %s211
    %s214 = sphi 0, %s213
    %s228 = sphi 0, %s214
    %s232 = sphi 0, %s232
    %s234 = sphi 0, %s232
    %s235 = sphi 0, %s234
    %s249 = sphi 0, %s235
    %s253 = sphi 0, %s253
    %s255 = sphi 0, %s253
    %s256 = sphi 0, %s255
    %s270 = sphi 0, %s256
    %s274 = sphi 0, %s274
    %s276 = sphi 0, %s274
    %s277 = sphi 0, %s276
    %s291 = sphi 0, %s277
    %s295 = sphi 0, %s295
    %s297 = sphi 0, %s295
    %s298 = sphi 0, %s297
    %s312 = sphi 0, %s298
    %s316 = sphi 0, %s316
    %s318 = sphi 0, %s316
    %s319 = sphi 0, %s318
    %s333 = sphi 0, %s319
    %s337 = sphi 0, %s337
    %s339 = sphi 0, %s337
    %s340 = sphi 0, %s339
    %s354 = sphi 0, %s340
    %s358 = sphi 0, %s358
    %s360 = sphi 0, %s358
    %s361 = sphi 0, %s360
    %s375 = sphi 0, %s361
    %s379 = sphi 0, %s379
    %s381 = sphi 0, %s379
    %s382 = sphi 0, %s381
    %s396 = sphi 0, %s382
    %s400 = sphi 0, %s400
    %s402 = sphi 0, %s400
    %s403 = sphi 0, %s402
    %s417 = sphi 0, %s403
    %s423 = sphi 0, %s425
    %s426 = sphi 0, %s423
    %s427 = sphi 0, %s426
    %s443 = sphi 0, %s427
    %s449 = sphi 0, %s451
    %s452 = sphi 0, %s449
    %s453 = sphi 0, %s452
    %s469 = sphi 0, %s453
  $region4: #{environment_model_forward.1} parent=0 // loop_header_branch
    %33 = sbr.rel (%p31) target = $region8
  $region5: #{environment_model_forward.1} parent=0 // loop_body
    %s35 = ssub.s32 %s30, 1
    %s36 = ssub.s32 %s30, 2
    %s37 = sadd.s32 %s30, 1
    %s38 = ssub.s32 %s30, %s37
    %p39 = scmp.eq.s32.totalorder %s38, 0
    %s41 = sadd.s32 %s40, 1
    %s42 = scalar_select %p39, %s40, %s41
    %p45 = pneg %p39
    %p46 = scmp.eq.s32.totalorder %s30, 1
    %p47 = por %p45, %p46
    %p48 = scmp.ne.s32.totalorder %s40, %s43
    %p49 = scmp.eq.s32.totalorder %s30, 0
    %p50 = por %p48, %p49
    %p51 = scmp.ne.s32.totalorder %s40, %s43
    %p52 = scmp.eq.s32.totalorder %s35, 1
    %p53 = por %p51, %p52
    %p54 = scmp.ne.s32.totalorder %s43, %s44
    %p55 = scmp.eq.s32.totalorder %s35, 0
    %p56 = por %p54, %p55
    %p57 = scmp.ne.s32.totalorder %s43, %s44
    %p58 = scmp.eq.s32.totalorder %s36, 1
    %p59 = por %p57, %p58
    %p61 = scmp.ne.s32.totalorder %s44, %s60
    %p62 = scmp.eq.s32.totalorder %s36, 0
    %p63 = por %p61, %p62
    %s65 = sadd.s32 %s64, 1
    %p68 = scmp.eq.s32.totalorder %s30, 1
    %p69 = scmp.ne.s32.totalorder %s64, %s66
    %p70 = scmp.eq.s32.totalorder %s30, 0
    %p71 = por %p69, %p70
    %p72 = scmp.ne.s32.totalorder %s64, %s66
    %p73 = scmp.eq.s32.totalorder %s35, 1
    %p74 = por %p72, %p73
    %p75 = scmp.ne.s32.totalorder %s66, %s67
    %p76 = scmp.eq.s32.totalorder %s35, 0
    %p77 = por %p75, %p76
    %p78 = scmp.ne.s32.totalorder %s66, %s67
    %p79 = scmp.eq.s32.totalorder %s36, 1
    %p80 = por %p78, %p79
    %p82 = scmp.ne.s32.totalorder %s67, %s81
    %p83 = scmp.eq.s32.totalorder %s36, 0
    %p84 = por %p82, %p83
    %s86 = sadd.s32 %s85, 1
    %p89 = scmp.eq.s32.totalorder %s30, 1
    %p90 = scmp.ne.s32.totalorder %s85, %s87
    %p91 = scmp.eq.s32.totalorder %s30, 0
    %p92 = por %p90, %p91
    %p93 = scmp.ne.s32.totalorder %s85, %s87
    %p94 = scmp.eq.s32.totalorder %s35, 1
    %p95 = por %p93, %p94
    %p96 = scmp.ne.s32.totalorder %s87, %s88
    %p97 = scmp.eq.s32.totalorder %s35, 0
    %p98 = por %p96, %p97
    %p99 = scmp.ne.s32.totalorder %s87, %s88
    %p100 = scmp.eq.s32.totalorder %s36, 1
    %p101 = por %p99, %p100
    %p103 = scmp.ne.s32.totalorder %s88, %s102
    %p104 = scmp.eq.s32.totalorder %s36, 0
    %p105 = por %p103, %p104
    %s107 = sadd.s32 %s106, 1
    %p110 = scmp.eq.s32.totalorder %s30, 1
    %p111 = scmp.ne.s32.totalorder %s106, %s108
    %p112 = scmp.eq.s32.totalorder %s30, 0
    %p113 = por %p111, %p112
    %p114 = scmp.ne.s32.totalorder %s106, %s108
    %p115 = scmp.eq.s32.totalorder %s35, 1
    %p116 = por %p114, %p115
    %p117 = scmp.ne.s32.totalorder %s108, %s109
    %p118 = scmp.eq.s32.totalorder %s35, 0
    %p119 = por %p117, %p118
    %p120 = scmp.ne.s32.totalorder %s108, %s109
    %p121 = scmp.eq.s32.totalorder %s36, 1
    %p122 = por %p120, %p121
    %p124 = scmp.ne.s32.totalorder %s109, %s123
    %p125 = scmp.eq.s32.totalorder %s36, 0
    %p126 = por %p124, %p125
    %s128 = sadd.s32 %s127, 1
    %p131 = scmp.eq.s32.totalorder %s30, 1
    %p132 = scmp.ne.s32.totalorder %s127, %s129
    %p133 = scmp.eq.s32.totalorder %s30, 0
    %p134 = por %p132, %p133
    %p135 = scmp.ne.s32.totalorder %s127, %s129
    %p136 = scmp.eq.s32.totalorder %s35, 1
    %p137 = por %p135, %p136
    %p138 = scmp.ne.s32.totalorder %s129, %s130
    %p139 = scmp.eq.s32.totalorder %s35, 0
    %p140 = por %p138, %p139
    %p141 = scmp.ne.s32.totalorder %s129, %s130
    %p142 = scmp.eq.s32.totalorder %s36, 1
    %p143 = por %p141, %p142
    %p145 = scmp.ne.s32.totalorder %s130, %s144
    %p146 = scmp.eq.s32.totalorder %s36, 0
    %p147 = por %p145, %p146
    %s149 = sadd.s32 %s148, 1
    %p152 = scmp.eq.s32.totalorder %s30, 1
    %p153 = scmp.ne.s32.totalorder %s148, %s150
    %p154 = scmp.eq.s32.totalorder %s30, 0
    %p155 = por %p153, %p154
    %p156 = scmp.ne.s32.totalorder %s148, %s150
    %p157 = scmp.eq.s32.totalorder %s35, 1
    %p158 = por %p156, %p157
    %p159 = scmp.ne.s32.totalorder %s150, %s151
    %p160 = scmp.eq.s32.totalorder %s35, 0
    %p161 = por %p159, %p160
    %p162 = scmp.ne.s32.totalorder %s150, %s151
    %p163 = scmp.eq.s32.totalorder %s36, 1
    %p164 = por %p162, %p163
    %p166 = scmp.ne.s32.totalorder %s151, %s165
    %p167 = scmp.eq.s32.totalorder %s36, 0
    %p168 = por %p166, %p167
    %s170 = sadd.s32 %s169, 1
    %p173 = scmp.eq.s32.totalorder %s30, 1
    %p174 = scmp.ne.s32.totalorder %s169, %s171
    %p175 = scmp.eq.s32.totalorder %s30, 0
    %p176 = por %p174, %p175
    %p177 = scmp.ne.s32.totalorder %s169, %s171
    %p178 = scmp.eq.s32.totalorder %s35, 1
    %p179 = por %p177, %p178
    %p180 = scmp.ne.s32.totalorder %s171, %s172
    %p181 = scmp.eq.s32.totalorder %s35, 0
    %p182 = por %p180, %p181
    %p183 = scmp.ne.s32.totalorder %s171, %s172
    %p184 = scmp.eq.s32.totalorder %s36, 1
    %p185 = por %p183, %p184
    %p187 = scmp.ne.s32.totalorder %s172, %s186
    %p188 = scmp.eq.s32.totalorder %s36, 0
    %p189 = por %p187, %p188
    %s191 = sadd.s32 %s190, 1
    %p194 = scmp.eq.s32.totalorder %s30, 1
    %p195 = scmp.ne.s32.totalorder %s190, %s192
    %p196 = scmp.eq.s32.totalorder %s30, 0
    %p197 = por %p195, %p196
    %p198 = scmp.ne.s32.totalorder %s190, %s192
    %p199 = scmp.eq.s32.totalorder %s35, 1
    %p200 = por %p198, %p199
    %p201 = scmp.ne.s32.totalorder %s192, %s193
    %p202 = scmp.eq.s32.totalorder %s35, 0
    %p203 = por %p201, %p202
    %p204 = scmp.ne.s32.totalorder %s192, %s193
    %p205 = scmp.eq.s32.totalorder %s36, 1
    %p206 = por %p204, %p205
    %p208 = scmp.ne.s32.totalorder %s193, %s207
    %p209 = scmp.eq.s32.totalorder %s36, 0
    %p210 = por %p208, %p209
    %s212 = sadd.s32 %s211, 1
    %p215 = scmp.eq.s32.totalorder %s30, 1
    %p216 = scmp.ne.s32.totalorder %s211, %s213
    %p217 = scmp.eq.s32.totalorder %s30, 0
    %p218 = por %p216, %p217
    %p219 = scmp.ne.s32.totalorder %s211, %s213
    %p220 = scmp.eq.s32.totalorder %s35, 1
    %p221 = por %p219, %p220
    %p222 = scmp.ne.s32.totalorder %s213, %s214
    %p223 = scmp.eq.s32.totalorder %s35, 0
    %p224 = por %p222, %p223
    %p225 = scmp.ne.s32.totalorder %s213, %s214
    %p226 = scmp.eq.s32.totalorder %s36, 1
    %p227 = por %p225, %p226
    %p229 = scmp.ne.s32.totalorder %s214, %s228
    %p230 = scmp.eq.s32.totalorder %s36, 0
    %p231 = por %p229, %p230
    %s233 = sadd.s32 %s232, 1
    %p236 = scmp.eq.s32.totalorder %s30, 1
    %p237 = scmp.ne.s32.totalorder %s232, %s234
    %p238 = scmp.eq.s32.totalorder %s30, 0
    %p239 = por %p237, %p238
    %p240 = scmp.ne.s32.totalorder %s232, %s234
    %p241 = scmp.eq.s32.totalorder %s35, 1
    %p242 = por %p240, %p241
    %p243 = scmp.ne.s32.totalorder %s234, %s235
    %p244 = scmp.eq.s32.totalorder %s35, 0
    %p245 = por %p243, %p244
    %p246 = scmp.ne.s32.totalorder %s234, %s235
    %p247 = scmp.eq.s32.totalorder %s36, 1
    %p248 = por %p246, %p247
    %p250 = scmp.ne.s32.totalorder %s235, %s249
    %p251 = scmp.eq.s32.totalorder %s36, 0
    %p252 = por %p250, %p251
    %s254 = sadd.s32 %s253, 1
    %p257 = scmp.eq.s32.totalorder %s30, 1
    %p258 = scmp.ne.s32.totalorder %s253, %s255
    %p259 = scmp.eq.s32.totalorder %s30, 0
    %p260 = por %p258, %p259
    %p261 = scmp.ne.s32.totalorder %s253, %s255
    %p262 = scmp.eq.s32.totalorder %s35, 1
    %p263 = por %p261, %p262
    %p264 = scmp.ne.s32.totalorder %s255, %s256
    %p265 = scmp.eq.s32.totalorder %s35, 0
    %p266 = por %p264, %p265
    %p267 = scmp.ne.s32.totalorder %s255, %s256
    %p268 = scmp.eq.s32.totalorder %s36, 1
    %p269 = por %p267, %p268
    %p271 = scmp.ne.s32.totalorder %s256, %s270
    %p272 = scmp.eq.s32.totalorder %s36, 0
    %p273 = por %p271, %p272
    %s275 = sadd.s32 %s274, 1
    %p278 = scmp.eq.s32.totalorder %s30, 1
    %p279 = scmp.ne.s32.totalorder %s274, %s276
    %p280 = scmp.eq.s32.totalorder %s30, 0
    %p281 = por %p279, %p280
    %p282 = scmp.ne.s32.totalorder %s274, %s276
    %p283 = scmp.eq.s32.totalorder %s35, 1
    %p284 = por %p282, %p283
    %p285 = scmp.ne.s32.totalorder %s276, %s277
    %p286 = scmp.eq.s32.totalorder %s35, 0
    %p287 = por %p285, %p286
    %p288 = scmp.ne.s32.totalorder %s276, %s277
    %p289 = scmp.eq.s32.totalorder %s36, 1
    %p290 = por %p288, %p289
    %p292 = scmp.ne.s32.totalorder %s277, %s291
    %p293 = scmp.eq.s32.totalorder %s36, 0
    %p294 = por %p292, %p293
    %s296 = sadd.s32 %s295, 1
    %p299 = scmp.eq.s32.totalorder %s30, 1
    %p300 = scmp.ne.s32.totalorder %s295, %s297
    %p301 = scmp.eq.s32.totalorder %s30, 0
    %p302 = por %p300, %p301
    %p303 = scmp.ne.s32.totalorder %s295, %s297
    %p304 = scmp.eq.s32.totalorder %s35, 1
    %p305 = por %p303, %p304
    %p306 = scmp.ne.s32.totalorder %s297, %s298
    %p307 = scmp.eq.s32.totalorder %s35, 0
    %p308 = por %p306, %p307
    %p309 = scmp.ne.s32.totalorder %s297, %s298
    %p310 = scmp.eq.s32.totalorder %s36, 1
    %p311 = por %p309, %p310
    %p313 = scmp.ne.s32.totalorder %s298, %s312
    %p314 = scmp.eq.s32.totalorder %s36, 0
    %p315 = por %p313, %p314
    %s317 = sadd.s32 %s316, 1
    %p320 = scmp.eq.s32.totalorder %s30, 1
    %p321 = scmp.ne.s32.totalorder %s316, %s318
    %p322 = scmp.eq.s32.totalorder %s30, 0
    %p323 = por %p321, %p322
    %p324 = scmp.ne.s32.totalorder %s316, %s318
    %p325 = scmp.eq.s32.totalorder %s35, 1
    %p326 = por %p324, %p325
    %p327 = scmp.ne.s32.totalorder %s318, %s319
    %p328 = scmp.eq.s32.totalorder %s35, 0
    %p329 = por %p327, %p328
    %p330 = scmp.ne.s32.totalorder %s318, %s319
    %p331 = scmp.eq.s32.totalorder %s36, 1
    %p332 = por %p330, %p331
    %p334 = scmp.ne.s32.totalorder %s319, %s333
    %p335 = scmp.eq.s32.totalorder %s36, 0
    %p336 = por %p334, %p335
    %s338 = sadd.s32 %s337, 1
    %p341 = scmp.eq.s32.totalorder %s30, 1
    %p342 = scmp.ne.s32.totalorder %s337, %s339
    %p343 = scmp.eq.s32.totalorder %s30, 0
    %p344 = por %p342, %p343
    %p345 = scmp.ne.s32.totalorder %s337, %s339
    %p346 = scmp.eq.s32.totalorder %s35, 1
    %p347 = por %p345, %p346
    %p348 = scmp.ne.s32.totalorder %s339, %s340
    %p349 = scmp.eq.s32.totalorder %s35, 0
    %p350 = por %p348, %p349
    %p351 = scmp.ne.s32.totalorder %s339, %s340
    %p352 = scmp.eq.s32.totalorder %s36, 1
    %p353 = por %p351, %p352
    %p355 = scmp.ne.s32.totalorder %s340, %s354
    %p356 = scmp.eq.s32.totalorder %s36, 0
    %p357 = por %p355, %p356
    %s359 = sadd.s32 %s358, 1
    %p362 = scmp.eq.s32.totalorder %s30, 1
    %p363 = scmp.ne.s32.totalorder %s358, %s360
    %p364 = scmp.eq.s32.totalorder %s30, 0
    %p365 = por %p363, %p364
    %p366 = scmp.ne.s32.totalorder %s358, %s360
    %p367 = scmp.eq.s32.totalorder %s35, 1
    %p368 = por %p366, %p367
    %p369 = scmp.ne.s32.totalorder %s360, %s361
    %p370 = scmp.eq.s32.totalorder %s35, 0
    %p371 = por %p369, %p370
    %p372 = scmp.ne.s32.totalorder %s360, %s361
    %p373 = scmp.eq.s32.totalorder %s36, 1
    %p374 = por %p372, %p373
    %p376 = scmp.ne.s32.totalorder %s361, %s375
    %p377 = scmp.eq.s32.totalorder %s36, 0
    %p378 = por %p376, %p377
    %s380 = sadd.s32 %s379, 1
    %p383 = scmp.eq.s32.totalorder %s30, 1
    %p384 = scmp.ne.s32.totalorder %s379, %s381
    %p385 = scmp.eq.s32.totalorder %s30, 0
    %p386 = por %p384, %p385
    %p387 = scmp.ne.s32.totalorder %s379, %s381
    %p388 = scmp.eq.s32.totalorder %s35, 1
    %p389 = por %p387, %p388
    %p390 = scmp.ne.s32.totalorder %s381, %s382
    %p391 = scmp.eq.s32.totalorder %s35, 0
    %p392 = por %p390, %p391
    %p393 = scmp.ne.s32.totalorder %s381, %s382
    %p394 = scmp.eq.s32.totalorder %s36, 1
    %p395 = por %p393, %p394
    %p397 = scmp.ne.s32.totalorder %s382, %s396
    %p398 = scmp.eq.s32.totalorder %s36, 0
    %p399 = por %p397, %p398
    %s401 = sadd.s32 %s400, 1
    %p404 = scmp.eq.s32.totalorder %s30, 1
    %p405 = scmp.ne.s32.totalorder %s400, %s402
    %p406 = scmp.eq.s32.totalorder %s30, 0
    %p407 = por %p405, %p406
    %p408 = scmp.ne.s32.totalorder %s400, %s402
    %p409 = scmp.eq.s32.totalorder %s35, 1
    %p410 = por %p408, %p409
    %p411 = scmp.ne.s32.totalorder %s402, %s403
    %p412 = scmp.eq.s32.totalorder %s35, 0
    %p413 = por %p411, %p412
    %p414 = scmp.ne.s32.totalorder %s402, %s403
    %p415 = scmp.eq.s32.totalorder %s36, 1
    %p416 = por %p414, %p415
    %p418 = scmp.ne.s32.totalorder %s403, %s417
    %p419 = scmp.eq.s32.totalorder %s36, 0
    %p420 = por %p418, %p419
    %s421 = ssub.s32 %s30, %s37
    %p422 = scmp.eq.s32.totalorder %s421, 0
    %s424 = sadd.s32 %s423, 1
    %s425 = scalar_select %p422, %s423, %s424
    %p428 = pneg %p422
    %p429 = scmp.eq.s32.totalorder %s30, 1
    %p430 = por %p428, %p429
    %p431 = scmp.ne.s32.totalorder %s423, %s426
    %p432 = scmp.eq.s32.totalorder %s30, 0
    %p433 = por %p431, %p432
    %p434 = scmp.ne.s32.totalorder %s423, %s426
    %p435 = scmp.eq.s32.totalorder %s35, 1
    %p436 = por %p434, %p435
    %p437 = scmp.ne.s32.totalorder %s426, %s427
    %p438 = scmp.eq.s32.totalorder %s35, 0
    %p439 = por %p437, %p438
    %p440 = scmp.ne.s32.totalorder %s426, %s427
    %p441 = scmp.eq.s32.totalorder %s36, 1
    %p442 = por %p440, %p441
    %p444 = scmp.ne.s32.totalorder %s427, %s443
    %p445 = scmp.eq.s32.totalorder %s36, 0
    %p446 = por %p444, %p445
    %s447 = ssub.s32 %s30, %s37
    %p448 = scmp.eq.s32.totalorder %s447, 0
    %s450 = sadd.s32 %s449, 1
    %s451 = scalar_select %p448, %s449, %s450
    %p454 = pneg %p448
    %p455 = scmp.eq.s32.totalorder %s30, 1
    %p456 = por %p454, %p455
    %p457 = scmp.ne.s32.totalorder %s449, %s452
    %p458 = scmp.eq.s32.totalorder %s30, 0
    %p459 = por %p457, %p458
    %p460 = scmp.ne.s32.totalorder %s449, %s452
    %p461 = scmp.eq.s32.totalorder %s35, 1
    %p462 = por %p460, %p461
    %p463 = scmp.ne.s32.totalorder %s452, %s453
    %p464 = scmp.eq.s32.totalorder %s35, 0
    %p465 = por %p463, %p464
    %p466 = scmp.ne.s32.totalorder %s452, %s453
    %p467 = scmp.eq.s32.totalorder %s36, 1
    %p468 = por %p466, %p467
    %p470 = scmp.ne.s32.totalorder %s453, %s469
    %p471 = scmp.eq.s32.totalorder %s36, 0
    %p472 = por %p470, %p471
    %p473 = scmp.le.s32.totalorder 1, %s30
    %p474 = scmp.lt.s32.totalorder %s30, 3
    %p475 = pnand %p473, %p474
    %p476 = pneg %p475
    // Predicated region
    $region9: #{environment_model_forward.1} parent=5 // pred_check
      _
    $region10: #{environment_model_forward.1} parent=5 // pred_check_branch
      %478 = sbr.rel (%p475) target = $region12
    $region11: #{environment_model_forward.1} parent=5 // pred_region
      %s479 = ssub.s32 %s30, 1
      // Predicated region
      $region13: #{environment_model_forward.1} parent=11 // pred_check
        %p480 = pneg %p77
      $region14: #{environment_model_forward.1} parent=11 // pred_check_branch
        %482 = sbr.rel (%p480) target = $region16
      $region15: #{environment_model_forward.1} parent=11 // pred_region
        _
      $region16: #{environment_model_forward.1} parent=11 // pred_fallthru
        _
      // Predicated region
      $region17: #{environment_model_forward.1} parent=11 // pred_check
        %p483 = pneg %p98
      $region18: #{environment_model_forward.1} parent=11 // pred_check_branch
        %485 = sbr.rel (%p483) target = $region20
      $region19: #{environment_model_forward.1} parent=11 // pred_region
        _
      $region20: #{environment_model_forward.1} parent=11 // pred_fallthru
        _
      // Predicated region
      $region21: #{environment_model_forward.1} parent=11 // pred_check
        %p486 = pneg %p119
      $region22: #{environment_model_forward.1} parent=11 // pred_check_branch
        %488 = sbr.rel (%p486) target = $region24
      $region23: #{environment_model_forward.1} parent=11 // pred_region
        _
      $region24: #{environment_model_forward.1} parent=11 // pred_fallthru
        _
      // Predicated region
      $region25: #{environment_model_forward.1} parent=11 // pred_check
        %p489 = pneg %p140
      $region26: #{environment_model_forward.1} parent=11 // pred_check_branch
        %491 = sbr.rel (%p489) target = $region28
      $region27: #{environment_model_forward.1} parent=11 // pred_region
        _
      $region28: #{environment_model_forward.1} parent=11 // pred_fallthru
        _
      // Predicated region
      $region29: #{environment_model_forward.1} parent=11 // pred_check
        %p492 = pneg %p161
      $region30: #{environment_model_forward.1} parent=11 // pred_check_branch
        %494 = sbr.rel (%p492) target = $region32
      $region31: #{environment_model_forward.1} parent=11 // pred_region
        _
      $region32: #{environment_model_forward.1} parent=11 // pred_fallthru
        _
      // Predicated region
      $region33: #{environment_model_forward.1} parent=11 // pred_check
        %p495 = pneg %p182
      $region34: #{environment_model_forward.1} parent=11 // pred_check_branch
        %497 = sbr.rel (%p495) target = $region36
      $region35: #{environment_model_forward.1} parent=11 // pred_region
        _
      $region36: #{environment_model_forward.1} parent=11 // pred_fallthru
        _
      // Predicated region
      $region37: #{environment_model_forward.1} parent=11 // pred_check
        %p498 = pneg %p203
      $region38: #{environment_model_forward.1} parent=11 // pred_check_branch
        %500 = sbr.rel (%p498) target = $region40
      $region39: #{environment_model_forward.1} parent=11 // pred_region
        _
      $region40: #{environment_model_forward.1} parent=11 // pred_fallthru
        _
      // Predicated region
      $region41: #{environment_model_forward.1} parent=11 // pred_check
        %p501 = pneg %p224
      $region42: #{environment_model_forward.1} parent=11 // pred_check_branch
        %503 = sbr.rel (%p501) target = $region44
      $region43: #{environment_model_forward.1} parent=11 // pred_region
        _
      $region44: #{environment_model_forward.1} parent=11 // pred_fallthru
        _
      // Predicated region
      $region45: #{environment_model_forward.1} parent=11 // pred_check
        %p504 = pneg %p245
      $region46: #{environment_model_forward.1} parent=11 // pred_check_branch
        %506 = sbr.rel (%p504) target = $region48
      $region47: #{environment_model_forward.1} parent=11 // pred_region
        _
      $region48: #{environment_model_forward.1} parent=11 // pred_fallthru
        _
      // Predicated region
      $region49: #{environment_model_forward.1} parent=11 // pred_check
        %p507 = pneg %p266
      $region50: #{environment_model_forward.1} parent=11 // pred_check_branch
        %509 = sbr.rel (%p507) target = $region52
      $region51: #{environment_model_forward.1} parent=11 // pred_region
        _
      $region52: #{environment_model_forward.1} parent=11 // pred_fallthru
        _
      // Predicated region
      $region53: #{environment_model_forward.1} parent=11 // pred_check
        %p510 = pneg %p287
      $region54: #{environment_model_forward.1} parent=11 // pred_check_branch
        %512 = sbr.rel (%p510) target = $region56
      $region55: #{environment_model_forward.1} parent=11 // pred_region
        _
      $region56: #{environment_model_forward.1} parent=11 // pred_fallthru
        _
      // Predicated region
      $region57: #{environment_model_forward.1} parent=11 // pred_check
        %p513 = pneg %p308
      $region58: #{environment_model_forward.1} parent=11 // pred_check_branch
        %515 = sbr.rel (%p513) target = $region60
      $region59: #{environment_model_forward.1} parent=11 // pred_region
        _
      $region60: #{environment_model_forward.1} parent=11 // pred_fallthru
        _
      // Predicated region
      $region61: #{environment_model_forward.1} parent=11 // pred_check
        %p516 = pneg %p329
      $region62: #{environment_model_forward.1} parent=11 // pred_check_branch
        %518 = sbr.rel (%p516) target = $region64
      $region63: #{environment_model_forward.1} parent=11 // pred_region
        _
      $region64: #{environment_model_forward.1} parent=11 // pred_fallthru
        _
      // Predicated region
      $region65: #{environment_model_forward.1} parent=11 // pred_check
        %p519 = pneg %p350
      $region66: #{environment_model_forward.1} parent=11 // pred_check_branch
        %521 = sbr.rel (%p519) target = $region68
      $region67: #{environment_model_forward.1} parent=11 // pred_region
        _
      $region68: #{environment_model_forward.1} parent=11 // pred_fallthru
        _
      // Predicated region
      $region69: #{environment_model_forward.1} parent=11 // pred_check
        %p522 = pneg %p371
      $region70: #{environment_model_forward.1} parent=11 // pred_check_branch
        %524 = sbr.rel (%p522) target = $region72
      $region71: #{environment_model_forward.1} parent=11 // pred_region
        _
      $region72: #{environment_model_forward.1} parent=11 // pred_fallthru
        _
      // Predicated region
      $region73: #{environment_model_forward.1} parent=11 // pred_check
        %p525 = pneg %p392
      $region74: #{environment_model_forward.1} parent=11 // pred_check_branch
        %527 = sbr.rel (%p525) target = $region76
      $region75: #{environment_model_forward.1} parent=11 // pred_region
        _
      $region76: #{environment_model_forward.1} parent=11 // pred_fallthru
        _
      // Predicated region
      $region77: #{environment_model_forward.1} parent=11 // pred_check
        %p528 = pneg %p413
      $region78: #{environment_model_forward.1} parent=11 // pred_check_branch
        %530 = sbr.rel (%p528) target = $region80
      $region79: #{environment_model_forward.1} parent=11 // pred_region
        _
      $region80: #{environment_model_forward.1} parent=11 // pred_fallthru
        _
    $region12: #{environment_model_forward.1} parent=5 // pred_fallthru
      _
    %p531 = scmp.lt.s32.totalorder %s30, 2
    // Predicated region
    $region81: #{environment_model_forward.1} parent=5 // pred_check
      %p532 = pneg %p531
    $region82: #{environment_model_forward.1} parent=5 // pred_check_branch
      %534 = sbr.rel (%p532) target = $region84
    $region83: #{environment_model_forward.1} parent=5 // pred_region
      // Predicated region
      $region85: #{environment_model_forward.1} parent=83 // pred_check
        %p535 = pneg %p50
      $region86: #{environment_model_forward.1} parent=83 // pred_check_branch
        %537 = sbr.rel (%p535) target = $region88
      $region87: #{environment_model_forward.1} parent=83 // pred_region
        %p538 = scmp.lt.s32.totalorder %s30, 1
        %s539 = scalar_select %p538, %s30, 1
        %s540 = smul.addr %s539, 13
        %s541 = smul.addr %s540, 4
        %s542 = scalar_lea.vmem %s0, %s541
      $region88: #{environment_model_forward.1} parent=83 // pred_fallthru
        _
    $region84: #{environment_model_forward.1} parent=5 // pred_fallthru
      _
    %p543 = scmp.le.s32.totalorder 1, %s30
    %p544 = scmp.lt.s32.totalorder %s30, 3
    %p545 = pnand %p543, %p544
    %p546 = pneg %p545
    // Predicated region
    $region89: #{environment_model_forward.1} parent=5 // pred_check
      _
    $region90: #{environment_model_forward.1} parent=5 // pred_check_branch
      %548 = sbr.rel (%p545) target = $region92
    $region91: #{environment_model_forward.1} parent=5 // pred_region
      %s549 = ssub.s32 %s30, 1
      %p550 = scmp.lt.s32.totalorder %s35, 1
      %s551 = scalar_select %p550, %s35, 1
      %s552 = smul.addr %s551, 13
      %s553 = smul.addr %s552, 4
      %s554 = scalar_lea.vmem %s0, %s553
      %p555 = pneg %p56
      %p556 = pneg %p53
      %p557 = pneg %p77
      %p558 = pneg %p74
      %p559 = pneg %p98
      %p560 = pneg %p95
      %p561 = pneg %p119
      %p562 = pneg %p116
      %p563 = pneg %p140
      %p564 = pneg %p137
      %p565 = pneg %p161
      %p566 = pneg %p158
      %p567 = pneg %p182
      %p568 = pneg %p179
      %p569 = pneg %p203
      %p570 = pneg %p200
      %p571 = pneg %p224
      %p572 = pneg %p221
      %p573 = pneg %p245
      %p574 = pneg %p242
      %p575 = pneg %p266
      %p576 = pneg %p263
      %p577 = pneg %p287
      %p578 = pneg %p284
      %p579 = pneg %p308
      %p580 = pneg %p305
      %p581 = pneg %p329
      %p582 = pneg %p326
      %p583 = pneg %p350
      %p584 = pneg %p347
      %p585 = pneg %p371
      %p586 = pneg %p368
      %p587 = pneg %p392
      %p588 = pneg %p389
      %p589 = pneg %p413
      %p590 = pneg %p410
      %p591 = pneg %p439
      %p592 = pneg %p436
      %p593 = scmp.lt.s32.totalorder %s35, 1
      %s594 = scalar_select %p593, %s35, 1
      %s595 = smul.addr %s594, 2
      %s596 = smul.addr %s595, 8
      %s597 = scalar_lea.vmem %s18, %s596
      %p598 = pneg %p465
      %p599 = pneg %p462
      %p600 = scmp.lt.s32.totalorder %s35, 1
      %s601 = scalar_select %p600, %s35, 1
      %s602 = scalar_lea.vmem %s19, %s601
      %p603 = scmp.lt.s32.totalorder %s35, 1
      %s604 = scalar_select %p603, %s35, 1
      %s605 = smul.addr %s604, 13
      %s606 = smul.addr %s605, 4
      %s607 = scalar_lea.vmem %s0, %s606
      %p608 = scmp.lt.s32.totalorder %s35, 1
      %s609 = scalar_select %p608, %s35, 1
      %s610 = smul.addr %s609, 2
      %s611 = smul.addr %s610, 8
      %s612 = scalar_lea.vmem %s18, %s611
      %p613 = scmp.lt.s32.totalorder %s35, 1
      %s614 = scalar_select %p613, %s35, 1
      %s615 = scalar_lea.vmem %s19, %s614
      %vm617 = vcmask 519168
      %618 = vst.msk [vmem:[#allocation2] sm:$0xf] %vm617, 0
      %vm619 = vcmask 517120
      %vm620 = vsmask.f32 1280
      %vm621 = vmand %vm619, %vm620
      %v622 = vld [vmem:[#allocation2 + $0x4] sm:$0x3]
      %v623 = vsel %vm621, 0, %v622
      %624 = vst [vmem:[#allocation2 + $0x4] sm:$0x3] %v623
      %vm625 = vcmask 519171
      %vm626 = vsmask.f32 7950
      %vm627 = vmand %vm625, %vm626
      %v628 = vld [vmem:[#allocation2 + $0x34] sm:$0x8]
      %v629 = vsel %vm627, 0, %v628
      %630 = vst [vmem:[#allocation2 + $0x34] sm:$0x8] %v629
      %631 = vst.msk [vmem:[#allocation2 + $0x38] sm:$0xf] %vm617, 0
      %vm632 = vcmask 516096
      %633 = vst.msk [vmem:[#allocation2 + $0x3c] sm:$0x1] %vm632, 0
      %vm634 = vcmask 518144
      %vm635 = vsmask.f32 2304
      %vm636 = vmand %vm634, %vm635
      %v637 = vld [vmem:[#allocation3] sm:$0x7]
      %v638 = vsel %vm636, 0, %v637
      %639 = vst [vmem:[#allocation3] sm:$0x7] %v638
      %vm640 = vcmask 519170
      %vm641 = vsmask.f32 7946
      %vm642 = vmand %vm640, %vm641
      %v643 = vld [vmem:[#allocation3 + $0x8] sm:$0xc]
      %v644 = vsel %vm642, 0, %v643
      %645 = vst [vmem:[#allocation3 + $0x8] sm:$0xc] %v644
      %646 = vst.msk [vmem:[#allocation3 + $0xc] sm:$0x1] %vm632, 0
      %v647 = vld [vmem:[%s607] sm:$0xf]
      %v648 = vld [vmem:[%s607 + $0x4] sm:$0xf]
      %v649 = vld [vmem:[%s607 + $0x8] sm:$0xf]
      %v650 = vld [vmem:[%s607 + $0xc] sm:$0xf]
      %v651 = vld [vmem:[%s607 + $0x10] sm:$0xf]
      %v652 = vld [vmem:[%s607 + $0x14] sm:$0xf]
      %v653 = vld [vmem:[%s607 + $0x18] sm:$0xf]
      %v654 = vld [vmem:[%s607 + $0x1c] sm:$0xf]
      %v655 = vld [vmem:[%s607 + $0x20] sm:$0xf]
      %v656 = vld [vmem:[%s607 + $0x24] sm:$0xf]
      %v657 = vld [vmem:[%s607 + $0x28] sm:$0xf]
      %v658 = vld [vmem:[%s607 + $0x2c] sm:$0xf]
      %v659 = vld [vmem:[%s607 + $0x30] sm:$0x3]
      %v660 = vld [vmem:[%s2] sm:$0xf]
      %v661 = vld [vmem:[%s2 + $0x4] sm:$0xf]
      %v662 = vld [vmem:[%s2 + $0x8] sm:$0xf]
      %v663 = vld [vmem:[%s2 + $0xc] sm:$0xf]
      %v664 = vld [vmem:[%s2 + $0x10] sm:$0xf]
      %v665 = vld [vmem:[%s2 + $0x14] sm:$0xf]
      %v666 = vld [vmem:[%s2 + $0x18] sm:$0xf]
      %v667 = vld [vmem:[%s2 + $0x1c] sm:$0xf]
      %v668 = vld [vmem:[%s2 + $0x20] sm:$0xf]
      %v669 = vld [vmem:[%s2 + $0x24] sm:$0xf]
      %v670 = vld [vmem:[%s2 + $0x28] sm:$0xf]
      %v671 = vld [vmem:[%s2 + $0x2c] sm:$0xf]
      %v672 = vld [vmem:[%s2 + $0x30] sm:$0xf]
      %v673 = vld [vmem:[%s2 + $0x34] sm:$0xf]
      %v674 = vld [vmem:[%s2 + $0x38] sm:$0xf]
      %v675 = vld [vmem:[%s2 + $0x3c] sm:$0xf]
      %v676 = vld [vmem:[%s3] sm:$0x1]
      %v678 = vlaneseq
      %v679 = vshrl.u32 %v678, 7
      %v680 = vsub.s32 0, %v679
      %v681 = vrot.slane %v676, %v680
      %v696 = vunpack.c.l.b16 %v647
      %v697 = vunpack.c.l.b16 %v648
      %v698 = vunpack.c.l.b16 %v649
      %v699 = vunpack.c.l.b16 %v650
      %v700 = vunpack.c.l.b16 %v651
      %v701 = vunpack.c.l.b16 %v652
      %v702 = vunpack.c.l.b16 %v653
      %v703 = vunpack.c.l.b16 %v654
      %v704 = vunpack.c.l.b16 %v655
      %v705 = vunpack.c.l.b16 %v656
      %v706 = vunpack.c.l.b16 %v657
      %v707 = vunpack.c.l.b16 %v658
      %v708 = vunpack.c.l.b16 %v659
      %v709 = vpack.c.b16 %v697, %v696
      %v710 = vpack.c.b16 %v699, %v698
      %v711 = vpack.c.b16 %v701, %v700
      %v712 = vpack.c.b16 %v703, %v702
      %v713 = vpack.c.b16 %v705, %v704
      %v714 = vpack.c.b16 %v707, %v706
      %v715 = vpack.c.b16 %v708, %v708
      %v739 = vunpack.c.l.b16 %v660
      %v740 = vunpack.c.l.b16 %v661
      %v741 = vunpack.c.l.b16 %v662
      %v742 = vunpack.c.l.b16 %v663
      %v743 = vunpack.c.l.b16 %v664
      %v744 = vunpack.c.l.b16 %v665
      %v745 = vunpack.c.l.b16 %v666
      %v746 = vunpack.c.l.b16 %v667
      %v747 = vunpack.c.l.b16 %v668
      %v748 = vunpack.c.l.b16 %v669
      %v749 = vunpack.c.l.b16 %v670
      %v750 = vunpack.c.l.b16 %v671
      %v751 = vunpack.c.l.b16 %v672
      %v752 = vunpack.c.l.b16 %v673
      %v753 = vunpack.c.l.b16 %v674
      %v754 = vunpack.c.l.b16 %v675
      %v755 = vpack.c.b16 %v740, %v739
      %v756 = vpack.c.b16 %v742, %v741
      %v757 = vpack.c.b16 %v744, %v743
      %v758 = vpack.c.b16 %v746, %v745
      %v759 = vpack.c.b16 %v748, %v747
      %v760 = vpack.c.b16 %v750, %v749
      %v761 = vpack.c.b16 %v752, %v751
      %v762 = vpack.c.b16 %v754, %v753
      %771 = vmatprep.subr.bf16.mxu0 0
      %772 = vmatpush1.bf16.msra.mxu0 %v755
      %773 = vmatprep.subr.bf16.mxu0 0
      %774 = vmatpush1.bf16.msra.mxu0 %v756
      %775 = vmatprep.subr.bf16.mxu0 0
      %776 = vmatpush1.bf16.msra.mxu0 %v757
      %777 = vmatprep.subr.bf16.mxu0 0
      %778 = vmatpush1.bf16.msra.mxu0 %v758
      %779 = vmatprep.subr.bf16.mxu0 0
      %780 = vmatpush1.bf16.msra.mxu0 %v759
      %781 = vmatprep.subr.bf16.mxu0 0
      %782 = vmatpush1.bf16.msra.mxu0 %v760
      %783 = vmatprep.subr.bf16.mxu0 0
      %784 = vmatpush1.bf16.msra.mxu0 %v761
      %785 = vmatprep.subr.bf16.mxu0 0
      %786 = vmatpush1.bf16.msra.mxu0 %v762
      %787 = vmatprep.subr.bf16.mxu0 0
      %788 = vmatpush1.bf16.msra.mxu0 0
      %789 = vmatprep.subr.bf16.mxu0 0
      %790 = vmatpush1.bf16.msra.mxu0 0
      %791 = vmatprep.subr.bf16.mxu0 0
      %792 = vmatpush1.bf16.msra.mxu0 0
      %793 = vmatprep.subr.bf16.mxu0 0
      %794 = vmatpush1.bf16.msra.mxu0 0
      %795 = vmatprep.subr.bf16.mxu0 0
      %796 = vmatpush1.bf16.msra.mxu0 0
      %797 = vmatprep.subr.bf16.mxu0 0
      %798 = vmatpush1.bf16.msra.mxu0 0
      %799 = vmatprep.subr.bf16.mxu0 0
      %800 = vmatpush1.bf16.msra.mxu0 0
      %801 = vmatprep.subr.bf16.mxu0 0
      %802 = vmatpush1.bf16.msra.mxu0 0
      %803 = vmatprep.mubr.bf16.mxu0 0
      %804 = vmatmul.mubr.bf16.gmra.mrb[0].mxu0 %v709
      %v805 = vpop.f32.mrb[0].mxu0
      %v806 = vadd.f32 %v681, %v805
      %v807 = vpop.f32.mrb[0].mxu0
      %v808 = vpop.f32.mrb[0].mxu0
      %v809 = vadd.f32 %v681, %v808
      %v810 = vpop.f32.mrb[0].mxu0
      %811 = vmatprep.mubr.bf16.mxu0 0
      %812 = vmatmul.mubr.bf16.gmra.mrb[0].mxu0 %v710
      %v813 = vpop.f32.mrb[0].mxu0
      %v814 = vadd.f32 %v681, %v813
      %v815 = vpop.f32.mrb[0].mxu0
      %v816 = vpop.f32.mrb[0].mxu0
      %v817 = vadd.f32 %v681, %v816
      %v818 = vpop.f32.mrb[0].mxu0
      %819 = vmatprep.mubr.bf16.mxu0 0
      %820 = vmatmul.mubr.bf16.gmra.mrb[0].mxu0 %v711
      %v821 = vpop.f32.mrb[0].mxu0
      %v822 = vadd.f32 %v681, %v821
      %v823 = vpop.f32.mrb[0].mxu0
      %v824 = vpop.f32.mrb[0].mxu0
      %v825 = vadd.f32 %v681, %v824
      %v826 = vpop.f32.mrb[0].mxu0
      %827 = vmatprep.mubr.bf16.mxu0 0
      %828 = vmatmul.mubr.bf16.gmra.mrb[0].mxu0 %v712
      %v829 = vpop.f32.mrb[0].mxu0
      %v830 = vadd.f32 %v681, %v829
      %v831 = vpop.f32.mrb[0].mxu0
      %v832 = vpop.f32.mrb[0].mxu0
      %v833 = vadd.f32 %v681, %v832
      %v834 = vpop.f32.mrb[0].mxu0
      %835 = vmatprep.mubr.bf16.mxu0 0
      %836 = vmatmul.mubr.bf16.gmra.mrb[0].mxu0 %v713
      %v837 = vpop.f32.mrb[0].mxu0
      %v838 = vadd.f32 %v681, %v837
      %v839 = vpop.f32.mrb[0].mxu0
      %v840 = vpop.f32.mrb[0].mxu0
      %v841 = vadd.f32 %v681, %v840
      %v842 = vpop.f32.mrb[0].mxu0
      %843 = vmatprep.mubr.bf16.mxu0 0
      %844 = vmatmul.mubr.bf16.gmra.mrb[0].mxu0 %v714
      %v845 = vpop.f32.mrb[0].mxu0
      %v846 = vadd.f32 %v681, %v845
      %v847 = vpop.f32.mrb[0].mxu0
      %v848 = vpop.f32.mrb[0].mxu0
      %v849 = vadd.f32 %v681, %v848
      %v850 = vpop.f32.mrb[0].mxu0
      %851 = vmatprep.mubr.bf16.mxu0 0
      %852 = vmatmul.mubr.bf16.gmra.mrb[0].mxu0 %v715
      %v853 = vpop.f32.mrb[0].mxu0
      %v854 = vadd.f32 %v681, %v853
      %v855 = vpop.f32.mrb[0].mxu0
      %v856 = vpop.f32.mrb[0].mxu0
      %v857 = vpop.f32.mrb[0].mxu0
      %858 = vdwg.mxu0
      %v859 = vmax.f32 %v806, 0.0
      %v860 = vmax.f32 %v809, 0.0
      %v861 = vmax.f32 %v814, 0.0
      %v862 = vmax.f32 %v817, 0.0
      %v863 = vmax.f32 %v822, 0.0
      %v864 = vmax.f32 %v825, 0.0
      %v865 = vmax.f32 %v830, 0.0
      %v866 = vmax.f32 %v833, 0.0
      %v867 = vmax.f32 %v838, 0.0
      %v868 = vmax.f32 %v841, 0.0
      %v869 = vmax.f32 %v846, 0.0
      %v870 = vmax.f32 %v849, 0.0
      %v871 = vmax.f32 %v854, 0.0
      %v872 = vpack.c.bf16 %v860, %v859
      %v873 = vpack.c.bf16 %v862, %v861
      %v874 = vpack.c.bf16 %v864, %v863
      %v875 = vpack.c.bf16 %v866, %v865
      %v876 = vpack.c.bf16 %v868, %v867
      %v877 = vpack.c.bf16 %v870, %v869
      %v878 = vpack.c.bf16 %v871, %v871
      %v886 = vunpack.c.l.b16 %v872
      %v887 = vunpack.c.h.b16 %v872
      %v888 = vunpack.c.l.b16 %v873
      %v889 = vunpack.c.h.b16 %v873
      %v890 = vunpack.c.l.b16 %v874
      %v891 = vunpack.c.h.b16 %v874
      %v892 = vunpack.c.l.b16 %v875
      %v893 = vunpack.c.h.b16 %v875
      %v894 = vunpack.c.l.b16 %v876
      %v895 = vunpack.c.h.b16 %v876
      %v896 = vunpack.c.l.b16 %v877
      %v897 = vunpack.c.h.b16 %v877
      %v898 = vunpack.c.l.b16 %v878
      %v899 = vpack.c.b16 %v886, %v886
      %v900 = vpack.c.b16 %v887, %v887
      %v901 = vpack.c.b16 %v888, %v888
      %v902 = vpack.c.b16 %v889, %v889
      %v903 = vpack.c.b16 %v890, %v890
      %v904 = vpack.c.b16 %v891, %v891
      %v905 = vpack.c.b16 %v892, %v892
      %v906 = vpack.c.b16 %v893, %v893
      %v907 = vpack.c.b16 %v894, %v894
      %v908 = vpack.c.b16 %v895, %v895
      %v909 = vpack.c.b16 %v896, %v896
      %v910 = vpack.c.b16 %v897, %v897
      %v911 = vpack.c.b16 %v898, %v898
      %vm912 = vsmask.f32 5392
      %vm913 = vmor %vm620, %vm912
      %v915 = vshrl.u32 %v899, 16
      %v917 = vrot.slane %v915, 6
      %v918 = vshll.u32 %v899, 16
      %v920 = vrot.slane %v918, 7
      %v921 = vor.u32 %v917, %v920
      %v922 = vrot.slane %v921, 4
      %v924 = vshrl.u32 %v900, 16
      %v926 = vrot.slane %v924, 6
      %v927 = vshll.u32 %v900, 16
      %v929 = vrot.slane %v927, 7
      %v930 = vor.u32 %v926, %v929
      %v931 = vsel %vm913, %v922, %v930
      %v932 = vrot.slane %v930, 4
      %v934 = vshrl.u32 %v901, 16
      %v936 = vrot.slane %v934, 6
      %v937 = vshll.u32 %v901, 16
      %v939 = vrot.slane %v937, 7
      %v940 = vor.u32 %v936, %v939
      %v941 = vsel %vm913, %v932, %v940
      %v942 = vrot.slane %v940, 4
      %v944 = vshrl.u32 %v902, 16
      %v946 = vrot.slane %v944, 6
      %v947 = vshll.u32 %v902, 16
      %v949 = vrot.slane %v947, 7
      %v950 = vor.u32 %v946, %v949
      %v951 = vsel %vm913, %v942, %v950
      %v952 = vrot.slane %v950, 4
      %v954 = vshrl.u32 %v903, 16
      %v956 = vrot.slane %v954, 6
      %v957 = vshll.u32 %v903, 16
      %v959 = vrot.slane %v957, 7
      %v960 = vor.u32 %v956, %v959
      %v961 = vsel %vm913, %v952, %v960
      %v962 = vrot.slane %v960, 4
      %v964 = vshrl.u32 %v904, 16
      %v966 = vrot.slane %v964, 6
      %v967 = vshll.u32 %v904, 16
      %v969 = vrot.slane %v967, 7
      %v970 = vor.u32 %v966, %v969
      %v971 = vsel %vm913, %v962, %v970
      %v972 = vrot.slane %v970, 4
      %v974 = vshrl.u32 %v905, 16
      %v976 = vrot.slane %v974, 6
      %v977 = vshll.u32 %v905, 16
      %v979 = vrot.slane %v977, 7
      %v980 = vor.u32 %v976, %v979
      %v981 = vsel %vm913, %v972, %v980
      %v982 = vrot.slane %v980, 4
      %v984 = vshrl.u32 %v906, 16
      %v986 = vrot.slane %v984, 6
      %v987 = vshll.u32 %v906, 16
      %v989 = vrot.slane %v987, 7
      %v990 = vor.u32 %v986, %v989
      %v991 = vsel %vm913, %v982, %v990
      %v992 = vrot.slane %v990, 4
      %v994 = vshrl.u32 %v907, 16
      %v996 = vrot.slane %v994, 6
      %v997 = vshll.u32 %v907, 16
      %v999 = vrot.slane %v997, 7
      %v1000 = vor.u32 %v996, %v999
      %v1001 = vsel %vm913, %v992, %v1000
      %v1002 = vrot.slane %v1000, 4
      %v1004 = vshrl.u32 %v908, 16
      %v1006 = vrot.slane %v1004, 6
      %v1007 = vshll.u32 %v908, 16
      %v1009 = vrot.slane %v1007, 7
      %v1010 = vor.u32 %v1006, %v1009
      %v1011 = vsel %vm913, %v1002, %v1010
      %v1012 = vrot.slane %v1010, 4
      %v1014 = vshrl.u32 %v909, 16
      %v1016 = vrot.slane %v1014, 6
      %v1017 = vshll.u32 %v909, 16
      %v1019 = vrot.slane %v1017, 7
      %v1020 = vor.u32 %v1016, %v1019
      %v1021 = vsel %vm913, %v1012, %v1020
      %v1022 = vrot.slane %v1020, 4
      %v1024 = vshrl.u32 %v910, 16
      %v1026 = vrot.slane %v1024, 6
      %v1027 = vshll.u32 %v910, 16
      %v1029 = vrot.slane %v1027, 7
      %v1030 = vor.u32 %v1026, %v1029
      %v1031 = vsel %vm913, %v1022, %v1030
      %v1032 = vrot.slane %v1030, 4
      %v1034 = vshrl.u32 %v911, 16
      %v1036 = vrot.slane %v1034, 6
      %v1037 = vshll.u32 %v911, 16
      %v1039 = vrot.slane %v1037, 7
      %v1040 = vor.u32 %v1036, %v1039
      %v1041 = vsel %vm913, %v1032, %v1040
      %vm1055 = vcmask 519169
      %vm1056 = vsmask.f32 7942
      %vm1057 = vmand %vm1055, %vm1056
      %v1058 = vld [vmem:[#allocation2 + $0x4] sm:$0xe]
      %v1059 = vsel %vm1057, %v921, %v1058
      %1060 = vst [vmem:[#allocation2 + $0x4] sm:$0xe] %v1059
      %1061 = vst.msk [vmem:[#allocation2 + $0x8] sm:$0xf] %vm617, %v931
      %1062 = vst.msk [vmem:[#allocation2 + $0xc] sm:$0xf] %vm617, %v941
      %1063 = vst.msk [vmem:[#allocation2 + $0x10] sm:$0xf] %vm617, %v951
      %1064 = vst.msk [vmem:[#allocation2 + $0x14] sm:$0xf] %vm617, %v961
      %1065 = vst.msk [vmem:[#allocation2 + $0x18] sm:$0xf] %vm617, %v971
      %1066 = vst.msk [vmem:[#allocation2 + $0x1c] sm:$0xf] %vm617, %v981
      %1067 = vst.msk [vmem:[#allocation2 + $0x20] sm:$0xf] %vm617, %v991
      %1068 = vst.msk [vmem:[#allocation2 + $0x24] sm:$0xf] %vm617, %v1001
      %1069 = vst.msk [vmem:[#allocation2 + $0x28] sm:$0xf] %vm617, %v1011
      %1070 = vst.msk [vmem:[#allocation2 + $0x2c] sm:$0xf] %vm617, %v1021
      %1071 = vst.msk [vmem:[#allocation2 + $0x30] sm:$0xf] %vm617, %v1031
      %vm1072 = vcmask 519168
      %vm1073 = vsmask.f32 3328
      %vm1074 = vmand %vm1072, %vm1073
      %v1075 = vld [vmem:[#allocation2 + $0x34] sm:$0xf]
      %v1076 = vsel %vm1074, %v1041, %v1075
      %1077 = vst [vmem:[#allocation2 + $0x34] sm:$0xf] %v1076
      %v1078 = vld [vmem:[#allocation2] sm:$0xf]
      %v1079 = vld [vmem:[#allocation2 + $0x4] sm:$0xf]
      %v1080 = vld [vmem:[#allocation2 + $0x8] sm:$0xf]
      %v1081 = vld [vmem:[#allocation2 + $0xc] sm:$0xf]
      %v1082 = vld [vmem:[#allocation2 + $0x10] sm:$0xf]
      %v1083 = vld [vmem:[#allocation2 + $0x14] sm:$0xf]
      %v1084 = vld [vmem:[#allocation2 + $0x18] sm:$0xf]
      %v1085 = vld [vmem:[#allocation2 + $0x1c] sm:$0xf]
      %v1086 = vld [vmem:[#allocation2 + $0x20] sm:$0xf]
      %v1087 = vld [vmem:[#allocation2 + $0x24] sm:$0xf]
      %v1088 = vld [vmem:[#allocation2 + $0x28] sm:$0xf]
      %v1089 = vld [vmem:[#allocation2 + $0x2c] sm:$0xf]
      %v1090 = vld [vmem:[#allocation2 + $0x30] sm:$0x3]
      %v1091 = vld [vmem:[%s1] sm:$0xf]
      %v1092 = vld [vmem:[%s1 + $0x4] sm:$0xf]
      %v1093 = vld [vmem:[%s1 + $0x8] sm:$0xf]
      %v1094 = vld [vmem:[%s1 + $0xc] sm:$0xf]
      %v1095 = vld [vmem:[%s1 + $0x10] sm:$0xf]
      %v1096 = vld [vmem:[%s1 + $0x14] sm:$0xf]
      %v1097 = vld [vmem:[%s1 + $0x18] sm:$0xf]
      %v1098 = vld [vmem:[%s1 + $0x1c] sm:$0xf]
      %v1099 = vld [vmem:[%s1 + $0x20] sm:$0xf]
      %v1100 = vld [vmem:[%s1 + $0x24] sm:$0xf]
      %v1101 = vld [vmem:[%s1 + $0x28] sm:$0xf]
      %v1102 = vld [vmem:[%s1 + $0x2c] sm:$0xf]
      %v1103 = vld [vmem:[%s1 + $0x30] sm:$0x3]
      %1105 = vset.pattern.permute.xlu0 0
      %1106 = vperm.xlu0 %1105, %v1091
      %v1107 = vpop.permute.xlu0 %1106
      %v1110 = vunpack.c.l.s4 839922192
      %v1111 = vunpack.c.0.s8 %v1110
      %v1112 = vlaneseq
      %v1113 = vshrl.u32 %v1112, 7
      %v1114 = vsub.s32 %v1111, %v1113
      %v1115 = vrot.slane %v1107, %v1114
      %1117 = vset.pattern.permute.xlu0 0
      %1118 = vperm.xlu0 %1117, %v1092
      %v1119 = vpop.permute.xlu0 %1118
      %v1122 = vunpack.c.l.s4 839922192
      %v1123 = vunpack.c.0.s8 %v1122
      %v1124 = vlaneseq
      %v1125 = vshrl.u32 %v1124, 7
      %v1126 = vsub.s32 %v1123, %v1125
      %v1127 = vrot.slane %v1119, %v1126
      %1129 = vset.pattern.permute.xlu0 0
      %1130 = vperm.xlu0 %1129, %v1093
      %v1131 = vpop.permute.xlu0 %1130
      %v1134 = vunpack.c.l.s4 839922192
      %v1135 = vunpack.c.0.s8 %v1134
      %v1136 = vlaneseq
      %v1137 = vshrl.u32 %v1136, 7
      %v1138 = vsub.s32 %v1135, %v1137
      %v1139 = vrot.slane %v1131, %v1138
      %1141 = vset.pattern.permute.xlu0 0
      %1142 = vperm.xlu0 %1141, %v1094
      %v1143 = vpop.permute.xlu0 %1142
      %v1146 = vunpack.c.l.s4 839922192
      %v1147 = vunpack.c.0.s8 %v1146
      %v1148 = vlaneseq
      %v1149 = vshrl.u32 %v1148, 7
      %v1150 = vsub.s32 %v1147, %v1149
      %v1151 = vrot.slane %v1143, %v1150
      %1153 = vset.pattern.permute.xlu0 0
      %1154 = vperm.xlu0 %1153, %v1095
      %v1155 = vpop.permute.xlu0 %1154
      %v1158 = vunpack.c.l.s4 839922192
      %v1159 = vunpack.c.0.s8 %v1158
      %v1160 = vlaneseq
      %v1161 = vshrl.u32 %v1160, 7
      %v1162 = vsub.s32 %v1159, %v1161
      %v1163 = vrot.slane %v1155, %v1162
      %1165 = vset.pattern.permute.xlu0 0
      %1166 = vperm.xlu0 %1165, %v1096
      %v1167 = vpop.permute.xlu0 %1166
      %v1170 = vunpack.c.l.s4 839922192
      %v1171 = vunpack.c.0.s8 %v1170
      %v1172 = vlaneseq
      %v1173 = vshrl.u32 %v1172, 7
      %v1174 = vsub.s32 %v1171, %v1173
      %v1175 = vrot.slane %v1167, %v1174
      %1177 = vset.pattern.permute.xlu0 0
      %1178 = vperm.xlu0 %1177, %v1097
      %v1179 = vpop.permute.xlu0 %1178
      %v1182 = vunpack.c.l.s4 839922192
      %v1183 = vunpack.c.0.s8 %v1182
      %v1184 = vlaneseq
      %v1185 = vshrl.u32 %v1184, 7
      %v1186 = vsub.s32 %v1183, %v1185
      %v1187 = vrot.slane %v1179, %v1186
      %1189 = vset.pattern.permute.xlu0 0
      %1190 = vperm.xlu0 %1189, %v1098
      %v1191 = vpop.permute.xlu0 %1190
      %v1194 = vunpack.c.l.s4 839922192
      %v1195 = vunpack.c.0.s8 %v1194
      %v1196 = vlaneseq
      %v1197 = vshrl.u32 %v1196, 7
      %v1198 = vsub.s32 %v1195, %v1197
      %v1199 = vrot.slane %v1191, %v1198
      %1201 = vset.pattern.permute.xlu0 0
      %1202 = vperm.xlu0 %1201, %v1099
      %v1203 = vpop.permute.xlu0 %1202
      %v1206 = vunpack.c.l.s4 839922192
      %v1207 = vunpack.c.0.s8 %v1206
      %v1208 = vlaneseq
      %v1209 = vshrl.u32 %v1208, 7
      %v1210 = vsub.s32 %v1207, %v1209
      %v1211 = vrot.slane %v1203, %v1210
      %1213 = vset.pattern.permute.xlu0 0
      %1214 = vperm.xlu0 %1213, %v1100
      %v1215 = vpop.permute.xlu0 %1214
      %v1218 = vunpack.c.l.s4 839922192
      %v1219 = vunpack.c.0.s8 %v1218
      %v1220 = vlaneseq
      %v1221 = vshrl.u32 %v1220, 7
      %v1222 = vsub.s32 %v1219, %v1221
      %v1223 = vrot.slane %v1215, %v1222
      %1225 = vset.pattern.permute.xlu0 0
      %1226 = vperm.xlu0 %1225, %v1101
      %v1227 = vpop.permute.xlu0 %1226
      %v1230 = vunpack.c.l.s4 839922192
      %v1231 = vunpack.c.0.s8 %v1230
      %v1232 = vlaneseq
      %v1233 = vshrl.u32 %v1232, 7
      %v1234 = vsub.s32 %v1231, %v1233
      %v1235 = vrot.slane %v1227, %v1234
      %1237 = vset.pattern.permute.xlu0 0
      %1238 = vperm.xlu0 %1237, %v1102
      %v1239 = vpop.permute.xlu0 %1238
      %v1242 = vunpack.c.l.s4 839922192
      %v1243 = vunpack.c.0.s8 %v1242
      %v1244 = vlaneseq
      %v1245 = vshrl.u32 %v1244, 7
      %v1246 = vsub.s32 %v1243, %v1245
      %v1247 = vrot.slane %v1239, %v1246
      %1249 = vset.pattern.permute.xlu0 0
      %1250 = vperm.xlu0 %1249, %v1103
      %v1251 = vpop.permute.xlu0 %1250
      %v1254 = vunpack.c.l.s4 839922192
      %v1255 = vunpack.c.0.s8 %v1254
      %v1256 = vlaneseq
      %v1257 = vshrl.u32 %v1256, 7
      %v1258 = vsub.s32 %v1255, %v1257
      %v1259 = vrot.slane %v1251, %v1258
      %v1260 = vmul.bf16 %v1078, %v1115
      %v1261 = vmul.bf16 %v1079, %v1127
      %v1262 = vmul.bf16 %v1080, %v1139
      %v1263 = vmul.bf16 %v1081, %v1151
      %v1264 = vmul.bf16 %v1082, %v1163
      %v1265 = vmul.bf16 %v1083, %v1175
      %v1266 = vmul.bf16 %v1084, %v1187
      %v1267 = vmul.bf16 %v1085, %v1199
      %v1268 = vmul.bf16 %v1086, %v1211
      %v1269 = vmul.bf16 %v1087, %v1223
      %v1270 = vmul.bf16 %v1088, %v1235
      %v1271 = vmul.bf16 %v1089, %v1247
      %v1272 = vmul.bf16 %v1090, %v1259
      %v1273 = vld [vmem:[#allocation2 + $0x30] sm:$0x7]
      %s1274 = scalar_lea.vmem %s1, 52
      %v1275 = vld [vmem:[%s1274] sm:$0xf]
      %v1276 = vld [vmem:[%s1274 + $0x4] sm:$0xf]
      %v1277 = vld [vmem:[%s1274 + $0x8] sm:$0xf]
      %v1278 = vld [vmem:[%s1274 + $0xc] sm:$0xf]
      %v1279 = vld [vmem:[%s1274 + $0x10] sm:$0xf]
      %v1280 = vld [vmem:[%s1274 + $0x14] sm:$0xf]
      %v1281 = vld [vmem:[%s1274 + $0x18] sm:$0xf]
      %v1282 = vld [vmem:[%s1274 + $0x1c] sm:$0xf]
      %v1283 = vld [vmem:[%s1274 + $0x20] sm:$0xf]
      %v1284 = vld [vmem:[%s1274 + $0x24] sm:$0xf]
      %v1285 = vld [vmem:[%s1274 + $0x28] sm:$0xf]
      %v1286 = vld [vmem:[%s1274 + $0x2c] sm:$0xf]
      %v1287 = vld [vmem:[%s1274 + $0x30] sm:$0x3]
      %1289 = vset.pattern.permute.xlu0 0
      %1290 = vperm.xlu0 %1289, %v1275
      %v1291 = vpop.permute.xlu0 %1290
      %v1294 = vunpack.c.l.s4 839922192
      %v1295 = vunpack.c.0.s8 %v1294
      %v1296 = vlaneseq
      %v1297 = vshrl.u32 %v1296, 7
      %v1298 = vsub.s32 %v1295, %v1297
      %v1299 = vrot.slane %v1291, %v1298
      %1301 = vset.pattern.permute.xlu0 0
      %1302 = vperm.xlu0 %1301, %v1276
      %v1303 = vpop.permute.xlu0 %1302
      %v1306 = vunpack.c.l.s4 839922192
      %v1307 = vunpack.c.0.s8 %v1306
      %v1308 = vlaneseq
      %v1309 = vshrl.u32 %v1308, 7
      %v1310 = vsub.s32 %v1307, %v1309
      %v1311 = vrot.slane %v1303, %v1310
      %1313 = vset.pattern.permute.xlu0 0
      %1314 = vperm.xlu0 %1313, %v1277
      %v1315 = vpop.permute.xlu0 %1314
      %v1318 = vunpack.c.l.s4 839922192
      %v1319 = vunpack.c.0.s8 %v1318
      %v1320 = vlaneseq
      %v1321 = vshrl.u32 %v1320, 7
      %v1322 = vsub.s32 %v1319, %v1321
      %v1323 = vrot.slane %v1315, %v1322
      %1325 = vset.pattern.permute.xlu0 0
      %1326 = vperm.xlu0 %1325, %v1278
      %v1327 = vpop.permute.xlu0 %1326
      %v1330 = vunpack.c.l.s4 839922192
      %v1331 = vunpack.c.0.s8 %v1330
      %v1332 = vlaneseq
      %v1333 = vshrl.u32 %v1332, 7
      %v1334 = vsub.s32 %v1331, %v1333
      %v1335 = vrot.slane %v1327, %v1334
      %1337 = vset.pattern.permute.xlu0 0
      %1338 = vperm.xlu0 %1337, %v1279
      %v1339 = vpop.permute.xlu0 %1338
      %v1342 = vunpack.c.l.s4 839922192
      %v1343 = vunpack.c.0.s8 %v1342
      %v1344 = vlaneseq
      %v1345 = vshrl.u32 %v1344, 7
      %v1346 = vsub.s32 %v1343, %v1345
      %v1347 = vrot.slane %v1339, %v1346
      %1349 = vset.pattern.permute.xlu0 0
      %1350 = vperm.xlu0 %1349, %v1280
      %v1351 = vpop.permute.xlu0 %1350
      %v1354 = vunpack.c.l.s4 839922192
      %v1355 = vunpack.c.0.s8 %v1354
      %v1356 = vlaneseq
      %v1357 = vshrl.u32 %v1356, 7
      %v1358 = vsub.s32 %v1355, %v1357
      %v1359 = vrot.slane %v1351, %v1358
      %1361 = vset.pattern.permute.xlu0 0
      %1362 = vperm.xlu0 %1361, %v1281
      %v1363 = vpop.permute.xlu0 %1362
      %v1366 = vunpack.c.l.s4 839922192
      %v1367 = vunpack.c.0.s8 %v1366
      %v1368 = vlaneseq
      %v1369 = vshrl.u32 %v1368, 7
      %v1370 = vsub.s32 %v1367, %v1369
      %v1371 = vrot.slane %v1363, %v1370
      %1373 = vset.pattern.permute.xlu0 0
      %1374 = vperm.xlu0 %1373, %v1282
      %v1375 = vpop.permute.xlu0 %1374
      %v1378 = vunpack.c.l.s4 839922192
      %v1379 = vunpack.c.0.s8 %v1378
      %v1380 = vlaneseq
      %v1381 = vshrl.u32 %v1380, 7
      %v1382 = vsub.s32 %v1379, %v1381
      %v1383 = vrot.slane %v1375, %v1382
      %1385 = vset.pattern.permute.xlu0 0
      %1386 = vperm.xlu0 %1385, %v1283
      %v1387 = vpop.permute.xlu0 %1386
      %v1390 = vunpack.c.l.s4 839922192
      %v1391 = vunpack.c.0.s8 %v1390
      %v1392 = vlaneseq
      %v1393 = vshrl.u32 %v1392, 7
      %v1394 = vsub.s32 %v1391, %v1393
      %v1395 = vrot.slane %v1387, %v1394
      %1397 = vset.pattern.permute.xlu0 0
      %1398 = vperm.xlu0 %1397, %v1284
      %v1399 = vpop.permute.xlu0 %1398
      %v1402 = vunpack.c.l.s4 839922192
      %v1403 = vunpack.c.0.s8 %v1402
      %v1404 = vlaneseq
      %v1405 = vshrl.u32 %v1404, 7
      %v1406 = vsub.s32 %v1403, %v1405
      %v1407 = vrot.slane %v1399, %v1406
      %1409 = vset.pattern.permute.xlu0 0
      %1410 = vperm.xlu0 %1409, %v1285
      %v1411 = vpop.permute.xlu0 %1410
      %v1414 = vunpack.c.l.s4 839922192
      %v1415 = vunpack.c.0.s8 %v1414
      %v1416 = vlaneseq
      %v1417 = vshrl.u32 %v1416, 7
      %v1418 = vsub.s32 %v1415, %v1417
      %v1419 = vrot.slane %v1411, %v1418
      %1421 = vset.pattern.permute.xlu0 0
      %1422 = vperm.xlu0 %1421, %v1286
      %v1423 = vpop.permute.xlu0 %1422
      %v1426 = vunpack.c.l.s4 839922192
      %v1427 = vunpack.c.0.s8 %v1426
      %v1428 = vlaneseq
      %v1429 = vshrl.u32 %v1428, 7
      %v1430 = vsub.s32 %v1427, %v1429
      %v1431 = vrot.slane %v1423, %v1430
      %1433 = vset.pattern.permute.xlu0 0
      %1434 = vperm.xlu0 %1433, %v1287
      %v1435 = vpop.permute.xlu0 %1434
      %v1438 = vunpack.c.l.s4 839922192
      %v1439 = vunpack.c.0.s8 %v1438
      %v1440 = vlaneseq
      %v1441 = vshrl.u32 %v1440, 7
      %v1442 = vsub.s32 %v1439, %v1441
      %v1443 = vrot.slane %v1435, %v1442
      %vm1444 = vsmask.f32 256
      %vm1445 = vsmask.f32 4368
      %vm1446 = vmor %vm1444, %vm1445
      %v1448 = vshrl.u32 %v1299, 16
      %v1450 = vrot.slane %v1448, 7
      %v1451 = vshll.u32 %v1299, 16
      %v1453 = vor.u32 %v1450, %v1451
      %v1454 = vrot.slane %v1450, 4
      %v1456 = vshrl.u32 %v1311, 16
      %v1458 = vrot.slane %v1456, 7
      %v1459 = vshll.u32 %v1311, 16
      %v1461 = vor.u32 %v1458, %v1459
      %v1462 = vsel %vm1446, %v1454, %v1461
      %v1463 = vrot.slane %v1458, 4
      %v1465 = vshrl.u32 %v1323, 16
      %v1467 = vrot.slane %v1465, 7
      %v1468 = vshll.u32 %v1323, 16
      %v1470 = vor.u32 %v1467, %v1468
      %v1471 = vsel %vm1446, %v1463, %v1470
      %v1472 = vrot.slane %v1467, 4
      %v1474 = vshrl.u32 %v1335, 16
      %v1476 = vrot.slane %v1474, 7
      %v1477 = vshll.u32 %v1335, 16
      %v1479 = vor.u32 %v1476, %v1477
      %v1480 = vsel %vm1446, %v1472, %v1479
      %v1481 = vrot.slane %v1476, 4
      %v1483 = vshrl.u32 %v1347, 16
      %v1485 = vrot.slane %v1483, 7
      %v1486 = vshll.u32 %v1347, 16
      %v1488 = vor.u32 %v1485, %v1486
      %v1489 = vsel %vm1446, %v1481, %v1488
      %v1490 = vrot.slane %v1485, 4
      %v1492 = vshrl.u32 %v1359, 16
      %v1494 = vrot.slane %v1492, 7
      %v1495 = vshll.u32 %v1359, 16
      %v1497 = vor.u32 %v1494, %v1495
      %v1498 = vsel %vm1446, %v1490, %v1497
      %v1499 = vrot.slane %v1494, 4
      %v1501 = vshrl.u32 %v1371, 16
      %v1503 = vrot.slane %v1501, 7
      %v1504 = vshll.u32 %v1371, 16
      %v1506 = vor.u32 %v1503, %v1504
      %v1507 = vsel %vm1446, %v1499, %v1506
      %v1508 = vrot.slane %v1503, 4
      %v1510 = vshrl.u32 %v1383, 16
      %v1512 = vrot.slane %v1510, 7
      %v1513 = vshll.u32 %v1383, 16
      %v1515 = vor.u32 %v1512, %v1513
      %v1516 = vsel %vm1446, %v1508, %v1515
      %v1517 = vrot.slane %v1512, 4
      %v1519 = vshrl.u32 %v1395, 16
      %v1521 = vrot.slane %v1519, 7
      %v1522 = vshll.u32 %v1395, 16
      %v1524 = vor.u32 %v1521, %v1522
      %v1525 = vsel %vm1446, %v1517, %v1524
      %v1526 = vrot.slane %v1521, 4
      %v1528 = vshrl.u32 %v1407, 16
      %v1530 = vrot.slane %v1528, 7
      %v1531 = vshll.u32 %v1407, 16
      %v1533 = vor.u32 %v1530, %v1531
      %v1534 = vsel %vm1446, %v1526, %v1533
      %v1535 = vrot.slane %v1530, 4
      %v1537 = vshrl.u32 %v1419, 16
      %v1539 = vrot.slane %v1537, 7
      %v1540 = vshll.u32 %v1419, 16
      %v1542 = vor.u32 %v1539, %v1540
      %v1543 = vsel %vm1446, %v1535, %v1542
      %v1544 = vrot.slane %v1539, 4
      %v1546 = vshrl.u32 %v1431, 16
      %v1548 = vrot.slane %v1546, 7
      %v1549 = vshll.u32 %v1431, 16
      %v1551 = vor.u32 %v1548, %v1549
      %v1552 = vsel %vm1446, %v1544, %v1551
      %v1553 = vrot.slane %v1548, 4
      %v1555 = vshrl.u32 %v1443, 16
      %v1557 = vrot.slane %v1555, 7
      %v1558 = vshll.u32 %v1443, 16
      %v1560 = vor.u32 %v1557, %v1558
      %v1561 = vsel %vm1446, %v1553, %v1560
      %v1575 = vmul.bf16 %v1078, %v1453
      %v1576 = vmul.bf16 %v1079, %v1462
      %v1577 = vmul.bf16 %v1080, %v1471
      %v1578 = vmul.bf16 %v1081, %v1480
      %v1579 = vmul.bf16 %v1082, %v1489
      %v1580 = vmul.bf16 %v1083, %v1498
      %v1581 = vmul.bf16 %v1084, %v1507
      %v1582 = vmul.bf16 %v1085, %v1516
      %v1583 = vmul.bf16 %v1086, %v1525
      %v1584 = vmul.bf16 %v1087, %v1534
      %v1585 = vmul.bf16 %v1088, %v1543
      %v1586 = vmul.bf16 %v1089, %v1552
      %v1587 = vmul.bf16 %v1273, %v1561
      %v1588 = vld [vmem:[#allocation2] sm:$0xe]
      %s1589 = scalar_lea.vmem %s1, 104
      %v1590 = vld [vmem:[%s1589] sm:$0xf]
      %v1591 = vld [vmem:[%s1589 + $0x4] sm:$0xf]
      %v1592 = vld [vmem:[%s1589 + $0x8] sm:$0xf]
      %v1593 = vld [vmem:[%s1589 + $0xc] sm:$0xf]
      %v1594 = vld [vmem:[%s1589 + $0x10] sm:$0xf]
      %v1595 = vld [vmem:[%s1589 + $0x14] sm:$0xf]
      %v1596 = vld [vmem:[%s1589 + $0x18] sm:$0xf]
      %v1597 = vld [vmem:[%s1589 + $0x1c] sm:$0xf]
      %v1598 = vld [vmem:[%s1589 + $0x20] sm:$0xf]
      %v1599 = vld [vmem:[%s1589 + $0x24] sm:$0xf]
      %v1600 = vld [vmem:[%s1589 + $0x28] sm:$0xf]
      %v1601 = vld [vmem:[%s1589 + $0x2c] sm:$0xf]
      %v1602 = vld [vmem:[%s1589 + $0x30] sm:$0x3]
      %1604 = vset.pattern.permute.xlu0 0
      %1605 = vperm.xlu0 %1604, %v1590
      %v1606 = vpop.permute.xlu0 %1605
      %v1609 = vunpack.c.l.s4 839922192
      %v1610 = vunpack.c.0.s8 %v1609
      %v1611 = vlaneseq
      %v1612 = vshrl.u32 %v1611, 7
      %v1613 = vsub.s32 %v1610, %v1612
      %v1614 = vrot.slane %v1606, %v1613
      %1616 = vset.pattern.permute.xlu0 0
      %1617 = vperm.xlu0 %1616, %v1591
      %v1618 = vpop.permute.xlu0 %1617
      %v1621 = vunpack.c.l.s4 839922192
      %v1622 = vunpack.c.0.s8 %v1621
      %v1623 = vlaneseq
      %v1624 = vshrl.u32 %v1623, 7
      %v1625 = vsub.s32 %v1622, %v1624
      %v1626 = vrot.slane %v1618, %v1625
      %1628 = vset.pattern.permute.xlu0 0
      %1629 = vperm.xlu0 %1628, %v1592
      %v1630 = vpop.permute.xlu0 %1629
      %v1633 = vunpack.c.l.s4 839922192
      %v1634 = vunpack.c.0.s8 %v1633
      %v1635 = vlaneseq
      %v1636 = vshrl.u32 %v1635, 7
      %v1637 = vsub.s32 %v1634, %v1636
      %v1638 = vrot.slane %v1630, %v1637
      %1640 = vset.pattern.permute.xlu0 0
      %1641 = vperm.xlu0 %1640, %v1593
      %v1642 = vpop.permute.xlu0 %1641
      %v1645 = vunpack.c.l.s4 839922192
      %v1646 = vunpack.c.0.s8 %v1645
      %v1647 = vlaneseq
      %v1648 = vshrl.u32 %v1647, 7
      %v1649 = vsub.s32 %v1646, %v1648
      %v1650 = vrot.slane %v1642, %v1649
      %1652 = vset.pattern.permute.xlu0 0
      %1653 = vperm.xlu0 %1652, %v1594
      %v1654 = vpop.permute.xlu0 %1653
      %v1657 = vunpack.c.l.s4 839922192
      %v1658 = vunpack.c.0.s8 %v1657
      %v1659 = vlaneseq
      %v1660 = vshrl.u32 %v1659, 7
      %v1661 = vsub.s32 %v1658, %v1660
      %v1662 = vrot.slane %v1654, %v1661
      %1664 = vset.pattern.permute.xlu0 0
      %1665 = vperm.xlu0 %1664, %v1595
      %v1666 = vpop.permute.xlu0 %1665
      %v1669 = vunpack.c.l.s4 839922192
      %v1670 = vunpack.c.0.s8 %v1669
      %v1671 = vlaneseq
      %v1672 = vshrl.u32 %v1671, 7
      %v1673 = vsub.s32 %v1670, %v1672
      %v1674 = vrot.slane %v1666, %v1673
      %1676 = vset.pattern.permute.xlu0 0
      %1677 = vperm.xlu0 %1676, %v1596
      %v1678 = vpop.permute.xlu0 %1677
      %v1681 = vunpack.c.l.s4 839922192
      %v1682 = vunpack.c.0.s8 %v1681
      %v1683 = vlaneseq
      %v1684 = vshrl.u32 %v1683, 7
      %v1685 = vsub.s32 %v1682, %v1684
      %v1686 = vrot.slane %v1678, %v1685
      %1688 = vset.pattern.permute.xlu0 0
      %1689 = vperm.xlu0 %1688, %v1597
      %v1690 = vpop.permute.xlu0 %1689
      %v1693 = vunpack.c.l.s4 839922192
      %v1694 = vunpack.c.0.s8 %v1693
      %v1695 = vlaneseq
      %v1696 = vshrl.u32 %v1695, 7
      %v1697 = vsub.s32 %v1694, %v1696
      %v1698 = vrot.slane %v1690, %v1697
      %1700 = vset.pattern.permute.xlu0 0
      %1701 = vperm.xlu0 %1700, %v1598
      %v1702 = vpop.permute.xlu0 %1701
      %v1705 = vunpack.c.l.s4 839922192
      %v1706 = vunpack.c.0.s8 %v1705
      %v1707 = vlaneseq
      %v1708 = vshrl.u32 %v1707, 7
      %v1709 = vsub.s32 %v1706, %v1708
      %v1710 = vrot.slane %v1702, %v1709
      %1712 = vset.pattern.permute.xlu0 0
      %1713 = vperm.xlu0 %1712, %v1599
      %v1714 = vpop.permute.xlu0 %1713
      %v1717 = vunpack.c.l.s4 839922192
      %v1718 = vunpack.c.0.s8 %v1717
      %v1719 = vlaneseq
      %v1720 = vshrl.u32 %v1719, 7
      %v1721 = vsub.s32 %v1718, %v1720
      %v1722 = vrot.slane %v1714, %v1721
      %1724 = vset.pattern.permute.xlu0 0
      %1725 = vperm.xlu0 %1724, %v1600
      %v1726 = vpop.permute.xlu0 %1725
      %v1729 = vunpack.c.l.s4 839922192
      %v1730 = vunpack.c.0.s8 %v1729
      %v1731 = vlaneseq
      %v1732 = vshrl.u32 %v1731, 7
      %v1733 = vsub.s32 %v1730, %v1732
      %v1734 = vrot.slane %v1726, %v1733
      %1736 = vset.pattern.permute.xlu0 0
      %1737 = vperm.xlu0 %1736, %v1601
      %v1738 = vpop.permute.xlu0 %1737
      %v1741 = vunpack.c.l.s4 839922192
      %v1742 = vunpack.c.0.s8 %v1741
      %v1743 = vlaneseq
      %v1744 = vshrl.u32 %v1743, 7
      %v1745 = vsub.s32 %v1742, %v1744
      %v1746 = vrot.slane %v1738, %v1745
      %1748 = vset.pattern.permute.xlu0 0
      %1749 = vperm.xlu0 %1748, %v1602
      %v1750 = vpop.permute.xlu0 %1749
      %v1753 = vunpack.c.l.s4 839922192
      %v1754 = vunpack.c.0.s8 %v1753
      %v1755 = vlaneseq
      %v1756 = vshrl.u32 %v1755, 7
      %v1757 = vsub.s32 %v1754, %v1756
      %v1758 = vrot.slane %v1750, %v1757
      %vm1772 = vcmask 1040384
      %vm1773 = vcmask 1044484
      %vm1774 = vmor %vm1772, %vm1773
      %v1775 = vrot.slane %v1614, 7
      %v1776 = vrot.slane %v1775, 4
      %v1777 = vrot.slane %v1626, 7
      %v1778 = vsel %vm1774, %v1776, %v1777
      %v1779 = vrot.slane %v1777, 4
      %v1780 = vrot.slane %v1638, 7
      %v1781 = vsel %vm1774, %v1779, %v1780
      %v1782 = vrot.slane %v1780, 4
      %v1783 = vrot.slane %v1650, 7
      %v1784 = vsel %vm1774, %v1782, %v1783
      %v1785 = vrot.slane %v1783, 4
      %v1786 = vrot.slane %v1662, 7
      %v1787 = vsel %vm1774, %v1785, %v1786
      %v1788 = vrot.slane %v1786, 4
      %v1789 = vrot.slane %v1674, 7
      %v1790 = vsel %vm1774, %v1788, %v1789
      %v1791 = vrot.slane %v1789, 4
      %v1792 = vrot.slane %v1686, 7
      %v1793 = vsel %vm1774, %v1791, %v1792
      %v1794 = vrot.slane %v1792, 4
      %v1795 = vrot.slane %v1698, 7
      %v1796 = vsel %vm1774, %v1794, %v1795
      %v1797 = vrot.slane %v1795, 4
      %v1798 = vrot.slane %v1710, 7
      %v1799 = vsel %vm1774, %v1797, %v1798
      %v1800 = vrot.slane %v1798, 4
      %v1801 = vrot.slane %v1722, 7
      %v1802 = vsel %vm1774, %v1800, %v1801
      %v1803 = vrot.slane %v1801, 4
      %v1804 = vrot.slane %v1734, 7
      %v1805 = vsel %vm1774, %v1803, %v1804
      %v1806 = vrot.slane %v1804, 4
      %v1807 = vrot.slane %v1746, 7
      %v1808 = vsel %vm1774, %v1806, %v1807
      %v1809 = vrot.slane %v1807, 4
      %v1810 = vrot.slane %v1758, 7
      %v1811 = vsel %vm1774, %v1809, %v1810
      %v1825 = vmul.bf16 %v1588, %v1775
      %v1826 = vmul.bf16 %v1079, %v1778
      %v1827 = vmul.bf16 %v1080, %v1781
      %v1828 = vmul.bf16 %v1081, %v1784
      %v1829 = vmul.bf16 %v1082, %v1787
      %v1830 = vmul.bf16 %v1083, %v1790
      %v1831 = vmul.bf16 %v1084, %v1793
      %v1832 = vmul.bf16 %v1085, %v1796
      %v1833 = vmul.bf16 %v1086, %v1799
      %v1834 = vmul.bf16 %v1087, %v1802
      %v1835 = vmul.bf16 %v1088, %v1805
      %v1836 = vmul.bf16 %v1089, %v1808
      %v1837 = vmul.bf16 %v1273, %v1811
      %v1838 = vld [vmem:[#allocation2 + $0x4] sm:$0xe]
      %v1839 = vld [vmem:[#allocation2 + $0x8] sm:$0xf]
      %v1840 = vld [vmem:[#allocation2 + $0xc] sm:$0xf]
      %v1841 = vld [vmem:[#allocation2 + $0x10] sm:$0xf]
      %v1842 = vld [vmem:[#allocation2 + $0x14] sm:$0xf]
      %v1843 = vld [vmem:[#allocation2 + $0x18] sm:$0xf]
      %v1844 = vld [vmem:[#allocation2 + $0x1c] sm:$0xf]
      %v1845 = vld [vmem:[#allocation2 + $0x20] sm:$0xf]
      %v1846 = vld [vmem:[#allocation2 + $0x24] sm:$0xf]
      %v1847 = vld [vmem:[#allocation2 + $0x28] sm:$0xf]
      %v1848 = vld [vmem:[#allocation2 + $0x2c] sm:$0xf]
      %v1849 = vld [vmem:[#allocation2 + $0x30] sm:$0xf]
      %v1850 = vld [vmem:[#allocation2 + $0x34] sm:$0x7]
      %s1851 = scalar_lea.vmem %s1, 156
      %v1852 = vld [vmem:[%s1851] sm:$0xf]
      %v1853 = vld [vmem:[%s1851 + $0x4] sm:$0xf]
      %v1854 = vld [vmem:[%s1851 + $0x8] sm:$0xf]
      %v1855 = vld [vmem:[%s1851 + $0xc] sm:$0xf]
      %v1856 = vld [vmem:[%s1851 + $0x10] sm:$0xf]
      %v1857 = vld [vmem:[%s1851 + $0x14] sm:$0xf]
      %v1858 = vld [vmem:[%s1851 + $0x18] sm:$0xf]
      %v1859 = vld [vmem:[%s1851 + $0x1c] sm:$0xf]
      %v1860 = vld [vmem:[%s1851 + $0x20] sm:$0xf]
      %v1861 = vld [vmem:[%s1851 + $0x24] sm:$0xf]
      %v1862 = vld [vmem:[%s1851 + $0x28] sm:$0xf]
      %v1863 = vld [vmem:[%s1851 + $0x2c] sm:$0xf]
      %v1864 = vld [vmem:[%s1851 + $0x30] sm:$0x3]
      %1866 = vset.pattern.permute.xlu0 0
      %1867 = vperm.xlu0 %1866, %v1852
      %v1868 = vpop.permute.xlu0 %1867
      %v1871 = vunpack.c.l.s4 839922192
      %v1872 = vunpack.c.0.s8 %v1871
      %v1873 = vlaneseq
      %v1874 = vshrl.u32 %v1873, 7
      %v1875 = vsub.s32 %v1872, %v1874
      %v1876 = vrot.slane %v1868, %v1875
      %1878 = vset.pattern.permute.xlu0 0
      %1879 = vperm.xlu0 %1878, %v1853
      %v1880 = vpop.permute.xlu0 %1879
      %v1883 = vunpack.c.l.s4 839922192
      %v1884 = vunpack.c.0.s8 %v1883
      %v1885 = vlaneseq
      %v1886 = vshrl.u32 %v1885, 7
      %v1887 = vsub.s32 %v1884, %v1886
      %v1888 = vrot.slane %v1880, %v1887
      %1890 = vset.pattern.permute.xlu0 0
      %1891 = vperm.xlu0 %1890, %v1854
      %v1892 = vpop.permute.xlu0 %1891
      %v1895 = vunpack.c.l.s4 839922192
      %v1896 = vunpack.c.0.s8 %v1895
      %v1897 = vlaneseq
      %v1898 = vshrl.u32 %v1897, 7
      %v1899 = vsub.s32 %v1896, %v1898
      %v1900 = vrot.slane %v1892, %v1899
      %1902 = vset.pattern.permute.xlu0 0
      %1903 = vperm.xlu0 %1902, %v1855
      %v1904 = vpop.permute.xlu0 %1903
      %v1907 = vunpack.c.l.s4 839922192
      %v1908 = vunpack.c.0.s8 %v1907
      %v1909 = vlaneseq
      %v1910 = vshrl.u32 %v1909, 7
      %v1911 = vsub.s32 %v1908, %v1910
      %v1912 = vrot.slane %v1904, %v1911
      %1914 = vset.pattern.permute.xlu0 0
      %1915 = vperm.xlu0 %1914, %v1856
      %v1916 = vpop.permute.xlu0 %1915
      %v1919 = vunpack.c.l.s4 839922192
      %v1920 = vunpack.c.0.s8 %v1919
      %v1921 = vlaneseq
      %v1922 = vshrl.u32 %v1921, 7
      %v1923 = vsub.s32 %v1920, %v1922
      %v1924 = vrot.slane %v1916, %v1923
      %1926 = vset.pattern.permute.xlu0 0
      %1927 = vperm.xlu0 %1926, %v1857
      %v1928 = vpop.permute.xlu0 %1927
      %v1931 = vunpack.c.l.s4 839922192
      %v1932 = vunpack.c.0.s8 %v1931
      %v1933 = vlaneseq
      %v1934 = vshrl.u32 %v1933, 7
      %v1935 = vsub.s32 %v1932, %v1934
      %v1936 = vrot.slane %v1928, %v1935
      %1938 = vset.pattern.permute.xlu0 0
      %1939 = vperm.xlu0 %1938, %v1858
      %v1940 = vpop.permute.xlu0 %1939
      %v1943 = vunpack.c.l.s4 839922192
      %v1944 = vunpack.c.0.s8 %v1943
      %v1945 = vlaneseq
      %v1946 = vshrl.u32 %v1945, 7
      %v1947 = vsub.s32 %v1944, %v1946
      %v1948 = vrot.slane %v1940, %v1947
      %1950 = vset.pattern.permute.xlu0 0
      %1951 = vperm.xlu0 %1950, %v1859
      %v1952 = vpop.permute.xlu0 %1951
      %v1955 = vunpack.c.l.s4 839922192
      %v1956 = vunpack.c.0.s8 %v1955
      %v1957 = vlaneseq
      %v1958 = vshrl.u32 %v1957, 7
      %v1959 = vsub.s32 %v1956, %v1958
      %v1960 = vrot.slane %v1952, %v1959
      %1962 = vset.pattern.permute.xlu0 0
      %1963 = vperm.xlu0 %1962, %v1860
      %v1964 = vpop.permute.xlu0 %1963
      %v1967 = vunpack.c.l.s4 839922192
      %v1968 = vunpack.c.0.s8 %v1967
      %v1969 = vlaneseq
      %v1970 = vshrl.u32 %v1969, 7
      %v1971 = vsub.s32 %v1968, %v1970
      %v1972 = vrot.slane %v1964, %v1971
      %1974 = vset.pattern.permute.xlu0 0
      %1975 = vperm.xlu0 %1974, %v1861
      %v1976 = vpop.permute.xlu0 %1975
      %v1979 = vunpack.c.l.s4 839922192
      %v1980 = vunpack.c.0.s8 %v1979
      %v1981 = vlaneseq
      %v1982 = vshrl.u32 %v1981, 7
      %v1983 = vsub.s32 %v1980, %v1982
      %v1984 = vrot.slane %v1976, %v1983
      %1986 = vset.pattern.permute.xlu0 0
      %1987 = vperm.xlu0 %1986, %v1862
      %v1988 = vpop.permute.xlu0 %1987
      %v1991 = vunpack.c.l.s4 839922192
      %v1992 = vunpack.c.0.s8 %v1991
      %v1993 = vlaneseq
      %v1994 = vshrl.u32 %v1993, 7
      %v1995 = vsub.s32 %v1992, %v1994
      %v1996 = vrot.slane %v1988, %v1995
      %1998 = vset.pattern.permute.xlu0 0
      %1999 = vperm.xlu0 %1998, %v1863
      %v2000 = vpop.permute.xlu0 %1999
      %v2003 = vunpack.c.l.s4 839922192
      %v2004 = vunpack.c.0.s8 %v2003
      %v2005 = vlaneseq
      %v2006 = vshrl.u32 %v2005, 7
      %v2007 = vsub.s32 %v2004, %v2006
      %v2008 = vrot.slane %v2000, %v2007
      %2010 = vset.pattern.permute.xlu0 0
      %2011 = vperm.xlu0 %2010, %v1864
      %v2012 = vpop.permute.xlu0 %2011
      %v2015 = vunpack.c.l.s4 839922192
      %v2016 = vunpack.c.0.s8 %v2015
      %v2017 = vlaneseq
      %v2018 = vshrl.u32 %v2017, 7
      %v2019 = vsub.s32 %v2016, %v2018
      %v2020 = vrot.slane %v2012, %v2019
      %v2034 = vrot.slane %v1876, 7
      %v2035 = vrot.slane %v2034, 4
      %v2036 = vrot.slane %v1888, 7
      %v2037 = vsel %vm1774, %v2035, %v2036
      %v2038 = vrot.slane %v2036, 4
      %v2039 = vrot.slane %v1900, 7
      %v2040 = vsel %vm1774, %v2038, %v2039
      %v2041 = vrot.slane %v2039, 4
      %v2042 = vrot.slane %v1912, 7
      %v2043 = vsel %vm1774, %v2041, %v2042
      %v2044 = vrot.slane %v2042, 4
      %v2045 = vrot.slane %v1924, 7
      %v2046 = vsel %vm1774, %v2044, %v2045
      %v2047 = vrot.slane %v2045, 4
      %v2048 = vrot.slane %v1936, 7
      %v2049 = vsel %vm1774, %v2047, %v2048
      %v2050 = vrot.slane %v2048, 4
      %v2051 = vrot.slane %v1948, 7
      %v2052 = vsel %vm1774, %v2050, %v2051
      %v2053 = vrot.slane %v2051, 4
      %v2054 = vrot.slane %v1960, 7
      %v2055 = vsel %vm1774, %v2053, %v2054
      %v2056 = vrot.slane %v2054, 4
      %v2057 = vrot.slane %v1972, 7
      %v2058 = vsel %vm1774, %v2056, %v2057
      %v2059 = vrot.slane %v2057, 4
      %v2060 = vrot.slane %v1984, 7
      %v2061 = vsel %vm1774, %v2059, %v2060
      %v2062 = vrot.slane %v2060, 4
      %v2063 = vrot.slane %v1996, 7
      %v2064 = vsel %vm1774, %v2062, %v2063
      %v2065 = vrot.slane %v2063, 4
      %v2066 = vrot.slane %v2008, 7
      %v2067 = vsel %vm1774, %v2065, %v2066
      %v2068 = vrot.slane %v2066, 4
      %v2069 = vrot.slane %v2020, 7
      %v2070 = vsel %vm1774, %v2068, %v2069
      %v2084 = vmul.bf16 %v1838, %v2034
      %v2085 = vmul.bf16 %v1839, %v2037
      %v2086 = vmul.bf16 %v1840, %v2040
      %v2087 = vmul.bf16 %v1841, %v2043
      %v2088 = vmul.bf16 %v1842, %v2046
      %v2089 = vmul.bf16 %v1843, %v2049
      %v2090 = vmul.bf16 %v1844, %v2052
      %v2091 = vmul.bf16 %v1845, %v2055
      %v2092 = vmul.bf16 %v1846, %v2058
      %v2093 = vmul.bf16 %v1847, %v2061
      %v2094 = vmul.bf16 %v1848, %v2064
      %v2095 = vmul.bf16 %v1849, %v2067
      %v2096 = vmul.bf16 %v1850, %v2070
      %v2097 = vld [vmem:[#allocation2 + $0x34] sm:$0xf]
      %s2098 = scalar_lea.vmem %s1, 208
      %v2099 = vld [vmem:[%s2098] sm:$0xf]
      %v2100 = vld [vmem:[%s2098 + $0x4] sm:$0xf]
      %v2101 = vld [vmem:[%s2098 + $0x8] sm:$0xf]
      %v2102 = vld [vmem:[%s2098 + $0xc] sm:$0xf]
      %v2103 = vld [vmem:[%s2098 + $0x10] sm:$0xf]
      %v2104 = vld [vmem:[%s2098 + $0x14] sm:$0xf]
      %v2105 = vld [vmem:[%s2098 + $0x18] sm:$0xf]
      %v2106 = vld [vmem:[%s2098 + $0x1c] sm:$0xf]
      %v2107 = vld [vmem:[%s2098 + $0x20] sm:$0xf]
      %v2108 = vld [vmem:[%s2098 + $0x24] sm:$0xf]
      %v2109 = vld [vmem:[%s2098 + $0x28] sm:$0xf]
      %v2110 = vld [vmem:[%s2098 + $0x2c] sm:$0xf]
      %v2111 = vld [vmem:[%s2098 + $0x30] sm:$0x3]
      %2113 = vset.pattern.permute.xlu0 0
      %2114 = vperm.xlu0 %2113, %v2099
      %v2115 = vpop.permute.xlu0 %2114
      %v2118 = vunpack.c.l.s4 839922192
      %v2119 = vunpack.c.0.s8 %v2118
      %v2120 = vlaneseq
      %v2121 = vshrl.u32 %v2120, 7
      %v2122 = vsub.s32 %v2119, %v2121
      %v2123 = vrot.slane %v2115, %v2122
      %2125 = vset.pattern.permute.xlu0 0
      %2126 = vperm.xlu0 %2125, %v2100
      %v2127 = vpop.permute.xlu0 %2126
      %v2130 = vunpack.c.l.s4 839922192
      %v2131 = vunpack.c.0.s8 %v2130
      %v2132 = vlaneseq
      %v2133 = vshrl.u32 %v2132, 7
      %v2134 = vsub.s32 %v2131, %v2133
      %v2135 = vrot.slane %v2127, %v2134
      %2137 = vset.pattern.permute.xlu0 0
      %2138 = vperm.xlu0 %2137, %v2101
      %v2139 = vpop.permute.xlu0 %2138
      %v2142 = vunpack.c.l.s4 839922192
      %v2143 = vunpack.c.0.s8 %v2142
      %v2144 = vlaneseq
      %v2145 = vshrl.u32 %v2144, 7
      %v2146 = vsub.s32 %v2143, %v2145
      %v2147 = vrot.slane %v2139, %v2146
      %2149 = vset.pattern.permute.xlu0 0
      %2150 = vperm.xlu0 %2149, %v2102
      %v2151 = vpop.permute.xlu0 %2150
      %v2154 = vunpack.c.l.s4 839922192
      %v2155 = vunpack.c.0.s8 %v2154
      %v2156 = vlaneseq
      %v2157 = vshrl.u32 %v2156, 7
      %v2158 = vsub.s32 %v2155, %v2157
      %v2159 = vrot.slane %v2151, %v2158
      %2161 = vset.pattern.permute.xlu0 0
      %2162 = vperm.xlu0 %2161, %v2103
      %v2163 = vpop.permute.xlu0 %2162
      %v2166 = vunpack.c.l.s4 839922192
      %v2167 = vunpack.c.0.s8 %v2166
      %v2168 = vlaneseq
      %v2169 = vshrl.u32 %v2168, 7
      %v2170 = vsub.s32 %v2167, %v2169
      %v2171 = vrot.slane %v2163, %v2170
      %2173 = vset.pattern.permute.xlu0 0
      %2174 = vperm.xlu0 %2173, %v2104
      %v2175 = vpop.permute.xlu0 %2174
      %v2178 = vunpack.c.l.s4 839922192
      %v2179 = vunpack.c.0.s8 %v2178
      %v2180 = vlaneseq
      %v2181 = vshrl.u32 %v2180, 7
      %v2182 = vsub.s32 %v2179, %v2181
      %v2183 = vrot.slane %v2175, %v2182
      %2185 = vset.pattern.permute.xlu0 0
      %2186 = vperm.xlu0 %2185, %v2105
      %v2187 = vpop.permute.xlu0 %2186
      %v2190 = vunpack.c.l.s4 839922192
      %v2191 = vunpack.c.0.s8 %v2190
      %v2192 = vlaneseq
      %v2193 = vshrl.u32 %v2192, 7
      %v2194 = vsub.s32 %v2191, %v2193
      %v2195 = vrot.slane %v2187, %v2194
      %2197 = vset.pattern.permute.xlu0 0
      %2198 = vperm.xlu0 %2197, %v2106
      %v2199 = vpop.permute.xlu0 %2198
      %v2202 = vunpack.c.l.s4 839922192
      %v2203 = vunpack.c.0.s8 %v2202
      %v2204 = vlaneseq
      %v2205 = vshrl.u32 %v2204, 7
      %v2206 = vsub.s32 %v2203, %v2205
      %v2207 = vrot.slane %v2199, %v2206
      %2209 = vset.pattern.permute.xlu0 0
      %2210 = vperm.xlu0 %2209, %v2107
      %v2211 = vpop.permute.xlu0 %2210
      %v2214 = vunpack.c.l.s4 839922192
      %v2215 = vunpack.c.0.s8 %v2214
      %v2216 = vlaneseq
      %v2217 = vshrl.u32 %v2216, 7
      %v2218 = vsub.s32 %v2215, %v2217
      %v2219 = vrot.slane %v2211, %v2218
      %2221 = vset.pattern.permute.xlu0 0
      %2222 = vperm.xlu0 %2221, %v2108
      %v2223 = vpop.permute.xlu0 %2222
      %v2226 = vunpack.c.l.s4 839922192
      %v2227 = vunpack.c.0.s8 %v2226
      %v2228 = vlaneseq
      %v2229 = vshrl.u32 %v2228, 7
      %v2230 = vsub.s32 %v2227, %v2229
      %v2231 = vrot.slane %v2223, %v2230
      %2233 = vset.pattern.permute.xlu0 0
      %2234 = vperm.xlu0 %2233, %v2109
      %v2235 = vpop.permute.xlu0 %2234
      %v2238 = vunpack.c.l.s4 839922192
      %v2239 = vunpack.c.0.s8 %v2238
      %v2240 = vlaneseq
      %v2241 = vshrl.u32 %v2240, 7
      %v2242 = vsub.s32 %v2239, %v2241
      %v2243 = vrot.slane %v2235, %v2242
      %2245 = vset.pattern.permute.xlu0 0
      %2246 = vperm.xlu0 %2245, %v2110
      %v2247 = vpop.permute.xlu0 %2246
      %v2250 = vunpack.c.l.s4 839922192
      %v2251 = vunpack.c.0.s8 %v2250
      %v2252 = vlaneseq
      %v2253 = vshrl.u32 %v2252, 7
      %v2254 = vsub.s32 %v2251, %v2253
      %v2255 = vrot.slane %v2247, %v2254
      %2257 = vset.pattern.permute.xlu0 0
      %2258 = vperm.xlu0 %2257, %v2111
      %v2259 = vpop.permute.xlu0 %2258
      %v2262 = vunpack.c.l.s4 839922192
      %v2263 = vunpack.c.0.s8 %v2262
      %v2264 = vlaneseq
      %v2265 = vshrl.u32 %v2264, 7
      %v2266 = vsub.s32 %v2263, %v2265
      %v2267 = vrot.slane %v2259, %v2266
      %v2269 = vshrl.u32 %v2123, 16
      %v2271 = vrot.slane %v2269, 6
      %v2272 = vshll.u32 %v2123, 16
      %v2274 = vrot.slane %v2272, 7
      %v2275 = vor.u32 %v2271, %v2274
      %v2276 = vrot.slane %v2275, 4
      %v2278 = vshrl.u32 %v2135, 16
      %v2280 = vrot.slane %v2278, 6
      %v2281 = vshll.u32 %v2135, 16
      %v2283 = vrot.slane %v2281, 7
      %v2284 = vor.u32 %v2280, %v2283
      %v2285 = vsel %vm913, %v2276, %v2284
      %v2286 = vrot.slane %v2284, 4
      %v2288 = vshrl.u32 %v2147, 16
      %v2290 = vrot.slane %v2288, 6
      %v2291 = vshll.u32 %v2147, 16
      %v2293 = vrot.slane %v2291, 7
      %v2294 = vor.u32 %v2290, %v2293
      %v2295 = vsel %vm913, %v2286, %v2294
      %v2296 = vrot.slane %v2294, 4
      %v2298 = vshrl.u32 %v2159, 16
      %v2300 = vrot.slane %v2298, 6
      %v2301 = vshll.u32 %v2159, 16
      %v2303 = vrot.slane %v2301, 7
      %v2304 = vor.u32 %v2300, %v2303
      %v2305 = vsel %vm913, %v2296, %v2304
      %v2306 = vrot.slane %v2304, 4
      %v2308 = vshrl.u32 %v2171, 16
      %v2310 = vrot.slane %v2308, 6
      %v2311 = vshll.u32 %v2171, 16
      %v2313 = vrot.slane %v2311, 7
      %v2314 = vor.u32 %v2310, %v2313
      %v2315 = vsel %vm913, %v2306, %v2314
      %v2316 = vrot.slane %v2314, 4
      %v2318 = vshrl.u32 %v2183, 16
      %v2320 = vrot.slane %v2318, 6
      %v2321 = vshll.u32 %v2183, 16
      %v2323 = vrot.slane %v2321, 7
      %v2324 = vor.u32 %v2320, %v2323
      %v2325 = vsel %vm913, %v2316, %v2324
      %v2326 = vrot.slane %v2324, 4
      %v2328 = vshrl.u32 %v2195, 16
      %v2330 = vrot.slane %v2328, 6
      %v2331 = vshll.u32 %v2195, 16
      %v2333 = vrot.slane %v2331, 7
      %v2334 = vor.u32 %v2330, %v2333
      %v2335 = vsel %vm913, %v2326, %v2334
      %v2336 = vrot.slane %v2334, 4
      %v2338 = vshrl.u32 %v2207, 16
      %v2340 = vrot.slane %v2338, 6
      %v2341 = vshll.u32 %v2207, 16
      %v2343 = vrot.slane %v2341, 7
      %v2344 = vor.u32 %v2340, %v2343
      %v2345 = vsel %vm913, %v2336, %v2344
      %v2346 = vrot.slane %v2344, 4
      %v2348 = vshrl.u32 %v2219, 16
      %v2350 = vrot.slane %v2348, 6
      %v2351 = vshll.u32 %v2219, 16
      %v2353 = vrot.slane %v2351, 7
      %v2354 = vor.u32 %v2350, %v2353
      %v2355 = vsel %vm913, %v2346, %v2354
      %v2356 = vrot.slane %v2354, 4
      %v2358 = vshrl.u32 %v2231, 16
      %v2360 = vrot.slane %v2358, 6
      %v2361 = vshll.u32 %v2231, 16
      %v2363 = vrot.slane %v2361, 7
      %v2364 = vor.u32 %v2360, %v2363
      %v2365 = vsel %vm913, %v2356, %v2364
      %v2366 = vrot.slane %v2364, 4
      %v2368 = vshrl.u32 %v2243, 16
      %v2370 = vrot.slane %v2368, 6
      %v2371 = vshll.u32 %v2243, 16
      %v2373 = vrot.slane %v2371, 7
      %v2374 = vor.u32 %v2370, %v2373
      %v2375 = vsel %vm913, %v2366, %v2374
      %v2376 = vrot.slane %v2374, 4
      %v2378 = vshrl.u32 %v2255, 16
      %v2380 = vrot.slane %v2378, 6
      %v2381 = vshll.u32 %v2255, 16
      %v2383 = vrot.slane %v2381, 7
      %v2384 = vor.u32 %v2380, %v2383
      %v2385 = vsel %vm913, %v2376, %v2384
      %v2386 = vrot.slane %v2384, 4
      %v2388 = vshrl.u32 %v2267, 16
      %v2390 = vrot.slane %v2388, 6
      %v2391 = vshll.u32 %v2267, 16
      %v2393 = vrot.slane %v2391, 7
      %v2394 = vor.u32 %v2390, %v2393
      %v2395 = vsel %vm913, %v2386, %v2394
      %v2409 = vmul.bf16 %v1838, %v2275
      %v2410 = vmul.bf16 %v1839, %v2285
      %v2411 = vmul.bf16 %v1840, %v2295
      %v2412 = vmul.bf16 %v1841, %v2305
      %v2413 = vmul.bf16 %v1842, %v2315
      %v2414 = vmul.bf16 %v1843, %v2325
      %v2415 = vmul.bf16 %v1844, %v2335
      %v2416 = vmul.bf16 %v1845, %v2345
      %v2417 = vmul.bf16 %v1846, %v2355
      %v2418 = vmul.bf16 %v1847, %v2365
      %v2419 = vmul.bf16 %v1848, %v2375
      %v2420 = vmul.bf16 %v1849, %v2385
      %v2421 = vmul.bf16 %v2097, %v2395
      %v2422 = vld [vmem:[#allocation2 + $0x4] sm:$0xc]
      %s2423 = scalar_lea.vmem %s1, 260
      %v2424 = vld [vmem:[%s2423] sm:$0xf]
      %v2425 = vld [vmem:[%s2423 + $0x4] sm:$0xf]
      %v2426 = vld [vmem:[%s2423 + $0x8] sm:$0xf]
      %v2427 = vld [vmem:[%s2423 + $0xc] sm:$0xf]
      %v2428 = vld [vmem:[%s2423 + $0x10] sm:$0xf]
      %v2429 = vld [vmem:[%s2423 + $0x14] sm:$0xf]
      %v2430 = vld [vmem:[%s2423 + $0x18] sm:$0xf]
      %v2431 = vld [vmem:[%s2423 + $0x1c] sm:$0xf]
      %v2432 = vld [vmem:[%s2423 + $0x20] sm:$0xf]
      %v2433 = vld [vmem:[%s2423 + $0x24] sm:$0xf]
      %v2434 = vld [vmem:[%s2423 + $0x28] sm:$0xf]
      %v2435 = vld [vmem:[%s2423 + $0x2c] sm:$0xf]
      %v2436 = vld [vmem:[%s2423 + $0x30] sm:$0x3]
      %2438 = vset.pattern.permute.xlu0 0
      %2439 = vperm.xlu0 %2438, %v2424
      %v2440 = vpop.permute.xlu0 %2439
      %v2443 = vunpack.c.l.s4 839922192
      %v2444 = vunpack.c.0.s8 %v2443
      %v2445 = vlaneseq
      %v2446 = vshrl.u32 %v2445, 7
      %v2447 = vsub.s32 %v2444, %v2446
      %v2448 = vrot.slane %v2440, %v2447
      %2450 = vset.pattern.permute.xlu0 0
      %2451 = vperm.xlu0 %2450, %v2425
      %v2452 = vpop.permute.xlu0 %2451
      %v2455 = vunpack.c.l.s4 839922192
      %v2456 = vunpack.c.0.s8 %v2455
      %v2457 = vlaneseq
      %v2458 = vshrl.u32 %v2457, 7
      %v2459 = vsub.s32 %v2456, %v2458
      %v2460 = vrot.slane %v2452, %v2459
      %2462 = vset.pattern.permute.xlu0 0
      %2463 = vperm.xlu0 %2462, %v2426
      %v2464 = vpop.permute.xlu0 %2463
      %v2467 = vunpack.c.l.s4 839922192
      %v2468 = vunpack.c.0.s8 %v2467
      %v2469 = vlaneseq
      %v2470 = vshrl.u32 %v2469, 7
      %v2471 = vsub.s32 %v2468, %v2470
      %v2472 = vrot.slane %v2464, %v2471
      %2474 = vset.pattern.permute.xlu0 0
      %2475 = vperm.xlu0 %2474, %v2427
      %v2476 = vpop.permute.xlu0 %2475
      %v2479 = vunpack.c.l.s4 839922192
      %v2480 = vunpack.c.0.s8 %v2479
      %v2481 = vlaneseq
      %v2482 = vshrl.u32 %v2481, 7
      %v2483 = vsub.s32 %v2480, %v2482
      %v2484 = vrot.slane %v2476, %v2483
      %2486 = vset.pattern.permute.xlu0 0
      %2487 = vperm.xlu0 %2486, %v2428
      %v2488 = vpop.permute.xlu0 %2487
      %v2491 = vunpack.c.l.s4 839922192
      %v2492 = vunpack.c.0.s8 %v2491
      %v2493 = vlaneseq
      %v2494 = vshrl.u32 %v2493, 7
      %v2495 = vsub.s32 %v2492, %v2494
      %v2496 = vrot.slane %v2488, %v2495
      %2498 = vset.pattern.permute.xlu0 0
      %2499 = vperm.xlu0 %2498, %v2429
      %v2500 = vpop.permute.xlu0 %2499
      %v2503 = vunpack.c.l.s4 839922192
      %v2504 = vunpack.c.0.s8 %v2503
      %v2505 = vlaneseq
      %v2506 = vshrl.u32 %v2505, 7
      %v2507 = vsub.s32 %v2504, %v2506
      %v2508 = vrot.slane %v2500, %v2507
      %2510 = vset.pattern.permute.xlu0 0
      %2511 = vperm.xlu0 %2510, %v2430
      %v2512 = vpop.permute.xlu0 %2511
      %v2515 = vunpack.c.l.s4 839922192
      %v2516 = vunpack.c.0.s8 %v2515
      %v2517 = vlaneseq
      %v2518 = vshrl.u32 %v2517, 7
      %v2519 = vsub.s32 %v2516, %v2518
      %v2520 = vrot.slane %v2512, %v2519
      %2522 = vset.pattern.permute.xlu0 0
      %2523 = vperm.xlu0 %2522, %v2431
      %v2524 = vpop.permute.xlu0 %2523
      %v2527 = vunpack.c.l.s4 839922192
      %v2528 = vunpack.c.0.s8 %v2527
      %v2529 = vlaneseq
      %v2530 = vshrl.u32 %v2529, 7
      %v2531 = vsub.s32 %v2528, %v2530
      %v2532 = vrot.slane %v2524, %v2531
      %2534 = vset.pattern.permute.xlu0 0
      %2535 = vperm.xlu0 %2534, %v2432
      %v2536 = vpop.permute.xlu0 %2535
      %v2539 = vunpack.c.l.s4 839922192
      %v2540 = vunpack.c.0.s8 %v2539
      %v2541 = vlaneseq
      %v2542 = vshrl.u32 %v2541, 7
      %v2543 = vsub.s32 %v2540, %v2542
      %v2544 = vrot.slane %v2536, %v2543
      %2546 = vset.pattern.permute.xlu0 0
      %2547 = vperm.xlu0 %2546, %v2433
      %v2548 = vpop.permute.xlu0 %2547
      %v2551 = vunpack.c.l.s4 839922192
      %v2552 = vunpack.c.0.s8 %v2551
      %v2553 = vlaneseq
      %v2554 = vshrl.u32 %v2553, 7
      %v2555 = vsub.s32 %v2552, %v2554
      %v2556 = vrot.slane %v2548, %v2555
      %2558 = vset.pattern.permute.xlu0 0
      %2559 = vperm.xlu0 %2558, %v2434
      %v2560 = vpop.permute.xlu0 %2559
      %v2563 = vunpack.c.l.s4 839922192
      %v2564 = vunpack.c.0.s8 %v2563
      %v2565 = vlaneseq
      %v2566 = vshrl.u32 %v2565, 7
      %v2567 = vsub.s32 %v2564, %v2566
      %v2568 = vrot.slane %v2560, %v2567
      %2570 = vset.pattern.permute.xlu0 0
      %2571 = vperm.xlu0 %2570, %v2435
      %v2572 = vpop.permute.xlu0 %2571
      %v2575 = vunpack.c.l.s4 839922192
      %v2576 = vunpack.c.0.s8 %v2575
      %v2577 = vlaneseq
      %v2578 = vshrl.u32 %v2577, 7
      %v2579 = vsub.s32 %v2576, %v2578
      %v2580 = vrot.slane %v2572, %v2579
      %2582 = vset.pattern.permute.xlu0 0
      %2583 = vperm.xlu0 %2582, %v2436
      %v2584 = vpop.permute.xlu0 %2583
      %v2587 = vunpack.c.l.s4 839922192
      %v2588 = vunpack.c.0.s8 %v2587
      %v2589 = vlaneseq
      %v2590 = vshrl.u32 %v2589, 7
      %v2591 = vsub.s32 %v2588, %v2590
      %v2592 = vrot.slane %v2584, %v2591
      %vm2606 = vcmask 1041408
      %vm2607 = vcmask 1045508
      %vm2608 = vmor %vm2606, %vm2607
      %v2609 = vrot.slane %v2448, 6
      %v2610 = vrot.slane %v2609, 4
      %v2611 = vrot.slane %v2460, 6
      %v2612 = vsel %vm2608, %v2610, %v2611
      %v2613 = vrot.slane %v2611, 4
      %v2614 = vrot.slane %v2472, 6
      %v2615 = vsel %vm2608, %v2613, %v2614
      %v2616 = vrot.slane %v2614, 4
      %v2617 = vrot.slane %v2484, 6
      %v2618 = vsel %vm2608, %v2616, %v2617
      %v2619 = vrot.slane %v2617, 4
      %v2620 = vrot.slane %v2496, 6
      %v2621 = vsel %vm2608, %v2619, %v2620
      %v2622 = vrot.slane %v2620, 4
      %v2623 = vrot.slane %v2508, 6
      %v2624 = vsel %vm2608, %v2622, %v2623
      %v2625 = vrot.slane %v2623, 4
      %v2626 = vrot.slane %v2520, 6
      %v2627 = vsel %vm2608, %v2625, %v2626
      %v2628 = vrot.slane %v2626, 4
      %v2629 = vrot.slane %v2532, 6
      %v2630 = vsel %vm2608, %v2628, %v2629
      %v2631 = vrot.slane %v2629, 4
      %v2632 = vrot.slane %v2544, 6
      %v2633 = vsel %vm2608, %v2631, %v2632
      %v2634 = vrot.slane %v2632, 4
      %v2635 = vrot.slane %v2556, 6
      %v2636 = vsel %vm2608, %v2634, %v2635
      %v2637 = vrot.slane %v2635, 4
      %v2638 = vrot.slane %v2568, 6
      %v2639 = vsel %vm2608, %v2637, %v2638
      %v2640 = vrot.slane %v2638, 4
      %v2641 = vrot.slane %v2580, 6
      %v2642 = vsel %vm2608, %v2640, %v2641
      %v2643 = vrot.slane %v2641, 4
      %v2644 = vrot.slane %v2592, 6
      %v2645 = vsel %vm2608, %v2643, %v2644
      %v2659 = vmul.bf16 %v2422, %v2609
      %v2660 = vmul.bf16 %v1839, %v2612
      %v2661 = vmul.bf16 %v1840, %v2615
      %v2662 = vmul.bf16 %v1841, %v2618
      %v2663 = vmul.bf16 %v1842, %v2621
      %v2664 = vmul.bf16 %v1843, %v2624
      %v2665 = vmul.bf16 %v1844, %v2627
      %v2666 = vmul.bf16 %v1845, %v2630
      %v2667 = vmul.bf16 %v1846, %v2633
      %v2668 = vmul.bf16 %v1847, %v2636
      %v2669 = vmul.bf16 %v1848, %v2639
      %v2670 = vmul.bf16 %v1849, %v2642
      %v2671 = vmul.bf16 %v2097, %v2645
      %v2672 = vld [vmem:[#allocation2 + $0x8] sm:$0xc]
      %v2673 = vld [vmem:[#allocation2 + $0xc] sm:$0xf]
      %v2674 = vld [vmem:[#allocation2 + $0x10] sm:$0xf]
      %v2675 = vld [vmem:[#allocation2 + $0x14] sm:$0xf]
      %v2676 = vld [vmem:[#allocation2 + $0x18] sm:$0xf]
      %v2677 = vld [vmem:[#allocation2 + $0x1c] sm:$0xf]
      %v2678 = vld [vmem:[#allocation2 + $0x20] sm:$0xf]
      %v2679 = vld [vmem:[#allocation2 + $0x24] sm:$0xf]
      %v2680 = vld [vmem:[#allocation2 + $0x28] sm:$0xf]
      %v2681 = vld [vmem:[#allocation2 + $0x2c] sm:$0xf]
      %v2682 = vld [vmem:[#allocation2 + $0x30] sm:$0xf]
      %v2683 = vld [vmem:[#allocation2 + $0x34] sm:$0xf]
      %v2684 = vld [vmem:[#allocation2 + $0x38] sm:$0xf]
      %s2685 = scalar_lea.vmem %s1, 312
      %v2686 = vld [vmem:[%s2685] sm:$0xf]
      %v2687 = vld [vmem:[%s2685 + $0x4] sm:$0xf]
      %v2688 = vld [vmem:[%s2685 + $0x8] sm:$0xf]
      %v2689 = vld [vmem:[%s2685 + $0xc] sm:$0xf]
      %v2690 = vld [vmem:[%s2685 + $0x10] sm:$0xf]
      %v2691 = vld [vmem:[%s2685 + $0x14] sm:$0xf]
      %v2692 = vld [vmem:[%s2685 + $0x18] sm:$0xf]
      %v2693 = vld [vmem:[%s2685 + $0x1c] sm:$0xf]
      %v2694 = vld [vmem:[%s2685 + $0x20] sm:$0xf]
      %v2695 = vld [vmem:[%s2685 + $0x24] sm:$0xf]
      %v2696 = vld [vmem:[%s2685 + $0x28] sm:$0xf]
      %v2697 = vld [vmem:[%s2685 + $0x2c] sm:$0xf]
      %v2698 = vld [vmem:[%s2685 + $0x30] sm:$0x3]
      %2700 = vset.pattern.permute.xlu0 0
      %2701 = vperm.xlu0 %2700, %v2686
      %v2702 = vpop.permute.xlu0 %2701
      %v2705 = vunpack.c.l.s4 839922192
      %v2706 = vunpack.c.0.s8 %v2705
      %v2707 = vlaneseq
      %v2708 = vshrl.u32 %v2707, 7
      %v2709 = vsub.s32 %v2706, %v2708
      %v2710 = vrot.slane %v2702, %v2709
      %2712 = vset.pattern.permute.xlu0 0
      %2713 = vperm.xlu0 %2712, %v2687
      %v2714 = vpop.permute.xlu0 %2713
      %v2717 = vunpack.c.l.s4 839922192
      %v2718 = vunpack.c.0.s8 %v2717
      %v2719 = vlaneseq
      %v2720 = vshrl.u32 %v2719, 7
      %v2721 = vsub.s32 %v2718, %v2720
      %v2722 = vrot.slane %v2714, %v2721
      %2724 = vset.pattern.permute.xlu0 0
      %2725 = vperm.xlu0 %2724, %v2688
      %v2726 = vpop.permute.xlu0 %2725
      %v2729 = vunpack.c.l.s4 839922192
      %v2730 = vunpack.c.0.s8 %v2729
      %v2731 = vlaneseq
      %v2732 = vshrl.u32 %v2731, 7
      %v2733 = vsub.s32 %v2730, %v2732
      %v2734 = vrot.slane %v2726, %v2733
      %2736 = vset.pattern.permute.xlu0 0
      %2737 = vperm.xlu0 %2736, %v2689
      %v2738 = vpop.permute.xlu0 %2737
      %v2741 = vunpack.c.l.s4 839922192
      %v2742 = vunpack.c.0.s8 %v2741
      %v2743 = vlaneseq
      %v2744 = vshrl.u32 %v2743, 7
      %v2745 = vsub.s32 %v2742, %v2744
      %v2746 = vrot.slane %v2738, %v2745
      %2748 = vset.pattern.permute.xlu0 0
      %2749 = vperm.xlu0 %2748, %v2690
      %v2750 = vpop.permute.xlu0 %2749
      %v2753 = vunpack.c.l.s4 839922192
      %v2754 = vunpack.c.0.s8 %v2753
      %v2755 = vlaneseq
      %v2756 = vshrl.u32 %v2755, 7
      %v2757 = vsub.s32 %v2754, %v2756
      %v2758 = vrot.slane %v2750, %v2757
      %2760 = vset.pattern.permute.xlu0 0
      %2761 = vperm.xlu0 %2760, %v2691
      %v2762 = vpop.permute.xlu0 %2761
      %v2765 = vunpack.c.l.s4 839922192
      %v2766 = vunpack.c.0.s8 %v2765
      %v2767 = vlaneseq
      %v2768 = vshrl.u32 %v2767, 7
      %v2769 = vsub.s32 %v2766, %v2768
      %v2770 = vrot.slane %v2762, %v2769
      %2772 = vset.pattern.permute.xlu0 0
      %2773 = vperm.xlu0 %2772, %v2692
      %v2774 = vpop.permute.xlu0 %2773
      %v2777 = vunpack.c.l.s4 839922192
      %v2778 = vunpack.c.0.s8 %v2777
      %v2779 = vlaneseq
      %v2780 = vshrl.u32 %v2779, 7
      %v2781 = vsub.s32 %v2778, %v2780
      %v2782 = vrot.slane %v2774, %v2781
      %2784 = vset.pattern.permute.xlu0 0
      %2785 = vperm.xlu0 %2784, %v2693
      %v2786 = vpop.permute.xlu0 %2785
      %v2789 = vunpack.c.l.s4 839922192
      %v2790 = vunpack.c.0.s8 %v2789
      %v2791 = vlaneseq
      %v2792 = vshrl.u32 %v2791, 7
      %v2793 = vsub.s32 %v2790, %v2792
      %v2794 = vrot.slane %v2786, %v2793
      %2796 = vset.pattern.permute.xlu0 0
      %2797 = vperm.xlu0 %2796, %v2694
      %v2798 = vpop.permute.xlu0 %2797
      %v2801 = vunpack.c.l.s4 839922192
      %v2802 = vunpack.c.0.s8 %v2801
      %v2803 = vlaneseq
      %v2804 = vshrl.u32 %v2803, 7
      %v2805 = vsub.s32 %v2802, %v2804
      %v2806 = vrot.slane %v2798, %v2805
      %2808 = vset.pattern.permute.xlu0 0
      %2809 = vperm.xlu0 %2808, %v2695
      %v2810 = vpop.permute.xlu0 %2809
      %v2813 = vunpack.c.l.s4 839922192
      %v2814 = vunpack.c.0.s8 %v2813
      %v2815 = vlaneseq
      %v2816 = vshrl.u32 %v2815, 7
      %v2817 = vsub.s32 %v2814, %v2816
      %v2818 = vrot.slane %v2810, %v2817
      %2820 = vset.pattern.permute.xlu0 0
      %2821 = vperm.xlu0 %2820, %v2696
      %v2822 = vpop.permute.xlu0 %2821
      %v2825 = vunpack.c.l.s4 839922192
      %v2826 = vunpack.c.0.s8 %v2825
      %v2827 = vlaneseq
      %v2828 = vshrl.u32 %v2827, 7
      %v2829 = vsub.s32 %v2826, %v2828
      %v2830 = vrot.slane %v2822, %v2829
      %2832 = vset.pattern.permute.xlu0 0
      %2833 = vperm.xlu0 %2832, %v2697
      %v2834 = vpop.permute.xlu0 %2833
      %v2837 = vunpack.c.l.s4 839922192
      %v2838 = vunpack.c.0.s8 %v2837
      %v2839 = vlaneseq
      %v2840 = vshrl.u32 %v2839, 7
      %v2841 = vsub.s32 %v2838, %v2840
      %v2842 = vrot.slane %v2834, %v2841
      %2844 = vset.pattern.permute.xlu0 0
      %2845 = vperm.xlu0 %2844, %v2698
      %v2846 = vpop.permute.xlu0 %2845
      %v2849 = vunpack.c.l.s4 839922192
      %v2850 = vunpack.c.0.s8 %v2849
      %v2851 = vlaneseq
      %v2852 = vshrl.u32 %v2851, 7
      %v2853 = vsub.s32 %v2850, %v2852
      %v2854 = vrot.slane %v2846, %v2853
      %v2868 = vrot.slane %v2710, 6
      %v2869 = vrot.slane %v2868, 4
      %v2870 = vrot.slane %v2722, 6
      %v2871 = vsel %vm2608, %v2869, %v2870
      %v2872 = vrot.slane %v2870, 4
      %v2873 = vrot.slane %v2734, 6
      %v2874 = vsel %vm2608, %v2872, %v2873
      %v2875 = vrot.slane %v2873, 4
      %v2876 = vrot.slane %v2746, 6
      %v2877 = vsel %vm2608, %v2875, %v2876
      %v2878 = vrot.slane %v2876, 4
      %v2879 = vrot.slane %v2758, 6
      %v2880 = vsel %vm2608, %v2878, %v2879
      %v2881 = vrot.slane %v2879, 4
      %v2882 = vrot.slane %v2770, 6
      %v2883 = vsel %vm2608, %v2881, %v2882
      %v2884 = vrot.slane %v2882, 4
      %v2885 = vrot.slane %v2782, 6
      %v2886 = vsel %vm2608, %v2884, %v2885
      %v2887 = vrot.slane %v2885, 4
      %v2888 = vrot.slane %v2794, 6
      %v2889 = vsel %vm2608, %v2887, %v2888
      %v2890 = vrot.slane %v2888, 4
      %v2891 = vrot.slane %v2806, 6
      %v2892 = vsel %vm2608, %v2890, %v2891
      %v2893 = vrot.slane %v2891, 4
      %v2894 = vrot.slane %v2818, 6
      %v2895 = vsel %vm2608, %v2893, %v2894
      %v2896 = vrot.slane %v2894, 4
      %v2897 = vrot.slane %v2830, 6
      %v2898 = vsel %vm2608, %v2896, %v2897
      %v2899 = vrot.slane %v2897, 4
      %v2900 = vrot.slane %v2842, 6
      %v2901 = vsel %vm2608, %v2899, %v2900
      %v2902 = vrot.slane %v2900, 4
      %v2903 = vrot.slane %v2854, 6
      %v2904 = vsel %vm2608, %v2902, %v2903
      %v2918 = vmul.bf16 %v2672, %v2868
      %v2919 = vmul.bf16 %v2673, %v2871
      %v2920 = vmul.bf16 %v2674, %v2874
      %v2921 = vmul.bf16 %v2675, %v2877
      %v2922 = vmul.bf16 %v2676, %v2880
      %v2923 = vmul.bf16 %v2677, %v2883
      %v2924 = vmul.bf16 %v2678, %v2886
      %v2925 = vmul.bf16 %v2679, %v2889
      %v2926 = vmul.bf16 %v2680, %v2892
      %v2927 = vmul.bf16 %v2681, %v2895
      %v2928 = vmul.bf16 %v2682, %v2898
      %v2929 = vmul.bf16 %v2683, %v2901
      %v2930 = vmul.bf16 %v2684, %v2904
      %v2931 = vld [vmem:[#allocation2 + $0x8] sm:$0xc]
      %v2932 = vld [vmem:[#allocation2 + $0xc] sm:$0xf]
      %v2933 = vld [vmem:[#allocation2 + $0x10] sm:$0xf]
      %v2934 = vld [vmem:[#allocation2 + $0x14] sm:$0xf]
      %v2935 = vld [vmem:[#allocation2 + $0x18] sm:$0xf]
      %v2936 = vld [vmem:[#allocation2 + $0x1c] sm:$0xf]
      %v2937 = vld [vmem:[#allocation2 + $0x20] sm:$0xf]
      %v2938 = vld [vmem:[#allocation2 + $0x24] sm:$0xf]
      %v2939 = vld [vmem:[#allocation2 + $0x28] sm:$0xf]
      %v2940 = vld [vmem:[#allocation2 + $0x2c] sm:$0xf]
      %v2941 = vld [vmem:[#allocation2 + $0x30] sm:$0xf]
      %v2942 = vld [vmem:[#allocation2 + $0x34] sm:$0xf]
      %v2943 = vld [vmem:[#allocation2 + $0x38] sm:$0xf]
      %v2944 = vld [vmem:[#allocation2 + $0x3c] sm:$0x1]
      %s2945 = scalar_lea.vmem %s1, 364
      %v2946 = vld [vmem:[%s2945] sm:$0xf]
      %v2947 = vld [vmem:[%s2945 + $0x4] sm:$0xf]
      %v2948 = vld [vmem:[%s2945 + $0x8] sm:$0xf]
      %v2949 = vld [vmem:[%s2945 + $0xc] sm:$0xf]
      %v2950 = vld [vmem:[%s2945 + $0x10] sm:$0xf]
      %v2951 = vld [vmem:[%s2945 + $0x14] sm:$0xf]
      %v2952 = vld [vmem:[%s2945 + $0x18] sm:$0xf]
      %v2953 = vld [vmem:[%s2945 + $0x1c] sm:$0xf]
      %v2954 = vld [vmem:[%s2945 + $0x20] sm:$0xf]
      %v2955 = vld [vmem:[%s2945 + $0x24] sm:$0xf]
      %v2956 = vld [vmem:[%s2945 + $0x28] sm:$0xf]
      %v2957 = vld [vmem:[%s2945 + $0x2c] sm:$0xf]
      %v2958 = vld [vmem:[%s2945 + $0x30] sm:$0x3]
      %2960 = vset.pattern.permute.xlu0 0
      %2961 = vperm.xlu0 %2960, %v2946
      %v2962 = vpop.permute.xlu0 %2961
      %v2965 = vunpack.c.l.s4 839922192
      %v2966 = vunpack.c.0.s8 %v2965
      %v2967 = vlaneseq
      %v2968 = vshrl.u32 %v2967, 7
      %v2969 = vsub.s32 %v2966, %v2968
      %v2970 = vrot.slane %v2962, %v2969
      %2972 = vset.pattern.permute.xlu0 0
      %2973 = vperm.xlu0 %2972, %v2947
      %v2974 = vpop.permute.xlu0 %2973
      %v2977 = vunpack.c.l.s4 839922192
      %v2978 = vunpack.c.0.s8 %v2977
      %v2979 = vlaneseq
      %v2980 = vshrl.u32 %v2979, 7
      %v2981 = vsub.s32 %v2978, %v2980
      %v2982 = vrot.slane %v2974, %v2981
      %2984 = vset.pattern.permute.xlu0 0
      %2985 = vperm.xlu0 %2984, %v2948
      %v2986 = vpop.permute.xlu0 %2985
      %v2989 = vunpack.c.l.s4 839922192
      %v2990 = vunpack.c.0.s8 %v2989
      %v2991 = vlaneseq
      %v2992 = vshrl.u32 %v2991, 7
      %v2993 = vsub.s32 %v2990, %v2992
      %v2994 = vrot.slane %v2986, %v2993
      %2996 = vset.pattern.permute.xlu0 0
      %2997 = vperm.xlu0 %2996, %v2949
      %v2998 = vpop.permute.xlu0 %2997
      %v3001 = vunpack.c.l.s4 839922192
      %v3002 = vunpack.c.0.s8 %v3001
      %v3003 = vlaneseq
      %v3004 = vshrl.u32 %v3003, 7
      %v3005 = vsub.s32 %v3002, %v3004
      %v3006 = vrot.slane %v2998, %v3005
      %3008 = vset.pattern.permute.xlu0 0
      %3009 = vperm.xlu0 %3008, %v2950
      %v3010 = vpop.permute.xlu0 %3009
      %v3013 = vunpack.c.l.s4 839922192
      %v3014 = vunpack.c.0.s8 %v3013
      %v3015 = vlaneseq
      %v3016 = vshrl.u32 %v3015, 7
      %v3017 = vsub.s32 %v3014, %v3016
      %v3018 = vrot.slane %v3010, %v3017
      %3020 = vset.pattern.permute.xlu0 0
      %3021 = vperm.xlu0 %3020, %v2951
      %v3022 = vpop.permute.xlu0 %3021
      %v3025 = vunpack.c.l.s4 839922192
      %v3026 = vunpack.c.0.s8 %v3025
      %v3027 = vlaneseq
      %v3028 = vshrl.u32 %v3027, 7
      %v3029 = vsub.s32 %v3026, %v3028
      %v3030 = vrot.slane %v3022, %v3029
      %3032 = vset.pattern.permute.xlu0 0
      %3033 = vperm.xlu0 %3032, %v2952
      %v3034 = vpop.permute.xlu0 %3033
      %v3037 = vunpack.c.l.s4 839922192
      %v3038 = vunpack.c.0.s8 %v3037
      %v3039 = vlaneseq
      %v3040 = vshrl.u32 %v3039, 7
      %v3041 = vsub.s32 %v3038, %v3040
      %v3042 = vrot.slane %v3034, %v3041
      %3044 = vset.pattern.permute.xlu0 0
      %3045 = vperm.xlu0 %3044, %v2953
      %v3046 = vpop.permute.xlu0 %3045
      %v3049 = vunpack.c.l.s4 839922192
      %v3050 = vunpack.c.0.s8 %v3049
      %v3051 = vlaneseq
      %v3052 = vshrl.u32 %v3051, 7
      %v3053 = vsub.s32 %v3050, %v3052
      %v3054 = vrot.slane %v3046, %v3053
      %3056 = vset.pattern.permute.xlu0 0
      %3057 = vperm.xlu0 %3056, %v2954
      %v3058 = vpop.permute.xlu0 %3057
      %v3061 = vunpack.c.l.s4 839922192
      %v3062 = vunpack.c.0.s8 %v3061
      %v3063 = vlaneseq
      %v3064 = vshrl.u32 %v3063, 7
      %v3065 = vsub.s32 %v3062, %v3064
      %v3066 = vrot.slane %v3058, %v3065
      %3068 = vset.pattern.permute.xlu0 0
      %3069 = vperm.xlu0 %3068, %v2955
      %v3070 = vpop.permute.xlu0 %3069
      %v3073 = vunpack.c.l.s4 839922192
      %v3074 = vunpack.c.0.s8 %v3073
      %v3075 = vlaneseq
      %v3076 = vshrl.u32 %v3075, 7
      %v3077 = vsub.s32 %v3074, %v3076
      %v3078 = vrot.slane %v3070, %v3077
      %3080 = vset.pattern.permute.xlu0 0
      %3081 = vperm.xlu0 %3080, %v2956
      %v3082 = vpop.permute.xlu0 %3081
      %v3085 = vunpack.c.l.s4 839922192
      %v3086 = vunpack.c.0.s8 %v3085
      %v3087 = vlaneseq
      %v3088 = vshrl.u32 %v3087, 7
      %v3089 = vsub.s32 %v3086, %v3088
      %v3090 = vrot.slane %v3082, %v3089
      %3092 = vset.pattern.permute.xlu0 0
      %3093 = vperm.xlu0 %3092, %v2957
      %v3094 = vpop.permute.xlu0 %3093
      %v3097 = vunpack.c.l.s4 839922192
      %v3098 = vunpack.c.0.s8 %v3097
      %v3099 = vlaneseq
      %v3100 = vshrl.u32 %v3099, 7
      %v3101 = vsub.s32 %v3098, %v3100
      %v3102 = vrot.slane %v3094, %v3101
      %3104 = vset.pattern.permute.xlu0 0
      %3105 = vperm.xlu0 %3104, %v2958
      %v3106 = vpop.permute.xlu0 %3105
      %v3109 = vunpack.c.l.s4 839922192
      %v3110 = vunpack.c.0.s8 %v3109
      %v3111 = vlaneseq
      %v3112 = vshrl.u32 %v3111, 7
      %v3113 = vsub.s32 %v3110, %v3112
      %v3114 = vrot.slane %v3106, %v3113
      %vm3115 = vsmask.f32 6416
      %vm3116 = vmor %vm635, %vm3115
      %v3118 = vshrl.u32 %v2970, 16
      %v3120 = vrot.slane %v3118, 5
      %v3121 = vshll.u32 %v2970, 16
      %v3123 = vrot.slane %v3121, 6
      %v3124 = vor.u32 %v3120, %v3123
      %v3125 = vrot.slane %v3124, 4
      %v3127 = vshrl.u32 %v2982, 16
      %v3129 = vrot.slane %v3127, 5
      %v3130 = vshll.u32 %v2982, 16
      %v3132 = vrot.slane %v3130, 6
      %v3133 = vor.u32 %v3129, %v3132
      %v3134 = vsel %vm3116, %v3125, %v3133
      %v3135 = vrot.slane %v3133, 4
      %v3137 = vshrl.u32 %v2994, 16
      %v3139 = vrot.slane %v3137, 5
      %v3140 = vshll.u32 %v2994, 16
      %v3142 = vrot.slane %v3140, 6
      %v3143 = vor.u32 %v3139, %v3142
      %v3144 = vsel %vm3116, %v3135, %v3143
      %v3145 = vrot.slane %v3143, 4
      %v3147 = vshrl.u32 %v3006, 16
      %v3149 = vrot.slane %v3147, 5
      %v3150 = vshll.u32 %v3006, 16
      %v3152 = vrot.slane %v3150, 6
      %v3153 = vor.u32 %v3149, %v3152
      %v3154 = vsel %vm3116, %v3145, %v3153
      %v3155 = vrot.slane %v3153, 4
      %v3157 = vshrl.u32 %v3018, 16
      %v3159 = vrot.slane %v3157, 5
      %v3160 = vshll.u32 %v3018, 16
      %v3162 = vrot.slane %v3160, 6
      %v3163 = vor.u32 %v3159, %v3162
      %v3164 = vsel %vm3116, %v3155, %v3163
      %v3165 = vrot.slane %v3163, 4
      %v3167 = vshrl.u32 %v3030, 16
      %v3169 = vrot.slane %v3167, 5
      %v3170 = vshll.u32 %v3030, 16
      %v3172 = vrot.slane %v3170, 6
      %v3173 = vor.u32 %v3169, %v3172
      %v3174 = vsel %vm3116, %v3165, %v3173
      %v3175 = vrot.slane %v3173, 4
      %v3177 = vshrl.u32 %v3042, 16
      %v3179 = vrot.slane %v3177, 5
      %v3180 = vshll.u32 %v3042, 16
      %v3182 = vrot.slane %v3180, 6
      %v3183 = vor.u32 %v3179, %v3182
      %v3184 = vsel %vm3116, %v3175, %v3183
      %v3185 = vrot.slane %v3183, 4
      %v3187 = vshrl.u32 %v3054, 16
      %v3189 = vrot.slane %v3187, 5
      %v3190 = vshll.u32 %v3054, 16
      %v3192 = vrot.slane %v3190, 6
      %v3193 = vor.u32 %v3189, %v3192
      %v3194 = vsel %vm3116, %v3185, %v3193
      %v3195 = vrot.slane %v3193, 4
      %v3197 = vshrl.u32 %v3066, 16
      %v3199 = vrot.slane %v3197, 5
      %v3200 = vshll.u32 %v3066, 16
      %v3202 = vrot.slane %v3200, 6
      %v3203 = vor.u32 %v3199, %v3202
      %v3204 = vsel %vm3116, %v3195, %v3203
      %v3205 = vrot.slane %v3203, 4
      %v3207 = vshrl.u32 %v3078, 16
      %v3209 = vrot.slane %v3207, 5
      %v3210 = vshll.u32 %v3078, 16
      %v3212 = vrot.slane %v3210, 6
      %v3213 = vor.u32 %v3209, %v3212
      %v3214 = vsel %vm3116, %v3205, %v3213
      %v3215 = vrot.slane %v3213, 4
      %v3217 = vshrl.u32 %v3090, 16
      %v3219 = vrot.slane %v3217, 5
      %v3220 = vshll.u32 %v3090, 16
      %v3222 = vrot.slane %v3220, 6
      %v3223 = vor.u32 %v3219, %v3222
      %v3224 = vsel %vm3116, %v3215, %v3223
      %v3225 = vrot.slane %v3223, 4
      %v3227 = vshrl.u32 %v3102, 16
      %v3229 = vrot.slane %v3227, 5
      %v3230 = vshll.u32 %v3102, 16
      %v3232 = vrot.slane %v3230, 6
      %v3233 = vor.u32 %v3229, %v3232
      %v3234 = vsel %vm3116, %v3225, %v3233
      %v3235 = vrot.slane %v3233, 4
      %v3237 = vshrl.u32 %v3114, 16
      %v3239 = vrot.slane %v3237, 5
      %v3240 = vshll.u32 %v3114, 16
      %v3242 = vrot.slane %v3240, 6
      %v3243 = vor.u32 %v3239, %v3242
      %v3244 = vsel %vm3116, %v3235, %v3243
      %v3245 = vrot.slane %v3239, 4
      %v3260 = vmul.bf16 %v2931, %v3124
      %v3261 = vmul.bf16 %v2932, %v3134
      %v3262 = vmul.bf16 %v2933, %v3144
      %v3263 = vmul.bf16 %v2934, %v3154
      %v3264 = vmul.bf16 %v2935, %v3164
      %v3265 = vmul.bf16 %v2936, %v3174
      %v3266 = vmul.bf16 %v2937, %v3184
      %v3267 = vmul.bf16 %v2938, %v3194
      %v3268 = vmul.bf16 %v2939, %v3204
      %v3269 = vmul.bf16 %v2940, %v3214
      %v3270 = vmul.bf16 %v2941, %v3224
      %v3271 = vmul.bf16 %v2942, %v3234
      %v3272 = vmul.bf16 %v2943, %v3244
      %v3273 = vmul.bf16 %v2944, %v3245
      %v3274 = vld [vmem:[#allocation2 + $0x8] sm:$0x8]
      %s3275 = scalar_lea.vmem %s1, 416
      %v3276 = vld [vmem:[%s3275] sm:$0xf]
      %v3277 = vld [vmem:[%s3275 + $0x4] sm:$0xf]
      %v3278 = vld [vmem:[%s3275 + $0x8] sm:$0xf]
      %v3279 = vld [vmem:[%s3275 + $0xc] sm:$0xf]
      %v3280 = vld [vmem:[%s3275 + $0x10] sm:$0xf]
      %v3281 = vld [vmem:[%s3275 + $0x14] sm:$0xf]
      %v3282 = vld [vmem:[%s3275 + $0x18] sm:$0xf]
      %v3283 = vld [vmem:[%s3275 + $0x1c] sm:$0xf]
      %v3284 = vld [vmem:[%s3275 + $0x20] sm:$0xf]
      %v3285 = vld [vmem:[%s3275 + $0x24] sm:$0xf]
      %v3286 = vld [vmem:[%s3275 + $0x28] sm:$0xf]
      %v3287 = vld [vmem:[%s3275 + $0x2c] sm:$0xf]
      %v3288 = vld [vmem:[%s3275 + $0x30] sm:$0x3]
      %3290 = vset.pattern.permute.xlu0 0
      %3291 = vperm.xlu0 %3290, %v3276
      %v3292 = vpop.permute.xlu0 %3291
      %v3295 = vunpack.c.l.s4 839922192
      %v3296 = vunpack.c.0.s8 %v3295
      %v3297 = vlaneseq
      %v3298 = vshrl.u32 %v3297, 7
      %v3299 = vsub.s32 %v3296, %v3298
      %v3300 = vrot.slane %v3292, %v3299
      %3302 = vset.pattern.permute.xlu0 0
      %3303 = vperm.xlu0 %3302, %v3277
      %v3304 = vpop.permute.xlu0 %3303
      %v3307 = vunpack.c.l.s4 839922192
      %v3308 = vunpack.c.0.s8 %v3307
      %v3309 = vlaneseq
      %v3310 = vshrl.u32 %v3309, 7
      %v3311 = vsub.s32 %v3308, %v3310
      %v3312 = vrot.slane %v3304, %v3311
      %3314 = vset.pattern.permute.xlu0 0
      %3315 = vperm.xlu0 %3314, %v3278
      %v3316 = vpop.permute.xlu0 %3315
      %v3319 = vunpack.c.l.s4 839922192
      %v3320 = vunpack.c.0.s8 %v3319
      %v3321 = vlaneseq
      %v3322 = vshrl.u32 %v3321, 7
      %v3323 = vsub.s32 %v3320, %v3322
      %v3324 = vrot.slane %v3316, %v3323
      %3326 = vset.pattern.permute.xlu0 0
      %3327 = vperm.xlu0 %3326, %v3279
      %v3328 = vpop.permute.xlu0 %3327
      %v3331 = vunpack.c.l.s4 839922192
      %v3332 = vunpack.c.0.s8 %v3331
      %v3333 = vlaneseq
      %v3334 = vshrl.u32 %v3333, 7
      %v3335 = vsub.s32 %v3332, %v3334
      %v3336 = vrot.slane %v3328, %v3335
      %3338 = vset.pattern.permute.xlu0 0
      %3339 = vperm.xlu0 %3338, %v3280
      %v3340 = vpop.permute.xlu0 %3339
      %v3343 = vunpack.c.l.s4 839922192
      %v3344 = vunpack.c.0.s8 %v3343
      %v3345 = vlaneseq
      %v3346 = vshrl.u32 %v3345, 7
      %v3347 = vsub.s32 %v3344, %v3346
      %v3348 = vrot.slane %v3340, %v3347
      %3350 = vset.pattern.permute.xlu0 0
      %3351 = vperm.xlu0 %3350, %v3281
      %v3352 = vpop.permute.xlu0 %3351
      %v3355 = vunpack.c.l.s4 839922192
      %v3356 = vunpack.c.0.s8 %v3355
      %v3357 = vlaneseq
      %v3358 = vshrl.u32 %v3357, 7
      %v3359 = vsub.s32 %v3356, %v3358
      %v3360 = vrot.slane %v3352, %v3359
      %3362 = vset.pattern.permute.xlu0 0
      %3363 = vperm.xlu0 %3362, %v3282
      %v3364 = vpop.permute.xlu0 %3363
      %v3367 = vunpack.c.l.s4 839922192
      %v3368 = vunpack.c.0.s8 %v3367
      %v3369 = vlaneseq
      %v3370 = vshrl.u32 %v3369, 7
      %v3371 = vsub.s32 %v3368, %v3370
      %v3372 = vrot.slane %v3364, %v3371
      %3374 = vset.pattern.permute.xlu0 0
      %3375 = vperm.xlu0 %3374, %v3283
      %v3376 = vpop.permute.xlu0 %3375
      %v3379 = vunpack.c.l.s4 839922192
      %v3380 = vunpack.c.0.s8 %v3379
      %v3381 = vlaneseq
      %v3382 = vshrl.u32 %v3381, 7
      %v3383 = vsub.s32 %v3380, %v3382
      %v3384 = vrot.slane %v3376, %v3383
      %3386 = vset.pattern.permute.xlu0 0
      %3387 = vperm.xlu0 %3386, %v3284
      %v3388 = vpop.permute.xlu0 %3387
      %v3391 = vunpack.c.l.s4 839922192
      %v3392 = vunpack.c.0.s8 %v3391
      %v3393 = vlaneseq
      %v3394 = vshrl.u32 %v3393, 7
      %v3395 = vsub.s32 %v3392, %v3394
      %v3396 = vrot.slane %v3388, %v3395
      %3398 = vset.pattern.permute.xlu0 0
      %3399 = vperm.xlu0 %3398, %v3285
      %v3400 = vpop.permute.xlu0 %3399
      %v3403 = vunpack.c.l.s4 839922192
      %v3404 = vunpack.c.0.s8 %v3403
      %v3405 = vlaneseq
      %v3406 = vshrl.u32 %v3405, 7
      %v3407 = vsub.s32 %v3404, %v3406
      %v3408 = vrot.slane %v3400, %v3407
      %3410 = vset.pattern.permute.xlu0 0
      %3411 = vperm.xlu0 %3410, %v3286
      %v3412 = vpop.permute.xlu0 %3411
      %v3415 = vunpack.c.l.s4 839922192
      %v3416 = vunpack.c.0.s8 %v3415
      %v3417 = vlaneseq
      %v3418 = vshrl.u32 %v3417, 7
      %v3419 = vsub.s32 %v3416, %v3418
      %v3420 = vrot.slane %v3412, %v3419
      %3422 = vset.pattern.permute.xlu0 0
      %3423 = vperm.xlu0 %3422, %v3287
      %v3424 = vpop.permute.xlu0 %3423
      %v3427 = vunpack.c.l.s4 839922192
      %v3428 = vunpack.c.0.s8 %v3427
      %v3429 = vlaneseq
      %v3430 = vshrl.u32 %v3429, 7
      %v3431 = vsub.s32 %v3428, %v3430
      %v3432 = vrot.slane %v3424, %v3431
      %3434 = vset.pattern.permute.xlu0 0
      %3435 = vperm.xlu0 %3434, %v3288
      %v3436 = vpop.permute.xlu0 %3435
      %v3439 = vunpack.c.l.s4 839922192
      %v3440 = vunpack.c.0.s8 %v3439
      %v3441 = vlaneseq
      %v3442 = vshrl.u32 %v3441, 7
      %v3443 = vsub.s32 %v3440, %v3442
      %v3444 = vrot.slane %v3436, %v3443
      %vm3458 = vcmask 1042432
      %vm3459 = vcmask 1046532
      %vm3460 = vmor %vm3458, %vm3459
      %v3461 = vrot.slane %v3300, 5
      %v3462 = vrot.slane %v3461, 4
      %v3463 = vrot.slane %v3312, 5
      %v3464 = vsel %vm3460, %v3462, %v3463
      %v3465 = vrot.slane %v3463, 4
      %v3466 = vrot.slane %v3324, 5
      %v3467 = vsel %vm3460, %v3465, %v3466
      %v3468 = vrot.slane %v3466, 4
      %v3469 = vrot.slane %v3336, 5
      %v3470 = vsel %vm3460, %v3468, %v3469
      %v3471 = vrot.slane %v3469, 4
      %v3472 = vrot.slane %v3348, 5
      %v3473 = vsel %vm3460, %v3471, %v3472
      %v3474 = vrot.slane %v3472, 4
      %v3475 = vrot.slane %v3360, 5
      %v3476 = vsel %vm3460, %v3474, %v3475
      %v3477 = vrot.slane %v3475, 4
      %v3478 = vrot.slane %v3372, 5
      %v3479 = vsel %vm3460, %v3477, %v3478
      %v3480 = vrot.slane %v3478, 4
      %v3481 = vrot.slane %v3384, 5
      %v3482 = vsel %vm3460, %v3480, %v3481
      %v3483 = vrot.slane %v3481, 4
      %v3484 = vrot.slane %v3396, 5
      %v3485 = vsel %vm3460, %v3483, %v3484
      %v3486 = vrot.slane %v3484, 4
      %v3487 = vrot.slane %v3408, 5
      %v3488 = vsel %vm3460, %v3486, %v3487
      %v3489 = vrot.slane %v3487, 4
      %v3490 = vrot.slane %v3420, 5
      %v3491 = vsel %vm3460, %v3489, %v3490
      %v3492 = vrot.slane %v3490, 4
      %v3493 = vrot.slane %v3432, 5
      %v3494 = vsel %vm3460, %v3492, %v3493
      %v3495 = vrot.slane %v3493, 4
      %v3496 = vrot.slane %v3444, 5
      %v3497 = vsel %vm3460, %v3495, %v3496
      %v3498 = vrot.slane %v3496, 4
      %v3513 = vmul.bf16 %v3274, %v3461
      %v3514 = vmul.bf16 %v2932, %v3464
      %v3515 = vmul.bf16 %v2933, %v3467
      %v3516 = vmul.bf16 %v2934, %v3470
      %v3517 = vmul.bf16 %v2935, %v3473
      %v3518 = vmul.bf16 %v2936, %v3476
      %v3519 = vmul.bf16 %v2937, %v3479
      %v3520 = vmul.bf16 %v2938, %v3482
      %v3521 = vmul.bf16 %v2939, %v3485
      %v3522 = vmul.bf16 %v2940, %v3488
      %v3523 = vmul.bf16 %v2941, %v3491
      %v3524 = vmul.bf16 %v2942, %v3494
      %v3525 = vmul.bf16 %v2943, %v3497
      %v3526 = vmul.bf16 %v2944, %v3498
      %v3540 = vunpack.c.l.b16 %v1260
      %v3541 = vunpack.c.l.b16 %v1261
      %v3542 = vunpack.c.l.b16 %v1262
      %v3543 = vunpack.c.l.b16 %v1263
      %v3544 = vunpack.c.l.b16 %v1264
      %v3545 = vunpack.c.l.b16 %v1265
      %v3546 = vunpack.c.l.b16 %v1266
      %v3547 = vunpack.c.l.b16 %v1267
      %v3548 = vunpack.c.l.b16 %v1268
      %v3549 = vunpack.c.l.b16 %v1269
      %v3550 = vunpack.c.l.b16 %v1270
      %v3551 = vunpack.c.l.b16 %v1271
      %v3552 = vunpack.c.l.b16 %v1272
      %v3553 = vpack.c.b16 %v3541, %v3540
      %v3554 = vpack.c.b16 %v3543, %v3542
      %v3555 = vpack.c.b16 %v3545, %v3544
      %v3556 = vpack.c.b16 %v3547, %v3546
      %v3557 = vpack.c.b16 %v3549, %v3548
      %v3558 = vpack.c.b16 %v3551, %v3550
      %v3559 = vpack.c.b16 %v3552, %v3552
      %v3573 = vunpack.c.l.b16 %v1575
      %v3574 = vunpack.c.l.b16 %v1576
      %v3575 = vunpack.c.l.b16 %v1577
      %v3576 = vunpack.c.l.b16 %v1578
      %v3577 = vunpack.c.l.b16 %v1579
      %v3578 = vunpack.c.l.b16 %v1580
      %v3579 = vunpack.c.l.b16 %v1581
      %v3580 = vunpack.c.l.b16 %v1582
      %v3581 = vunpack.c.l.b16 %v1583
      %v3582 = vunpack.c.l.b16 %v1584
      %v3583 = vunpack.c.l.b16 %v1585
      %v3584 = vunpack.c.l.b16 %v1586
      %v3585 = vunpack.c.l.b16 %v1587
      %v3586 = vpack.c.b16 %v3574, %v3573
      %v3587 = vpack.c.b16 %v3576, %v3575
      %v3588 = vpack.c.b16 %v3578, %v3577
      %v3589 = vpack.c.b16 %v3580, %v3579
      %v3590 = vpack.c.b16 %v3582, %v3581
      %v3591 = vpack.c.b16 %v3584, %v3583
      %v3592 = vpack.c.b16 %v3585, %v3585
      %vm3593 = vsmask.f32 7424
      %v3595 = vshrl.u32 %v3586, 16
      %v3597 = vshll.u32 %v3586, 16
      %v3599 = vrot.slane %v3597, 1
      %v3600 = vor.u32 %v3595, %v3599
      %v3602 = vshll.u32 %v3587, 16
      %v3604 = vrot.slane %v3602, 1
      %v3605 = vsel %vm3593, %v3600, %v3604
      %v3606 = vshrl.u32 %v3587, 16
      %v3608 = vor.u32 %v3606, %v3604
      %v3610 = vshll.u32 %v3588, 16
      %v3612 = vrot.slane %v3610, 1
      %v3613 = vsel %vm3593, %v3608, %v3612
      %v3614 = vshrl.u32 %v3588, 16
      %v3616 = vor.u32 %v3614, %v3612
      %v3618 = vshll.u32 %v3589, 16
      %v3620 = vrot.slane %v3618, 1
      %v3621 = vsel %vm3593, %v3616, %v3620
      %v3622 = vshrl.u32 %v3589, 16
      %v3624 = vor.u32 %v3622, %v3620
      %v3626 = vshll.u32 %v3590, 16
      %v3628 = vrot.slane %v3626, 1
      %v3629 = vsel %vm3593, %v3624, %v3628
      %v3630 = vshrl.u32 %v3590, 16
      %v3632 = vor.u32 %v3630, %v3628
      %v3634 = vshll.u32 %v3591, 16
      %v3636 = vrot.slane %v3634, 1
      %v3637 = vsel %vm3593, %v3632, %v3636
      %v3638 = vshrl.u32 %v3591, 16
      %v3640 = vor.u32 %v3638, %v3636
      %v3642 = vshll.u32 %v3592, 16
      %v3644 = vrot.slane %v3642, 1
      %v3645 = vsel %vm3593, %v3640, %v3644
      %v3646 = vshrl.u32 %v3592, 16
      %v3648 = vor.u32 %v3646, %v3644
      %3649 = vrot.lane.b32.xlu0 %v3605, 64
      %v3650 = vpop.permute.xlu0 %3649
      %3651 = vrot.lane.b32.xlu0 %v3613, 64
      %v3652 = vpop.permute.xlu0 %3651
      %3653 = vrot.lane.b32.xlu0 %v3621, 64
      %v3654 = vpop.permute.xlu0 %3653
      %3655 = vrot.lane.b32.xlu0 %v3629, 64
      %v3656 = vpop.permute.xlu0 %3655
      %3657 = vrot.lane.b32.xlu0 %v3637, 64
      %v3658 = vpop.permute.xlu0 %3657
      %3659 = vrot.lane.b32.xlu0 %v3645, 64
      %v3660 = vpop.permute.xlu0 %3659
      %3661 = vrot.lane.b32.xlu0 %v3648, 64
      %v3662 = vpop.permute.xlu0 %3661
      %v3676 = vunpack.c.l.b16 %v1825
      %v3677 = vunpack.c.l.b16 %v1826
      %v3678 = vunpack.c.l.b16 %v1827
      %v3679 = vunpack.c.l.b16 %v1828
      %v3680 = vunpack.c.l.b16 %v1829
      %v3681 = vunpack.c.l.b16 %v1830
      %v3682 = vunpack.c.l.b16 %v1831
      %v3683 = vunpack.c.l.b16 %v1832
      %v3684 = vunpack.c.l.b16 %v1833
      %v3685 = vunpack.c.l.b16 %v1834
      %v3686 = vunpack.c.l.b16 %v1835
      %v3687 = vunpack.c.l.b16 %v1836
      %v3688 = vunpack.c.l.b16 %v1837
      %v3689 = vpack.c.b16 %v3677, %v3676
      %v3690 = vpack.c.b16 %v3679, %v3678
      %v3691 = vpack.c.b16 %v3681, %v3680
      %v3692 = vpack.c.b16 %v3683, %v3682
      %v3693 = vpack.c.b16 %v3685, %v3684
      %v3694 = vpack.c.b16 %v3687, %v3686
      %v3695 = vpack.c.b16 %v3688, %v3688
      %vm3696 = vcmask 1046528
      %v3697 = vrot.slane %v3689, 1
      %v3698 = vrot.slane %v3690, 1
      %v3699 = vsel %vm3696, %v3697, %v3698
      %v3700 = vrot.slane %v3691, 1
      %v3701 = vsel %vm3696, %v3698, %v3700
      %v3702 = vrot.slane %v3692, 1
      %v3703 = vsel %vm3696, %v3700, %v3702
      %v3704 = vrot.slane %v3693, 1
      %v3705 = vsel %vm3696, %v3702, %v3704
      %v3706 = vrot.slane %v3694, 1
      %v3707 = vsel %vm3696, %v3704, %v3706
      %v3708 = vrot.slane %v3695, 1
      %v3709 = vsel %vm3696, %v3706, %v3708
      %v3723 = vunpack.c.l.b16 %v2084
      %v3724 = vunpack.c.l.b16 %v2085
      %v3725 = vunpack.c.l.b16 %v2086
      %v3726 = vunpack.c.l.b16 %v2087
      %v3727 = vunpack.c.l.b16 %v2088
      %v3728 = vunpack.c.l.b16 %v2089
      %v3729 = vunpack.c.l.b16 %v2090
      %v3730 = vunpack.c.l.b16 %v2091
      %v3731 = vunpack.c.l.b16 %v2092
      %v3732 = vunpack.c.l.b16 %v2093
      %v3733 = vunpack.c.l.b16 %v2094
      %v3734 = vunpack.c.l.b16 %v2095
      %v3735 = vunpack.c.l.b16 %v2096
      %v3736 = vpack.c.b16 %v3724, %v3723
      %v3737 = vpack.c.b16 %v3726, %v3725
      %v3738 = vpack.c.b16 %v3728, %v3727
      %v3739 = vpack.c.b16 %v3730, %v3729
      %v3740 = vpack.c.b16 %v3732, %v3731
      %v3741 = vpack.c.b16 %v3734, %v3733
      %v3742 = vpack.c.b16 %v3735, %v3735
      %v3743 = vrot.slane %v3736, 1
      %v3744 = vrot.slane %v3737, 1
      %v3745 = vsel %vm3696, %v3743, %v3744
      %v3746 = vrot.slane %v3738, 1
      %v3747 = vsel %vm3696, %v3744, %v3746
      %v3748 = vrot.slane %v3739, 1
      %v3749 = vsel %vm3696, %v3746, %v3748
      %v3750 = vrot.slane %v3740, 1
      %v3751 = vsel %vm3696, %v3748, %v3750
      %v3752 = vrot.slane %v3741, 1
      %v3753 = vsel %vm3696, %v3750, %v3752
      %v3754 = vrot.slane %v3742, 1
      %v3755 = vsel %vm3696, %v3752, %v3754
      %3756 = vrot.lane.b32.xlu0 %v3745, 64
      %v3757 = vpop.permute.xlu0 %3756
      %3758 = vrot.lane.b32.xlu0 %v3747, 64
      %v3759 = vpop.permute.xlu0 %3758
      %3760 = vrot.lane.b32.xlu0 %v3749, 64
      %v3761 = vpop.permute.xlu0 %3760
      %3762 = vrot.lane.b32.xlu0 %v3751, 64
      %v3763 = vpop.permute.xlu0 %3762
      %3764 = vrot.lane.b32.xlu0 %v3753, 64
      %v3765 = vpop.permute.xlu0 %3764
      %3766 = vrot.lane.b32.xlu0 %v3755, 64
      %v3767 = vpop.permute.xlu0 %3766
      %3768 = vrot.lane.b32.xlu0 %v3754, 64
      %v3769 = vpop.permute.xlu0 %3768
      %v3783 = vunpack.c.l.b16 %v2409
      %v3784 = vunpack.c.l.b16 %v2410
      %v3785 = vunpack.c.l.b16 %v2411
      %v3786 = vunpack.c.l.b16 %v2412
      %v3787 = vunpack.c.l.b16 %v2413
      %v3788 = vunpack.c.l.b16 %v2414
      %v3789 = vunpack.c.l.b16 %v2415
      %v3790 = vunpack.c.l.b16 %v2416
      %v3791 = vunpack.c.l.b16 %v2417
      %v3792 = vunpack.c.l.b16 %v2418
      %v3793 = vunpack.c.l.b16 %v2419
      %v3794 = vunpack.c.l.b16 %v2420
      %v3795 = vunpack.c.l.b16 %v2421
      %v3796 = vpack.c.b16 %v3784, %v3783
      %v3797 = vpack.c.b16 %v3786, %v3785
      %v3798 = vpack.c.b16 %v3788, %v3787
      %v3799 = vpack.c.b16 %v3790, %v3789
      %v3800 = vpack.c.b16 %v3792, %v3791
      %v3801 = vpack.c.b16 %v3794, %v3793
      %v3802 = vpack.c.b16 %v3795, %v3795
      %vm3803 = vsmask.f32 6400
      %v3805 = vshrl.u32 %v3796, 16
      %v3807 = vrot.slane %v3805, 1
      %v3808 = vshll.u32 %v3796, 16
      %v3810 = vrot.slane %v3808, 2
      %v3811 = vor.u32 %v3807, %v3810
      %v3813 = vshrl.u32 %v3797, 16
      %v3815 = vrot.slane %v3813, 1
      %v3816 = vshll.u32 %v3797, 16
      %v3818 = vrot.slane %v3816, 2
      %v3819 = vor.u32 %v3815, %v3818
      %v3820 = vsel %vm3803, %v3811, %v3819
      %v3822 = vshrl.u32 %v3798, 16
      %v3824 = vrot.slane %v3822, 1
      %v3825 = vshll.u32 %v3798, 16
      %v3827 = vrot.slane %v3825, 2
      %v3828 = vor.u32 %v3824, %v3827
      %v3829 = vsel %vm3803, %v3819, %v3828
      %v3831 = vshrl.u32 %v3799, 16
      %v3833 = vrot.slane %v3831, 1
      %v3834 = vshll.u32 %v3799, 16
      %v3836 = vrot.slane %v3834, 2
      %v3837 = vor.u32 %v3833, %v3836
      %v3838 = vsel %vm3803, %v3828, %v3837
      %v3840 = vshrl.u32 %v3800, 16
      %v3842 = vrot.slane %v3840, 1
      %v3843 = vshll.u32 %v3800, 16
      %v3845 = vrot.slane %v3843, 2
      %v3846 = vor.u32 %v3842, %v3845
      %v3847 = vsel %vm3803, %v3837, %v3846
      %v3849 = vshrl.u32 %v3801, 16
      %v3851 = vrot.slane %v3849, 1
      %v3852 = vshll.u32 %v3801, 16
      %v3854 = vrot.slane %v3852, 2
      %v3855 = vor.u32 %v3851, %v3854
      %v3856 = vsel %vm3803, %v3846, %v3855
      %v3858 = vshrl.u32 %v3802, 16
      %v3860 = vrot.slane %v3858, 1
      %v3861 = vshll.u32 %v3802, 16
      %v3863 = vrot.slane %v3861, 2
      %v3864 = vor.u32 %v3860, %v3863
      %v3865 = vsel %vm3803, %v3855, %v3864
      %v3879 = vunpack.c.l.b16 %v2659
      %v3880 = vunpack.c.l.b16 %v2660
      %v3881 = vunpack.c.l.b16 %v2661
      %v3882 = vunpack.c.l.b16 %v2662
      %v3883 = vunpack.c.l.b16 %v2663
      %v3884 = vunpack.c.l.b16 %v2664
      %v3885 = vunpack.c.l.b16 %v2665
      %v3886 = vunpack.c.l.b16 %v2666
      %v3887 = vunpack.c.l.b16 %v2667
      %v3888 = vunpack.c.l.b16 %v2668
      %v3889 = vunpack.c.l.b16 %v2669
      %v3890 = vunpack.c.l.b16 %v2670
      %v3891 = vunpack.c.l.b16 %v2671
      %v3892 = vpack.c.b16 %v3880, %v3879
      %v3893 = vpack.c.b16 %v3882, %v3881
      %v3894 = vpack.c.b16 %v3884, %v3883
      %v3895 = vpack.c.b16 %v3886, %v3885
      %v3896 = vpack.c.b16 %v3888, %v3887
      %v3897 = vpack.c.b16 %v3890, %v3889
      %v3898 = vpack.c.b16 %v3891, %v3891
      %vm3899 = vcmask 1045504
      %v3900 = vrot.slane %v3892, 2
      %v3901 = vrot.slane %v3893, 2
      %v3902 = vsel %vm3899, %v3900, %v3901
      %v3903 = vrot.slane %v3894, 2
      %v3904 = vsel %vm3899, %v3901, %v3903
      %v3905 = vrot.slane %v3895, 2
      %v3906 = vsel %vm3899, %v3903, %v3905
      %v3907 = vrot.slane %v3896, 2
      %v3908 = vsel %vm3899, %v3905, %v3907
      %v3909 = vrot.slane %v3897, 2
      %v3910 = vsel %vm3899, %v3907, %v3909
      %v3911 = vrot.slane %v3898, 2
      %v3912 = vsel %vm3899, %v3909, %v3911
      %3913 = vrot.lane.b32.xlu0 %v3902, 64
      %v3914 = vpop.permute.xlu0 %3913
      %3915 = vrot.lane.b32.xlu0 %v3904, 64
      %v3916 = vpop.permute.xlu0 %3915
      %3917 = vrot.lane.b32.xlu0 %v3906, 64
      %v3918 = vpop.permute.xlu0 %3917
      %3919 = vrot.lane.b32.xlu0 %v3908, 64
      %v3920 = vpop.permute.xlu0 %3919
      %3921 = vrot.lane.b32.xlu0 %v3910, 64
      %v3922 = vpop.permute.xlu0 %3921
      %3923 = vrot.lane.b32.xlu0 %v3912, 64
      %v3924 = vpop.permute.xlu0 %3923
      %3925 = vrot.lane.b32.xlu0 %v3911, 64
      %v3926 = vpop.permute.xlu0 %3925
      %v3940 = vunpack.c.l.b16 %v2918
      %v3941 = vunpack.c.l.b16 %v2919
      %v3942 = vunpack.c.l.b16 %v2920
      %v3943 = vunpack.c.l.b16 %v2921
      %v3944 = vunpack.c.l.b16 %v2922
      %v3945 = vunpack.c.l.b16 %v2923
      %v3946 = vunpack.c.l.b16 %v2924
      %v3947 = vunpack.c.l.b16 %v2925
      %v3948 = vunpack.c.l.b16 %v2926
      %v3949 = vunpack.c.l.b16 %v2927
      %v3950 = vunpack.c.l.b16 %v2928
      %v3951 = vunpack.c.l.b16 %v2929
      %v3952 = vunpack.c.l.b16 %v2930
      %v3953 = vpack.c.b16 %v3941, %v3940
      %v3954 = vpack.c.b16 %v3943, %v3942
      %v3955 = vpack.c.b16 %v3945, %v3944
      %v3956 = vpack.c.b16 %v3947, %v3946
      %v3957 = vpack.c.b16 %v3949, %v3948
      %v3958 = vpack.c.b16 %v3951, %v3950
      %v3959 = vpack.c.b16 %v3952, %v3952
      %v3960 = vrot.slane %v3953, 2
      %v3961 = vrot.slane %v3954, 2
      %v3962 = vsel %vm3899, %v3960, %v3961
      %v3963 = vrot.slane %v3955, 2
      %v3964 = vsel %vm3899, %v3961, %v3963
      %v3965 = vrot.slane %v3956, 2
      %v3966 = vsel %vm3899, %v3963, %v3965
      %v3967 = vrot.slane %v3957, 2
      %v3968 = vsel %vm3899, %v3965, %v3967
      %v3969 = vrot.slane %v3958, 2
      %v3970 = vsel %vm3899, %v3967, %v3969
      %v3971 = vrot.slane %v3959, 2
      %v3972 = vsel %vm3899, %v3969, %v3971
      %v3987 = vunpack.c.l.b16 %v3260
      %v3988 = vunpack.c.l.b16 %v3261
      %v3989 = vunpack.c.l.b16 %v3262
      %v3990 = vunpack.c.l.b16 %v3263
      %v3991 = vunpack.c.l.b16 %v3264
      %v3992 = vunpack.c.l.b16 %v3265
      %v3993 = vunpack.c.l.b16 %v3266
      %v3994 = vunpack.c.l.b16 %v3267
      %v3995 = vunpack.c.l.b16 %v3268
      %v3996 = vunpack.c.l.b16 %v3269
      %v3997 = vunpack.c.l.b16 %v3270
      %v3998 = vunpack.c.l.b16 %v3271
      %v3999 = vunpack.c.l.b16 %v3272
      %v4000 = vunpack.c.l.b16 %v3273
      %v4001 = vpack.c.b16 %v3988, %v3987
      %v4002 = vpack.c.b16 %v3990, %v3989
      %v4003 = vpack.c.b16 %v3992, %v3991
      %v4004 = vpack.c.b16 %v3994, %v3993
      %v4005 = vpack.c.b16 %v3996, %v3995
      %v4006 = vpack.c.b16 %v3998, %v3997
      %v4007 = vpack.c.b16 %v4000, %v3999
      %vm4008 = vsmask.f32 5376
      %v4010 = vshrl.u32 %v4001, 16
      %v4012 = vrot.slane %v4010, 2
      %v4013 = vshll.u32 %v4001, 16
      %v4015 = vrot.slane %v4013, 3
      %v4016 = vor.u32 %v4012, %v4015
      %v4018 = vshrl.u32 %v4002, 16
      %v4020 = vrot.slane %v4018, 2
      %v4021 = vshll.u32 %v4002, 16
      %v4023 = vrot.slane %v4021, 3
      %v4024 = vor.u32 %v4020, %v4023
      %v4025 = vsel %vm4008, %v4016, %v4024
      %v4027 = vshrl.u32 %v4003, 16
      %v4029 = vrot.slane %v4027, 2
      %v4030 = vshll.u32 %v4003, 16
      %v4032 = vrot.slane %v4030, 3
      %v4033 = vor.u32 %v4029, %v4032
      %v4034 = vsel %vm4008, %v4024, %v4033
      %v4036 = vshrl.u32 %v4004, 16
      %v4038 = vrot.slane %v4036, 2
      %v4039 = vshll.u32 %v4004, 16
      %v4041 = vrot.slane %v4039, 3
      %v4042 = vor.u32 %v4038, %v4041
      %v4043 = vsel %vm4008, %v4033, %v4042
      %v4045 = vshrl.u32 %v4005, 16
      %v4047 = vrot.slane %v4045, 2
      %v4048 = vshll.u32 %v4005, 16
      %v4050 = vrot.slane %v4048, 3
      %v4051 = vor.u32 %v4047, %v4050
      %v4052 = vsel %vm4008, %v4042, %v4051
      %v4054 = vshrl.u32 %v4006, 16
      %v4056 = vrot.slane %v4054, 2
      %v4057 = vshll.u32 %v4006, 16
      %v4059 = vrot.slane %v4057, 3
      %v4060 = vor.u32 %v4056, %v4059
      %v4061 = vsel %vm4008, %v4051, %v4060
      %v4063 = vshrl.u32 %v4007, 16
      %v4065 = vrot.slane %v4063, 2
      %v4066 = vshll.u32 %v4007, 16
      %v4068 = vrot.slane %v4066, 3
      %v4069 = vor.u32 %v4065, %v4068
      %v4070 = vsel %vm4008, %v4060, %v4069
      %4071 = vrot.lane.b32.xlu0 %v4025, 64
      %v4072 = vpop.permute.xlu0 %4071
      %4073 = vrot.lane.b32.xlu0 %v4034, 64
      %v4074 = vpop.permute.xlu0 %4073
      %4075 = vrot.lane.b32.xlu0 %v4043, 64
      %v4076 = vpop.permute.xlu0 %4075
      %4077 = vrot.lane.b32.xlu0 %v4052, 64
      %v4078 = vpop.permute.xlu0 %4077
      %4079 = vrot.lane.b32.xlu0 %v4061, 64
      %v4080 = vpop.permute.xlu0 %4079
      %4081 = vrot.lane.b32.xlu0 %v4070, 64
      %v4082 = vpop.permute.xlu0 %4081
      %4083 = vrot.lane.b32.xlu0 %v4069, 64
      %v4084 = vpop.permute.xlu0 %4083
      %v4099 = vunpack.c.l.b16 %v3513
      %v4100 = vunpack.c.l.b16 %v3514
      %v4101 = vunpack.c.l.b16 %v3515
      %v4102 = vunpack.c.l.b16 %v3516
      %v4103 = vunpack.c.l.b16 %v3517
      %v4104 = vunpack.c.l.b16 %v3518
      %v4105 = vunpack.c.l.b16 %v3519
      %v4106 = vunpack.c.l.b16 %v3520
      %v4107 = vunpack.c.l.b16 %v3521
      %v4108 = vunpack.c.l.b16 %v3522
      %v4109 = vunpack.c.l.b16 %v3523
      %v4110 = vunpack.c.l.b16 %v3524
      %v4111 = vunpack.c.l.b16 %v3525
      %v4112 = vunpack.c.l.b16 %v3526
      %v4113 = vpack.c.b16 %v4100, %v4099
      %v4114 = vpack.c.b16 %v4102, %v4101
      %v4115 = vpack.c.b16 %v4104, %v4103
      %v4116 = vpack.c.b16 %v4106, %v4105
      %v4117 = vpack.c.b16 %v4108, %v4107
      %v4118 = vpack.c.b16 %v4110, %v4109
      %v4119 = vpack.c.b16 %v4112, %v4111
      %vm4120 = vcmask 1044480
      %v4121 = vrot.slane %v4113, 3
      %v4122 = vrot.slane %v4114, 3
      %v4123 = vsel %vm4120, %v4121, %v4122
      %v4124 = vrot.slane %v4115, 3
      %v4125 = vsel %vm4120, %v4122, %v4124
      %v4126 = vrot.slane %v4116, 3
      %v4127 = vsel %vm4120, %v4124, %v4126
      %v4128 = vrot.slane %v4117, 3
      %v4129 = vsel %vm4120, %v4126, %v4128
      %v4130 = vrot.slane %v4118, 3
      %v4131 = vsel %vm4120, %v4128, %v4130
      %v4132 = vrot.slane %v4119, 3
      %v4133 = vsel %vm4120, %v4130, %v4132
      %vm4134 = vcmask 523264
      %v4137 = vsel %vm4134, %v3553, %v3650
      %v4141 = vsel %vm4134, %v3554, %v3652
      %v4145 = vsel %vm4134, %v3555, %v3654
      %v4149 = vsel %vm4134, %v3556, %v3656
      %v4153 = vsel %vm4134, %v3557, %v3658
      %v4157 = vsel %vm4134, %v3558, %v3660
      %v4161 = vsel %vm4134, %v3559, %v3662
      %v4165 = vsel %vm4134, %v3699, %v3757
      %v4169 = vsel %vm4134, %v3701, %v3759
      %v4173 = vsel %vm4134, %v3703, %v3761
      %v4177 = vsel %vm4134, %v3705, %v3763
      %v4181 = vsel %vm4134, %v3707, %v3765
      %v4185 = vsel %vm4134, %v3709, %v3767
      %v4189 = vsel %vm4134, %v3708, %v3769
      %v4193 = vsel %vm4134, %v3820, %v3914
      %v4197 = vsel %vm4134, %v3829, %v3916
      %v4201 = vsel %vm4134, %v3838, %v3918
      %v4205 = vsel %vm4134, %v3847, %v3920
      %v4209 = vsel %vm4134, %v3856, %v3922
      %v4213 = vsel %vm4134, %v3865, %v3924
      %v4217 = vsel %vm4134, %v3864, %v3926
      %v4221 = vsel %vm4134, %v3962, %v4072
      %v4225 = vsel %vm4134, %v3964, %v4074
      %v4229 = vsel %vm4134, %v3966, %v4076
      %v4233 = vsel %vm4134, %v3968, %v4078
      %v4237 = vsel %vm4134, %v3970, %v4080
      %v4241 = vsel %vm4134, %v3972, %v4082
      %v4245 = vsel %vm4134, %v3971, %v4084
      %v4247 = vld [vmem:[%s4] sm:$0xf]
      %v4248 = vld [vmem:[%s4 + $0x4] sm:$0xf]
      %v4249 = vld [vmem:[%s4 + $0x8] sm:$0xf]
      %v4250 = vld [vmem:[%s4 + $0xc] sm:$0xf]
      %v4251 = vld [vmem:[%s4 + $0x10] sm:$0xf]
      %v4252 = vld [vmem:[%s4 + $0x14] sm:$0xf]
      %v4253 = vld [vmem:[%s4 + $0x18] sm:$0xf]
      %v4254 = vld [vmem:[%s4 + $0x1c] sm:$0xf]
      %v4255 = vld [vmem:[%s4 + $0x20] sm:$0xf]
      %v4256 = vld [vmem:[%s4 + $0x24] sm:$0xf]
      %v4257 = vld [vmem:[%s4 + $0x28] sm:$0xf]
      %v4258 = vld [vmem:[%s4 + $0x2c] sm:$0xf]
      %v4259 = vld [vmem:[%s4 + $0x30] sm:$0xf]
      %v4260 = vld [vmem:[%s4 + $0x34] sm:$0xf]
      %v4261 = vld [vmem:[%s4 + $0x38] sm:$0xf]
      %v4262 = vld [vmem:[%s4 + $0x3c] sm:$0xf]
      %v4263 = vld [vmem:[%s4 + $0x40] sm:$0xf]
      %v4264 = vld [vmem:[%s4 + $0x44] sm:$0xf]
      %v4265 = vld [vmem:[%s4 + $0x48] sm:$0xf]
      %v4266 = vld [vmem:[%s4 + $0x4c] sm:$0xf]
      %v4267 = vld [vmem:[%s4 + $0x50] sm:$0xf]
      %v4268 = vld [vmem:[%s4 + $0x54] sm:$0xf]
      %v4269 = vld [vmem:[%s4 + $0x58] sm:$0xf]
      %v4270 = vld [vmem:[%s4 + $0x5c] sm:$0xf]
      %v4271 = vld [vmem:[%s4 + $0x60] sm:$0xf]
      %v4272 = vld [vmem:[%s4 + $0x64] sm:$0xf]
      %v4273 = vld [vmem:[%s4 + $0x68] sm:$0xf]
      %v4274 = vld [vmem:[%s4 + $0x6c] sm:$0xf]
      %v4275 = vld [vmem:[%s4 + $0x70] sm:$0xf]
      %v4276 = vld [vmem:[%s4 + $0x74] sm:$0xf]
      %v4277 = vld [vmem:[%s4 + $0x78] sm:$0xf]
      %v4278 = vld [vmem:[%s4 + $0x7c] sm:$0xf]
      %v4279 = vld [vmem:[%s4 + $0x80] sm:$0xf]
      %v4280 = vld [vmem:[%s4 + $0x84] sm:$0xf]
      %v4281 = vld [vmem:[%s4 + $0x88] sm:$0xf]
      %v4282 = vld [vmem:[%s4 + $0x8c] sm:$0xf]
      %v4283 = vld [vmem:[%s4 + $0x90] sm:$0xf]
      %v4284 = vld [vmem:[%s4 + $0x94] sm:$0xf]
      %v4285 = vld [vmem:[%s4 + $0x98] sm:$0xf]
      %v4286 = vld [vmem:[%s4 + $0x9c] sm:$0xf]
      %v4287 = vld [vmem:[%s4 + $0xa0] sm:$0xf]
      %v4288 = vld [vmem:[%s4 + $0xa4] sm:$0xf]
      %v4289 = vld [vmem:[%s4 + $0xa8] sm:$0xf]
      %v4290 = vld [vmem:[%s4 + $0xac] sm:$0xf]
      %v4291 = vld [vmem:[%s4 + $0xb0] sm:$0xf]
      %v4292 = vld [vmem:[%s4 + $0xb4] sm:$0xf]
      %v4293 = vld [vmem:[%s4 + $0xb8] sm:$0xf]
      %v4294 = vld [vmem:[%s4 + $0xbc] sm:$0xf]
      %v4295 = vld [vmem:[%s4 + $0xc0] sm:$0xf]
      %v4296 = vld [vmem:[%s4 + $0xc4] sm:$0xf]
      %v4297 = vld [vmem:[%s4 + $0xc8] sm:$0xf]
      %v4298 = vld [vmem:[%s4 + $0xcc] sm:$0xf]
      %v4299 = vld [vmem:[%s4 + $0xd0] sm:$0xf]
      %v4300 = vld [vmem:[%s4 + $0xd4] sm:$0xf]
      %v4301 = vld [vmem:[%s4 + $0xd8] sm:$0xf]
      %v4302 = vld [vmem:[%s4 + $0xdc] sm:$0xf]
      %v4303 = vld [vmem:[%s4 + $0xe0] sm:$0xf]
      %v4304 = vld [vmem:[%s4 + $0xe4] sm:$0xf]
      %v4305 = vld [vmem:[%s4 + $0xe8] sm:$0xf]
      %v4306 = vld [vmem:[%s4 + $0xec] sm:$0xf]
      %v4307 = vld [vmem:[%s4 + $0xf0] sm:$0xf]
      %v4308 = vld [vmem:[%s4 + $0xf4] sm:$0xf]
      %v4309 = vld [vmem:[%s4 + $0xf8] sm:$0xf]
      %v4310 = vld [vmem:[%s4 + $0xfc] sm:$0xf]
      %v4311 = vld [vmem:[%s4 + $0x100] sm:$0xf]
      %v4312 = vld [vmem:[%s4 + $0x104] sm:$0xf]
      %v4313 = vld [vmem:[%s4 + $0x108] sm:$0xf]
      %v4314 = vld [vmem:[%s4 + $0x10c] sm:$0xf]
      %v4315 = vld [vmem:[%s4 + $0x110] sm:$0xf]
      %v4316 = vld [vmem:[%s4 + $0x114] sm:$0xf]
      %v4317 = vld [vmem:[%s4 + $0x118] sm:$0xf]
      %v4318 = vld [vmem:[%s4 + $0x11c] sm:$0xf]
      %v4319 = vld [vmem:[%s5] sm:$0x1]
      %v4321 = vlaneseq
      %v4322 = vshrl.u32 %v4321, 7
      %v4323 = vsub.s32 0, %v4322
      %v4324 = vrot.slane %v4319, %v4323
      %v4398 = vunpack.c.l.b16 %v4247
      %v4399 = vunpack.c.l.b16 %v4248
      %v4400 = vunpack.c.l.b16 %v4249
      %v4401 = vunpack.c.l.b16 %v4250
      %v4402 = vunpack.c.l.b16 %v4251
      %v4403 = vunpack.c.l.b16 %v4252
      %v4404 = vunpack.c.l.b16 %v4253
      %v4405 = vunpack.c.l.b16 %v4254
      %v4406 = vunpack.c.l.b16 %v4255
      %v4407 = vunpack.c.l.b16 %v4256
      %v4408 = vunpack.c.l.b16 %v4257
      %v4409 = vunpack.c.l.b16 %v4258
      %v4410 = vunpack.c.l.b16 %v4259
      %v4411 = vunpack.c.l.b16 %v4260
      %v4412 = vunpack.c.l.b16 %v4261
      %v4413 = vunpack.c.l.b16 %v4262
      %v4414 = vunpack.c.l.b16 %v4263
      %v4415 = vunpack.c.l.b16 %v4264
      %v4416 = vunpack.c.l.b16 %v4265
      %v4417 = vunpack.c.l.b16 %v4266
      %v4418 = vunpack.c.l.b16 %v4267
      %v4419 = vunpack.c.l.b16 %v4268
      %v4420 = vunpack.c.l.b16 %v4269
      %v4421 = vunpack.c.l.b16 %v4270
      %v4422 = vunpack.c.l.b16 %v4271
      %v4423 = vunpack.c.l.b16 %v4272
      %v4424 = vunpack.c.l.b16 %v4273
      %v4425 = vunpack.c.l.b16 %v4274
      %v4426 = vunpack.c.l.b16 %v4275
      %v4427 = vunpack.c.l.b16 %v4276
      %v4428 = vunpack.c.l.b16 %v4277
      %v4429 = vunpack.c.l.b16 %v4278
      %v4430 = vunpack.c.l.b16 %v4279
      %v4431 = vunpack.c.l.b16 %v4280
      %v4432 = vunpack.c.l.b16 %v4281
      %v4433 = vunpack.c.l.b16 %v4282
      %v4434 = vunpack.c.l.b16 %v4283
      %v4435 = vunpack.c.l.b16 %v4284
      %v4436 = vunpack.c.l.b16 %v4285
      %v4437 = vunpack.c.l.b16 %v4286
      %v4438 = vunpack.c.l.b16 %v4287
      %v4439 = vunpack.c.l.b16 %v4288
      %v4440 = vunpack.c.l.b16 %v4289
      %v4441 = vunpack.c.l.b16 %v4290
      %v4442 = vunpack.c.l.b16 %v4291
      %v4443 = vunpack.c.l.b16 %v4292
      %v4444 = vunpack.c.l.b16 %v4293
      %v4445 = vunpack.c.l.b16 %v4294
      %v4446 = vunpack.c.l.b16 %v4295
      %v4447 = vunpack.c.l.b16 %v4296
      %v4448 = vunpack.c.l.b16 %v4297
      %v4449 = vunpack.c.l.b16 %v4298
      %v4450 = vunpack.c.l.b16 %v4299
      %v4451 = vunpack.c.l.b16 %v4300
      %v4452 = vunpack.c.l.b16 %v4301
      %v4453 = vunpack.c.l.b16 %v4302
      %v4454 = vunpack.c.l.b16 %v4303
      %v4455 = vunpack.c.l.b16 %v4304
      %v4456 = vunpack.c.l.b16 %v4305
      %v4457 = vunpack.c.l.b16 %v4306
      %v4458 = vunpack.c.l.b16 %v4307
      %v4459 = vunpack.c.l.b16 %v4308
      %v4460 = vunpack.c.l.b16 %v4309
      %v4461 = vunpack.c.l.b16 %v4310
      %v4462 = vunpack.c.l.b16 %v4311
      %v4463 = vunpack.c.l.b16 %v4312
      %v4464 = vunpack.c.l.b16 %v4313
      %v4465 = vunpack.c.l.b16 %v4314
      %v4466 = vunpack.c.l.b16 %v4315
      %v4467 = vunpack.c.l.b16 %v4316
      %v4468 = vunpack.c.l.b16 %v4317
      %v4469 = vunpack.c.l.b16 %v4318
      %v4470 = vpack.c.b16 %v4399, %v4398
      %v4471 = vpack.c.b16 %v4401, %v4400
      %v4472 = vpack.c.b16 %v4403, %v4402
      %v4473 = vpack.c.b16 %v4405, %v4404
      %v4474 = vpack.c.b16 %v4407, %v4406
      %v4475 = vpack.c.b16 %v4409, %v4408
      %v4476 = vpack.c.b16 %v4411, %v4410
      %v4477 = vpack.c.b16 %v4413, %v4412
      %v4478 = vpack.c.b16 %v4415, %v4414
      %v4479 = vpack.c.b16 %v4417, %v4416
      %v4480 = vpack.c.b16 %v4419, %v4418
      %v4481 = vpack.c.b16 %v4421, %v4420
      %v4482 = vpack.c.b16 %v4423, %v4422
      %v4483 = vpack.c.b16 %v4425, %v4424
      %v4484 = vpack.c.b16 %v4427, %v4426
      %v4485 = vpack.c.b16 %v4429, %v4428
      %v4486 = vpack.c.b16 %v4431, %v4430
      %v4487 = vpack.c.b16 %v4433, %v4432
      %v4488 = vpack.c.b16 %v4435, %v4434
      %v4489 = vpack.c.b16 %v4437, %v4436
      %v4490 = vpack.c.b16 %v4439, %v4438
      %v4491 = vpack.c.b16 %v4441, %v4440
      %v4492 = vpack.c.b16 %v4443, %v4442
      %v4493 = vpack.c.b16 %v4445, %v4444
      %v4494 = vpack.c.b16 %v4447, %v4446
      %v4495 = vpack.c.b16 %v4449, %v4448
      %v4496 = vpack.c.b16 %v4451, %v4450
      %v4497 = vpack.c.b16 %v4453, %v4452
      %v4498 = vpack.c.b16 %v4455, %v4454
      %v4499 = vpack.c.b16 %v4457, %v4456
      %v4500 = vpack.c.b16 %v4459, %v4458
      %v4501 = vpack.c.b16 %v4461, %v4460
      %v4502 = vpack.c.b16 %v4463, %v4462
      %v4503 = vpack.c.b16 %v4465, %v4464
      %v4504 = vpack.c.b16 %v4467, %v4466
      %v4505 = vpack.c.b16 %v4469, %v4468
      %v4543 = vsel %vm4134, %v4123, 0
      %v4546 = vsel %vm4134, %v4125, 0
      %v4549 = vsel %vm4134, %v4127, 0
      %v4552 = vsel %vm4134, %v4129, 0
      %v4555 = vsel %vm4134, %v4131, 0
      %v4558 = vsel %vm4134, %v4133, 0
      %v4561 = vsel %vm4134, %v4132, 0
      %4563 = vmatprep.subr.bf16.mxu0 0
      %4564 = vmatpush1.bf16.msra.mxu0 %v4470
      %4565 = vmatprep.subr.bf16.mxu0 0
      %4566 = vmatpush1.bf16.msra.mxu0 %v4471
      %4567 = vmatprep.subr.bf16.mxu0 0
      %4568 = vmatpush1.bf16.msra.mxu0 %v4472
      %4569 = vmatprep.subr.bf16.mxu0 0
      %4570 = vmatpush1.bf16.msra.mxu0 %v4473
      %4571 = vmatprep.subr.bf16.mxu0 0
      %4572 = vmatpush1.bf16.msra.mxu0 %v4474
      %4573 = vmatprep.subr.bf16.mxu0 0
      %4574 = vmatpush1.bf16.msra.mxu0 %v4475
      %4575 = vmatprep.subr.bf16.mxu0 0
      %4576 = vmatpush1.bf16.msra.mxu0 %v4476
      %4577 = vmatprep.subr.bf16.mxu0 0
      %4578 = vmatpush1.bf16.msra.mxu0 %v4477
      %4579 = vmatprep.subr.bf16.mxu0 0
      %4580 = vmatpush1.bf16.msra.mxu0 %v4478
      %4581 = vmatprep.subr.bf16.mxu0 0
      %4582 = vmatpush1.bf16.msra.mxu0 %v4479
      %4583 = vmatprep.subr.bf16.mxu0 0
      %4584 = vmatpush1.bf16.msra.mxu0 %v4480
      %4585 = vmatprep.subr.bf16.mxu0 0
      %4586 = vmatpush1.bf16.msra.mxu0 %v4481
      %4587 = vmatprep.subr.bf16.mxu0 0
      %4588 = vmatpush1.bf16.msra.mxu0 %v4482
      %4589 = vmatprep.subr.bf16.mxu0 0
      %4590 = vmatpush1.bf16.msra.mxu0 %v4483
      %4591 = vmatprep.subr.bf16.mxu0 0
      %4592 = vmatpush1.bf16.msra.mxu0 %v4484
      %4593 = vmatprep.subr.bf16.mxu0 0
      %4594 = vmatpush1.bf16.msra.mxu0 %v4485
      %4595 = vmatprep.mubr.bf16.mxu0 %v4165
      %4596 = vmatmul.mubr.bf16.gmra.mrb[0].mxu0 %v4137
      %v4597 = vpop.f32.mrb[0].mxu0
      %v4598 = vadd.f32 %v4324, %v4597
      %v4599 = vpop.f32.mrb[0].mxu0
      %v4600 = vpop.f32.mrb[0].mxu0
      %v4601 = vadd.f32 %v4324, %v4600
      %v4602 = vpop.f32.mrb[0].mxu0
      %4603 = vmatprep.mubr.bf16.mxu0 %v4169
      %4604 = vmatmul.mubr.bf16.gmra.mrb[0].mxu0 %v4141
      %v4605 = vpop.f32.mrb[0].mxu0
      %v4606 = vadd.f32 %v4324, %v4605
      %v4607 = vpop.f32.mrb[0].mxu0
      %v4608 = vpop.f32.mrb[0].mxu0
      %v4609 = vadd.f32 %v4324, %v4608
      %v4610 = vpop.f32.mrb[0].mxu0
      %4611 = vmatprep.mubr.bf16.mxu0 %v4173
      %4612 = vmatmul.mubr.bf16.gmra.mrb[0].mxu0 %v4145
      %v4613 = vpop.f32.mrb[0].mxu0
      %v4614 = vadd.f32 %v4324, %v4613
      %v4615 = vpop.f32.mrb[0].mxu0
      %v4616 = vpop.f32.mrb[0].mxu0
      %v4617 = vadd.f32 %v4324, %v4616
      %v4618 = vpop.f32.mrb[0].mxu0
      %4619 = vmatprep.mubr.bf16.mxu0 %v4177
      %4620 = vmatmul.mubr.bf16.gmra.mrb[0].mxu0 %v4149
      %v4621 = vpop.f32.mrb[0].mxu0
      %v4622 = vadd.f32 %v4324, %v4621
      %v4623 = vpop.f32.mrb[0].mxu0
      %v4624 = vpop.f32.mrb[0].mxu0
      %v4625 = vadd.f32 %v4324, %v4624
      %v4626 = vpop.f32.mrb[0].mxu0
      %4627 = vmatprep.mubr.bf16.mxu0 %v4181
      %4628 = vmatmul.mubr.bf16.gmra.mrb[0].mxu0 %v4153
      %v4629 = vpop.f32.mrb[0].mxu0
      %v4630 = vadd.f32 %v4324, %v4629
      %v4631 = vpop.f32.mrb[0].mxu0
      %v4632 = vpop.f32.mrb[0].mxu0
      %v4633 = vadd.f32 %v4324, %v4632
      %v4634 = vpop.f32.mrb[0].mxu0
      %4635 = vmatprep.mubr.bf16.mxu0 %v4185
      %4636 = vmatmul.mubr.bf16.gmra.mrb[0].mxu0 %v4157
      %v4637 = vpop.f32.mrb[0].mxu0
      %v4638 = vadd.f32 %v4324, %v4637
      %v4639 = vpop.f32.mrb[0].mxu0
      %v4640 = vpop.f32.mrb[0].mxu0
      %v4641 = vadd.f32 %v4324, %v4640
      %v4642 = vpop.f32.mrb[0].mxu0
      %4643 = vmatprep.mubr.bf16.mxu0 %v4189
      %4644 = vmatmul.mubr.bf16.gmra.mrb[0].mxu0 %v4161
      %v4645 = vpop.f32.mrb[0].mxu0
      %v4646 = vadd.f32 %v4324, %v4645
      %v4647 = vpop.f32.mrb[0].mxu0
      %v4648 = vpop.f32.mrb[0].mxu0
      %v4649 = vpop.f32.mrb[0].mxu0
      %4650 = vdwg.mxu0
      %4651 = vmatprep.subr.bf16.mxu0 0
      %4652 = vmatpush1.bf16.msra.mxu0 %v4486
      %4653 = vmatprep.subr.bf16.mxu0 0
      %4654 = vmatpush1.bf16.msra.mxu0 %v4487
      %4655 = vmatprep.subr.bf16.mxu0 0
      %4656 = vmatpush1.bf16.msra.mxu0 %v4488
      %4657 = vmatprep.subr.bf16.mxu0 0
      %4658 = vmatpush1.bf16.msra.mxu0 %v4489
      %4659 = vmatprep.subr.bf16.mxu0 0
      %4660 = vmatpush1.bf16.msra.mxu0 %v4490
      %4661 = vmatprep.subr.bf16.mxu0 0
      %4662 = vmatpush1.bf16.msra.mxu0 %v4491
      %4663 = vmatprep.subr.bf16.mxu0 0
      %4664 = vmatpush1.bf16.msra.mxu0 %v4492
      %4665 = vmatprep.subr.bf16.mxu0 0
      %4666 = vmatpush1.bf16.msra.mxu0 %v4493
      %4667 = vmatprep.subr.bf16.mxu0 0
      %4668 = vmatpush1.bf16.msra.mxu0 %v4494
      %4669 = vmatprep.subr.bf16.mxu0 0
      %4670 = vmatpush1.bf16.msra.mxu0 %v4495
      %4671 = vmatprep.subr.bf16.mxu0 0
      %4672 = vmatpush1.bf16.msra.mxu0 %v4496
      %4673 = vmatprep.subr.bf16.mxu0 0
      %4674 = vmatpush1.bf16.msra.mxu0 %v4497
      %4675 = vmatprep.subr.bf16.mxu0 0
      %4676 = vmatpush1.bf16.msra.mxu0 %v4498
      %4677 = vmatprep.subr.bf16.mxu0 0
      %4678 = vmatpush1.bf16.msra.mxu0 %v4499
      %4679 = vmatprep.subr.bf16.mxu0 0
      %4680 = vmatpush1.bf16.msra.mxu0 %v4500
      %4681 = vmatprep.subr.bf16.mxu0 0
      %4682 = vmatpush1.bf16.msra.mxu0 %v4501
      %4683 = vmatprep.mubr.bf16.mxu0 %v4221
      %4684 = vmatmul.mubr.bf16.gmra.mrb[0].mxu0 %v4193
      %v4685 = vpop.f32.mrb[0].mxu0
      %v4686 = vadd.f32 %v4598, %v4685
      %v4687 = vpop.f32.mrb[0].mxu0
      %v4688 = vpop.f32.mrb[0].mxu0
      %v4689 = vadd.f32 %v4601, %v4688
      %v4690 = vpop.f32.mrb[0].mxu0
      %4691 = vmatprep.mubr.bf16.mxu0 %v4225
      %4692 = vmatmul.mubr.bf16.gmra.mrb[0].mxu0 %v4197
      %v4693 = vpop.f32.mrb[0].mxu0
      %v4694 = vadd.f32 %v4606, %v4693
      %v4695 = vpop.f32.mrb[0].mxu0
      %v4696 = vpop.f32.mrb[0].mxu0
      %v4697 = vadd.f32 %v4609, %v4696
      %v4698 = vpop.f32.mrb[0].mxu0
      %4699 = vmatprep.mubr.bf16.mxu0 %v4229
      %4700 = vmatmul.mubr.bf16.gmra.mrb[0].mxu0 %v4201
      %v4701 = vpop.f32.mrb[0].mxu0
      %v4702 = vadd.f32 %v4614, %v4701
      %v4703 = vpop.f32.mrb[0].mxu0
      %v4704 = vpop.f32.mrb[0].mxu0
      %v4705 = vadd.f32 %v4617, %v4704
      %v4706 = vpop.f32.mrb[0].mxu0
      %4707 = vmatprep.mubr.bf16.mxu0 %v4233
      %4708 = vmatmul.mubr.bf16.gmra.mrb[0].mxu0 %v4205
      %v4709 = vpop.f32.mrb[0].mxu0
      %v4710 = vadd.f32 %v4622, %v4709
      %v4711 = vpop.f32.mrb[0].mxu0
      %v4712 = vpop.f32.mrb[0].mxu0
      %v4713 = vadd.f32 %v4625, %v4712
      %v4714 = vpop.f32.mrb[0].mxu0
      %4715 = vmatprep.mubr.bf16.mxu0 %v4237
      %4716 = vmatmul.mubr.bf16.gmra.mrb[0].mxu0 %v4209
      %v4717 = vpop.f32.mrb[0].mxu0
      %v4718 = vadd.f32 %v4630, %v4717
      %v4719 = vpop.f32.mrb[0].mxu0
      %v4720 = vpop.f32.mrb[0].mxu0
      %v4721 = vadd.f32 %v4633, %v4720
      %v4722 = vpop.f32.mrb[0].mxu0
      %4723 = vmatprep.mubr.bf16.mxu0 %v4241
      %4724 = vmatmul.mubr.bf16.gmra.mrb[0].mxu0 %v4213
      %v4725 = vpop.f32.mrb[0].mxu0
      %v4726 = vadd.f32 %v4638, %v4725
      %v4727 = vpop.f32.mrb[0].mxu0
      %v4728 = vpop.f32.mrb[0].mxu0
      %v4729 = vadd.f32 %v4641, %v4728
      %v4730 = vpop.f32.mrb[0].mxu0
      %4731 = vmatprep.mubr.bf16.mxu0 %v4245
      %4732 = vmatmul.mubr.bf16.gmra.mrb[0].mxu0 %v4217
      %v4733 = vpop.f32.mrb[0].mxu0
      %v4734 = vadd.f32 %v4646, %v4733
      %v4735 = vpop.f32.mrb[0].mxu0
      %v4736 = vpop.f32.mrb[0].mxu0
      %v4737 = vpop.f32.mrb[0].mxu0
      %4738 = vdwg.mxu0
      %4739 = vmatprep.subr.bf16.mxu0 0
      %4740 = vmatpush1.bf16.msra.mxu0 %v4502
      %4741 = vmatprep.subr.bf16.mxu0 0
      %4742 = vmatpush1.bf16.msra.mxu0 %v4503
      %4743 = vmatprep.subr.bf16.mxu0 0
      %4744 = vmatpush1.bf16.msra.mxu0 %v4504
      %4745 = vmatprep.subr.bf16.mxu0 0
      %4746 = vmatpush1.bf16.msra.mxu0 %v4505
      %4747 = vmatprep.subr.bf16.mxu0 0
      %4748 = vmatpush1.bf16.msra.mxu0 0
      %4749 = vmatprep.subr.bf16.mxu0 0
      %4750 = vmatpush1.bf16.msra.mxu0 0
      %4751 = vmatprep.subr.bf16.mxu0 0
      %4752 = vmatpush1.bf16.msra.mxu0 0
      %4753 = vmatprep.subr.bf16.mxu0 0
      %4754 = vmatpush1.bf16.msra.mxu0 0
      %4755 = vmatprep.subr.bf16.mxu0 0
      %4756 = vmatpush1.bf16.msra.mxu0 0
      %4757 = vmatprep.subr.bf16.mxu0 0
      %4758 = vmatpush1.bf16.msra.mxu0 0
      %4759 = vmatprep.subr.bf16.mxu0 0
      %4760 = vmatpush1.bf16.msra.mxu0 0
      %4761 = vmatprep.subr.bf16.mxu0 0
      %4762 = vmatpush1.bf16.msra.mxu0 0
      %4763 = vmatprep.subr.bf16.mxu0 0
      %4764 = vmatpush1.bf16.msra.mxu0 0
      %4765 = vmatprep.subr.bf16.mxu0 0
      %4766 = vmatpush1.bf16.msra.mxu0 0
      %4767 = vmatprep.subr.bf16.mxu0 0
      %4768 = vmatpush1.bf16.msra.mxu0 0
      %4769 = vmatprep.subr.bf16.mxu0 0
      %4770 = vmatpush1.bf16.msra.mxu0 0
      %4771 = vmatprep.mubr.bf16.mxu0 0
      %4772 = vmatmul.mubr.bf16.gmra.mrb[0].mxu0 %v4543
      %v4773 = vpop.f32.mrb[0].mxu0
      %v4774 = vadd.f32 %v4686, %v4773
      %v4775 = vpop.f32.mrb[0].mxu0
      %v4776 = vpop.f32.mrb[0].mxu0
      %v4777 = vadd.f32 %v4689, %v4776
      %v4778 = vpop.f32.mrb[0].mxu0
      %4779 = vmatprep.mubr.bf16.mxu0 0
      %4780 = vmatmul.mubr.bf16.gmra.mrb[0].mxu0 %v4546
      %v4781 = vpop.f32.mrb[0].mxu0
      %v4782 = vadd.f32 %v4694, %v4781
      %v4783 = vpop.f32.mrb[0].mxu0
      %v4784 = vpop.f32.mrb[0].mxu0
      %v4785 = vadd.f32 %v4697, %v4784
      %v4786 = vpop.f32.mrb[0].mxu0
      %4787 = vmatprep.mubr.bf16.mxu0 0
      %4788 = vmatmul.mubr.bf16.gmra.mrb[0].mxu0 %v4549
      %v4789 = vpop.f32.mrb[0].mxu0
      %v4790 = vadd.f32 %v4702, %v4789
      %v4791 = vpop.f32.mrb[0].mxu0
      %v4792 = vpop.f32.mrb[0].mxu0
      %v4793 = vadd.f32 %v4705, %v4792
      %v4794 = vpop.f32.mrb[0].mxu0
      %4795 = vmatprep.mubr.bf16.mxu0 0
      %4796 = vmatmul.mubr.bf16.gmra.mrb[0].mxu0 %v4552
      %v4797 = vpop.f32.mrb[0].mxu0
      %v4798 = vadd.f32 %v4710, %v4797
      %v4799 = vpop.f32.mrb[0].mxu0
      %v4800 = vpop.f32.mrb[0].mxu0
      %v4801 = vadd.f32 %v4713, %v4800
      %v4802 = vpop.f32.mrb[0].mxu0
      %4803 = vmatprep.mubr.bf16.mxu0 0
      %4804 = vmatmul.mubr.bf16.gmra.mrb[0].mxu0 %v4555
      %v4805 = vpop.f32.mrb[0].mxu0
      %v4806 = vadd.f32 %v4718, %v4805
      %v4807 = vpop.f32.mrb[0].mxu0
      %v4808 = vpop.f32.mrb[0].mxu0
      %v4809 = vadd.f32 %v4721, %v4808
      %v4810 = vpop.f32.mrb[0].mxu0
      %4811 = vmatprep.mubr.bf16.mxu0 0
      %4812 = vmatmul.mubr.bf16.gmra.mrb[0].mxu0 %v4558
      %v4813 = vpop.f32.mrb[0].mxu0
      %v4814 = vadd.f32 %v4726, %v4813
      %v4815 = vpop.f32.mrb[0].mxu0
      %v4816 = vpop.f32.mrb[0].mxu0
      %v4817 = vadd.f32 %v4729, %v4816
      %v4818 = vpop.f32.mrb[0].mxu0
      %4819 = vmatprep.mubr.bf16.mxu0 0
      %4820 = vmatmul.mubr.bf16.gmra.mrb[0].mxu0 %v4561
      %v4821 = vpop.f32.mrb[0].mxu0
      %v4822 = vadd.f32 %v4734, %v4821
      %v4823 = vpop.f32.mrb[0].mxu0
      %v4824 = vpop.f32.mrb[0].mxu0
      %v4825 = vpop.f32.mrb[0].mxu0
      %4826 = vdwg.mxu0
      %v4827 = vmax.f32 %v4774, 0.0
      %v4828 = vmax.f32 %v4777, 0.0
      %v4829 = vmax.f32 %v4782, 0.0
      %v4830 = vmax.f32 %v4785, 0.0
      %v4831 = vmax.f32 %v4790, 0.0
      %v4832 = vmax.f32 %v4793, 0.0
      %v4833 = vmax.f32 %v4798, 0.0
      %v4834 = vmax.f32 %v4801, 0.0
      %v4835 = vmax.f32 %v4806, 0.0
      %v4836 = vmax.f32 %v4809, 0.0
      %v4837 = vmax.f32 %v4814, 0.0
      %v4838 = vmax.f32 %v4817, 0.0
      %v4839 = vmax.f32 %v4822, 0.0
      %v4840 = vpack.c.bf16 %v4828, %v4827
      %v4841 = vpack.c.bf16 %v4830, %v4829
      %v4842 = vpack.c.bf16 %v4832, %v4831
      %v4843 = vpack.c.bf16 %v4834, %v4833
      %v4844 = vpack.c.bf16 %v4836, %v4835
      %v4845 = vpack.c.bf16 %v4838, %v4837
      %v4846 = vpack.c.bf16 %v4839, %v4839
      %v4854 = vunpack.c.l.b16 %v4840
      %v4855 = vunpack.c.h.b16 %v4840
      %v4856 = vunpack.c.l.b16 %v4841
      %v4857 = vunpack.c.h.b16 %v4841
      %v4858 = vunpack.c.l.b16 %v4842
      %v4859 = vunpack.c.h.b16 %v4842
      %v4860 = vunpack.c.l.b16 %v4843
      %v4861 = vunpack.c.h.b16 %v4843
      %v4862 = vunpack.c.l.b16 %v4844
      %v4863 = vunpack.c.h.b16 %v4844
      %v4864 = vunpack.c.l.b16 %v4845
      %v4865 = vunpack.c.h.b16 %v4845
      %v4866 = vunpack.c.l.b16 %v4846
      %v4867 = vpack.c.b16 %v4854, %v4854
      %v4868 = vpack.c.b16 %v4855, %v4855
      %v4869 = vpack.c.b16 %v4856, %v4856
      %v4870 = vpack.c.b16 %v4857, %v4857
      %v4871 = vpack.c.b16 %v4858, %v4858
      %v4872 = vpack.c.b16 %v4859, %v4859
      %v4873 = vpack.c.b16 %v4860, %v4860
      %v4874 = vpack.c.b16 %v4861, %v4861
      %v4875 = vpack.c.b16 %v4862, %v4862
      %v4876 = vpack.c.b16 %v4863, %v4863
      %v4877 = vpack.c.b16 %v4864, %v4864
      %v4878 = vpack.c.b16 %v4865, %v4865
      %v4879 = vpack.c.b16 %v4866, %v4866
      %v4881 = vshrl.u32 %v4867, 16
      %v4883 = vrot.slane %v4881, 6
      %v4884 = vshll.u32 %v4867, 16
      %v4886 = vrot.slane %v4884, 7
      %v4887 = vor.u32 %v4883, %v4886
      %v4888 = vrot.slane %v4887, 4
      %v4890 = vshrl.u32 %v4868, 16
      %v4892 = vrot.slane %v4890, 6
      %v4893 = vshll.u32 %v4868, 16
      %v4895 = vrot.slane %v4893, 7
      %v4896 = vor.u32 %v4892, %v4895
      %v4897 = vsel %vm913, %v4888, %v4896
      %v4898 = vrot.slane %v4896, 4
      %v4900 = vshrl.u32 %v4869, 16
      %v4902 = vrot.slane %v4900, 6
      %v4903 = vshll.u32 %v4869, 16
      %v4905 = vrot.slane %v4903, 7
      %v4906 = vor.u32 %v4902, %v4905
      %v4907 = vsel %vm913, %v4898, %v4906
      %v4908 = vrot.slane %v4906, 4
      %v4910 = vshrl.u32 %v4870, 16
      %v4912 = vrot.slane %v4910, 6
      %v4913 = vshll.u32 %v4870, 16
      %v4915 = vrot.slane %v4913, 7
      %v4916 = vor.u32 %v4912, %v4915
      %v4917 = vsel %vm913, %v4908, %v4916
      %v4918 = vrot.slane %v4916, 4
      %v4920 = vshrl.u32 %v4871, 16
      %v4922 = vrot.slane %v4920, 6
      %v4923 = vshll.u32 %v4871, 16
      %v4925 = vrot.slane %v4923, 7
      %v4926 = vor.u32 %v4922, %v4925
      %v4927 = vsel %vm913, %v4918, %v4926
      %v4928 = vrot.slane %v4926, 4
      %v4930 = vshrl.u32 %v4872, 16
      %v4932 = vrot.slane %v4930, 6
      %v4933 = vshll.u32 %v4872, 16
      %v4935 = vrot.slane %v4933, 7
      %v4936 = vor.u32 %v4932, %v4935
      %v4937 = vsel %vm913, %v4928, %v4936
      %v4938 = vrot.slane %v4936, 4
      %v4940 = vshrl.u32 %v4873, 16
      %v4942 = vrot.slane %v4940, 6
      %v4943 = vshll.u32 %v4873, 16
      %v4945 = vrot.slane %v4943, 7
      %v4946 = vor.u32 %v4942, %v4945
      %v4947 = vsel %vm913, %v4938, %v4946
      %v4948 = vrot.slane %v4946, 4
      %v4950 = vshrl.u32 %v4874, 16
      %v4952 = vrot.slane %v4950, 6
      %v4953 = vshll.u32 %v4874, 16
      %v4955 = vrot.slane %v4953, 7
      %v4956 = vor.u32 %v4952, %v4955
      %v4957 = vsel %vm913, %v4948, %v4956
      %v4958 = vrot.slane %v4956, 4
      %v4960 = vshrl.u32 %v4875, 16
      %v4962 = vrot.slane %v4960, 6
      %v4963 = vshll.u32 %v4875, 16
      %v4965 = vrot.slane %v4963, 7
      %v4966 = vor.u32 %v4962, %v4965
      %v4967 = vsel %vm913, %v4958, %v4966
      %v4968 = vrot.slane %v4966, 4
      %v4970 = vshrl.u32 %v4876, 16
      %v4972 = vrot.slane %v4970, 6
      %v4973 = vshll.u32 %v4876, 16
      %v4975 = vrot.slane %v4973, 7
      %v4976 = vor.u32 %v4972, %v4975
      %v4977 = vsel %vm913, %v4968, %v4976
      %v4978 = vrot.slane %v4976, 4
      %v4980 = vshrl.u32 %v4877, 16
      %v4982 = vrot.slane %v4980, 6
      %v4983 = vshll.u32 %v4877, 16
      %v4985 = vrot.slane %v4983, 7
      %v4986 = vor.u32 %v4982, %v4985
      %v4987 = vsel %vm913, %v4978, %v4986
      %v4988 = vrot.slane %v4986, 4
      %v4990 = vshrl.u32 %v4878, 16
      %v4992 = vrot.slane %v4990, 6
      %v4993 = vshll.u32 %v4878, 16
      %v4995 = vrot.slane %v4993, 7
      %v4996 = vor.u32 %v4992, %v4995
      %v4997 = vsel %vm913, %v4988, %v4996
      %v4998 = vrot.slane %v4996, 4
      %v5000 = vshrl.u32 %v4879, 16
      %v5002 = vrot.slane %v5000, 6
      %v5003 = vshll.u32 %v4879, 16
      %v5005 = vrot.slane %v5003, 7
      %v5006 = vor.u32 %v5002, %v5005
      %v5007 = vsel %vm913, %v4998, %v5006
      %v5021 = vsel %vm1057, %v4887, %v1838
      %5022 = vst [vmem:[#allocation2 + $0x4] sm:$0xe] %v5021
      %5023 = vst.msk [vmem:[#allocation2 + $0x8] sm:$0xf] %vm617, %v4897
      %5024 = vst.msk [vmem:[#allocation2 + $0xc] sm:$0xf] %vm617, %v4907
      %5025 = vst.msk [vmem:[#allocation2 + $0x10] sm:$0xf] %vm617, %v4917
      %5026 = vst.msk [vmem:[#allocation2 + $0x14] sm:$0xf] %vm617, %v4927
      %5027 = vst.msk [vmem:[#allocation2 + $0x18] sm:$0xf] %vm617, %v4937
      %5028 = vst.msk [vmem:[#allocation2 + $0x1c] sm:$0xf] %vm617, %v4947
      %5029 = vst.msk [vmem:[#allocation2 + $0x20] sm:$0xf] %vm617, %v4957
      %5030 = vst.msk [vmem:[#allocation2 + $0x24] sm:$0xf] %vm617, %v4967
      %5031 = vst.msk [vmem:[#allocation2 + $0x28] sm:$0xf] %vm617, %v4977
      %5032 = vst.msk [vmem:[#allocation2 + $0x2c] sm:$0xf] %vm617, %v4987
      %5033 = vst.msk [vmem:[#allocation2 + $0x30] sm:$0xf] %vm617, %v4997
      %v5034 = vld [vmem:[#allocation2 + $0x34] sm:$0xf]
      %v5035 = vsel %vm1074, %v5007, %v5034
      %5036 = vst [vmem:[#allocation2 + $0x34] sm:$0xf] %v5035
      %v5037 = vld [vmem:[#allocation2] sm:$0xf]
      %v5038 = vld [vmem:[#allocation2 + $0x4] sm:$0xf]
      %v5039 = vld [vmem:[#allocation2 + $0x8] sm:$0xf]
      %v5040 = vld [vmem:[#allocation2 + $0xc] sm:$0xf]
      %v5041 = vld [vmem:[#allocation2 + $0x10] sm:$0xf]
      %v5042 = vld [vmem:[#allocation2 + $0x14] sm:$0xf]
      %v5043 = vld [vmem:[#allocation2 + $0x18] sm:$0xf]
      %v5044 = vld [vmem:[#allocation2 + $0x1c] sm:$0xf]
      %v5045 = vld [vmem:[#allocation2 + $0x20] sm:$0xf]
      %v5046 = vld [vmem:[#allocation2 + $0x24] sm:$0xf]
      %v5047 = vld [vmem:[#allocation2 + $0x28] sm:$0xf]
      %v5048 = vld [vmem:[#allocation2 + $0x2c] sm:$0xf]
      %v5049 = vld [vmem:[#allocation2 + $0x30] sm:$0x3]
      %v5050 = vld [vmem:[%s1] sm:$0xf]
      %v5051 = vld [vmem:[%s1 + $0x4] sm:$0xf]
      %v5052 = vld [vmem:[%s1 + $0x8] sm:$0xf]
      %v5053 = vld [vmem:[%s1 + $0xc] sm:$0xf]
      %v5054 = vld [vmem:[%s1 + $0x10] sm:$0xf]
      %v5055 = vld [vmem:[%s1 + $0x14] sm:$0xf]
      %v5056 = vld [vmem:[%s1 + $0x18] sm:$0xf]
      %v5057 = vld [vmem:[%s1 + $0x1c] sm:$0xf]
      %v5058 = vld [vmem:[%s1 + $0x20] sm:$0xf]
      %v5059 = vld [vmem:[%s1 + $0x24] sm:$0xf]
      %v5060 = vld [vmem:[%s1 + $0x28] sm:$0xf]
      %v5061 = vld [vmem:[%s1 + $0x2c] sm:$0xf]
      %v5062 = vld [vmem:[%s1 + $0x30] sm:$0x3]
      %5064 = vset.pattern.permute.xlu0 0
      %5065 = vperm.xlu0 %5064, %v5050
      %v5066 = vpop.permute.xlu0 %5065
      %v5069 = vunpack.c.l.s4 839922192
      %v5070 = vunpack.c.0.s8 %v5069
      %v5071 = vlaneseq
      %v5072 = vshrl.u32 %v5071, 7
      %v5073 = vsub.s32 %v5070, %v5072
      %v5074 = vrot.slane %v5066, %v5073
      %5076 = vset.pattern.permute.xlu0 0
      %5077 = vperm.xlu0 %5076, %v5051
      %v5078 = vpop.permute.xlu0 %5077
      %v5081 = vunpack.c.l.s4 839922192
      %v5082 = vunpack.c.0.s8 %v5081
      %v5083 = vlaneseq
      %v5084 = vshrl.u32 %v5083, 7
      %v5085 = vsub.s32 %v5082, %v5084
      %v5086 = vrot.slane %v5078, %v5085
      %5088 = vset.pattern.permute.xlu0 0
      %5089 = vperm.xlu0 %5088, %v5052
      %v5090 = vpop.permute.xlu0 %5089
      %v5093 = vunpack.c.l.s4 839922192
      %v5094 = vunpack.c.0.s8 %v5093
      %v5095 = vlaneseq
      %v5096 = vshrl.u32 %v5095, 7
      %v5097 = vsub.s32 %v5094, %v5096
      %v5098 = vrot.slane %v5090, %v5097
      %5100 = vset.pattern.permute.xlu0 0
      %5101 = vperm.xlu0 %5100, %v5053
      %v5102 = vpop.permute.xlu0 %5101
      %v5105 = vunpack.c.l.s4 839922192
      %v5106 = vunpack.c.0.s8 %v5105
      %v5107 = vlaneseq
      %v5108 = vshrl.u32 %v5107, 7
      %v5109 = vsub.s32 %v5106, %v5108
      %v5110 = vrot.slane %v5102, %v5109
      %5112 = vset.pattern.permute.xlu0 0
      %5113 = vperm.xlu0 %5112, %v5054
      %v5114 = vpop.permute.xlu0 %5113
      %v5117 = vunpack.c.l.s4 839922192
      %v5118 = vunpack.c.0.s8 %v5117
      %v5119 = vlaneseq
      %v5120 = vshrl.u32 %v5119, 7
      %v5121 = vsub.s32 %v5118, %v5120
      %v5122 = vrot.slane %v5114, %v5121
      %5124 = vset.pattern.permute.xlu0 0
      %5125 = vperm.xlu0 %5124, %v5055
      %v5126 = vpop.permute.xlu0 %5125
      %v5129 = vunpack.c.l.s4 839922192
      %v5130 = vunpack.c.0.s8 %v5129
      %v5131 = vlaneseq
      %v5132 = vshrl.u32 %v5131, 7
      %v5133 = vsub.s32 %v5130, %v5132
      %v5134 = vrot.slane %v5126, %v5133
      %5136 = vset.pattern.permute.xlu0 0
      %5137 = vperm.xlu0 %5136, %v5056
      %v5138 = vpop.permute.xlu0 %5137
      %v5141 = vunpack.c.l.s4 839922192
      %v5142 = vunpack.c.0.s8 %v5141
      %v5143 = vlaneseq
      %v5144 = vshrl.u32 %v5143, 7
      %v5145 = vsub.s32 %v5142, %v5144
      %v5146 = vrot.slane %v5138, %v5145
      %5148 = vset.pattern.permute.xlu0 0
      %5149 = vperm.xlu0 %5148, %v5057
      %v5150 = vpop.permute.xlu0 %5149
      %v5153 = vunpack.c.l.s4 839922192
      %v5154 = vunpack.c.0.s8 %v5153
      %v5155 = vlaneseq
      %v5156 = vshrl.u32 %v5155, 7
      %v5157 = vsub.s32 %v5154, %v5156
      %v5158 = vrot.slane %v5150, %v5157
      %5160 = vset.pattern.permute.xlu0 0
      %5161 = vperm.xlu0 %5160, %v5058
      %v5162 = vpop.permute.xlu0 %5161
      %v5165 = vunpack.c.l.s4 839922192
      %v5166 = vunpack.c.0.s8 %v5165
      %v5167 = vlaneseq
      %v5168 = vshrl.u32 %v5167, 7
      %v5169 = vsub.s32 %v5166, %v5168
      %v5170 = vrot.slane %v5162, %v5169
      %5172 = vset.pattern.permute.xlu0 0
      %5173 = vperm.xlu0 %5172, %v5059
      %v5174 = vpop.permute.xlu0 %5173
      %v5177 = vunpack.c.l.s4 839922192
      %v5178 = vunpack.c.0.s8 %v5177
      %v5179 = vlaneseq
      %v5180 = vshrl.u32 %v5179, 7
      %v5181 = vsub.s32 %v5178, %v5180
      %v5182 = vrot.slane %v5174, %v5181
      %5184 = vset.pattern.permute.xlu0 0
      %5185 = vperm.xlu0 %5184, %v5060
      %v5186 = vpop.permute.xlu0 %5185
      %v5189 = vunpack.c.l.s4 839922192
      %v5190 = vunpack.c.0.s8 %v5189
      %v5191 = vlaneseq
      %v5192 = vshrl.u32 %v5191, 7
      %v5193 = vsub.s32 %v5190, %v5192
      %v5194 = vrot.slane %v5186, %v5193
      %5196 = vset.pattern.permute.xlu0 0
      %5197 = vperm.xlu0 %5196, %v5061
      %v5198 = vpop.permute.xlu0 %5197
      %v5201 = vunpack.c.l.s4 839922192
      %v5202 = vunpack.c.0.s8 %v5201
      %v5203 = vlaneseq
      %v5204 = vshrl.u32 %v5203, 7
      %v5205 = vsub.s32 %v5202, %v5204
      %v5206 = vrot.slane %v5198, %v5205
      %5208 = vset.pattern.permute.xlu0 0
      %5209 = vperm.xlu0 %5208, %v5062
      %v5210 = vpop.permute.xlu0 %5209
      %v5213 = vunpack.c.l.s4 839922192
      %v5214 = vunpack.c.0.s8 %v5213
      %v5215 = vlaneseq
      %v5216 = vshrl.u32 %v5215, 7
      %v5217 = vsub.s32 %v5214, %v5216
      %v5218 = vrot.slane %v5210, %v5217
      %v5219 = vmul.bf16 %v5037, %v5074
      %v5220 = vmul.bf16 %v5038, %v5086
      %v5221 = vmul.bf16 %v5039, %v5098
      %v5222 = vmul.bf16 %v5040, %v5110
      %v5223 = vmul.bf16 %v5041, %v5122
      %v5224 = vmul.bf16 %v5042, %v5134
      %v5225 = vmul.bf16 %v5043, %v5146
      %v5226 = vmul.bf16 %v5044, %v5158
      %v5227 = vmul.bf16 %v5045, %v5170
      %v5228 = vmul.bf16 %v5046, %v5182
      %v5229 = vmul.bf16 %v5047, %v5194
      %v5230 = vmul.bf16 %v5048, %v5206
      %v5231 = vmul.bf16 %v5049, %v5218
      %v5232 = vld [vmem:[#allocation2 + $0x30] sm:$0x7]
      %v5233 = vld [vmem:[%s1274] sm:$0xf]
      %v5234 = vld [vmem:[%s1274 + $0x4] sm:$0xf]
      %v5235 = vld [vmem:[%s1274 + $0x8] sm:$0xf]
      %v5236 = vld [vmem:[%s1274 + $0xc] sm:$0xf]
      %v5237 = vld [vmem:[%s1274 + $0x10] sm:$0xf]
      %v5238 = vld [vmem:[%s1274 + $0x14] sm:$0xf]
      %v5239 = vld [vmem:[%s1274 + $0x18] sm:$0xf]
      %v5240 = vld [vmem:[%s1274 + $0x1c] sm:$0xf]
      %v5241 = vld [vmem:[%s1274 + $0x20] sm:$0xf]
      %v5242 = vld [vmem:[%s1274 + $0x24] sm:$0xf]
      %v5243 = vld [vmem:[%s1274 + $0x28] sm:$0xf]
      %v5244 = vld [vmem:[%s1274 + $0x2c] sm:$0xf]
      %v5245 = vld [vmem:[%s1274 + $0x30] sm:$0x3]
      %5247 = vset.pattern.permute.xlu0 0
      %5248 = vperm.xlu0 %5247, %v5233
      %v5249 = vpop.permute.xlu0 %5248
      %v5252 = vunpack.c.l.s4 839922192
      %v5253 = vunpack.c.0.s8 %v5252
      %v5254 = vlaneseq
      %v5255 = vshrl.u32 %v5254, 7
      %v5256 = vsub.s32 %v5253, %v5255
      %v5257 = vrot.slane %v5249, %v5256
      %5259 = vset.pattern.permute.xlu0 0
      %5260 = vperm.xlu0 %5259, %v5234
      %v5261 = vpop.permute.xlu0 %5260
      %v5264 = vunpack.c.l.s4 839922192
      %v5265 = vunpack.c.0.s8 %v5264
      %v5266 = vlaneseq
      %v5267 = vshrl.u32 %v5266, 7
      %v5268 = vsub.s32 %v5265, %v5267
      %v5269 = vrot.slane %v5261, %v5268
      %5271 = vset.pattern.permute.xlu0 0
      %5272 = vperm.xlu0 %5271, %v5235
      %v5273 = vpop.permute.xlu0 %5272
      %v5276 = vunpack.c.l.s4 839922192
      %v5277 = vunpack.c.0.s8 %v5276
      %v5278 = vlaneseq
      %v5279 = vshrl.u32 %v5278, 7
      %v5280 = vsub.s32 %v5277, %v5279
      %v5281 = vrot.slane %v5273, %v5280
      %5283 = vset.pattern.permute.xlu0 0
      %5284 = vperm.xlu0 %5283, %v5236
      %v5285 = vpop.permute.xlu0 %5284
      %v5288 = vunpack.c.l.s4 839922192
      %v5289 = vunpack.c.0.s8 %v5288
      %v5290 = vlaneseq
      %v5291 = vshrl.u32 %v5290, 7
      %v5292 = vsub.s32 %v5289, %v5291
      %v5293 = vrot.slane %v5285, %v5292
      %5295 = vset.pattern.permute.xlu0 0
      %5296 = vperm.xlu0 %5295, %v5237
      %v5297 = vpop.permute.xlu0 %5296
      %v5300 = vunpack.c.l.s4 839922192
      %v5301 = vunpack.c.0.s8 %v5300
      %v5302 = vlaneseq
      %v5303 = vshrl.u32 %v5302, 7
      %v5304 = vsub.s32 %v5301, %v5303
      %v5305 = vrot.slane %v5297, %v5304
      %5307 = vset.pattern.permute.xlu0 0
      %5308 = vperm.xlu0 %5307, %v5238
      %v5309 = vpop.permute.xlu0 %5308
      %v5312 = vunpack.c.l.s4 839922192
      %v5313 = vunpack.c.0.s8 %v5312
      %v5314 = vlaneseq
      %v5315 = vshrl.u32 %v5314, 7
      %v5316 = vsub.s32 %v5313, %v5315
      %v5317 = vrot.slane %v5309, %v5316
      %5319 = vset.pattern.permute.xlu0 0
      %5320 = vperm.xlu0 %5319, %v5239
      %v5321 = vpop.permute.xlu0 %5320
      %v5324 = vunpack.c.l.s4 839922192
      %v5325 = vunpack.c.0.s8 %v5324
      %v5326 = vlaneseq
      %v5327 = vshrl.u32 %v5326, 7
      %v5328 = vsub.s32 %v5325, %v5327
      %v5329 = vrot.slane %v5321, %v5328
      %5331 = vset.pattern.permute.xlu0 0
      %5332 = vperm.xlu0 %5331, %v5240
      %v5333 = vpop.permute.xlu0 %5332
      %v5336 = vunpack.c.l.s4 839922192
      %v5337 = vunpack.c.0.s8 %v5336
      %v5338 = vlaneseq
      %v5339 = vshrl.u32 %v5338, 7
      %v5340 = vsub.s32 %v5337, %v5339
      %v5341 = vrot.slane %v5333, %v5340
      %5343 = vset.pattern.permute.xlu0 0
      %5344 = vperm.xlu0 %5343, %v5241
      %v5345 = vpop.permute.xlu0 %5344
      %v5348 = vunpack.c.l.s4 839922192
      %v5349 = vunpack.c.0.s8 %v5348
      %v5350 = vlaneseq
      %v5351 = vshrl.u32 %v5350, 7
      %v5352 = vsub.s32 %v5349, %v5351
      %v5353 = vrot.slane %v5345, %v5352
      %5355 = vset.pattern.permute.xlu0 0
      %5356 = vperm.xlu0 %5355, %v5242
      %v5357 = vpop.permute.xlu0 %5356
      %v5360 = vunpack.c.l.s4 839922192
      %v5361 = vunpack.c.0.s8 %v5360
      %v5362 = vlaneseq
      %v5363 = vshrl.u32 %v5362, 7
      %v5364 = vsub.s32 %v5361, %v5363
      %v5365 = vrot.slane %v5357, %v5364
      %5367 = vset.pattern.permute.xlu0 0
      %5368 = vperm.xlu0 %5367, %v5243
      %v5369 = vpop.permute.xlu0 %5368
      %v5372 = vunpack.c.l.s4 839922192
      %v5373 = vunpack.c.0.s8 %v5372
      %v5374 = vlaneseq
      %v5375 = vshrl.u32 %v5374, 7
      %v5376 = vsub.s32 %v5373, %v5375
      %v5377 = vrot.slane %v5369, %v5376
      %5379 = vset.pattern.permute.xlu0 0
      %5380 = vperm.xlu0 %5379, %v5244
      %v5381 = vpop.permute.xlu0 %5380
      %v5384 = vunpack.c.l.s4 839922192
      %v5385 = vunpack.c.0.s8 %v5384
      %v5386 = vlaneseq
      %v5387 = vshrl.u32 %v5386, 7
      %v5388 = vsub.s32 %v5385, %v5387
      %v5389 = vrot.slane %v5381, %v5388
      %5391 = vset.pattern.permute.xlu0 0
      %5392 = vperm.xlu0 %5391, %v5245
      %v5393 = vpop.permute.xlu0 %5392
      %v5396 = vunpack.c.l.s4 839922192
      %v5397 = vunpack.c.0.s8 %v5396
      %v5398 = vlaneseq
      %v5399 = vshrl.u32 %v5398, 7
      %v5400 = vsub.s32 %v5397, %v5399
      %v5401 = vrot.slane %v5393, %v5400
      %v5403 = vshrl.u32 %v5257, 16
      %v5405 = vrot.slane %v5403, 7
      %v5406 = vshll.u32 %v5257, 16
      %v5408 = vor.u32 %v5405, %v5406
      %v5409 = vrot.slane %v5405, 4
      %v5411 = vshrl.u32 %v5269, 16
      %v5413 = vrot.slane %v5411, 7
      %v5414 = vshll.u32 %v5269, 16
      %v5416 = vor.u32 %v5413, %v5414
      %v5417 = vsel %vm1446, %v5409, %v5416
      %v5418 = vrot.slane %v5413, 4
      %v5420 = vshrl.u32 %v5281, 16
      %v5422 = vrot.slane %v5420, 7
      %v5423 = vshll.u32 %v5281, 16
      %v5425 = vor.u32 %v5422, %v5423
      %v5426 = vsel %vm1446, %v5418, %v5425
      %v5427 = vrot.slane %v5422, 4
      %v5429 = vshrl.u32 %v5293, 16
      %v5431 = vrot.slane %v5429, 7
      %v5432 = vshll.u32 %v5293, 16
      %v5434 = vor.u32 %v5431, %v5432
      %v5435 = vsel %vm1446, %v5427, %v5434
      %v5436 = vrot.slane %v5431, 4
      %v5438 = vshrl.u32 %v5305, 16
      %v5440 = vrot.slane %v5438, 7
      %v5441 = vshll.u32 %v5305, 16
      %v5443 = vor.u32 %v5440, %v5441
      %v5444 = vsel %vm1446, %v5436, %v5443
      %v5445 = vrot.slane %v5440, 4
      %v5447 = vshrl.u32 %v5317, 16
      %v5449 = vrot.slane %v5447, 7
      %v5450 = vshll.u32 %v5317, 16
      %v5452 = vor.u32 %v5449, %v5450
      %v5453 = vsel %vm1446, %v5445, %v5452
      %v5454 = vrot.slane %v5449, 4
      %v5456 = vshrl.u32 %v5329, 16
      %v5458 = vrot.slane %v5456, 7
      %v5459 = vshll.u32 %v5329, 16
      %v5461 = vor.u32 %v5458, %v5459
      %v5462 = vsel %vm1446, %v5454, %v5461
      %v5463 = vrot.slane %v5458, 4
      %v5465 = vshrl.u32 %v5341, 16
      %v5467 = vrot.slane %v5465, 7
      %v5468 = vshll.u32 %v5341, 16
      %v5470 = vor.u32 %v5467, %v5468
      %v5471 = vsel %vm1446, %v5463, %v5470
      %v5472 = vrot.slane %v5467, 4
      %v5474 = vshrl.u32 %v5353, 16
      %v5476 = vrot.slane %v5474, 7
      %v5477 = vshll.u32 %v5353, 16
      %v5479 = vor.u32 %v5476, %v5477
      %v5480 = vsel %vm1446, %v5472, %v5479
      %v5481 = vrot.slane %v5476, 4
      %v5483 = vshrl.u32 %v5365, 16
      %v5485 = vrot.slane %v5483, 7
      %v5486 = vshll.u32 %v5365, 16
      %v5488 = vor.u32 %v5485, %v5486
      %v5489 = vsel %vm1446, %v5481, %v5488
      %v5490 = vrot.slane %v5485, 4
      %v5492 = vshrl.u32 %v5377, 16
      %v5494 = vrot.slane %v5492, 7
      %v5495 = vshll.u32 %v5377, 16
      %v5497 = vor.u32 %v5494, %v5495
      %v5498 = vsel %vm1446, %v5490, %v5497
      %v5499 = vrot.slane %v5494, 4
      %v5501 = vshrl.u32 %v5389, 16
      %v5503 = vrot.slane %v5501, 7
      %v5504 = vshll.u32 %v5389, 16
      %v5506 = vor.u32 %v5503, %v5504
      %v5507 = vsel %vm1446, %v5499, %v5506
      %v5508 = vrot.slane %v5503, 4
      %v5510 = vshrl.u32 %v5401, 16
      %v5512 = vrot.slane %v5510, 7
      %v5513 = vshll.u32 %v5401, 16
      %v5515 = vor.u32 %v5512, %v5513
      %v5516 = vsel %vm1446, %v5508, %v5515
      %v5530 = vmul.bf16 %v5037, %v5408
      %v5531 = vmul.bf16 %v5038, %v5417
      %v5532 = vmul.bf16 %v5039, %v5426
      %v5533 = vmul.bf16 %v5040, %v5435
      %v5534 = vmul.bf16 %v5041, %v5444
      %v5535 = vmul.bf16 %v5042, %v5453
      %v5536 = vmul.bf16 %v5043, %v5462
      %v5537 = vmul.bf16 %v5044, %v5471
      %v5538 = vmul.bf16 %v5045, %v5480
      %v5539 = vmul.bf16 %v5046, %v5489
      %v5540 = vmul.bf16 %v5047, %v5498
      %v5541 = vmul.bf16 %v5048, %v5507
      %v5542 = vmul.bf16 %v5232, %v5516
      %v5543 = vld [vmem:[#allocation2] sm:$0xe]
      %v5544 = vld [vmem:[%s1589] sm:$0xf]
      %v5545 = vld [vmem:[%s1589 + $0x4] sm:$0xf]
      %v5546 = vld [vmem:[%s1589 + $0x8] sm:$0xf]
      %v5547 = vld [vmem:[%s1589 + $0xc] sm:$0xf]
      %v5548 = vld [vmem:[%s1589 + $0x10] sm:$0xf]
      %v5549 = vld [vmem:[%s1589 + $0x14] sm:$0xf]
      %v5550 = vld [vmem:[%s1589 + $0x18] sm:$0xf]
      %v5551 = vld [vmem:[%s1589 + $0x1c] sm:$0xf]
      %v5552 = vld [vmem:[%s1589 + $0x20] sm:$0xf]
      %v5553 = vld [vmem:[%s1589 + $0x24] sm:$0xf]
      %v5554 = vld [vmem:[%s1589 + $0x28] sm:$0xf]
      %v5555 = vld [vmem:[%s1589 + $0x2c] sm:$0xf]
      %v5556 = vld [vmem:[%s1589 + $0x30] sm:$0x3]
      %5558 = vset.pattern.permute.xlu0 0
      %5559 = vperm.xlu0 %5558, %v5544
      %v5560 = vpop.permute.xlu0 %5559
      %v5563 = vunpack.c.l.s4 839922192
      %v5564 = vunpack.c.0.s8 %v5563
      %v5565 = vlaneseq
      %v5566 = vshrl.u32 %v5565, 7
      %v5567 = vsub.s32 %v5564, %v5566
      %v5568 = vrot.slane %v5560, %v5567
      %5570 = vset.pattern.permute.xlu0 0
      %5571 = vperm.xlu0 %5570, %v5545
      %v5572 = vpop.permute.xlu0 %5571
      %v5575 = vunpack.c.l.s4 839922192
      %v5576 = vunpack.c.0.s8 %v5575
      %v5577 = vlaneseq
      %v5578 = vshrl.u32 %v5577, 7
      %v5579 = vsub.s32 %v5576, %v5578
      %v5580 = vrot.slane %v5572, %v5579
      %5582 = vset.pattern.permute.xlu0 0
      %5583 = vperm.xlu0 %5582, %v5546
      %v5584 = vpop.permute.xlu0 %5583
      %v5587 = vunpack.c.l.s4 839922192
      %v5588 = vunpack.c.0.s8 %v5587
      %v5589 = vlaneseq
      %v5590 = vshrl.u32 %v5589, 7
      %v5591 = vsub.s32 %v5588, %v5590
      %v5592 = vrot.slane %v5584, %v5591
      %5594 = vset.pattern.permute.xlu0 0
      %5595 = vperm.xlu0 %5594, %v5547
      %v5596 = vpop.permute.xlu0 %5595
      %v5599 = vunpack.c.l.s4 839922192
      %v5600 = vunpack.c.0.s8 %v5599
      %v5601 = vlaneseq
      %v5602 = vshrl.u32 %v5601, 7
      %v5603 = vsub.s32 %v5600, %v5602
      %v5604 = vrot.slane %v5596, %v5603
      %5606 = vset.pattern.permute.xlu0 0
      %5607 = vperm.xlu0 %5606, %v5548
      %v5608 = vpop.permute.xlu0 %5607
      %v5611 = vunpack.c.l.s4 839922192
      %v5612 = vunpack.c.0.s8 %v5611
      %v5613 = vlaneseq
      %v5614 = vshrl.u32 %v5613, 7
      %v5615 = vsub.s32 %v5612, %v5614
      %v5616 = vrot.slane %v5608, %v5615
      %5618 = vset.pattern.permute.xlu0 0
      %5619 = vperm.xlu0 %5618, %v5549
      %v5620 = vpop.permute.xlu0 %5619
      %v5623 = vunpack.c.l.s4 839922192
      %v5624 = vunpack.c.0.s8 %v5623
      %v5625 = vlaneseq
      %v5626 = vshrl.u32 %v5625, 7
      %v5627 = vsub.s32 %v5624, %v5626
      %v5628 = vrot.slane %v5620, %v5627
      %5630 = vset.pattern.permute.xlu0 0
      %5631 = vperm.xlu0 %5630, %v5550
      %v5632 = vpop.permute.xlu0 %5631
      %v5635 = vunpack.c.l.s4 839922192
      %v5636 = vunpack.c.0.s8 %v5635
      %v5637 = vlaneseq
      %v5638 = vshrl.u32 %v5637, 7
      %v5639 = vsub.s32 %v5636, %v5638
      %v5640 = vrot.slane %v5632, %v5639
      %5642 = vset.pattern.permute.xlu0 0
      %5643 = vperm.xlu0 %5642, %v5551
      %v5644 = vpop.permute.xlu0 %5643
      %v5647 = vunpack.c.l.s4 839922192
      %v5648 = vunpack.c.0.s8 %v5647
      %v5649 = vlaneseq
      %v5650 = vshrl.u32 %v5649, 7
      %v5651 = vsub.s32 %v5648, %v5650
      %v5652 = vrot.slane %v5644, %v5651
      %5654 = vset.pattern.permute.xlu0 0
      %5655 = vperm.xlu0 %5654, %v5552
      %v5656 = vpop.permute.xlu0 %5655
      %v5659 = vunpack.c.l.s4 839922192
      %v5660 = vunpack.c.0.s8 %v5659
      %v5661 = vlaneseq
      %v5662 = vshrl.u32 %v5661, 7
      %v5663 = vsub.s32 %v5660, %v5662
      %v5664 = vrot.slane %v5656, %v5663
      %5666 = vset.pattern.permute.xlu0 0
      %5667 = vperm.xlu0 %5666, %v5553
      %v5668 = vpop.permute.xlu0 %5667
      %v5671 = vunpack.c.l.s4 839922192
      %v5672 = vunpack.c.0.s8 %v5671
      %v5673 = vlaneseq
      %v5674 = vshrl.u32 %v5673, 7
      %v5675 = vsub.s32 %v5672, %v5674
      %v5676 = vrot.slane %v5668, %v5675
      %5678 = vset.pattern.permute.xlu0 0
      %5679 = vperm.xlu0 %5678, %v5554
      %v5680 = vpop.permute.xlu0 %5679
      %v5683 = vunpack.c.l.s4 839922192
      %v5684 = vunpack.c.0.s8 %v5683
      %v5685 = vlaneseq
      %v5686 = vshrl.u32 %v5685, 7
      %v5687 = vsub.s32 %v5684, %v5686
      %v5688 = vrot.slane %v5680, %v5687
      %5690 = vset.pattern.permute.xlu0 0
      %5691 = vperm.xlu0 %5690, %v5555
      %v5692 = vpop.permute.xlu0 %5691
      %v5695 = vunpack.c.l.s4 839922192
      %v5696 = vunpack.c.0.s8 %v5695
      %v5697 = vlaneseq
      %v5698 = vshrl.u32 %v5697, 7
      %v5699 = vsub.s32 %v5696, %v5698
      %v5700 = vrot.slane %v5692, %v5699
      %5702 = vset.pattern.permute.xlu0 0
      %5703 = vperm.xlu0 %5702, %v5556
      %v5704 = vpop.permute.xlu0 %5703
      %v5707 = vunpack.c.l.s4 839922192
      %v5708 = vunpack.c.0.s8 %v5707
      %v5709 = vlaneseq
      %v5710 = vshrl.u32 %v5709, 7
      %v5711 = vsub.s32 %v5708, %v5710
      %v5712 = vrot.slane %v5704, %v5711
      %v5726 = vrot.slane %v5568, 7
      %v5727 = vrot.slane %v5726, 4
      %v5728 = vrot.slane %v5580, 7
      %v5729 = vsel %vm1774, %v5727, %v5728
      %v5730 = vrot.slane %v5728, 4
      %v5731 = vrot.slane %v5592, 7
      %v5732 = vsel %vm1774, %v5730, %v5731
      %v5733 = vrot.slane %v5731, 4
      %v5734 = vrot.slane %v5604, 7
      %v5735 = vsel %vm1774, %v5733, %v5734
      %v5736 = vrot.slane %v5734, 4
      %v5737 = vrot.slane %v5616, 7
      %v5738 = vsel %vm1774, %v5736, %v5737
      %v5739 = vrot.slane %v5737, 4
      %v5740 = vrot.slane %v5628, 7
      %v5741 = vsel %vm1774, %v5739, %v5740
      %v5742 = vrot.slane %v5740, 4
      %v5743 = vrot.slane %v5640, 7
      %v5744 = vsel %vm1774, %v5742, %v5743
      %v5745 = vrot.slane %v5743, 4
      %v5746 = vrot.slane %v5652, 7
      %v5747 = vsel %vm1774, %v5745, %v5746
      %v5748 = vrot.slane %v5746, 4
      %v5749 = vrot.slane %v5664, 7
      %v5750 = vsel %vm1774, %v5748, %v5749
      %v5751 = vrot.slane %v5749, 4
      %v5752 = vrot.slane %v5676, 7
      %v5753 = vsel %vm1774, %v5751, %v5752
      %v5754 = vrot.slane %v5752, 4
      %v5755 = vrot.slane %v5688, 7
      %v5756 = vsel %vm1774, %v5754, %v5755
      %v5757 = vrot.slane %v5755, 4
      %v5758 = vrot.slane %v5700, 7
      %v5759 = vsel %vm1774, %v5757, %v5758
      %v5760 = vrot.slane %v5758, 4
      %v5761 = vrot.slane %v5712, 7
      %v5762 = vsel %vm1774, %v5760, %v5761
      %v5776 = vmul.bf16 %v5543, %v5726
      %v5777 = vmul.bf16 %v5038, %v5729
      %v5778 = vmul.bf16 %v5039, %v5732
      %v5779 = vmul.bf16 %v5040, %v5735
      %v5780 = vmul.bf16 %v5041, %v5738
      %v5781 = vmul.bf16 %v5042, %v5741
      %v5782 = vmul.bf16 %v5043, %v5744
      %v5783 = vmul.bf16 %v5044, %v5747
      %v5784 = vmul.bf16 %v5045, %v5750
      %v5785 = vmul.bf16 %v5046, %v5753
      %v5786 = vmul.bf16 %v5047, %v5756
      %v5787 = vmul.bf16 %v5048, %v5759
      %v5788 = vmul.bf16 %v5232, %v5762
      %v5789 = vld [vmem:[#allocation2 + $0x4] sm:$0xe]
      %v5790 = vld [vmem:[#allocation2 + $0x8] sm:$0xf]
      %v5791 = vld [vmem:[#allocation2 + $0xc] sm:$0xf]
      %v5792 = vld [vmem:[#allocation2 + $0x10] sm:$0xf]
      %v5793 = vld [vmem:[#allocation2 + $0x14] sm:$0xf]
      %v5794 = vld [vmem:[#allocation2 + $0x18] sm:$0xf]
      %v5795 = vld [vmem:[#allocation2 + $0x1c] sm:$0xf]
      %v5796 = vld [vmem:[#allocation2 + $0x20] sm:$0xf]
      %v5797 = vld [vmem:[#allocation2 + $0x24] sm:$0xf]
      %v5798 = vld [vmem:[#allocation2 + $0x28] sm:$0xf]
      %v5799 = vld [vmem:[#allocation2 + $0x2c] sm:$0xf]
      %v5800 = vld [vmem:[#allocation2 + $0x30] sm:$0xf]
      %v5801 = vld [vmem:[#allocation2 + $0x34] sm:$0x7]
      %v5802 = vld [vmem:[%s1851] sm:$0xf]
      %v5803 = vld [vmem:[%s1851 + $0x4] sm:$0xf]
      %v5804 = vld [vmem:[%s1851 + $0x8] sm:$0xf]
      %v5805 = vld [vmem:[%s1851 + $0xc] sm:$0xf]
      %v5806 = vld [vmem:[%s1851 + $0x10] sm:$0xf]
      %v5807 = vld [vmem:[%s1851 + $0x14] sm:$0xf]
      %v5808 = vld [vmem:[%s1851 + $0x18] sm:$0xf]
      %v5809 = vld [vmem:[%s1851 + $0x1c] sm:$0xf]
      %v5810 = vld [vmem:[%s1851 + $0x20] sm:$0xf]
      %v5811 = vld [vmem:[%s1851 + $0x24] sm:$0xf]
      %v5812 = vld [vmem:[%s1851 + $0x28] sm:$0xf]
      %v5813 = vld [vmem:[%s1851 + $0x2c] sm:$0xf]
      %v5814 = vld [vmem:[%s1851 + $0x30] sm:$0x3]
      %5816 = vset.pattern.permute.xlu0 0
      %5817 = vperm.xlu0 %5816, %v5802
      %v5818 = vpop.permute.xlu0 %5817
      %v5821 = vunpack.c.l.s4 839922192
      %v5822 = vunpack.c.0.s8 %v5821
      %v5823 = vlaneseq
      %v5824 = vshrl.u32 %v5823, 7
      %v5825 = vsub.s32 %v5822, %v5824
      %v5826 = vrot.slane %v5818, %v5825
      %5828 = vset.pattern.permute.xlu0 0
      %5829 = vperm.xlu0 %5828, %v5803
      %v5830 = vpop.permute.xlu0 %5829
      %v5833 = vunpack.c.l.s4 839922192
      %v5834 = vunpack.c.0.s8 %v5833
      %v5835 = vlaneseq
      %v5836 = vshrl.u32 %v5835, 7
      %v5837 = vsub.s32 %v5834, %v5836
      %v5838 = vrot.slane %v5830, %v5837
      %5840 = vset.pattern.permute.xlu0 0
      %5841 = vperm.xlu0 %5840, %v5804
      %v5842 = vpop.permute.xlu0 %5841
      %v5845 = vunpack.c.l.s4 839922192
      %v5846 = vunpack.c.0.s8 %v5845
      %v5847 = vlaneseq
      %v5848 = vshrl.u32 %v5847, 7
      %v5849 = vsub.s32 %v5846, %v5848
      %v5850 = vrot.slane %v5842, %v5849
      %5852 = vset.pattern.permute.xlu0 0
      %5853 = vperm.xlu0 %5852, %v5805
      %v5854 = vpop.permute.xlu0 %5853
      %v5857 = vunpack.c.l.s4 839922192
      %v5858 = vunpack.c.0.s8 %v5857
      %v5859 = vlaneseq
      %v5860 = vshrl.u32 %v5859, 7
      %v5861 = vsub.s32 %v5858, %v5860
      %v5862 = vrot.slane %v5854, %v5861
      %5864 = vset.pattern.permute.xlu0 0
      %5865 = vperm.xlu0 %5864, %v5806
      %v5866 = vpop.permute.xlu0 %5865
      %v5869 = vunpack.c.l.s4 839922192
      %v5870 = vunpack.c.0.s8 %v5869
      %v5871 = vlaneseq
      %v5872 = vshrl.u32 %v5871, 7
      %v5873 = vsub.s32 %v5870, %v5872
      %v5874 = vrot.slane %v5866, %v5873
      %5876 = vset.pattern.permute.xlu0 0
      %5877 = vperm.xlu0 %5876, %v5807
      %v5878 = vpop.permute.xlu0 %5877
      %v5881 = vunpack.c.l.s4 839922192
      %v5882 = vunpack.c.0.s8 %v5881
      %v5883 = vlaneseq
      %v5884 = vshrl.u32 %v5883, 7
      %v5885 = vsub.s32 %v5882, %v5884
      %v5886 = vrot.slane %v5878, %v5885
      %5888 = vset.pattern.permute.xlu0 0
      %5889 = vperm.xlu0 %5888, %v5808
      %v5890 = vpop.permute.xlu0 %5889
      %v5893 = vunpack.c.l.s4 839922192
      %v5894 = vunpack.c.0.s8 %v5893
      %v5895 = vlaneseq
      %v5896 = vshrl.u32 %v5895, 7
      %v5897 = vsub.s32 %v5894, %v5896
      %v5898 = vrot.slane %v5890, %v5897
      %5900 = vset.pattern.permute.xlu0 0
      %5901 = vperm.xlu0 %5900, %v5809
      %v5902 = vpop.permute.xlu0 %5901
      %v5905 = vunpack.c.l.s4 839922192
      %v5906 = vunpack.c.0.s8 %v5905
      %v5907 = vlaneseq
      %v5908 = vshrl.u32 %v5907, 7
      %v5909 = vsub.s32 %v5906, %v5908
      %v5910 = vrot.slane %v5902, %v5909
      %5912 = vset.pattern.permute.xlu0 0
      %5913 = vperm.xlu0 %5912, %v5810
      %v5914 = vpop.permute.xlu0 %5913
      %v5917 = vunpack.c.l.s4 839922192
      %v5918 = vunpack.c.0.s8 %v5917
      %v5919 = vlaneseq
      %v5920 = vshrl.u32 %v5919, 7
      %v5921 = vsub.s32 %v5918, %v5920
      %v5922 = vrot.slane %v5914, %v5921
      %5924 = vset.pattern.permute.xlu0 0
      %5925 = vperm.xlu0 %5924, %v5811
      %v5926 = vpop.permute.xlu0 %5925
      %v5929 = vunpack.c.l.s4 839922192
      %v5930 = vunpack.c.0.s8 %v5929
      %v5931 = vlaneseq
      %v5932 = vshrl.u32 %v5931, 7
      %v5933 = vsub.s32 %v5930, %v5932
      %v5934 = vrot.slane %v5926, %v5933
      %5936 = vset.pattern.permute.xlu0 0
      %5937 = vperm.xlu0 %5936, %v5812
      %v5938 = vpop.permute.xlu0 %5937
      %v5941 = vunpack.c.l.s4 839922192
      %v5942 = vunpack.c.0.s8 %v5941
      %v5943 = vlaneseq
      %v5944 = vshrl.u32 %v5943, 7
      %v5945 = vsub.s32 %v5942, %v5944
      %v5946 = vrot.slane %v5938, %v5945
      %5948 = vset.pattern.permute.xlu0 0
      %5949 = vperm.xlu0 %5948, %v5813
      %v5950 = vpop.permute.xlu0 %5949
      %v5953 = vunpack.c.l.s4 839922192
      %v5954 = vunpack.c.0.s8 %v5953
      %v5955 = vlaneseq
      %v5956 = vshrl.u32 %v5955, 7
      %v5957 = vsub.s32 %v5954, %v5956
      %v5958 = vrot.slane %v5950, %v5957
      %5960 = vset.pattern.permute.xlu0 0
      %5961 = vperm.xlu0 %5960, %v5814
      %v5962 = vpop.permute.xlu0 %5961
      %v5965 = vunpack.c.l.s4 839922192
      %v5966 = vunpack.c.0.s8 %v5965
      %v5967 = vlaneseq
      %v5968 = vshrl.u32 %v5967, 7
      %v5969 = vsub.s32 %v5966, %v5968
      %v5970 = vrot.slane %v5962, %v5969
      %v5984 = vrot.slane %v5826, 7
      %v5985 = vrot.slane %v5984, 4
      %v5986 = vrot.slane %v5838, 7
      %v5987 = vsel %vm1774, %v5985, %v5986
      %v5988 = vrot.slane %v5986, 4
      %v5989 = vrot.slane %v5850, 7
      %v5990 = vsel %vm1774, %v5988, %v5989
      %v5991 = vrot.slane %v5989, 4
      %v5992 = vrot.slane %v5862, 7
      %v5993 = vsel %vm1774, %v5991, %v5992
      %v5994 = vrot.slane %v5992, 4
      %v5995 = vrot.slane %v5874, 7
      %v5996 = vsel %vm1774, %v5994, %v5995
      %v5997 = vrot.slane %v5995, 4
      %v5998 = vrot.slane %v5886, 7
      %v5999 = vsel %vm1774, %v5997, %v5998
      %v6000 = vrot.slane %v5998, 4
      %v6001 = vrot.slane %v5898, 7
      %v6002 = vsel %vm1774, %v6000, %v6001
      %v6003 = vrot.slane %v6001, 4
      %v6004 = vrot.slane %v5910, 7
      %v6005 = vsel %vm1774, %v6003, %v6004
      %v6006 = vrot.slane %v6004, 4
      %v6007 = vrot.slane %v5922, 7
      %v6008 = vsel %vm1774, %v6006, %v6007
      %v6009 = vrot.slane %v6007, 4
      %v6010 = vrot.slane %v5934, 7
      %v6011 = vsel %vm1774, %v6009, %v6010
      %v6012 = vrot.slane %v6010, 4
      %v6013 = vrot.slane %v5946, 7
      %v6014 = vsel %vm1774, %v6012, %v6013
      %v6015 = vrot.slane %v6013, 4
      %v6016 = vrot.slane %v5958, 7
      %v6017 = vsel %vm1774, %v6015, %v6016
      %v6018 = vrot.slane %v6016, 4
      %v6019 = vrot.slane %v5970, 7
      %v6020 = vsel %vm1774, %v6018, %v6019
      %v6034 = vmul.bf16 %v5789, %v5984
      %v6035 = vmul.bf16 %v5790, %v5987
      %v6036 = vmul.bf16 %v5791, %v5990
      %v6037 = vmul.bf16 %v5792, %v5993
      %v6038 = vmul.bf16 %v5793, %v5996
      %v6039 = vmul.bf16 %v5794, %v5999
      %v6040 = vmul.bf16 %v5795, %v6002
      %v6041 = vmul.bf16 %v5796, %v6005
      %v6042 = vmul.bf16 %v5797, %v6008
      %v6043 = vmul.bf16 %v5798, %v6011
      %v6044 = vmul.bf16 %v5799, %v6014
      %v6045 = vmul.bf16 %v5800, %v6017
      %v6046 = vmul.bf16 %v5801, %v6020
      %v6047 = vld [vmem:[#allocation2 + $0x34] sm:$0xf]
      %v6048 = vld [vmem:[%s2098] sm:$0xf]
      %v6049 = vld [vmem:[%s2098 + $0x4] sm:$0xf]
      %v6050 = vld [vmem:[%s2098 + $0x8] sm:$0xf]
      %v6051 = vld [vmem:[%s2098 + $0xc] sm:$0xf]
      %v6052 = vld [vmem:[%s2098 + $0x10] sm:$0xf]
      %v6053 = vld [vmem:[%s2098 + $0x14] sm:$0xf]
      %v6054 = vld [vmem:[%s2098 + $0x18] sm:$0xf]
      %v6055 = vld [vmem:[%s2098 + $0x1c] sm:$0xf]
      %v6056 = vld [vmem:[%s2098 + $0x20] sm:$0xf]
      %v6057 = vld [vmem:[%s2098 + $0x24] sm:$0xf]
      %v6058 = vld [vmem:[%s2098 + $0x28] sm:$0xf]
      %v6059 = vld [vmem:[%s2098 + $0x2c] sm:$0xf]
      %v6060 = vld [vmem:[%s2098 + $0x30] sm:$0x3]
      %6062 = vset.pattern.permute.xlu0 0
      %6063 = vperm.xlu0 %6062, %v6048
      %v6064 = vpop.permute.xlu0 %6063
      %v6067 = vunpack.c.l.s4 839922192
      %v6068 = vunpack.c.0.s8 %v6067
      %v6069 = vlaneseq
      %v6070 = vshrl.u32 %v6069, 7
      %v6071 = vsub.s32 %v6068, %v6070
      %v6072 = vrot.slane %v6064, %v6071
      %6074 = vset.pattern.permute.xlu0 0
      %6075 = vperm.xlu0 %6074, %v6049
      %v6076 = vpop.permute.xlu0 %6075
      %v6079 = vunpack.c.l.s4 839922192
      %v6080 = vunpack.c.0.s8 %v6079
      %v6081 = vlaneseq
      %v6082 = vshrl.u32 %v6081, 7
      %v6083 = vsub.s32 %v6080, %v6082
      %v6084 = vrot.slane %v6076, %v6083
      %6086 = vset.pattern.permute.xlu0 0
      %6087 = vperm.xlu0 %6086, %v6050
      %v6088 = vpop.permute.xlu0 %6087
      %v6091 = vunpack.c.l.s4 839922192
      %v6092 = vunpack.c.0.s8 %v6091
      %v6093 = vlaneseq
      %v6094 = vshrl.u32 %v6093, 7
      %v6095 = vsub.s32 %v6092, %v6094
      %v6096 = vrot.slane %v6088, %v6095
      %6098 = vset.pattern.permute.xlu0 0
      %6099 = vperm.xlu0 %6098, %v6051
      %v6100 = vpop.permute.xlu0 %6099
      %v6103 = vunpack.c.l.s4 839922192
      %v6104 = vunpack.c.0.s8 %v6103
      %v6105 = vlaneseq
      %v6106 = vshrl.u32 %v6105, 7
      %v6107 = vsub.s32 %v6104, %v6106
      %v6108 = vrot.slane %v6100, %v6107
      %6110 = vset.pattern.permute.xlu0 0
      %6111 = vperm.xlu0 %6110, %v6052
      %v6112 = vpop.permute.xlu0 %6111
      %v6115 = vunpack.c.l.s4 839922192
      %v6116 = vunpack.c.0.s8 %v6115
      %v6117 = vlaneseq
      %v6118 = vshrl.u32 %v6117, 7
      %v6119 = vsub.s32 %v6116, %v6118
      %v6120 = vrot.slane %v6112, %v6119
      %6122 = vset.pattern.permute.xlu0 0
      %6123 = vperm.xlu0 %6122, %v6053
      %v6124 = vpop.permute.xlu0 %6123
      %v6127 = vunpack.c.l.s4 839922192
      %v6128 = vunpack.c.0.s8 %v6127
      %v6129 = vlaneseq
      %v6130 = vshrl.u32 %v6129, 7
      %v6131 = vsub.s32 %v6128, %v6130
      %v6132 = vrot.slane %v6124, %v6131
      %6134 = vset.pattern.permute.xlu0 0
      %6135 = vperm.xlu0 %6134, %v6054
      %v6136 = vpop.permute.xlu0 %6135
      %v6139 = vunpack.c.l.s4 839922192
      %v6140 = vunpack.c.0.s8 %v6139
      %v6141 = vlaneseq
      %v6142 = vshrl.u32 %v6141, 7
      %v6143 = vsub.s32 %v6140, %v6142
      %v6144 = vrot.slane %v6136, %v6143
      %6146 = vset.pattern.permute.xlu0 0
      %6147 = vperm.xlu0 %6146, %v6055
      %v6148 = vpop.permute.xlu0 %6147
      %v6151 = vunpack.c.l.s4 839922192
      %v6152 = vunpack.c.0.s8 %v6151
      %v6153 = vlaneseq
      %v6154 = vshrl.u32 %v6153, 7
      %v6155 = vsub.s32 %v6152, %v6154
      %v6156 = vrot.slane %v6148, %v6155
      %6158 = vset.pattern.permute.xlu0 0
      %6159 = vperm.xlu0 %6158, %v6056
      %v6160 = vpop.permute.xlu0 %6159
      %v6163 = vunpack.c.l.s4 839922192
      %v6164 = vunpack.c.0.s8 %v6163
      %v6165 = vlaneseq
      %v6166 = vshrl.u32 %v6165, 7
      %v6167 = vsub.s32 %v6164, %v6166
      %v6168 = vrot.slane %v6160, %v6167
      %6170 = vset.pattern.permute.xlu0 0
      %6171 = vperm.xlu0 %6170, %v6057
      %v6172 = vpop.permute.xlu0 %6171
      %v6175 = vunpack.c.l.s4 839922192
      %v6176 = vunpack.c.0.s8 %v6175
      %v6177 = vlaneseq
      %v6178 = vshrl.u32 %v6177, 7
      %v6179 = vsub.s32 %v6176, %v6178
      %v6180 = vrot.slane %v6172, %v6179
      %6182 = vset.pattern.permute.xlu0 0
      %6183 = vperm.xlu0 %6182, %v6058
      %v6184 = vpop.permute.xlu0 %6183
      %v6187 = vunpack.c.l.s4 839922192
      %v6188 = vunpack.c.0.s8 %v6187
      %v6189 = vlaneseq
      %v6190 = vshrl.u32 %v6189, 7
      %v6191 = vsub.s32 %v6188, %v6190
      %v6192 = vrot.slane %v6184, %v6191
      %6194 = vset.pattern.permute.xlu0 0
      %6195 = vperm.xlu0 %6194, %v6059
      %v6196 = vpop.permute.xlu0 %6195
      %v6199 = vunpack.c.l.s4 839922192
      %v6200 = vunpack.c.0.s8 %v6199
      %v6201 = vlaneseq
      %v6202 = vshrl.u32 %v6201, 7
      %v6203 = vsub.s32 %v6200, %v6202
      %v6204 = vrot.slane %v6196, %v6203
      %6206 = vset.pattern.permute.xlu0 0
      %6207 = vperm.xlu0 %6206, %v6060
      %v6208 = vpop.permute.xlu0 %6207
      %v6211 = vunpack.c.l.s4 839922192
      %v6212 = vunpack.c.0.s8 %v6211
      %v6213 = vlaneseq
      %v6214 = vshrl.u32 %v6213, 7
      %v6215 = vsub.s32 %v6212, %v6214
      %v6216 = vrot.slane %v6208, %v6215
      %v6218 = vshrl.u32 %v6072, 16
      %v6220 = vrot.slane %v6218, 6
      %v6221 = vshll.u32 %v6072, 16
      %v6223 = vrot.slane %v6221, 7
      %v6224 = vor.u32 %v6220, %v6223
      %v6225 = vrot.slane %v6224, 4
      %v6227 = vshrl.u32 %v6084, 16
      %v6229 = vrot.slane %v6227, 6
      %v6230 = vshll.u32 %v6084, 16
      %v6232 = vrot.slane %v6230, 7
      %v6233 = vor.u32 %v6229, %v6232
      %v6234 = vsel %vm913, %v6225, %v6233
      %v6235 = vrot.slane %v6233, 4
      %v6237 = vshrl.u32 %v6096, 16
      %v6239 = vrot.slane %v6237, 6
      %v6240 = vshll.u32 %v6096, 16
      %v6242 = vrot.slane %v6240, 7
      %v6243 = vor.u32 %v6239, %v6242
      %v6244 = vsel %vm913, %v6235, %v6243
      %v6245 = vrot.slane %v6243, 4
      %v6247 = vshrl.u32 %v6108, 16
      %v6249 = vrot.slane %v6247, 6
      %v6250 = vshll.u32 %v6108, 16
      %v6252 = vrot.slane %v6250, 7
      %v6253 = vor.u32 %v6249, %v6252
      %v6254 = vsel %vm913, %v6245, %v6253
      %v6255 = vrot.slane %v6253, 4
      %v6257 = vshrl.u32 %v6120, 16
      %v6259 = vrot.slane %v6257, 6
      %v6260 = vshll.u32 %v6120, 16
      %v6262 = vrot.slane %v6260, 7
      %v6263 = vor.u32 %v6259, %v6262
      %v6264 = vsel %vm913, %v6255, %v6263
      %v6265 = vrot.slane %v6263, 4
      %v6267 = vshrl.u32 %v6132, 16
      %v6269 = vrot.slane %v6267, 6
      %v6270 = vshll.u32 %v6132, 16
      %v6272 = vrot.slane %v6270, 7
      %v6273 = vor.u32 %v6269, %v6272
      %v6274 = vsel %vm913, %v6265, %v6273
      %v6275 = vrot.slane %v6273, 4
      %v6277 = vshrl.u32 %v6144, 16
      %v6279 = vrot.slane %v6277, 6
      %v6280 = vshll.u32 %v6144, 16
      %v6282 = vrot.slane %v6280, 7
      %v6283 = vor.u32 %v6279, %v6282
      %v6284 = vsel %vm913, %v6275, %v6283
      %v6285 = vrot.slane %v6283, 4
      %v6287 = vshrl.u32 %v6156, 16
      %v6289 = vrot.slane %v6287, 6
      %v6290 = vshll.u32 %v6156, 16
      %v6292 = vrot.slane %v6290, 7
      %v6293 = vor.u32 %v6289, %v6292
      %v6294 = vsel %vm913, %v6285, %v6293
      %v6295 = vrot.slane %v6293, 4
      %v6297 = vshrl.u32 %v6168, 16
      %v6299 = vrot.slane %v6297, 6
      %v6300 = vshll.u32 %v6168, 16
      %v6302 = vrot.slane %v6300, 7
      %v6303 = vor.u32 %v6299, %v6302
      %v6304 = vsel %vm913, %v6295, %v6303
      %v6305 = vrot.slane %v6303, 4
      %v6307 = vshrl.u32 %v6180, 16
      %v6309 = vrot.slane %v6307, 6
      %v6310 = vshll.u32 %v6180, 16
      %v6312 = vrot.slane %v6310, 7
      %v6313 = vor.u32 %v6309, %v6312
      %v6314 = vsel %vm913, %v6305, %v6313
      %v6315 = vrot.slane %v6313, 4
      %v6317 = vshrl.u32 %v6192, 16
      %v6319 = vrot.slane %v6317, 6
      %v6320 = vshll.u32 %v6192, 16
      %v6322 = vrot.slane %v6320, 7
      %v6323 = vor.u32 %v6319, %v6322
      %v6324 = vsel %vm913, %v6315, %v6323
      %v6325 = vrot.slane %v6323, 4
      %v6327 = vshrl.u32 %v6204, 16
      %v6329 = vrot.slane %v6327, 6
      %v6330 = vshll.u32 %v6204, 16
      %v6332 = vrot.slane %v6330, 7
      %v6333 = vor.u32 %v6329, %v6332
      %v6334 = vsel %vm913, %v6325, %v6333
      %v6335 = vrot.slane %v6333, 4
      %v6337 = vshrl.u32 %v6216, 16
      %v6339 = vrot.slane %v6337, 6
      %v6340 = vshll.u32 %v6216, 16
      %v6342 = vrot.slane %v6340, 7
      %v6343 = vor.u32 %v6339, %v6342
      %v6344 = vsel %vm913, %v6335, %v6343
      %v6358 = vmul.bf16 %v5789, %v6224
      %v6359 = vmul.bf16 %v5790, %v6234
      %v6360 = vmul.bf16 %v5791, %v6244
      %v6361 = vmul.bf16 %v5792, %v6254
      %v6362 = vmul.bf16 %v5793, %v6264
      %v6363 = vmul.bf16 %v5794, %v6274
      %v6364 = vmul.bf16 %v5795, %v6284
      %v6365 = vmul.bf16 %v5796, %v6294
      %v6366 = vmul.bf16 %v5797, %v6304
      %v6367 = vmul.bf16 %v5798, %v6314
      %v6368 = vmul.bf16 %v5799, %v6324
      %v6369 = vmul.bf16 %v5800, %v6334
      %v6370 = vmul.bf16 %v6047, %v6344
      %v6371 = vld [vmem:[#allocation2 + $0x4] sm:$0xc]
      %v6372 = vld [vmem:[%s2423] sm:$0xf]
      %v6373 = vld [vmem:[%s2423 + $0x4] sm:$0xf]
      %v6374 = vld [vmem:[%s2423 + $0x8] sm:$0xf]
      %v6375 = vld [vmem:[%s2423 + $0xc] sm:$0xf]
      %v6376 = vld [vmem:[%s2423 + $0x10] sm:$0xf]
      %v6377 = vld [vmem:[%s2423 + $0x14] sm:$0xf]
      %v6378 = vld [vmem:[%s2423 + $0x18] sm:$0xf]
      %v6379 = vld [vmem:[%s2423 + $0x1c] sm:$0xf]
      %v6380 = vld [vmem:[%s2423 + $0x20] sm:$0xf]
      %v6381 = vld [vmem:[%s2423 + $0x24] sm:$0xf]
      %v6382 = vld [vmem:[%s2423 + $0x28] sm:$0xf]
      %v6383 = vld [vmem:[%s2423 + $0x2c] sm:$0xf]
      %v6384 = vld [vmem:[%s2423 + $0x30] sm:$0x3]
      %6386 = vset.pattern.permute.xlu0 0
      %6387 = vperm.xlu0 %6386, %v6372
      %v6388 = vpop.permute.xlu0 %6387
      %v6391 = vunpack.c.l.s4 839922192
      %v6392 = vunpack.c.0.s8 %v6391
      %v6393 = vlaneseq
      %v6394 = vshrl.u32 %v6393, 7
      %v6395 = vsub.s32 %v6392, %v6394
      %v6396 = vrot.slane %v6388, %v6395
      %6398 = vset.pattern.permute.xlu0 0
      %6399 = vperm.xlu0 %6398, %v6373
      %v6400 = vpop.permute.xlu0 %6399
      %v6403 = vunpack.c.l.s4 839922192
      %v6404 = vunpack.c.0.s8 %v6403
      %v6405 = vlaneseq
      %v6406 = vshrl.u32 %v6405, 7
      %v6407 = vsub.s32 %v6404, %v6406
      %v6408 = vrot.slane %v6400, %v6407
      %6410 = vset.pattern.permute.xlu0 0
      %6411 = vperm.xlu0 %6410, %v6374
      %v6412 = vpop.permute.xlu0 %6411
      %v6415 = vunpack.c.l.s4 839922192
      %v6416 = vunpack.c.0.s8 %v6415
      %v6417 = vlaneseq
      %v6418 = vshrl.u32 %v6417, 7
      %v6419 = vsub.s32 %v6416, %v6418
      %v6420 = vrot.slane %v6412, %v6419
      %6422 = vset.pattern.permute.xlu0 0
      %6423 = vperm.xlu0 %6422, %v6375
      %v6424 = vpop.permute.xlu0 %6423
      %v6427 = vunpack.c.l.s4 839922192
      %v6428 = vunpack.c.0.s8 %v6427
      %v6429 = vlaneseq
      %v6430 = vshrl.u32 %v6429, 7
      %v6431 = vsub.s32 %v6428, %v6430
      %v6432 = vrot.slane %v6424, %v6431
      %6434 = vset.pattern.permute.xlu0 0
      %6435 = vperm.xlu0 %6434, %v6376
      %v6436 = vpop.permute.xlu0 %6435
      %v6439 = vunpack.c.l.s4 839922192
      %v6440 = vunpack.c.0.s8 %v6439
      %v6441 = vlaneseq
      %v6442 = vshrl.u32 %v6441, 7
      %v6443 = vsub.s32 %v6440, %v6442
      %v6444 = vrot.slane %v6436, %v6443
      %6446 = vset.pattern.permute.xlu0 0
      %6447 = vperm.xlu0 %6446, %v6377
      %v6448 = vpop.permute.xlu0 %6447
      %v6451 = vunpack.c.l.s4 839922192
      %v6452 = vunpack.c.0.s8 %v6451
      %v6453 = vlaneseq
      %v6454 = vshrl.u32 %v6453, 7
      %v6455 = vsub.s32 %v6452, %v6454
      %v6456 = vrot.slane %v6448, %v6455
      %6458 = vset.pattern.permute.xlu0 0
      %6459 = vperm.xlu0 %6458, %v6378
      %v6460 = vpop.permute.xlu0 %6459
      %v6463 = vunpack.c.l.s4 839922192
      %v6464 = vunpack.c.0.s8 %v6463
      %v6465 = vlaneseq
      %v6466 = vshrl.u32 %v6465, 7
      %v6467 = vsub.s32 %v6464, %v6466
      %v6468 = vrot.slane %v6460, %v6467
      %6470 = vset.pattern.permute.xlu0 0
      %6471 = vperm.xlu0 %6470, %v6379
      %v6472 = vpop.permute.xlu0 %6471
      %v6475 = vunpack.c.l.s4 839922192
      %v6476 = vunpack.c.0.s8 %v6475
      %v6477 = vlaneseq
      %v6478 = vshrl.u32 %v6477, 7
      %v6479 = vsub.s32 %v6476, %v6478
      %v6480 = vrot.slane %v6472, %v6479
      %6482 = vset.pattern.permute.xlu0 0
      %6483 = vperm.xlu0 %6482, %v6380
      %v6484 = vpop.permute.xlu0 %6483
      %v6487 = vunpack.c.l.s4 839922192
      %v6488 = vunpack.c.0.s8 %v6487
      %v6489 = vlaneseq
      %v6490 = vshrl.u32 %v6489, 7
      %v6491 = vsub.s32 %v6488, %v6490
      %v6492 = vrot.slane %v6484, %v6491
      %6494 = vset.pattern.permute.xlu0 0
      %6495 = vperm.xlu0 %6494, %v6381
      %v6496 = vpop.permute.xlu0 %6495
      %v6499 = vunpack.c.l.s4 839922192
      %v6500 = vunpack.c.0.s8 %v6499
      %v6501 = vlaneseq
      %v6502 = vshrl.u32 %v6501, 7
      %v6503 = vsub.s32 %v6500, %v6502
      %v6504 = vrot.slane %v6496, %v6503
      %6506 = vset.pattern.permute.xlu0 0
      %6507 = vperm.xlu0 %6506, %v6382
      %v6508 = vpop.permute.xlu0 %6507
      %v6511 = vunpack.c.l.s4 839922192
      %v6512 = vunpack.c.0.s8 %v6511
      %v6513 = vlaneseq
      %v6514 = vshrl.u32 %v6513, 7
      %v6515 = vsub.s32 %v6512, %v6514
      %v6516 = vrot.slane %v6508, %v6515
      %6518 = vset.pattern.permute.xlu0 0
      %6519 = vperm.xlu0 %6518, %v6383
      %v6520 = vpop.permute.xlu0 %6519
      %v6523 = vunpack.c.l.s4 839922192
      %v6524 = vunpack.c.0.s8 %v6523
      %v6525 = vlaneseq
      %v6526 = vshrl.u32 %v6525, 7
      %v6527 = vsub.s32 %v6524, %v6526
      %v6528 = vrot.slane %v6520, %v6527
      %6530 = vset.pattern.permute.xlu0 0
      %6531 = vperm.xlu0 %6530, %v6384
      %v6532 = vpop.permute.xlu0 %6531
      %v6535 = vunpack.c.l.s4 839922192
      %v6536 = vunpack.c.0.s8 %v6535
      %v6537 = vlaneseq
      %v6538 = vshrl.u32 %v6537, 7
      %v6539 = vsub.s32 %v6536, %v6538
      %v6540 = vrot.slane %v6532, %v6539
      %v6554 = vrot.slane %v6396, 6
      %v6555 = vrot.slane %v6554, 4
      %v6556 = vrot.slane %v6408, 6
      %v6557 = vsel %vm2608, %v6555, %v6556
      %v6558 = vrot.slane %v6556, 4
      %v6559 = vrot.slane %v6420, 6
      %v6560 = vsel %vm2608, %v6558, %v6559
      %v6561 = vrot.slane %v6559, 4
      %v6562 = vrot.slane %v6432, 6
      %v6563 = vsel %vm2608, %v6561, %v6562
      %v6564 = vrot.slane %v6562, 4
      %v6565 = vrot.slane %v6444, 6
      %v6566 = vsel %vm2608, %v6564, %v6565
      %v6567 = vrot.slane %v6565, 4
      %v6568 = vrot.slane %v6456, 6
      %v6569 = vsel %vm2608, %v6567, %v6568
      %v6570 = vrot.slane %v6568, 4
      %v6571 = vrot.slane %v6468, 6
      %v6572 = vsel %vm2608, %v6570, %v6571
      %v6573 = vrot.slane %v6571, 4
      %v6574 = vrot.slane %v6480, 6
      %v6575 = vsel %vm2608, %v6573, %v6574
      %v6576 = vrot.slane %v6574, 4
      %v6577 = vrot.slane %v6492, 6
      %v6578 = vsel %vm2608, %v6576, %v6577
      %v6579 = vrot.slane %v6577, 4
      %v6580 = vrot.slane %v6504, 6
      %v6581 = vsel %vm2608, %v6579, %v6580
      %v6582 = vrot.slane %v6580, 4
      %v6583 = vrot.slane %v6516, 6
      %v6584 = vsel %vm2608, %v6582, %v6583
      %v6585 = vrot.slane %v6583, 4
      %v6586 = vrot.slane %v6528, 6
      %v6587 = vsel %vm2608, %v6585, %v6586
      %v6588 = vrot.slane %v6586, 4
      %v6589 = vrot.slane %v6540, 6
      %v6590 = vsel %vm2608, %v6588, %v6589
      %v6604 = vmul.bf16 %v6371, %v6554
      %v6605 = vmul.bf16 %v5790, %v6557
      %v6606 = vmul.bf16 %v5791, %v6560
      %v6607 = vmul.bf16 %v5792, %v6563
      %v6608 = vmul.bf16 %v5793, %v6566
      %v6609 = vmul.bf16 %v5794, %v6569
      %v6610 = vmul.bf16 %v5795, %v6572
      %v6611 = vmul.bf16 %v5796, %v6575
      %v6612 = vmul.bf16 %v5797, %v6578
      %v6613 = vmul.bf16 %v5798, %v6581
      %v6614 = vmul.bf16 %v5799, %v6584
      %v6615 = vmul.bf16 %v5800, %v6587
      %v6616 = vmul.bf16 %v6047, %v6590
      %v6617 = vld [vmem:[#allocation2 + $0x8] sm:$0xc]
      %v6618 = vld [vmem:[#allocation2 + $0xc] sm:$0xf]
      %v6619 = vld [vmem:[#allocation2 + $0x10] sm:$0xf]
      %v6620 = vld [vmem:[#allocation2 + $0x14] sm:$0xf]
      %v6621 = vld [vmem:[#allocation2 + $0x18] sm:$0xf]
      %v6622 = vld [vmem:[#allocation2 + $0x1c] sm:$0xf]
      %v6623 = vld [vmem:[#allocation2 + $0x20] sm:$0xf]
      %v6624 = vld [vmem:[#allocation2 + $0x24] sm:$0xf]
      %v6625 = vld [vmem:[#allocation2 + $0x28] sm:$0xf]
      %v6626 = vld [vmem:[#allocation2 + $0x2c] sm:$0xf]
      %v6627 = vld [vmem:[#allocation2 + $0x30] sm:$0xf]
      %v6628 = vld [vmem:[#allocation2 + $0x34] sm:$0xf]
      %v6629 = vld [vmem:[#allocation2 + $0x38] sm:$0xf]
      %v6630 = vld [vmem:[%s2685] sm:$0xf]
      %v6631 = vld [vmem:[%s2685 + $0x4] sm:$0xf]
      %v6632 = vld [vmem:[%s2685 + $0x8] sm:$0xf]
      %v6633 = vld [vmem:[%s2685 + $0xc] sm:$0xf]
      %v6634 = vld [vmem:[%s2685 + $0x10] sm:$0xf]
      %v6635 = vld [vmem:[%s2685 + $0x14] sm:$0xf]
      %v6636 = vld [vmem:[%s2685 + $0x18] sm:$0xf]
      %v6637 = vld [vmem:[%s2685 + $0x1c] sm:$0xf]
      %v6638 = vld [vmem:[%s2685 + $0x20] sm:$0xf]
      %v6639 = vld [vmem:[%s2685 + $0x24] sm:$0xf]
      %v6640 = vld [vmem:[%s2685 + $0x28] sm:$0xf]
      %v6641 = vld [vmem:[%s2685 + $0x2c] sm:$0xf]
      %v6642 = vld [vmem:[%s2685 + $0x30] sm:$0x3]
      %6644 = vset.pattern.permute.xlu0 0
      %6645 = vperm.xlu0 %6644, %v6630
      %v6646 = vpop.permute.xlu0 %6645
      %v6649 = vunpack.c.l.s4 839922192
      %v6650 = vunpack.c.0.s8 %v6649
      %v6651 = vlaneseq
      %v6652 = vshrl.u32 %v6651, 7
      %v6653 = vsub.s32 %v6650, %v6652
      %v6654 = vrot.slane %v6646, %v6653
      %6656 = vset.pattern.permute.xlu0 0
      %6657 = vperm.xlu0 %6656, %v6631
      %v6658 = vpop.permute.xlu0 %6657
      %v6661 = vunpack.c.l.s4 839922192
      %v6662 = vunpack.c.0.s8 %v6661
      %v6663 = vlaneseq
      %v6664 = vshrl.u32 %v6663, 7
      %v6665 = vsub.s32 %v6662, %v6664
      %v6666 = vrot.slane %v6658, %v6665
      %6668 = vset.pattern.permute.xlu0 0
      %6669 = vperm.xlu0 %6668, %v6632
      %v6670 = vpop.permute.xlu0 %6669
      %v6673 = vunpack.c.l.s4 839922192
      %v6674 = vunpack.c.0.s8 %v6673
      %v6675 = vlaneseq
      %v6676 = vshrl.u32 %v6675, 7
      %v6677 = vsub.s32 %v6674, %v6676
      %v6678 = vrot.slane %v6670, %v6677
      %6680 = vset.pattern.permute.xlu0 0
      %6681 = vperm.xlu0 %6680, %v6633
      %v6682 = vpop.permute.xlu0 %6681
      %v6685 = vunpack.c.l.s4 839922192
      %v6686 = vunpack.c.0.s8 %v6685
      %v6687 = vlaneseq
      %v6688 = vshrl.u32 %v6687, 7
      %v6689 = vsub.s32 %v6686, %v6688
      %v6690 = vrot.slane %v6682, %v6689
      %6692 = vset.pattern.permute.xlu0 0
      %6693 = vperm.xlu0 %6692, %v6634
      %v6694 = vpop.permute.xlu0 %6693
      %v6697 = vunpack.c.l.s4 839922192
      %v6698 = vunpack.c.0.s8 %v6697
      %v6699 = vlaneseq
      %v6700 = vshrl.u32 %v6699, 7
      %v6701 = vsub.s32 %v6698, %v6700
      %v6702 = vrot.slane %v6694, %v6701
      %6704 = vset.pattern.permute.xlu0 0
      %6705 = vperm.xlu0 %6704, %v6635
      %v6706 = vpop.permute.xlu0 %6705
      %v6709 = vunpack.c.l.s4 839922192
      %v6710 = vunpack.c.0.s8 %v6709
      %v6711 = vlaneseq
      %v6712 = vshrl.u32 %v6711, 7
      %v6713 = vsub.s32 %v6710, %v6712
      %v6714 = vrot.slane %v6706, %v6713
      %6716 = vset.pattern.permute.xlu0 0
      %6717 = vperm.xlu0 %6716, %v6636
      %v6718 = vpop.permute.xlu0 %6717
      %v6721 = vunpack.c.l.s4 839922192
      %v6722 = vunpack.c.0.s8 %v6721
      %v6723 = vlaneseq
      %v6724 = vshrl.u32 %v6723, 7
      %v6725 = vsub.s32 %v6722, %v6724
      %v6726 = vrot.slane %v6718, %v6725
      %6728 = vset.pattern.permute.xlu0 0
      %6729 = vperm.xlu0 %6728, %v6637
      %v6730 = vpop.permute.xlu0 %6729
      %v6733 = vunpack.c.l.s4 839922192
      %v6734 = vunpack.c.0.s8 %v6733
      %v6735 = vlaneseq
      %v6736 = vshrl.u32 %v6735, 7
      %v6737 = vsub.s32 %v6734, %v6736
      %v6738 = vrot.slane %v6730, %v6737
      %6740 = vset.pattern.permute.xlu0 0
      %6741 = vperm.xlu0 %6740, %v6638
      %v6742 = vpop.permute.xlu0 %6741
      %v6745 = vunpack.c.l.s4 839922192
      %v6746 = vunpack.c.0.s8 %v6745
      %v6747 = vlaneseq
      %v6748 = vshrl.u32 %v6747, 7
      %v6749 = vsub.s32 %v6746, %v6748
      %v6750 = vrot.slane %v6742, %v6749
      %6752 = vset.pattern.permute.xlu0 0
      %6753 = vperm.xlu0 %6752, %v6639
      %v6754 = vpop.permute.xlu0 %6753
      %v6757 = vunpack.c.l.s4 839922192
      %v6758 = vunpack.c.0.s8 %v6757
      %v6759 = vlaneseq
      %v6760 = vshrl.u32 %v6759, 7
      %v6761 = vsub.s32 %v6758, %v6760
      %v6762 = vrot.slane %v6754, %v6761
      %6764 = vset.pattern.permute.xlu0 0
      %6765 = vperm.xlu0 %6764, %v6640
      %v6766 = vpop.permute.xlu0 %6765
      %v6769 = vunpack.c.l.s4 839922192
      %v6770 = vunpack.c.0.s8 %v6769
      %v6771 = vlaneseq
      %v6772 = vshrl.u32 %v6771, 7
      %v6773 = vsub.s32 %v6770, %v6772
      %v6774 = vrot.slane %v6766, %v6773
      %6776 = vset.pattern.permute.xlu0 0
      %6777 = vperm.xlu0 %6776, %v6641
      %v6778 = vpop.permute.xlu0 %6777
      %v6781 = vunpack.c.l.s4 839922192
      %v6782 = vunpack.c.0.s8 %v6781
      %v6783 = vlaneseq
      %v6784 = vshrl.u32 %v6783, 7
      %v6785 = vsub.s32 %v6782, %v6784
      %v6786 = vrot.slane %v6778, %v6785
      %6788 = vset.pattern.permute.xlu0 0
      %6789 = vperm.xlu0 %6788, %v6642
      %v6790 = vpop.permute.xlu0 %6789
      %v6793 = vunpack.c.l.s4 839922192
      %v6794 = vunpack.c.0.s8 %v6793
      %v6795 = vlaneseq
      %v6796 = vshrl.u32 %v6795, 7
      %v6797 = vsub.s32 %v6794, %v6796
      %v6798 = vrot.slane %v6790, %v6797
      %v6812 = vrot.slane %v6654, 6
      %v6813 = vrot.slane %v6812, 4
      %v6814 = vrot.slane %v6666, 6
      %v6815 = vsel %vm2608, %v6813, %v6814
      %v6816 = vrot.slane %v6814, 4
      %v6817 = vrot.slane %v6678, 6
      %v6818 = vsel %vm2608, %v6816, %v6817
      %v6819 = vrot.slane %v6817, 4
      %v6820 = vrot.slane %v6690, 6
      %v6821 = vsel %vm2608, %v6819, %v6820
      %v6822 = vrot.slane %v6820, 4
      %v6823 = vrot.slane %v6702, 6
      %v6824 = vsel %vm2608, %v6822, %v6823
      %v6825 = vrot.slane %v6823, 4
      %v6826 = vrot.slane %v6714, 6
      %v6827 = vsel %vm2608, %v6825, %v6826
      %v6828 = vrot.slane %v6826, 4
      %v6829 = vrot.slane %v6726, 6
      %v6830 = vsel %vm2608, %v6828, %v6829
      %v6831 = vrot.slane %v6829, 4
      %v6832 = vrot.slane %v6738, 6
      %v6833 = vsel %vm2608, %v6831, %v6832
      %v6834 = vrot.slane %v6832, 4
      %v6835 = vrot.slane %v6750, 6
      %v6836 = vsel %vm2608, %v6834, %v6835
      %v6837 = vrot.slane %v6835, 4
      %v6838 = vrot.slane %v6762, 6
      %v6839 = vsel %vm2608, %v6837, %v6838
      %v6840 = vrot.slane %v6838, 4
      %v6841 = vrot.slane %v6774, 6
      %v6842 = vsel %vm2608, %v6840, %v6841
      %v6843 = vrot.slane %v6841, 4
      %v6844 = vrot.slane %v6786, 6
      %v6845 = vsel %vm2608, %v6843, %v6844
      %v6846 = vrot.slane %v6844, 4
      %v6847 = vrot.slane %v6798, 6
      %v6848 = vsel %vm2608, %v6846, %v6847
      %v6862 = vmul.bf16 %v6617, %v6812
      %v6863 = vmul.bf16 %v6618, %v6815
      %v6864 = vmul.bf16 %v6619, %v6818
      %v6865 = vmul.bf16 %v6620, %v6821
      %v6866 = vmul.bf16 %v6621, %v6824
      %v6867 = vmul.bf16 %v6622, %v6827
      %v6868 = vmul.bf16 %v6623, %v6830
      %v6869 = vmul.bf16 %v6624, %v6833
      %v6870 = vmul.bf16 %v6625, %v6836
      %v6871 = vmul.bf16 %v6626, %v6839
      %v6872 = vmul.bf16 %v6627, %v6842
      %v6873 = vmul.bf16 %v6628, %v6845
      %v6874 = vmul.bf16 %v6629, %v6848
      %v6875 = vld [vmem:[#allocation2 + $0x8] sm:$0xc]
      %v6876 = vld [vmem:[#allocation2 + $0xc] sm:$0xf]
      %v6877 = vld [vmem:[#allocation2 + $0x10] sm:$0xf]
      %v6878 = vld [vmem:[#allocation2 + $0x14] sm:$0xf]
      %v6879 = vld [vmem:[#allocation2 + $0x18] sm:$0xf]
      %v6880 = vld [vmem:[#allocation2 + $0x1c] sm:$0xf]
      %v6881 = vld [vmem:[#allocation2 + $0x20] sm:$0xf]
      %v6882 = vld [vmem:[#allocation2 + $0x24] sm:$0xf]
      %v6883 = vld [vmem:[#allocation2 + $0x28] sm:$0xf]
      %v6884 = vld [vmem:[#allocation2 + $0x2c] sm:$0xf]
      %v6885 = vld [vmem:[#allocation2 + $0x30] sm:$0xf]
      %v6886 = vld [vmem:[#allocation2 + $0x34] sm:$0xf]
      %v6887 = vld [vmem:[#allocation2 + $0x38] sm:$0xf]
      %v6888 = vld [vmem:[#allocation2 + $0x3c] sm:$0x1]
      %v6889 = vld [vmem:[%s2945] sm:$0xf]
      %v6890 = vld [vmem:[%s2945 + $0x4] sm:$0xf]
      %v6891 = vld [vmem:[%s2945 + $0x8] sm:$0xf]
      %v6892 = vld [vmem:[%s2945 + $0xc] sm:$0xf]
      %v6893 = vld [vmem:[%s2945 + $0x10] sm:$0xf]
      %v6894 = vld [vmem:[%s2945 + $0x14] sm:$0xf]
      %v6895 = vld [vmem:[%s2945 + $0x18] sm:$0xf]
      %v6896 = vld [vmem:[%s2945 + $0x1c] sm:$0xf]
      %v6897 = vld [vmem:[%s2945 + $0x20] sm:$0xf]
      %v6898 = vld [vmem:[%s2945 + $0x24] sm:$0xf]
      %v6899 = vld [vmem:[%s2945 + $0x28] sm:$0xf]
      %v6900 = vld [vmem:[%s2945 + $0x2c] sm:$0xf]
      %v6901 = vld [vmem:[%s2945 + $0x30] sm:$0x3]
      %6903 = vset.pattern.permute.xlu0 0
      %6904 = vperm.xlu0 %6903, %v6889
      %v6905 = vpop.permute.xlu0 %6904
      %v6908 = vunpack.c.l.s4 839922192
      %v6909 = vunpack.c.0.s8 %v6908
      %v6910 = vlaneseq
      %v6911 = vshrl.u32 %v6910, 7
      %v6912 = vsub.s32 %v6909, %v6911
      %v6913 = vrot.slane %v6905, %v6912
      %6915 = vset.pattern.permute.xlu0 0
      %6916 = vperm.xlu0 %6915, %v6890
      %v6917 = vpop.permute.xlu0 %6916
      %v6920 = vunpack.c.l.s4 839922192
      %v6921 = vunpack.c.0.s8 %v6920
      %v6922 = vlaneseq
      %v6923 = vshrl.u32 %v6922, 7
      %v6924 = vsub.s32 %v6921, %v6923
      %v6925 = vrot.slane %v6917, %v6924
      %6927 = vset.pattern.permute.xlu0 0
      %6928 = vperm.xlu0 %6927, %v6891
      %v6929 = vpop.permute.xlu0 %6928
      %v6932 = vunpack.c.l.s4 839922192
      %v6933 = vunpack.c.0.s8 %v6932
      %v6934 = vlaneseq
      %v6935 = vshrl.u32 %v6934, 7
      %v6936 = vsub.s32 %v6933, %v6935
      %v6937 = vrot.slane %v6929, %v6936
      %6939 = vset.pattern.permute.xlu0 0
      %6940 = vperm.xlu0 %6939, %v6892
      %v6941 = vpop.permute.xlu0 %6940
      %v6944 = vunpack.c.l.s4 839922192
      %v6945 = vunpack.c.0.s8 %v6944
      %v6946 = vlaneseq
      %v6947 = vshrl.u32 %v6946, 7
      %v6948 = vsub.s32 %v6945, %v6947
      %v6949 = vrot.slane %v6941, %v6948
      %6951 = vset.pattern.permute.xlu0 0
      %6952 = vperm.xlu0 %6951, %v6893
      %v6953 = vpop.permute.xlu0 %6952
      %v6956 = vunpack.c.l.s4 839922192
      %v6957 = vunpack.c.0.s8 %v6956
      %v6958 = vlaneseq
      %v6959 = vshrl.u32 %v6958, 7
      %v6960 = vsub.s32 %v6957, %v6959
      %v6961 = vrot.slane %v6953, %v6960
      %6963 = vset.pattern.permute.xlu0 0
      %6964 = vperm.xlu0 %6963, %v6894
      %v6965 = vpop.permute.xlu0 %6964
      %v6968 = vunpack.c.l.s4 839922192
      %v6969 = vunpack.c.0.s8 %v6968
      %v6970 = vlaneseq
      %v6971 = vshrl.u32 %v6970, 7
      %v6972 = vsub.s32 %v6969, %v6971
      %v6973 = vrot.slane %v6965, %v6972
      %6975 = vset.pattern.permute.xlu0 0
      %6976 = vperm.xlu0 %6975, %v6895
      %v6977 = vpop.permute.xlu0 %6976
      %v6980 = vunpack.c.l.s4 839922192
      %v6981 = vunpack.c.0.s8 %v6980
      %v6982 = vlaneseq
      %v6983 = vshrl.u32 %v6982, 7
      %v6984 = vsub.s32 %v6981, %v6983
      %v6985 = vrot.slane %v6977, %v6984
      %6987 = vset.pattern.permute.xlu0 0
      %6988 = vperm.xlu0 %6987, %v6896
      %v6989 = vpop.permute.xlu0 %6988
      %v6992 = vunpack.c.l.s4 839922192
      %v6993 = vunpack.c.0.s8 %v6992
      %v6994 = vlaneseq
      %v6995 = vshrl.u32 %v6994, 7
      %v6996 = vsub.s32 %v6993, %v6995
      %v6997 = vrot.slane %v6989, %v6996
      %6999 = vset.pattern.permute.xlu0 0
      %7000 = vperm.xlu0 %6999, %v6897
      %v7001 = vpop.permute.xlu0 %7000
      %v7004 = vunpack.c.l.s4 839922192
      %v7005 = vunpack.c.0.s8 %v7004
      %v7006 = vlaneseq
      %v7007 = vshrl.u32 %v7006, 7
      %v7008 = vsub.s32 %v7005, %v7007
      %v7009 = vrot.slane %v7001, %v7008
      %7011 = vset.pattern.permute.xlu0 0
      %7012 = vperm.xlu0 %7011, %v6898
      %v7013 = vpop.permute.xlu0 %7012
      %v7016 = vunpack.c.l.s4 839922192
      %v7017 = vunpack.c.0.s8 %v7016
      %v7018 = vlaneseq
      %v7019 = vshrl.u32 %v7018, 7
      %v7020 = vsub.s32 %v7017, %v7019
      %v7021 = vrot.slane %v7013, %v7020
      %7023 = vset.pattern.permute.xlu0 0
      %7024 = vperm.xlu0 %7023, %v6899
      %v7025 = vpop.permute.xlu0 %7024
      %v7028 = vunpack.c.l.s4 839922192
      %v7029 = vunpack.c.0.s8 %v7028
      %v7030 = vlaneseq
      %v7031 = vshrl.u32 %v7030, 7
      %v7032 = vsub.s32 %v7029, %v7031
      %v7033 = vrot.slane %v7025, %v7032
      %7035 = vset.pattern.permute.xlu0 0
      %7036 = vperm.xlu0 %7035, %v6900
      %v7037 = vpop.permute.xlu0 %7036
      %v7040 = vunpack.c.l.s4 839922192
      %v7041 = vunpack.c.0.s8 %v7040
      %v7042 = vlaneseq
      %v7043 = vshrl.u32 %v7042, 7
      %v7044 = vsub.s32 %v7041, %v7043
      %v7045 = vrot.slane %v7037, %v7044
      %7047 = vset.pattern.permute.xlu0 0
      %7048 = vperm.xlu0 %7047, %v6901
      %v7049 = vpop.permute.xlu0 %7048
      %v7052 = vunpack.c.l.s4 839922192
      %v7053 = vunpack.c.0.s8 %v7052
      %v7054 = vlaneseq
      %v7055 = vshrl.u32 %v7054, 7
      %v7056 = vsub.s32 %v7053, %v7055
      %v7057 = vrot.slane %v7049, %v7056
      %v7059 = vshrl.u32 %v6913, 16
      %v7061 = vrot.slane %v7059, 5
      %v7062 = vshll.u32 %v6913, 16
      %v7064 = vrot.slane %v7062, 6
      %v7065 = vor.u32 %v7061, %v7064
      %v7066 = vrot.slane %v7065, 4
      %v7068 = vshrl.u32 %v6925, 16
      %v7070 = vrot.slane %v7068, 5
      %v7071 = vshll.u32 %v6925, 16
      %v7073 = vrot.slane %v7071, 6
      %v7074 = vor.u32 %v7070, %v7073
      %v7075 = vsel %vm3116, %v7066, %v7074
      %v7076 = vrot.slane %v7074, 4
      %v7078 = vshrl.u32 %v6937, 16
      %v7080 = vrot.slane %v7078, 5
      %v7081 = vshll.u32 %v6937, 16
      %v7083 = vrot.slane %v7081, 6
      %v7084 = vor.u32 %v7080, %v7083
      %v7085 = vsel %vm3116, %v7076, %v7084
      %v7086 = vrot.slane %v7084, 4
      %v7088 = vshrl.u32 %v6949, 16
      %v7090 = vrot.slane %v7088, 5
      %v7091 = vshll.u32 %v6949, 16
      %v7093 = vrot.slane %v7091, 6
      %v7094 = vor.u32 %v7090, %v7093
      %v7095 = vsel %vm3116, %v7086, %v7094
      %v7096 = vrot.slane %v7094, 4
      %v7098 = vshrl.u32 %v6961, 16
      %v7100 = vrot.slane %v7098, 5
      %v7101 = vshll.u32 %v6961, 16
      %v7103 = vrot.slane %v7101, 6
      %v7104 = vor.u32 %v7100, %v7103
      %v7105 = vsel %vm3116, %v7096, %v7104
      %v7106 = vrot.slane %v7104, 4
      %v7108 = vshrl.u32 %v6973, 16
      %v7110 = vrot.slane %v7108, 5
      %v7111 = vshll.u32 %v6973, 16
      %v7113 = vrot.slane %v7111, 6
      %v7114 = vor.u32 %v7110, %v7113
      %v7115 = vsel %vm3116, %v7106, %v7114
      %v7116 = vrot.slane %v7114, 4
      %v7118 = vshrl.u32 %v6985, 16
      %v7120 = vrot.slane %v7118, 5
      %v7121 = vshll.u32 %v6985, 16
      %v7123 = vrot.slane %v7121, 6
      %v7124 = vor.u32 %v7120, %v7123
      %v7125 = vsel %vm3116, %v7116, %v7124
      %v7126 = vrot.slane %v7124, 4
      %v7128 = vshrl.u32 %v6997, 16
      %v7130 = vrot.slane %v7128, 5
      %v7131 = vshll.u32 %v6997, 16
      %v7133 = vrot.slane %v7131, 6
      %v7134 = vor.u32 %v7130, %v7133
      %v7135 = vsel %vm3116, %v7126, %v7134
      %v7136 = vrot.slane %v7134, 4
      %v7138 = vshrl.u32 %v7009, 16
      %v7140 = vrot.slane %v7138, 5
      %v7141 = vshll.u32 %v7009, 16
      %v7143 = vrot.slane %v7141, 6
      %v7144 = vor.u32 %v7140, %v7143
      %v7145 = vsel %vm3116, %v7136, %v7144
      %v7146 = vrot.slane %v7144, 4
      %v7148 = vshrl.u32 %v7021, 16
      %v7150 = vrot.slane %v7148, 5
      %v7151 = vshll.u32 %v7021, 16
      %v7153 = vrot.slane %v7151, 6
      %v7154 = vor.u32 %v7150, %v7153
      %v7155 = vsel %vm3116, %v7146, %v7154
      %v7156 = vrot.slane %v7154, 4
      %v7158 = vshrl.u32 %v7033, 16
      %v7160 = vrot.slane %v7158, 5
      %v7161 = vshll.u32 %v7033, 16
      %v7163 = vrot.slane %v7161, 6
      %v7164 = vor.u32 %v7160, %v7163
      %v7165 = vsel %vm3116, %v7156, %v7164
      %v7166 = vrot.slane %v7164, 4
      %v7168 = vshrl.u32 %v7045, 16
      %v7170 = vrot.slane %v7168, 5
      %v7171 = vshll.u32 %v7045, 16
      %v7173 = vrot.slane %v7171, 6
      %v7174 = vor.u32 %v7170, %v7173
      %v7175 = vsel %vm3116, %v7166, %v7174
      %v7176 = vrot.slane %v7174, 4
      %v7178 = vshrl.u32 %v7057, 16
      %v7180 = vrot.slane %v7178, 5
      %v7181 = vshll.u32 %v7057, 16
      %v7183 = vrot.slane %v7181, 6
      %v7184 = vor.u32 %v7180, %v7183
      %v7185 = vsel %vm3116, %v7176, %v7184
      %v7186 = vrot.slane %v7180, 4
      %v7201 = vmul.bf16 %v6875, %v7065
      %v7202 = vmul.bf16 %v6876, %v7075
      %v7203 = vmul.bf16 %v6877, %v7085
      %v7204 = vmul.bf16 %v6878, %v7095
      %v7205 = vmul.bf16 %v6879, %v7105
      %v7206 = vmul.bf16 %v6880, %v7115
      %v7207 = vmul.bf16 %v6881, %v7125
      %v7208 = vmul.bf16 %v6882, %v7135
      %v7209 = vmul.bf16 %v6883, %v7145
      %v7210 = vmul.bf16 %v6884, %v7155
      %v7211 = vmul.bf16 %v6885, %v7165
      %v7212 = vmul.bf16 %v6886, %v7175
      %v7213 = vmul.bf16 %v6887, %v7185
      %v7214 = vmul.bf16 %v6888, %v7186
      %v7215 = vld [vmem:[#allocation2 + $0x8] sm:$0x8]
      %v7216 = vld [vmem:[%s3275] sm:$0xf]
      %v7217 = vld [vmem:[%s3275 + $0x4] sm:$0xf]
      %v7218 = vld [vmem:[%s3275 + $0x8] sm:$0xf]
      %v7219 = vld [vmem:[%s3275 + $0xc] sm:$0xf]
      %v7220 = vld [vmem:[%s3275 + $0x10] sm:$0xf]
      %v7221 = vld [vmem:[%s3275 + $0x14] sm:$0xf]
      %v7222 = vld [vmem:[%s3275 + $0x18] sm:$0xf]
      %v7223 = vld [vmem:[%s3275 + $0x1c] sm:$0xf]
      %v7224 = vld [vmem:[%s3275 + $0x20] sm:$0xf]
      %v7225 = vld [vmem:[%s3275 + $0x24] sm:$0xf]
      %v7226 = vld [vmem:[%s3275 + $0x28] sm:$0xf]
      %v7227 = vld [vmem:[%s3275 + $0x2c] sm:$0xf]
      %v7228 = vld [vmem:[%s3275 + $0x30] sm:$0x3]
      %7230 = vset.pattern.permute.xlu0 0
      %7231 = vperm.xlu0 %7230, %v7216
      %v7232 = vpop.permute.xlu0 %7231
      %v7235 = vunpack.c.l.s4 839922192
      %v7236 = vunpack.c.0.s8 %v7235
      %v7237 = vlaneseq
      %v7238 = vshrl.u32 %v7237, 7
      %v7239 = vsub.s32 %v7236, %v7238
      %v7240 = vrot.slane %v7232, %v7239
      %7242 = vset.pattern.permute.xlu0 0
      %7243 = vperm.xlu0 %7242, %v7217
      %v7244 = vpop.permute.xlu0 %7243
      %v7247 = vunpack.c.l.s4 839922192
      %v7248 = vunpack.c.0.s8 %v7247
      %v7249 = vlaneseq
      %v7250 = vshrl.u32 %v7249, 7
      %v7251 = vsub.s32 %v7248, %v7250
      %v7252 = vrot.slane %v7244, %v7251
      %7254 = vset.pattern.permute.xlu0 0
      %7255 = vperm.xlu0 %7254, %v7218
      %v7256 = vpop.permute.xlu0 %7255
      %v7259 = vunpack.c.l.s4 839922192
      %v7260 = vunpack.c.0.s8 %v7259
      %v7261 = vlaneseq
      %v7262 = vshrl.u32 %v7261, 7
      %v7263 = vsub.s32 %v7260, %v7262
      %v7264 = vrot.slane %v7256, %v7263
      %7266 = vset.pattern.permute.xlu0 0
      %7267 = vperm.xlu0 %7266, %v7219
      %v7268 = vpop.permute.xlu0 %7267
      %v7271 = vunpack.c.l.s4 839922192
      %v7272 = vunpack.c.0.s8 %v7271
      %v7273 = vlaneseq
      %v7274 = vshrl.u32 %v7273, 7
      %v7275 = vsub.s32 %v7272, %v7274
      %v7276 = vrot.slane %v7268, %v7275
      %7278 = vset.pattern.permute.xlu0 0
      %7279 = vperm.xlu0 %7278, %v7220
      %v7280 = vpop.permute.xlu0 %7279
      %v7283 = vunpack.c.l.s4 839922192
      %v7284 = vunpack.c.0.s8 %v7283
      %v7285 = vlaneseq
      %v7286 = vshrl.u32 %v7285, 7
      %v7287 = vsub.s32 %v7284, %v7286
      %v7288 = vrot.slane %v7280, %v7287
      %7290 = vset.pattern.permute.xlu0 0
      %7291 = vperm.xlu0 %7290, %v7221
      %v7292 = vpop.permute.xlu0 %7291
      %v7295 = vunpack.c.l.s4 839922192
      %v7296 = vunpack.c.0.s8 %v7295
      %v7297 = vlaneseq
      %v7298 = vshrl.u32 %v7297, 7
      %v7299 = vsub.s32 %v7296, %v7298
      %v7300 = vrot.slane %v7292, %v7299
      %7302 = vset.pattern.permute.xlu0 0
      %7303 = vperm.xlu0 %7302, %v7222
      %v7304 = vpop.permute.xlu0 %7303
      %v7307 = vunpack.c.l.s4 839922192
      %v7308 = vunpack.c.0.s8 %v7307
      %v7309 = vlaneseq
      %v7310 = vshrl.u32 %v7309, 7
      %v7311 = vsub.s32 %v7308, %v7310
      %v7312 = vrot.slane %v7304, %v7311
      %7314 = vset.pattern.permute.xlu0 0
      %7315 = vperm.xlu0 %7314, %v7223
      %v7316 = vpop.permute.xlu0 %7315
      %v7319 = vunpack.c.l.s4 839922192
      %v7320 = vunpack.c.0.s8 %v7319
      %v7321 = vlaneseq
      %v7322 = vshrl.u32 %v7321, 7
      %v7323 = vsub.s32 %v7320, %v7322
      %v7324 = vrot.slane %v7316, %v7323
      %7326 = vset.pattern.permute.xlu0 0
      %7327 = vperm.xlu0 %7326, %v7224
      %v7328 = vpop.permute.xlu0 %7327
      %v7331 = vunpack.c.l.s4 839922192
      %v7332 = vunpack.c.0.s8 %v7331
      %v7333 = vlaneseq
      %v7334 = vshrl.u32 %v7333, 7
      %v7335 = vsub.s32 %v7332, %v7334
      %v7336 = vrot.slane %v7328, %v7335
      %7338 = vset.pattern.permute.xlu0 0
      %7339 = vperm.xlu0 %7338, %v7225
      %v7340 = vpop.permute.xlu0 %7339
      %v7343 = vunpack.c.l.s4 839922192
      %v7344 = vunpack.c.0.s8 %v7343
      %v7345 = vlaneseq
      %v7346 = vshrl.u32 %v7345, 7
      %v7347 = vsub.s32 %v7344, %v7346
      %v7348 = vrot.slane %v7340, %v7347
      %7350 = vset.pattern.permute.xlu0 0
      %7351 = vperm.xlu0 %7350, %v7226
      %v7352 = vpop.permute.xlu0 %7351
      %v7355 = vunpack.c.l.s4 839922192
      %v7356 = vunpack.c.0.s8 %v7355
      %v7357 = vlaneseq
      %v7358 = vshrl.u32 %v7357, 7
      %v7359 = vsub.s32 %v7356, %v7358
      %v7360 = vrot.slane %v7352, %v7359
      %7362 = vset.pattern.permute.xlu0 0
      %7363 = vperm.xlu0 %7362, %v7227
      %v7364 = vpop.permute.xlu0 %7363
      %v7367 = vunpack.c.l.s4 839922192
      %v7368 = vunpack.c.0.s8 %v7367
      %v7369 = vlaneseq
      %v7370 = vshrl.u32 %v7369, 7
      %v7371 = vsub.s32 %v7368, %v7370
      %v7372 = vrot.slane %v7364, %v7371
      %7374 = vset.pattern.permute.xlu0 0
      %7375 = vperm.xlu0 %7374, %v7228
      %v7376 = vpop.permute.xlu0 %7375
      %v7379 = vunpack.c.l.s4 839922192
      %v7380 = vunpack.c.0.s8 %v7379
      %v7381 = vlaneseq
      %v7382 = vshrl.u32 %v7381, 7
      %v7383 = vsub.s32 %v7380, %v7382
      %v7384 = vrot.slane %v7376, %v7383
      %v7398 = vrot.slane %v7240, 5
      %v7399 = vrot.slane %v7398, 4
      %v7400 = vrot.slane %v7252, 5
      %v7401 = vsel %vm3460, %v7399, %v7400
      %v7402 = vrot.slane %v7400, 4
      %v7403 = vrot.slane %v7264, 5
      %v7404 = vsel %vm3460, %v7402, %v7403
      %v7405 = vrot.slane %v7403, 4
      %v7406 = vrot.slane %v7276, 5
      %v7407 = vsel %vm3460, %v7405, %v7406
      %v7408 = vrot.slane %v7406, 4
      %v7409 = vrot.slane %v7288, 5
      %v7410 = vsel %vm3460, %v7408, %v7409
      %v7411 = vrot.slane %v7409, 4
      %v7412 = vrot.slane %v7300, 5
      %v7413 = vsel %vm3460, %v7411, %v7412
      %v7414 = vrot.slane %v7412, 4
      %v7415 = vrot.slane %v7312, 5
      %v7416 = vsel %vm3460, %v7414, %v7415
      %v7417 = vrot.slane %v7415, 4
      %v7418 = vrot.slane %v7324, 5
      %v7419 = vsel %vm3460, %v7417, %v7418
      %v7420 = vrot.slane %v7418, 4
      %v7421 = vrot.slane %v7336, 5
      %v7422 = vsel %vm3460, %v7420, %v7421
      %v7423 = vrot.slane %v7421, 4
      %v7424 = vrot.slane %v7348, 5
      %v7425 = vsel %vm3460, %v7423, %v7424
      %v7426 = vrot.slane %v7424, 4
      %v7427 = vrot.slane %v7360, 5
      %v7428 = vsel %vm3460, %v7426, %v7427
      %v7429 = vrot.slane %v7427, 4
      %v7430 = vrot.slane %v7372, 5
      %v7431 = vsel %vm3460, %v7429, %v7430
      %v7432 = vrot.slane %v7430, 4
      %v7433 = vrot.slane %v7384, 5
      %v7434 = vsel %vm3460, %v7432, %v7433
      %v7435 = vrot.slane %v7433, 4
      %v7450 = vmul.bf16 %v7215, %v7398
      %v7451 = vmul.bf16 %v6876, %v7401
      %v7452 = vmul.bf16 %v6877, %v7404
      %v7453 = vmul.bf16 %v6878, %v7407
      %v7454 = vmul.bf16 %v6879, %v7410
      %v7455 = vmul.bf16 %v6880, %v7413
      %v7456 = vmul.bf16 %v6881, %v7416
      %v7457 = vmul.bf16 %v6882, %v7419
      %v7458 = vmul.bf16 %v6883, %v7422
      %v7459 = vmul.bf16 %v6884, %v7425
      %v7460 = vmul.bf16 %v6885, %v7428
      %v7461 = vmul.bf16 %v6886, %v7431
      %v7462 = vmul.bf16 %v6887, %v7434
      %v7463 = vmul.bf16 %v6888, %v7435
      %v7477 = vunpack.c.l.b16 %v5219
      %v7478 = vunpack.c.l.b16 %v5220
      %v7479 = vunpack.c.l.b16 %v5221
      %v7480 = vunpack.c.l.b16 %v5222
      %v7481 = vunpack.c.l.b16 %v5223
      %v7482 = vunpack.c.l.b16 %v5224
      %v7483 = vunpack.c.l.b16 %v5225
      %v7484 = vunpack.c.l.b16 %v5226
      %v7485 = vunpack.c.l.b16 %v5227
      %v7486 = vunpack.c.l.b16 %v5228
      %v7487 = vunpack.c.l.b16 %v5229
      %v7488 = vunpack.c.l.b16 %v5230
      %v7489 = vunpack.c.l.b16 %v5231
      %v7490 = vpack.c.b16 %v7478, %v7477
      %v7491 = vpack.c.b16 %v7480, %v7479
      %v7492 = vpack.c.b16 %v7482, %v7481
      %v7493 = vpack.c.b16 %v7484, %v7483
      %v7494 = vpack.c.b16 %v7486, %v7485
      %v7495 = vpack.c.b16 %v7488, %v7487
      %v7496 = vpack.c.b16 %v7489, %v7489
      %v7510 = vunpack.c.l.b16 %v5530
      %v7511 = vunpack.c.l.b16 %v5531
      %v7512 = vunpack.c.l.b16 %v5532
      %v7513 = vunpack.c.l.b16 %v5533
      %v7514 = vunpack.c.l.b16 %v5534
      %v7515 = vunpack.c.l.b16 %v5535
      %v7516 = vunpack.c.l.b16 %v5536
      %v7517 = vunpack.c.l.b16 %v5537
      %v7518 = vunpack.c.l.b16 %v5538
      %v7519 = vunpack.c.l.b16 %v5539
      %v7520 = vunpack.c.l.b16 %v5540
      %v7521 = vunpack.c.l.b16 %v5541
      %v7522 = vunpack.c.l.b16 %v5542
      %v7523 = vpack.c.b16 %v7511, %v7510
      %v7524 = vpack.c.b16 %v7513, %v7512
      %v7525 = vpack.c.b16 %v7515, %v7514
      %v7526 = vpack.c.b16 %v7517, %v7516
      %v7527 = vpack.c.b16 %v7519, %v7518
      %v7528 = vpack.c.b16 %v7521, %v7520
      %v7529 = vpack.c.b16 %v7522, %v7522
      %v7531 = vshrl.u32 %v7523, 16
      %v7533 = vshll.u32 %v7523, 16
      %v7535 = vrot.slane %v7533, 1
      %v7536 = vor.u32 %v7531, %v7535
      %v7538 = vshll.u32 %v7524, 16
      %v7540 = vrot.slane %v7538, 1
      %v7541 = vsel %vm3593, %v7536, %v7540
      %v7542 = vshrl.u32 %v7524, 16
      %v7544 = vor.u32 %v7542, %v7540
      %v7546 = vshll.u32 %v7525, 16
      %v7548 = vrot.slane %v7546, 1
      %v7549 = vsel %vm3593, %v7544, %v7548
      %v7550 = vshrl.u32 %v7525, 16
      %v7552 = vor.u32 %v7550, %v7548
      %v7554 = vshll.u32 %v7526, 16
      %v7556 = vrot.slane %v7554, 1
      %v7557 = vsel %vm3593, %v7552, %v7556
      %v7558 = vshrl.u32 %v7526, 16
      %v7560 = vor.u32 %v7558, %v7556
      %v7562 = vshll.u32 %v7527, 16
      %v7564 = vrot.slane %v7562, 1
      %v7565 = vsel %vm3593, %v7560, %v7564
      %v7566 = vshrl.u32 %v7527, 16
      %v7568 = vor.u32 %v7566, %v7564
      %v7570 = vshll.u32 %v7528, 16
      %v7572 = vrot.slane %v7570, 1
      %v7573 = vsel %vm3593, %v7568, %v7572
      %v7574 = vshrl.u32 %v7528, 16
      %v7576 = vor.u32 %v7574, %v7572
      %v7578 = vshll.u32 %v7529, 16
      %v7580 = vrot.slane %v7578, 1
      %v7581 = vsel %vm3593, %v7576, %v7580
      %v7582 = vshrl.u32 %v7529, 16
      %v7584 = vor.u32 %v7582, %v7580
      %7585 = vrot.lane.b32.xlu0 %v7541, 64
      %v7586 = vpop.permute.xlu0 %7585
      %7587 = vrot.lane.b32.xlu0 %v7549, 64
      %v7588 = vpop.permute.xlu0 %7587
      %7589 = vrot.lane.b32.xlu0 %v7557, 64
      %v7590 = vpop.permute.xlu0 %7589
      %7591 = vrot.lane.b32.xlu0 %v7565, 64
      %v7592 = vpop.permute.xlu0 %7591
      %7593 = vrot.lane.b32.xlu0 %v7573, 64
      %v7594 = vpop.permute.xlu0 %7593
      %7595 = vrot.lane.b32.xlu0 %v7581, 64
      %v7596 = vpop.permute.xlu0 %7595
      %7597 = vrot.lane.b32.xlu0 %v7584, 64
      %v7598 = vpop.permute.xlu0 %7597
      %v7612 = vunpack.c.l.b16 %v5776
      %v7613 = vunpack.c.l.b16 %v5777
      %v7614 = vunpack.c.l.b16 %v5778
      %v7615 = vunpack.c.l.b16 %v5779
      %v7616 = vunpack.c.l.b16 %v5780
      %v7617 = vunpack.c.l.b16 %v5781
      %v7618 = vunpack.c.l.b16 %v5782
      %v7619 = vunpack.c.l.b16 %v5783
      %v7620 = vunpack.c.l.b16 %v5784
      %v7621 = vunpack.c.l.b16 %v5785
      %v7622 = vunpack.c.l.b16 %v5786
      %v7623 = vunpack.c.l.b16 %v5787
      %v7624 = vunpack.c.l.b16 %v5788
      %v7625 = vpack.c.b16 %v7613, %v7612
      %v7626 = vpack.c.b16 %v7615, %v7614
      %v7627 = vpack.c.b16 %v7617, %v7616
      %v7628 = vpack.c.b16 %v7619, %v7618
      %v7629 = vpack.c.b16 %v7621, %v7620
      %v7630 = vpack.c.b16 %v7623, %v7622
      %v7631 = vpack.c.b16 %v7624, %v7624
      %v7632 = vrot.slane %v7625, 1
      %v7633 = vrot.slane %v7626, 1
      %v7634 = vsel %vm3696, %v7632, %v7633
      %v7635 = vrot.slane %v7627, 1
      %v7636 = vsel %vm3696, %v7633, %v7635
      %v7637 = vrot.slane %v7628, 1
      %v7638 = vsel %vm3696, %v7635, %v7637
      %v7639 = vrot.slane %v7629, 1
      %v7640 = vsel %vm3696, %v7637, %v7639
      %v7641 = vrot.slane %v7630, 1
      %v7642 = vsel %vm3696, %v7639, %v7641
      %v7643 = vrot.slane %v7631, 1
      %v7644 = vsel %vm3696, %v7641, %v7643
      %v7658 = vunpack.c.l.b16 %v6034
      %v7659 = vunpack.c.l.b16 %v6035
      %v7660 = vunpack.c.l.b16 %v6036
      %v7661 = vunpack.c.l.b16 %v6037
      %v7662 = vunpack.c.l.b16 %v6038
      %v7663 = vunpack.c.l.b16 %v6039
      %v7664 = vunpack.c.l.b16 %v6040
      %v7665 = vunpack.c.l.b16 %v6041
      %v7666 = vunpack.c.l.b16 %v6042
      %v7667 = vunpack.c.l.b16 %v6043
      %v7668 = vunpack.c.l.b16 %v6044
      %v7669 = vunpack.c.l.b16 %v6045
      %v7670 = vunpack.c.l.b16 %v6046
      %v7671 = vpack.c.b16 %v7659, %v7658
      %v7672 = vpack.c.b16 %v7661, %v7660
      %v7673 = vpack.c.b16 %v7663, %v7662
      %v7674 = vpack.c.b16 %v7665, %v7664
      %v7675 = vpack.c.b16 %v7667, %v7666
      %v7676 = vpack.c.b16 %v7669, %v7668
      %v7677 = vpack.c.b16 %v7670, %v7670
      %v7678 = vrot.slane %v7671, 1
      %v7679 = vrot.slane %v7672, 1
      %v7680 = vsel %vm3696, %v7678, %v7679
      %v7681 = vrot.slane %v7673, 1
      %v7682 = vsel %vm3696, %v7679, %v7681
      %v7683 = vrot.slane %v7674, 1
      %v7684 = vsel %vm3696, %v7681, %v7683
      %v7685 = vrot.slane %v7675, 1
      %v7686 = vsel %vm3696, %v7683, %v7685
      %v7687 = vrot.slane %v7676, 1
      %v7688 = vsel %vm3696, %v7685, %v7687
      %v7689 = vrot.slane %v7677, 1
      %v7690 = vsel %vm3696, %v7687, %v7689
      %7691 = vrot.lane.b32.xlu0 %v7680, 64
      %v7692 = vpop.permute.xlu0 %7691
      %7693 = vrot.lane.b32.xlu0 %v7682, 64
      %v7694 = vpop.permute.xlu0 %7693
      %7695 = vrot.lane.b32.xlu0 %v7684, 64
      %v7696 = vpop.permute.xlu0 %7695
      %7697 = vrot.lane.b32.xlu0 %v7686, 64
      %v7698 = vpop.permute.xlu0 %7697
      %7699 = vrot.lane.b32.xlu0 %v7688, 64
      %v7700 = vpop.permute.xlu0 %7699
      %7701 = vrot.lane.b32.xlu0 %v7690, 64
      %v7702 = vpop.permute.xlu0 %7701
      %7703 = vrot.lane.b32.xlu0 %v7689, 64
      %v7704 = vpop.permute.xlu0 %7703
      %v7718 = vunpack.c.l.b16 %v6358
      %v7719 = vunpack.c.l.b16 %v6359
      %v7720 = vunpack.c.l.b16 %v6360
      %v7721 = vunpack.c.l.b16 %v6361
      %v7722 = vunpack.c.l.b16 %v6362
      %v7723 = vunpack.c.l.b16 %v6363
      %v7724 = vunpack.c.l.b16 %v6364
      %v7725 = vunpack.c.l.b16 %v6365
      %v7726 = vunpack.c.l.b16 %v6366
      %v7727 = vunpack.c.l.b16 %v6367
      %v7728 = vunpack.c.l.b16 %v6368
      %v7729 = vunpack.c.l.b16 %v6369
      %v7730 = vunpack.c.l.b16 %v6370
      %v7731 = vpack.c.b16 %v7719, %v7718
      %v7732 = vpack.c.b16 %v7721, %v7720
      %v7733 = vpack.c.b16 %v7723, %v7722
      %v7734 = vpack.c.b16 %v7725, %v7724
      %v7735 = vpack.c.b16 %v7727, %v7726
      %v7736 = vpack.c.b16 %v7729, %v7728
      %v7737 = vpack.c.b16 %v7730, %v7730
      %v7739 = vshrl.u32 %v7731, 16
      %v7741 = vrot.slane %v7739, 1
      %v7742 = vshll.u32 %v7731, 16
      %v7744 = vrot.slane %v7742, 2
      %v7745 = vor.u32 %v7741, %v7744
      %v7747 = vshrl.u32 %v7732, 16
      %v7749 = vrot.slane %v7747, 1
      %v7750 = vshll.u32 %v7732, 16
      %v7752 = vrot.slane %v7750, 2
      %v7753 = vor.u32 %v7749, %v7752
      %v7754 = vsel %vm3803, %v7745, %v7753
      %v7756 = vshrl.u32 %v7733, 16
      %v7758 = vrot.slane %v7756, 1
      %v7759 = vshll.u32 %v7733, 16
      %v7761 = vrot.slane %v7759, 2
      %v7762 = vor.u32 %v7758, %v7761
      %v7763 = vsel %vm3803, %v7753, %v7762
      %v7765 = vshrl.u32 %v7734, 16
      %v7767 = vrot.slane %v7765, 1
      %v7768 = vshll.u32 %v7734, 16
      %v7770 = vrot.slane %v7768, 2
      %v7771 = vor.u32 %v7767, %v7770
      %v7772 = vsel %vm3803, %v7762, %v7771
      %v7774 = vshrl.u32 %v7735, 16
      %v7776 = vrot.slane %v7774, 1
      %v7777 = vshll.u32 %v7735, 16
      %v7779 = vrot.slane %v7777, 2
      %v7780 = vor.u32 %v7776, %v7779
      %v7781 = vsel %vm3803, %v7771, %v7780
      %v7783 = vshrl.u32 %v7736, 16
      %v7785 = vrot.slane %v7783, 1
      %v7786 = vshll.u32 %v7736, 16
      %v7788 = vrot.slane %v7786, 2
      %v7789 = vor.u32 %v7785, %v7788
      %v7790 = vsel %vm3803, %v7780, %v7789
      %v7792 = vshrl.u32 %v7737, 16
      %v7794 = vrot.slane %v7792, 1
      %v7795 = vshll.u32 %v7737, 16
      %v7797 = vrot.slane %v7795, 2
      %v7798 = vor.u32 %v7794, %v7797
      %v7799 = vsel %vm3803, %v7789, %v7798
      %v7813 = vunpack.c.l.b16 %v6604
      %v7814 = vunpack.c.l.b16 %v6605
      %v7815 = vunpack.c.l.b16 %v6606
      %v7816 = vunpack.c.l.b16 %v6607
      %v7817 = vunpack.c.l.b16 %v6608
      %v7818 = vunpack.c.l.b16 %v6609
      %v7819 = vunpack.c.l.b16 %v6610
      %v7820 = vunpack.c.l.b16 %v6611
      %v7821 = vunpack.c.l.b16 %v6612
      %v7822 = vunpack.c.l.b16 %v6613
      %v7823 = vunpack.c.l.b16 %v6614
      %v7824 = vunpack.c.l.b16 %v6615
      %v7825 = vunpack.c.l.b16 %v6616
      %v7826 = vpack.c.b16 %v7814, %v7813
      %v7827 = vpack.c.b16 %v7816, %v7815
      %v7828 = vpack.c.b16 %v7818, %v7817
      %v7829 = vpack.c.b16 %v7820, %v7819
      %v7830 = vpack.c.b16 %v7822, %v7821
      %v7831 = vpack.c.b16 %v7824, %v7823
      %v7832 = vpack.c.b16 %v7825, %v7825
      %v7833 = vrot.slane %v7826, 2
      %v7834 = vrot.slane %v7827, 2
      %v7835 = vsel %vm3899, %v7833, %v7834
      %v7836 = vrot.slane %v7828, 2
      %v7837 = vsel %vm3899, %v7834, %v7836
      %v7838 = vrot.slane %v7829, 2
      %v7839 = vsel %vm3899, %v7836, %v7838
      %v7840 = vrot.slane %v7830, 2
      %v7841 = vsel %vm3899, %v7838, %v7840
      %v7842 = vrot.slane %v7831, 2
      %v7843 = vsel %vm3899, %v7840, %v7842
      %v7844 = vrot.slane %v7832, 2
      %v7845 = vsel %vm3899, %v7842, %v7844
      %7846 = vrot.lane.b32.xlu0 %v7835, 64
      %v7847 = vpop.permute.xlu0 %7846
      %7848 = vrot.lane.b32.xlu0 %v7837, 64
      %v7849 = vpop.permute.xlu0 %7848
      %7850 = vrot.lane.b32.xlu0 %v7839, 64
      %v7851 = vpop.permute.xlu0 %7850
      %7852 = vrot.lane.b32.xlu0 %v7841, 64
      %v7853 = vpop.permute.xlu0 %7852
      %7854 = vrot.lane.b32.xlu0 %v7843, 64
      %v7855 = vpop.permute.xlu0 %7854
      %7856 = vrot.lane.b32.xlu0 %v7845, 64
      %v7857 = vpop.permute.xlu0 %7856
      %7858 = vrot.lane.b32.xlu0 %v7844, 64
      %v7859 = vpop.permute.xlu0 %7858
      %v7873 = vunpack.c.l.b16 %v6862
      %v7874 = vunpack.c.l.b16 %v6863
      %v7875 = vunpack.c.l.b16 %v6864
      %v7876 = vunpack.c.l.b16 %v6865
      %v7877 = vunpack.c.l.b16 %v6866
      %v7878 = vunpack.c.l.b16 %v6867
      %v7879 = vunpack.c.l.b16 %v6868
      %v7880 = vunpack.c.l.b16 %v6869
      %v7881 = vunpack.c.l.b16 %v6870
      %v7882 = vunpack.c.l.b16 %v6871
      %v7883 = vunpack.c.l.b16 %v6872
      %v7884 = vunpack.c.l.b16 %v6873
      %v7885 = vunpack.c.l.b16 %v6874
      %v7886 = vpack.c.b16 %v7874, %v7873
      %v7887 = vpack.c.b16 %v7876, %v7875
      %v7888 = vpack.c.b16 %v7878, %v7877
      %v7889 = vpack.c.b16 %v7880, %v7879
      %v7890 = vpack.c.b16 %v7882, %v7881
      %v7891 = vpack.c.b16 %v7884, %v7883
      %v7892 = vpack.c.b16 %v7885, %v7885
      %v7893 = vrot.slane %v7886, 2
      %v7894 = vrot.slane %v7887, 2
      %v7895 = vsel %vm3899, %v7893, %v7894
      %v7896 = vrot.slane %v7888, 2
      %v7897 = vsel %vm3899, %v7894, %v7896
      %v7898 = vrot.slane %v7889, 2
      %v7899 = vsel %vm3899, %v7896, %v7898
      %v7900 = vrot.slane %v7890, 2
      %v7901 = vsel %vm3899, %v7898, %v7900
      %v7902 = vrot.slane %v7891, 2
      %v7903 = vsel %vm3899, %v7900, %v7902
      %v7904 = vrot.slane %v7892, 2
      %v7905 = vsel %vm3899, %v7902, %v7904
      %v7920 = vunpack.c.l.b16 %v7201
      %v7921 = vunpack.c.l.b16 %v7202
      %v7922 = vunpack.c.l.b16 %v7203
      %v7923 = vunpack.c.l.b16 %v7204
      %v7924 = vunpack.c.l.b16 %v7205
      %v7925 = vunpack.c.l.b16 %v7206
      %v7926 = vunpack.c.l.b16 %v7207
      %v7927 = vunpack.c.l.b16 %v7208
      %v7928 = vunpack.c.l.b16 %v7209
      %v7929 = vunpack.c.l.b16 %v7210
      %v7930 = vunpack.c.l.b16 %v7211
      %v7931 = vunpack.c.l.b16 %v7212
      %v7932 = vunpack.c.l.b16 %v7213
      %v7933 = vunpack.c.l.b16 %v7214
      %v7934 = vpack.c.b16 %v7921, %v7920
      %v7935 = vpack.c.b16 %v7923, %v7922
      %v7936 = vpack.c.b16 %v7925, %v7924
      %v7937 = vpack.c.b16 %v7927, %v7926
      %v7938 = vpack.c.b16 %v7929, %v7928
      %v7939 = vpack.c.b16 %v7931, %v7930
      %v7940 = vpack.c.b16 %v7933, %v7932
      %v7942 = vshrl.u32 %v7934, 16
      %v7944 = vrot.slane %v7942, 2
      %v7945 = vshll.u32 %v7934, 16
      %v7947 = vrot.slane %v7945, 3
      %v7948 = vor.u32 %v7944, %v7947
      %v7950 = vshrl.u32 %v7935, 16
      %v7952 = vrot.slane %v7950, 2
      %v7953 = vshll.u32 %v7935, 16
      %v7955 = vrot.slane %v7953, 3
      %v7956 = vor.u32 %v7952, %v7955
      %v7957 = vsel %vm4008, %v7948, %v7956
      %v7959 = vshrl.u32 %v7936, 16
      %v7961 = vrot.slane %v7959, 2
      %v7962 = vshll.u32 %v7936, 16
      %v7964 = vrot.slane %v7962, 3
      %v7965 = vor.u32 %v7961, %v7964
      %v7966 = vsel %vm4008, %v7956, %v7965
      %v7968 = vshrl.u32 %v7937, 16
      %v7970 = vrot.slane %v7968, 2
      %v7971 = vshll.u32 %v7937, 16
      %v7973 = vrot.slane %v7971, 3
      %v7974 = vor.u32 %v7970, %v7973
      %v7975 = vsel %vm4008, %v7965, %v7974
      %v7977 = vshrl.u32 %v7938, 16
      %v7979 = vrot.slane %v7977, 2
      %v7980 = vshll.u32 %v7938, 16
      %v7982 = vrot.slane %v7980, 3
      %v7983 = vor.u32 %v7979, %v7982
      %v7984 = vsel %vm4008, %v7974, %v7983
      %v7986 = vshrl.u32 %v7939, 16
      %v7988 = vrot.slane %v7986, 2
      %v7989 = vshll.u32 %v7939, 16
      %v7991 = vrot.slane %v7989, 3
      %v7992 = vor.u32 %v7988, %v7991
      %v7993 = vsel %vm4008, %v7983, %v7992
      %v7995 = vshrl.u32 %v7940, 16
      %v7997 = vrot.slane %v7995, 2
      %v7998 = vshll.u32 %v7940, 16
      %v8000 = vrot.slane %v7998, 3
      %v8001 = vor.u32 %v7997, %v8000
      %v8002 = vsel %vm4008, %v7992, %v8001
      %8003 = vrot.lane.b32.xlu0 %v7957, 64
      %v8004 = vpop.permute.xlu0 %8003
      %8005 = vrot.lane.b32.xlu0 %v7966, 64
      %v8006 = vpop.permute.xlu0 %8005
      %8007 = vrot.lane.b32.xlu0 %v7975, 64
      %v8008 = vpop.permute.xlu0 %8007
      %8009 = vrot.lane.b32.xlu0 %v7984, 64
      %v8010 = vpop.permute.xlu0 %8009
      %8011 = vrot.lane.b32.xlu0 %v7993, 64
      %v8012 = vpop.permute.xlu0 %8011
      %8013 = vrot.lane.b32.xlu0 %v8002, 64
      %v8014 = vpop.permute.xlu0 %8013
      %8015 = vrot.lane.b32.xlu0 %v8001, 64
      %v8016 = vpop.permute.xlu0 %8015
      %v8031 = vunpack.c.l.b16 %v7450
      %v8032 = vunpack.c.l.b16 %v7451
      %v8033 = vunpack.c.l.b16 %v7452
      %v8034 = vunpack.c.l.b16 %v7453
      %v8035 = vunpack.c.l.b16 %v7454
      %v8036 = vunpack.c.l.b16 %v7455
      %v8037 = vunpack.c.l.b16 %v7456
      %v8038 = vunpack.c.l.b16 %v7457
      %v8039 = vunpack.c.l.b16 %v7458
      %v8040 = vunpack.c.l.b16 %v7459
      %v8041 = vunpack.c.l.b16 %v7460
      %v8042 = vunpack.c.l.b16 %v7461
      %v8043 = vunpack.c.l.b16 %v7462
      %v8044 = vunpack.c.l.b16 %v7463
      %v8045 = vpack.c.b16 %v8032, %v8031
      %v8046 = vpack.c.b16 %v8034, %v8033
      %v8047 = vpack.c.b16 %v8036, %v8035
      %v8048 = vpack.c.b16 %v8038, %v8037
      %v8049 = vpack.c.b16 %v8040, %v8039
      %v8050 = vpack.c.b16 %v8042, %v8041
      %v8051 = vpack.c.b16 %v8044, %v8043
      %v8052 = vrot.slane %v8045, 3
      %v8053 = vrot.slane %v8046, 3
      %v8054 = vsel %vm4120, %v8052, %v8053
      %v8055 = vrot.slane %v8047, 3
      %v8056 = vsel %vm4120, %v8053, %v8055
      %v8057 = vrot.slane %v8048, 3
      %v8058 = vsel %vm4120, %v8055, %v8057
      %v8059 = vrot.slane %v8049, 3
      %v8060 = vsel %vm4120, %v8057, %v8059
      %v8061 = vrot.slane %v8050, 3
      %v8062 = vsel %vm4120, %v8059, %v8061
      %v8063 = vrot.slane %v8051, 3
      %v8064 = vsel %vm4120, %v8061, %v8063
      %v8067 = vsel %vm4134, %v7490, %v7586
      %v8071 = vsel %vm4134, %v7491, %v7588
      %v8075 = vsel %vm4134, %v7492, %v7590
      %v8079 = vsel %vm4134, %v7493, %v7592
      %v8083 = vsel %vm4134, %v7494, %v7594
      %v8087 = vsel %vm4134, %v7495, %v7596
      %v8091 = vsel %vm4134, %v7496, %v7598
      %v8095 = vsel %vm4134, %v7634, %v7692
      %v8099 = vsel %vm4134, %v7636, %v7694
      %v8103 = vsel %vm4134, %v7638, %v7696
      %v8107 = vsel %vm4134, %v7640, %v7698
      %v8111 = vsel %vm4134, %v7642, %v7700
      %v8115 = vsel %vm4134, %v7644, %v7702
      %v8119 = vsel %vm4134, %v7643, %v7704
      %v8123 = vsel %vm4134, %v7754, %v7847
      %v8127 = vsel %vm4134, %v7763, %v7849
      %v8131 = vsel %vm4134, %v7772, %v7851
      %v8135 = vsel %vm4134, %v7781, %v7853
      %v8139 = vsel %vm4134, %v7790, %v7855
      %v8143 = vsel %vm4134, %v7799, %v7857
      %v8147 = vsel %vm4134, %v7798, %v7859
      %v8151 = vsel %vm4134, %v7895, %v8004
      %v8155 = vsel %vm4134, %v7897, %v8006
      %v8159 = vsel %vm4134, %v7899, %v8008
      %v8163 = vsel %vm4134, %v7901, %v8010
      %v8167 = vsel %vm4134, %v7903, %v8012
      %v8171 = vsel %vm4134, %v7905, %v8014
      %v8175 = vsel %vm4134, %v7904, %v8016
      %v8177 = vld [vmem:[%s6] sm:$0xf]
      %v8178 = vld [vmem:[%s6 + $0x4] sm:$0xf]
      %v8179 = vld [vmem:[%s6 + $0x8] sm:$0xf]
      %v8180 = vld [vmem:[%s6 + $0xc] sm:$0xf]
      %v8181 = vld [vmem:[%s6 + $0x10] sm:$0xf]
      %v8182 = vld [vmem:[%s6 + $0x14] sm:$0xf]
      %v8183 = vld [vmem:[%s6 + $0x18] sm:$0xf]
      %v8184 = vld [vmem:[%s6 + $0x1c] sm:$0xf]
      %v8185 = vld [vmem:[%s6 + $0x20] sm:$0xf]
      %v8186 = vld [vmem:[%s6 + $0x24] sm:$0xf]
      %v8187 = vld [vmem:[%s6 + $0x28] sm:$0xf]
      %v8188 = vld [vmem:[%s6 + $0x2c] sm:$0xf]
      %v8189 = vld [vmem:[%s6 + $0x30] sm:$0xf]
      %v8190 = vld [vmem:[%s6 + $0x34] sm:$0xf]
      %v8191 = vld [vmem:[%s6 + $0x38] sm:$0xf]
      %v8192 = vld [vmem:[%s6 + $0x3c] sm:$0xf]
      %v8193 = vld [vmem:[%s6 + $0x40] sm:$0xf]
      %v8194 = vld [vmem:[%s6 + $0x44] sm:$0xf]
      %v8195 = vld [vmem:[%s6 + $0x48] sm:$0xf]
      %v8196 = vld [vmem:[%s6 + $0x4c] sm:$0xf]
      %v8197 = vld [vmem:[%s6 + $0x50] sm:$0xf]
      %v8198 = vld [vmem:[%s6 + $0x54] sm:$0xf]
      %v8199 = vld [vmem:[%s6 + $0x58] sm:$0xf]
      %v8200 = vld [vmem:[%s6 + $0x5c] sm:$0xf]
      %v8201 = vld [vmem:[%s6 + $0x60] sm:$0xf]
      %v8202 = vld [vmem:[%s6 + $0x64] sm:$0xf]
      %v8203 = vld [vmem:[%s6 + $0x68] sm:$0xf]
      %v8204 = vld [vmem:[%s6 + $0x6c] sm:$0xf]
      %v8205 = vld [vmem:[%s6 + $0x70] sm:$0xf]
      %v8206 = vld [vmem:[%s6 + $0x74] sm:$0xf]
      %v8207 = vld [vmem:[%s6 + $0x78] sm:$0xf]
      %v8208 = vld [vmem:[%s6 + $0x7c] sm:$0xf]
      %v8209 = vld [vmem:[%s6 + $0x80] sm:$0xf]
      %v8210 = vld [vmem:[%s6 + $0x84] sm:$0xf]
      %v8211 = vld [vmem:[%s6 + $0x88] sm:$0xf]
      %v8212 = vld [vmem:[%s6 + $0x8c] sm:$0xf]
      %v8213 = vld [vmem:[%s6 + $0x90] sm:$0xf]
      %v8214 = vld [vmem:[%s6 + $0x94] sm:$0xf]
      %v8215 = vld [vmem:[%s6 + $0x98] sm:$0xf]
      %v8216 = vld [vmem:[%s6 + $0x9c] sm:$0xf]
      %v8217 = vld [vmem:[%s6 + $0xa0] sm:$0xf]
      %v8218 = vld [vmem:[%s6 + $0xa4] sm:$0xf]
      %v8219 = vld [vmem:[%s6 + $0xa8] sm:$0xf]
      %v8220 = vld [vmem:[%s6 + $0xac] sm:$0xf]
      %v8221 = vld [vmem:[%s6 + $0xb0] sm:$0xf]
      %v8222 = vld [vmem:[%s6 + $0xb4] sm:$0xf]
      %v8223 = vld [vmem:[%s6 + $0xb8] sm:$0xf]
      %v8224 = vld [vmem:[%s6 + $0xbc] sm:$0xf]
      %v8225 = vld [vmem:[%s6 + $0xc0] sm:$0xf]
      %v8226 = vld [vmem:[%s6 + $0xc4] sm:$0xf]
      %v8227 = vld [vmem:[%s6 + $0xc8] sm:$0xf]
      %v8228 = vld [vmem:[%s6 + $0xcc] sm:$0xf]
      %v8229 = vld [vmem:[%s6 + $0xd0] sm:$0xf]
      %v8230 = vld [vmem:[%s6 + $0xd4] sm:$0xf]
      %v8231 = vld [vmem:[%s6 + $0xd8] sm:$0xf]
      %v8232 = vld [vmem:[%s6 + $0xdc] sm:$0xf]
      %v8233 = vld [vmem:[%s6 + $0xe0] sm:$0xf]
      %v8234 = vld [vmem:[%s6 + $0xe4] sm:$0xf]
      %v8235 = vld [vmem:[%s6 + $0xe8] sm:$0xf]
      %v8236 = vld [vmem:[%s6 + $0xec] sm:$0xf]
      %v8237 = vld [vmem:[%s6 + $0xf0] sm:$0xf]
      %v8238 = vld [vmem:[%s6 + $0xf4] sm:$0xf]
      %v8239 = vld [vmem:[%s6 + $0xf8] sm:$0xf]
      %v8240 = vld [vmem:[%s6 + $0xfc] sm:$0xf]
      %v8241 = vld [vmem:[%s6 + $0x100] sm:$0xf]
      %v8242 = vld [vmem:[%s6 + $0x104] sm:$0xf]
      %v8243 = vld [vmem:[%s6 + $0x108] sm:$0xf]
      %v8244 = vld [vmem:[%s6 + $0x10c] sm:$0xf]
      %v8245 = vld [vmem:[%s6 + $0x110] sm:$0xf]
      %v8246 = vld [vmem:[%s6 + $0x114] sm:$0xf]
      %v8247 = vld [vmem:[%s6 + $0x118] sm:$0xf]
      %v8248 = vld [vmem:[%s6 + $0x11c] sm:$0xf]
      %v8249 = vld [vmem:[%s7] sm:$0x1]
      %v8251 = vlaneseq
      %v8252 = vshrl.u32 %v8251, 7
      %v8253 = vsub.s32 0, %v8252
      %v8254 = vrot.slane %v8249, %v8253
      %v8328 = vunpack.c.l.b16 %v8177
      %v8329 = vunpack.c.l.b16 %v8178
      %v8330 = vunpack.c.l.b16 %v8179
      %v8331 = vunpack.c.l.b16 %v8180
      %v8332 = vunpack.c.l.b16 %v8181
      %v8333 = vunpack.c.l.b16 %v8182
      %v8334 = vunpack.c.l.b16 %v8183
      %v8335 = vunpack.c.l.b16 %v8184
      %v8336 = vunpack.c.l.b16 %v8185
      %v8337 = vunpack.c.l.b16 %v8186
      %v8338 = vunpack.c.l.b16 %v8187
      %v8339 = vunpack.c.l.b16 %v8188
      %v8340 = vunpack.c.l.b16 %v8189
      %v8341 = vunpack.c.l.b16 %v8190
      %v8342 = vunpack.c.l.b16 %v8191
      %v8343 = vunpack.c.l.b16 %v8192
      %v8344 = vunpack.c.l.b16 %v8193
      %v8345 = vunpack.c.l.b16 %v8194
      %v8346 = vunpack.c.l.b16 %v8195
      %v8347 = vunpack.c.l.b16 %v8196
      %v8348 = vunpack.c.l.b16 %v8197
      %v8349 = vunpack.c.l.b16 %v8198
      %v8350 = vunpack.c.l.b16 %v8199
      %v8351 = vunpack.c.l.b16 %v8200
      %v8352 = vunpack.c.l.b16 %v8201
      %v8353 = vunpack.c.l.b16 %v8202
      %v8354 = vunpack.c.l.b16 %v8203
      %v8355 = vunpack.c.l.b16 %v8204
      %v8356 = vunpack.c.l.b16 %v8205
      %v8357 = vunpack.c.l.b16 %v8206
      %v8358 = vunpack.c.l.b16 %v8207
      %v8359 = vunpack.c.l.b16 %v8208
      %v8360 = vunpack.c.l.b16 %v8209
      %v8361 = vunpack.c.l.b16 %v8210
      %v8362 = vunpack.c.l.b16 %v8211
      %v8363 = vunpack.c.l.b16 %v8212
      %v8364 = vunpack.c.l.b16 %v8213
      %v8365 = vunpack.c.l.b16 %v8214
      %v8366 = vunpack.c.l.b16 %v8215
      %v8367 = vunpack.c.l.b16 %v8216
      %v8368 = vunpack.c.l.b16 %v8217
      %v8369 = vunpack.c.l.b16 %v8218
      %v8370 = vunpack.c.l.b16 %v8219
      %v8371 = vunpack.c.l.b16 %v8220
      %v8372 = vunpack.c.l.b16 %v8221
      %v8373 = vunpack.c.l.b16 %v8222
      %v8374 = vunpack.c.l.b16 %v8223
      %v8375 = vunpack.c.l.b16 %v8224
      %v8376 = vunpack.c.l.b16 %v8225
      %v8377 = vunpack.c.l.b16 %v8226
      %v8378 = vunpack.c.l.b16 %v8227
      %v8379 = vunpack.c.l.b16 %v8228
      %v8380 = vunpack.c.l.b16 %v8229
      %v8381 = vunpack.c.l.b16 %v8230
      %v8382 = vunpack.c.l.b16 %v8231
      %v8383 = vunpack.c.l.b16 %v8232
      %v8384 = vunpack.c.l.b16 %v8233
      %v8385 = vunpack.c.l.b16 %v8234
      %v8386 = vunpack.c.l.b16 %v8235
      %v8387 = vunpack.c.l.b16 %v8236
      %v8388 = vunpack.c.l.b16 %v8237
      %v8389 = vunpack.c.l.b16 %v8238
      %v8390 = vunpack.c.l.b16 %v8239
      %v8391 = vunpack.c.l.b16 %v8240
      %v8392 = vunpack.c.l.b16 %v8241
      %v8393 = vunpack.c.l.b16 %v8242
      %v8394 = vunpack.c.l.b16 %v8243
      %v8395 = vunpack.c.l.b16 %v8244
      %v8396 = vunpack.c.l.b16 %v8245
      %v8397 = vunpack.c.l.b16 %v8246
      %v8398 = vunpack.c.l.b16 %v8247
      %v8399 = vunpack.c.l.b16 %v8248
      %v8400 = vpack.c.b16 %v8329, %v8328
      %v8401 = vpack.c.b16 %v8331, %v8330
      %v8402 = vpack.c.b16 %v8333, %v8332
      %v8403 = vpack.c.b16 %v8335, %v8334
      %v8404 = vpack.c.b16 %v8337, %v8336
      %v8405 = vpack.c.b16 %v8339, %v8338
      %v8406 = vpack.c.b16 %v8341, %v8340
      %v8407 = vpack.c.b16 %v8343, %v8342
      %v8408 = vpack.c.b16 %v8345, %v8344
      %v8409 = vpack.c.b16 %v8347, %v8346
      %v8410 = vpack.c.b16 %v8349, %v8348
      %v8411 = vpack.c.b16 %v8351, %v8350
      %v8412 = vpack.c.b16 %v8353, %v8352
      %v8413 = vpack.c.b16 %v8355, %v8354
      %v8414 = vpack.c.b16 %v8357, %v8356
      %v8415 = vpack.c.b16 %v8359, %v8358
      %v8416 = vpack.c.b16 %v8361, %v8360
      %v8417 = vpack.c.b16 %v8363, %v8362
      %v8418 = vpack.c.b16 %v8365, %v8364
      %v8419 = vpack.c.b16 %v8367, %v8366
      %v8420 = vpack.c.b16 %v8369, %v8368
      %v8421 = vpack.c.b16 %v8371, %v8370
      %v8422 = vpack.c.b16 %v8373, %v8372
      %v8423 = vpack.c.b16 %v8375, %v8374
      %v8424 = vpack.c.b16 %v8377, %v8376
      %v8425 = vpack.c.b16 %v8379, %v8378
      %v8426 = vpack.c.b16 %v8381, %v8380
      %v8427 = vpack.c.b16 %v8383, %v8382
      %v8428 = vpack.c.b16 %v8385, %v8384
      %v8429 = vpack.c.b16 %v8387, %v8386
      %v8430 = vpack.c.b16 %v8389, %v8388
      %v8431 = vpack.c.b16 %v8391, %v8390
      %v8432 = vpack.c.b16 %v8393, %v8392
      %v8433 = vpack.c.b16 %v8395, %v8394
      %v8434 = vpack.c.b16 %v8397, %v8396
      %v8435 = vpack.c.b16 %v8399, %v8398
      %v8473 = vsel %vm4134, %v8054, 0
      %v8476 = vsel %vm4134, %v8056, 0
      %v8479 = vsel %vm4134, %v8058, 0
      %v8482 = vsel %vm4134, %v8060, 0
      %v8485 = vsel %vm4134, %v8062, 0
      %v8488 = vsel %vm4134, %v8064, 0
      %v8491 = vsel %vm4134, %v8063, 0
      %8493 = vmatprep.subr.bf16.mxu0 0
      %8494 = vmatpush1.bf16.msra.mxu0 %v8400
      %8495 = vmatprep.subr.bf16.mxu0 0
      %8496 = vmatpush1.bf16.msra.mxu0 %v8401
      %8497 = vmatprep.subr.bf16.mxu0 0
      %8498 = vmatpush1.bf16.msra.mxu0 %v8402
      %8499 = vmatprep.subr.bf16.mxu0 0
      %8500 = vmatpush1.bf16.msra.mxu0 %v8403
      %8501 = vmatprep.subr.bf16.mxu0 0
      %8502 = vmatpush1.bf16.msra.mxu0 %v8404
      %8503 = vmatprep.subr.bf16.mxu0 0
      %8504 = vmatpush1.bf16.msra.mxu0 %v8405
      %8505 = vmatprep.subr.bf16.mxu0 0
      %8506 = vmatpush1.bf16.msra.mxu0 %v8406
      %8507 = vmatprep.subr.bf16.mxu0 0
      %8508 = vmatpush1.bf16.msra.mxu0 %v8407
      %8509 = vmatprep.subr.bf16.mxu0 0
      %8510 = vmatpush1.bf16.msra.mxu0 %v8408
      %8511 = vmatprep.subr.bf16.mxu0 0
      %8512 = vmatpush1.bf16.msra.mxu0 %v8409
      %8513 = vmatprep.subr.bf16.mxu0 0
      %8514 = vmatpush1.bf16.msra.mxu0 %v8410
      %8515 = vmatprep.subr.bf16.mxu0 0
      %8516 = vmatpush1.bf16.msra.mxu0 %v8411
      %8517 = vmatprep.subr.bf16.mxu0 0
      %8518 = vmatpush1.bf16.msra.mxu0 %v8412
      %8519 = vmatprep.subr.bf16.mxu0 0
      %8520 = vmatpush1.bf16.msra.mxu0 %v8413
      %8521 = vmatprep.subr.bf16.mxu0 0
      %8522 = vmatpush1.bf16.msra.mxu0 %v8414
      %8523 = vmatprep.subr.bf16.mxu0 0
      %8524 = vmatpush1.bf16.msra.mxu0 %v8415
      %8525 = vmatprep.mubr.bf16.mxu0 %v8095
      %8526 = vmatmul.mubr.bf16.gmra.mrb[0].mxu0 %v8067
      %v8527 = vpop.f32.mrb[0].mxu0
      %v8528 = vadd.f32 %v8254, %v8527
      %v8529 = vpop.f32.mrb[0].mxu0
      %v8530 = vpop.f32.mrb[0].mxu0
      %v8531 = vadd.f32 %v8254, %v8530
      %v8532 = vpop.f32.mrb[0].mxu0
      %8533 = vmatprep.mubr.bf16.mxu0 %v8099
      %8534 = vmatmul.mubr.bf16.gmra.mrb[0].mxu0 %v8071
      %v8535 = vpop.f32.mrb[0].mxu0
      %v8536 = vadd.f32 %v8254, %v8535
      %v8537 = vpop.f32.mrb[0].mxu0
      %v8538 = vpop.f32.mrb[0].mxu0
      %v8539 = vadd.f32 %v8254, %v8538
      %v8540 = vpop.f32.mrb[0].mxu0
      %8541 = vmatprep.mubr.bf16.mxu0 %v8103
      %8542 = vmatmul.mubr.bf16.gmra.mrb[0].mxu0 %v8075
      %v8543 = vpop.f32.mrb[0].mxu0
      %v8544 = vadd.f32 %v8254, %v8543
      %v8545 = vpop.f32.mrb[0].mxu0
      %v8546 = vpop.f32.mrb[0].mxu0
      %v8547 = vadd.f32 %v8254, %v8546
      %v8548 = vpop.f32.mrb[0].mxu0
      %8549 = vmatprep.mubr.bf16.mxu0 %v8107
      %8550 = vmatmul.mubr.bf16.gmra.mrb[0].mxu0 %v8079
      %v8551 = vpop.f32.mrb[0].mxu0
      %v8552 = vadd.f32 %v8254, %v8551
      %v8553 = vpop.f32.mrb[0].mxu0
      %v8554 = vpop.f32.mrb[0].mxu0
      %v8555 = vadd.f32 %v8254, %v8554
      %v8556 = vpop.f32.mrb[0].mxu0
      %8557 = vmatprep.mubr.bf16.mxu0 %v8111
      %8558 = vmatmul.mubr.bf16.gmra.mrb[0].mxu0 %v8083
      %v8559 = vpop.f32.mrb[0].mxu0
      %v8560 = vadd.f32 %v8254, %v8559
      %v8561 = vpop.f32.mrb[0].mxu0
      %v8562 = vpop.f32.mrb[0].mxu0
      %v8563 = vadd.f32 %v8254, %v8562
      %v8564 = vpop.f32.mrb[0].mxu0
      %8565 = vmatprep.mubr.bf16.mxu0 %v8115
      %8566 = vmatmul.mubr.bf16.gmra.mrb[0].mxu0 %v8087
      %v8567 = vpop.f32.mrb[0].mxu0
      %v8568 = vadd.f32 %v8254, %v8567
      %v8569 = vpop.f32.mrb[0].mxu0
      %v8570 = vpop.f32.mrb[0].mxu0
      %v8571 = vadd.f32 %v8254, %v8570
      %v8572 = vpop.f32.mrb[0].mxu0
      %8573 = vmatprep.mubr.bf16.mxu0 %v8119
      %8574 = vmatmul.mubr.bf16.gmra.mrb[0].mxu0 %v8091
      %v8575 = vpop.f32.mrb[0].mxu0
      %v8576 = vadd.f32 %v8254, %v8575
      %v8577 = vpop.f32.mrb[0].mxu0
      %v8578 = vpop.f32.mrb[0].mxu0
      %v8579 = vpop.f32.mrb[0].mxu0
      %8580 = vdwg.mxu0
      %8581 = vmatprep.subr.bf16.mxu0 0
      %8582 = vmatpush1.bf16.msra.mxu0 %v8416
      %8583 = vmatprep.subr.bf16.mxu0 0
      %8584 = vmatpush1.bf16.msra.mxu0 %v8417
      %8585 = vmatprep.subr.bf16.mxu0 0
      %8586 = vmatpush1.bf16.msra.mxu0 %v8418
      %8587 = vmatprep.subr.bf16.mxu0 0
      %8588 = vmatpush1.bf16.msra.mxu0 %v8419
      %8589 = vmatprep.subr.bf16.mxu0 0
      %8590 = vmatpush1.bf16.msra.mxu0 %v8420
      %8591 = vmatprep.subr.bf16.mxu0 0
      %8592 = vmatpush1.bf16.msra.mxu0 %v8421
      %8593 = vmatprep.subr.bf16.mxu0 0
      %8594 = vmatpush1.bf16.msra.mxu0 %v8422
      %8595 = vmatprep.subr.bf16.mxu0 0
      %8596 = vmatpush1.bf16.msra.mxu0 %v8423
      %8597 = vmatprep.subr.bf16.mxu0 0
      %8598 = vmatpush1.bf16.msra.mxu0 %v8424
      %8599 = vmatprep.subr.bf16.mxu0 0
      %8600 = vmatpush1.bf16.msra.mxu0 %v8425
      %8601 = vmatprep.subr.bf16.mxu0 0
      %8602 = vmatpush1.bf16.msra.mxu0 %v8426
      %8603 = vmatprep.subr.bf16.mxu0 0
      %8604 = vmatpush1.bf16.msra.mxu0 %v8427
      %8605 = vmatprep.subr.bf16.mxu0 0
      %8606 = vmatpush1.bf16.msra.mxu0 %v8428
      %8607 = vmatprep.subr.bf16.mxu0 0
      %8608 = vmatpush1.bf16.msra.mxu0 %v8429
      %8609 = vmatprep.subr.bf16.mxu0 0
      %8610 = vmatpush1.bf16.msra.mxu0 %v8430
      %8611 = vmatprep.subr.bf16.mxu0 0
      %8612 = vmatpush1.bf16.msra.mxu0 %v8431
      %8613 = vmatprep.mubr.bf16.mxu0 %v8151
      %8614 = vmatmul.mubr.bf16.gmra.mrb[0].mxu0 %v8123
      %v8615 = vpop.f32.mrb[0].mxu0
      %v8616 = vadd.f32 %v8528, %v8615
      %v8617 = vpop.f32.mrb[0].mxu0
      %v8618 = vpop.f32.mrb[0].mxu0
      %v8619 = vadd.f32 %v8531, %v8618
      %v8620 = vpop.f32.mrb[0].mxu0
      %8621 = vmatprep.mubr.bf16.mxu0 %v8155
      %8622 = vmatmul.mubr.bf16.gmra.mrb[0].mxu0 %v8127
      %v8623 = vpop.f32.mrb[0].mxu0
      %v8624 = vadd.f32 %v8536, %v8623
      %v8625 = vpop.f32.mrb[0].mxu0
      %v8626 = vpop.f32.mrb[0].mxu0
      %v8627 = vadd.f32 %v8539, %v8626
      %v8628 = vpop.f32.mrb[0].mxu0
      %8629 = vmatprep.mubr.bf16.mxu0 %v8159
      %8630 = vmatmul.mubr.bf16.gmra.mrb[0].mxu0 %v8131
      %v8631 = vpop.f32.mrb[0].mxu0
      %v8632 = vadd.f32 %v8544, %v8631
      %v8633 = vpop.f32.mrb[0].mxu0
      %v8634 = vpop.f32.mrb[0].mxu0
      %v8635 = vadd.f32 %v8547, %v8634
      %v8636 = vpop.f32.mrb[0].mxu0
      %8637 = vmatprep.mubr.bf16.mxu0 %v8163
      %8638 = vmatmul.mubr.bf16.gmra.mrb[0].mxu0 %v8135
      %v8639 = vpop.f32.mrb[0].mxu0
      %v8640 = vadd.f32 %v8552, %v8639
      %v8641 = vpop.f32.mrb[0].mxu0
      %v8642 = vpop.f32.mrb[0].mxu0
      %v8643 = vadd.f32 %v8555, %v8642
      %v8644 = vpop.f32.mrb[0].mxu0
      %8645 = vmatprep.mubr.bf16.mxu0 %v8167
      %8646 = vmatmul.mubr.bf16.gmra.mrb[0].mxu0 %v8139
      %v8647 = vpop.f32.mrb[0].mxu0
      %v8648 = vadd.f32 %v8560, %v8647
      %v8649 = vpop.f32.mrb[0].mxu0
      %v8650 = vpop.f32.mrb[0].mxu0
      %v8651 = vadd.f32 %v8563, %v8650
      %v8652 = vpop.f32.mrb[0].mxu0
      %8653 = vmatprep.mubr.bf16.mxu0 %v8171
      %8654 = vmatmul.mubr.bf16.gmra.mrb[0].mxu0 %v8143
      %v8655 = vpop.f32.mrb[0].mxu0
      %v8656 = vadd.f32 %v8568, %v8655
      %v8657 = vpop.f32.mrb[0].mxu0
      %v8658 = vpop.f32.mrb[0].mxu0
      %v8659 = vadd.f32 %v8571, %v8658
      %v8660 = vpop.f32.mrb[0].mxu0
      %8661 = vmatprep.mubr.bf16.mxu0 %v8175
      %8662 = vmatmul.mubr.bf16.gmra.mrb[0].mxu0 %v8147
      %v8663 = vpop.f32.mrb[0].mxu0
      %v8664 = vadd.f32 %v8576, %v8663
      %v8665 = vpop.f32.mrb[0].mxu0
      %v8666 = vpop.f32.mrb[0].mxu0
      %v8667 = vpop.f32.mrb[0].mxu0
      %8668 = vdwg.mxu0
      %8669 = vmatprep.subr.bf16.mxu0 0
      %8670 = vmatpush1.bf16.msra.mxu0 %v8432
      %8671 = vmatprep.subr.bf16.mxu0 0
      %8672 = vmatpush1.bf16.msra.mxu0 %v8433
      %8673 = vmatprep.subr.bf16.mxu0 0
      %8674 = vmatpush1.bf16.msra.mxu0 %v8434
      %8675 = vmatprep.subr.bf16.mxu0 0
      %8676 = vmatpush1.bf16.msra.mxu0 %v8435
      %8677 = vmatprep.subr.bf16.mxu0 0
      %8678 = vmatpush1.bf16.msra.mxu0 0
      %8679 = vmatprep.subr.bf16.mxu0 0
      %8680 = vmatpush1.bf16.msra.mxu0 0
      %8681 = vmatprep.subr.bf16.mxu0 0
      %8682 = vmatpush1.bf16.msra.mxu0 0
      %8683 = vmatprep.subr.bf16.mxu0 0
      %8684 = vmatpush1.bf16.msra.mxu0 0
      %8685 = vmatprep.subr.bf16.mxu0 0
      %8686 = vmatpush1.bf16.msra.mxu0 0
      %8687 = vmatprep.subr.bf16.mxu0 0
      %8688 = vmatpush1.bf16.msra.mxu0 0
      %8689 = vmatprep.subr.bf16.mxu0 0
      %8690 = vmatpush1.bf16.msra.mxu0 0
      %8691 = vmatprep.subr.bf16.mxu0 0
      %8692 = vmatpush1.bf16.msra.mxu0 0
      %8693 = vmatprep.subr.bf16.mxu0 0
      %8694 = vmatpush1.bf16.msra.mxu0 0
      %8695 = vmatprep.subr.bf16.mxu0 0
      %8696 = vmatpush1.bf16.msra.mxu0 0
      %8697 = vmatprep.subr.bf16.mxu0 0
      %8698 = vmatpush1.bf16.msra.mxu0 0
      %8699 = vmatprep.subr.bf16.mxu0 0
      %8700 = vmatpush1.bf16.msra.mxu0 0
      %8701 = vmatprep.mubr.bf16.mxu0 0
      %8702 = vmatmul.mubr.bf16.gmra.mrb[0].mxu0 %v8473
      %v8703 = vpop.f32.mrb[0].mxu0
      %v8704 = vadd.f32 %v8616, %v8703
      %v8705 = vpop.f32.mrb[0].mxu0
      %v8706 = vpop.f32.mrb[0].mxu0
      %v8707 = vadd.f32 %v8619, %v8706
      %v8708 = vpop.f32.mrb[0].mxu0
      %8709 = vmatprep.mubr.bf16.mxu0 0
      %8710 = vmatmul.mubr.bf16.gmra.mrb[0].mxu0 %v8476
      %v8711 = vpop.f32.mrb[0].mxu0
      %v8712 = vadd.f32 %v8624, %v8711
      %v8713 = vpop.f32.mrb[0].mxu0
      %v8714 = vpop.f32.mrb[0].mxu0
      %v8715 = vadd.f32 %v8627, %v8714
      %v8716 = vpop.f32.mrb[0].mxu0
      %8717 = vmatprep.mubr.bf16.mxu0 0
      %8718 = vmatmul.mubr.bf16.gmra.mrb[0].mxu0 %v8479
      %v8719 = vpop.f32.mrb[0].mxu0
      %v8720 = vadd.f32 %v8632, %v8719
      %v8721 = vpop.f32.mrb[0].mxu0
      %v8722 = vpop.f32.mrb[0].mxu0
      %v8723 = vadd.f32 %v8635, %v8722
      %v8724 = vpop.f32.mrb[0].mxu0
      %8725 = vmatprep.mubr.bf16.mxu0 0
      %8726 = vmatmul.mubr.bf16.gmra.mrb[0].mxu0 %v8482
      %v8727 = vpop.f32.mrb[0].mxu0
      %v8728 = vadd.f32 %v8640, %v8727
      %v8729 = vpop.f32.mrb[0].mxu0
      %v8730 = vpop.f32.mrb[0].mxu0
      %v8731 = vadd.f32 %v8643, %v8730
      %v8732 = vpop.f32.mrb[0].mxu0
      %8733 = vmatprep.mubr.bf16.mxu0 0
      %8734 = vmatmul.mubr.bf16.gmra.mrb[0].mxu0 %v8485
      %v8735 = vpop.f32.mrb[0].mxu0
      %v8736 = vadd.f32 %v8648, %v8735
      %v8737 = vpop.f32.mrb[0].mxu0
      %v8738 = vpop.f32.mrb[0].mxu0
      %v8739 = vadd.f32 %v8651, %v8738
      %v8740 = vpop.f32.mrb[0].mxu0
      %8741 = vmatprep.mubr.bf16.mxu0 0
      %8742 = vmatmul.mubr.bf16.gmra.mrb[0].mxu0 %v8488
      %v8743 = vpop.f32.mrb[0].mxu0
      %v8744 = vadd.f32 %v8656, %v8743
      %v8745 = vpop.f32.mrb[0].mxu0
      %v8746 = vpop.f32.mrb[0].mxu0
      %v8747 = vadd.f32 %v8659, %v8746
      %v8748 = vpop.f32.mrb[0].mxu0
      %8749 = vmatprep.mubr.bf16.mxu0 0
      %8750 = vmatmul.mubr.bf16.gmra.mrb[0].mxu0 %v8491
      %v8751 = vpop.f32.mrb[0].mxu0
      %v8752 = vadd.f32 %v8664, %v8751
      %v8753 = vpop.f32.mrb[0].mxu0
      %v8754 = vpop.f32.mrb[0].mxu0
      %v8755 = vpop.f32.mrb[0].mxu0
      %8756 = vdwg.mxu0
      %v8757 = vmax.f32 %v8704, 0.0
      %v8758 = vmax.f32 %v8707, 0.0
      %v8759 = vmax.f32 %v8712, 0.0
      %v8760 = vmax.f32 %v8715, 0.0
      %v8761 = vmax.f32 %v8720, 0.0
      %v8762 = vmax.f32 %v8723, 0.0
      %v8763 = vmax.f32 %v8728, 0.0
      %v8764 = vmax.f32 %v8731, 0.0
      %v8765 = vmax.f32 %v8736, 0.0
      %v8766 = vmax.f32 %v8739, 0.0
      %v8767 = vmax.f32 %v8744, 0.0
      %v8768 = vmax.f32 %v8747, 0.0
      %v8769 = vmax.f32 %v8752, 0.0
      %v8770 = vadd.f32 %v8757, %v4827
      %v8771 = vadd.f32 %v8758, %v4828
      %v8772 = vadd.f32 %v8759, %v4829
      %v8773 = vadd.f32 %v8760, %v4830
      %v8774 = vadd.f32 %v8761, %v4831
      %v8775 = vadd.f32 %v8762, %v4832
      %v8776 = vadd.f32 %v8763, %v4833
      %v8777 = vadd.f32 %v8764, %v4834
      %v8778 = vadd.f32 %v8765, %v4835
      %v8779 = vadd.f32 %v8766, %v4836
      %v8780 = vadd.f32 %v8767, %v4837
      %v8781 = vadd.f32 %v8768, %v4838
      %v8782 = vadd.f32 %v8769, %v4839
      %v8783 = vld [vmem:[%s8] sm:$0xf]
      %v8784 = vld [vmem:[%s8 + $0x4] sm:$0xf]
      %8785 = vxpose.xlu0.b32.start [1/16] %v8770, 128
      %8786 = vxpose.xlu0.b32.cont [2/16] %v8771, 128
      %8787 = vxpose.xlu0.b32.cont [3/16] %v8772, 128
      %8788 = vxpose.xlu0.b32.cont [4/16] %v8773, 128
      %8789 = vxpose.xlu0.b32.cont [5/16] %v8774, 128
      %8790 = vxpose.xlu0.b32.cont [6/16] %v8775, 128
      %8791 = vxpose.xlu0.b32.cont [7/16] %v8776, 128
      %8792 = vxpose.xlu0.b32.cont [8/16] %v8777, 128
      %8793 = vxpose.xlu0.b32.cont [9/16] %v8778, 128
      %8794 = vxpose.xlu0.b32.cont [10/16] %v8779, 128
      %8795 = vxpose.xlu0.b32.cont [11/16] %v8780, 128
      %8796 = vxpose.xlu0.b32.cont [12/16] %v8781, 128
      %8797 = vxpose.xlu0.b32.cont [13/16] %v8782, 128
      %8798 = vxpose.xlu0.b32.cont [14/16] 0.0, 128
      %8799 = vxpose.xlu0.b32.cont [15/16] 0.0, 128
      %8800 = vxpose.xlu0.b32.end [16/16] 0.0, 128
      %v8801 = vpop.trf.xlu0
      %v8802 = vpop.trf.xlu0
      %v8803 = vpop.trf.xlu0
      %v8804 = vpop.trf.xlu0
      %v8805 = vpop.trf.xlu0
      %v8806 = vpop.trf.xlu0
      %v8807 = vpop.trf.xlu0
      %v8808 = vpop.trf.xlu0
      %v8809 = vpop.trf.xlu0
      %v8810 = vpop.trf.xlu0
      %v8811 = vpop.trf.xlu0
      %v8812 = vpop.trf.xlu0
      %v8813 = vpop.trf.xlu0
      %v8814 = vpop.trf.xlu0
      %v8815 = vpop.trf.xlu0
      %v8816 = vpop.trf.xlu0
      %v8817 = vpack.c.bf16 %v8802, %v8801
      %v8818 = vpack.c.bf16 %v8804, %v8803
      %v8819 = vpack.c.bf16 %v8806, %v8805
      %v8820 = vpack.c.bf16 %v8808, %v8807
      %v8821 = vld [vmem:[#allocation6] sm:$0x1]
      %v8823 = vlaneseq
      %v8824 = vshrl.u32 %v8823, 7
      %v8825 = vsub.s32 0, %v8824
      %v8826 = vrot.slane %v8821, %v8825
      %8827 = vset.pattern.permute.xlu0 0
      %8828 = vperm.xlu0 %8827, %v8826
      %v8829 = vpop.permute.xlu0 %8828
      %v8833 = vunpack.c.l.b16 %v8783
      %v8834 = vunpack.c.l.b16 %v8784
      %v8835 = vpack.c.b16 %v8834, %v8833
      %v8837 = vsel %vm4134, %v8835, 0
      %8839 = vmatprep.subr.bf16.mxu0 0
      %8840 = vmatpush1.bf16.msra.mxu0 %v8817
      %8841 = vmatprep.subr.bf16.mxu0 0
      %8842 = vmatpush1.bf16.msra.mxu0 %v8818
      %8843 = vmatprep.subr.bf16.mxu0 0
      %8844 = vmatpush1.bf16.msra.mxu0 %v8819
      %8845 = vmatprep.subr.bf16.mxu0 0
      %8846 = vmatpush1.bf16.msra.mxu0 %v8820
      %8847 = vmatprep.subr.bf16.mxu0 0
      %8848 = vmatpush1.bf16.msra.mxu0 0
      %8849 = vmatprep.subr.bf16.mxu0 0
      %8850 = vmatpush1.bf16.msra.mxu0 0
      %8851 = vmatprep.subr.bf16.mxu0 0
      %8852 = vmatpush1.bf16.msra.mxu0 0
      %8853 = vmatprep.subr.bf16.mxu0 0
      %8854 = vmatpush1.bf16.msra.mxu0 0
      %8855 = vmatprep.subr.bf16.mxu0 0
      %8856 = vmatpush1.bf16.msra.mxu0 0
      %8857 = vmatprep.subr.bf16.mxu0 0
      %8858 = vmatpush1.bf16.msra.mxu0 0
      %8859 = vmatprep.subr.bf16.mxu0 0
      %8860 = vmatpush1.bf16.msra.mxu0 0
      %8861 = vmatprep.subr.bf16.mxu0 0
      %8862 = vmatpush1.bf16.msra.mxu0 0
      %8863 = vmatprep.subr.bf16.mxu0 0
      %8864 = vmatpush1.bf16.msra.mxu0 0
      %8865 = vmatprep.subr.bf16.mxu0 0
      %8866 = vmatpush1.bf16.msra.mxu0 0
      %8867 = vmatprep.subr.bf16.mxu0 0
      %8868 = vmatpush1.bf16.msra.mxu0 0
      %8869 = vmatprep.subr.bf16.mxu0 0
      %8870 = vmatpush1.bf16.msra.mxu0 0
      %8871 = vmatprep.mubr.bf16.mxu0 0
      %8872 = vmatmul.mubr.bf16.gmra.mrb[0].mxu0 %v8837
      %v8873 = vpop.f32.mrb[0].mxu0
      %v8874 = vadd.f32 %v8829, %v8873
      %v8875 = vpop.f32.mrb[0].mxu0
      %v8876 = vpop.f32.mrb[0].mxu0
      %v8877 = vadd.f32 %v8829, %v8876
      %v8878 = vpop.f32.mrb[0].mxu0
      %8879 = vdwg.mxu0
      %vm8880 = vcmask 818176
      %8881 = vst.msk [vmem:[%s612] sm:$0xff] %vm8880, %v8874
      %8882 = vst.msk [vmem:[%s612 + $0x8] sm:$0xff] %vm8880, %v8877
      %v8883 = vpack.c.bf16 %v8771, %v8770
      %v8884 = vpack.c.bf16 %v8773, %v8772
      %v8885 = vpack.c.bf16 %v8775, %v8774
      %v8886 = vpack.c.bf16 %v8777, %v8776
      %v8887 = vpack.c.bf16 %v8779, %v8778
      %v8888 = vpack.c.bf16 %v8781, %v8780
      %v8889 = vpack.c.bf16 %v8782, %v8782
      %v8897 = vunpack.c.l.b16 %v8883
      %v8898 = vunpack.c.h.b16 %v8883
      %v8899 = vunpack.c.l.b16 %v8884
      %v8900 = vunpack.c.h.b16 %v8884
      %v8901 = vunpack.c.l.b16 %v8885
      %v8902 = vunpack.c.h.b16 %v8885
      %v8903 = vunpack.c.l.b16 %v8886
      %v8904 = vunpack.c.h.b16 %v8886
      %v8905 = vunpack.c.l.b16 %v8887
      %v8906 = vunpack.c.h.b16 %v8887
      %v8907 = vunpack.c.l.b16 %v8888
      %v8908 = vunpack.c.h.b16 %v8888
      %v8909 = vunpack.c.l.b16 %v8889
      %v8910 = vpack.c.b16 %v8897, %v8897
      %v8911 = vpack.c.b16 %v8898, %v8898
      %v8912 = vpack.c.b16 %v8899, %v8899
      %v8913 = vpack.c.b16 %v8900, %v8900
      %v8914 = vpack.c.b16 %v8901, %v8901
      %v8915 = vpack.c.b16 %v8902, %v8902
      %v8916 = vpack.c.b16 %v8903, %v8903
      %v8917 = vpack.c.b16 %v8904, %v8904
      %v8918 = vpack.c.b16 %v8905, %v8905
      %v8919 = vpack.c.b16 %v8906, %v8906
      %v8920 = vpack.c.b16 %v8907, %v8907
      %v8921 = vpack.c.b16 %v8908, %v8908
      %v8922 = vpack.c.b16 %v8909, %v8909
      %v8924 = vshrl.u32 %v8910, 16
      %v8926 = vrot.slane %v8924, 6
      %v8927 = vshll.u32 %v8910, 16
      %v8929 = vrot.slane %v8927, 7
      %v8930 = vor.u32 %v8926, %v8929
      %v8931 = vrot.slane %v8930, 4
      %v8933 = vshrl.u32 %v8911, 16
      %v8935 = vrot.slane %v8933, 6
      %v8936 = vshll.u32 %v8911, 16
      %v8938 = vrot.slane %v8936, 7
      %v8939 = vor.u32 %v8935, %v8938
      %v8940 = vsel %vm913, %v8931, %v8939
      %v8941 = vrot.slane %v8939, 4
      %v8943 = vshrl.u32 %v8912, 16
      %v8945 = vrot.slane %v8943, 6
      %v8946 = vshll.u32 %v8912, 16
      %v8948 = vrot.slane %v8946, 7
      %v8949 = vor.u32 %v8945, %v8948
      %v8950 = vsel %vm913, %v8941, %v8949
      %v8951 = vrot.slane %v8949, 4
      %v8953 = vshrl.u32 %v8913, 16
      %v8955 = vrot.slane %v8953, 6
      %v8956 = vshll.u32 %v8913, 16
      %v8958 = vrot.slane %v8956, 7
      %v8959 = vor.u32 %v8955, %v8958
      %v8960 = vsel %vm913, %v8951, %v8959
      %v8961 = vrot.slane %v8959, 4
      %v8963 = vshrl.u32 %v8914, 16
      %v8965 = vrot.slane %v8963, 6
      %v8966 = vshll.u32 %v8914, 16
      %v8968 = vrot.slane %v8966, 7
      %v8969 = vor.u32 %v8965, %v8968
      %v8970 = vsel %vm913, %v8961, %v8969
      %v8971 = vrot.slane %v8969, 4
      %v8973 = vshrl.u32 %v8915, 16
      %v8975 = vrot.slane %v8973, 6
      %v8976 = vshll.u32 %v8915, 16
      %v8978 = vrot.slane %v8976, 7
      %v8979 = vor.u32 %v8975, %v8978
      %v8980 = vsel %vm913, %v8971, %v8979
      %v8981 = vrot.slane %v8979, 4
      %v8983 = vshrl.u32 %v8916, 16
      %v8985 = vrot.slane %v8983, 6
      %v8986 = vshll.u32 %v8916, 16
      %v8988 = vrot.slane %v8986, 7
      %v8989 = vor.u32 %v8985, %v8988
      %v8990 = vsel %vm913, %v8981, %v8989
      %v8991 = vrot.slane %v8989, 4
      %v8993 = vshrl.u32 %v8917, 16
      %v8995 = vrot.slane %v8993, 6
      %v8996 = vshll.u32 %v8917, 16
      %v8998 = vrot.slane %v8996, 7
      %v8999 = vor.u32 %v8995, %v8998
      %v9000 = vsel %vm913, %v8991, %v8999
      %v9001 = vrot.slane %v8999, 4
      %v9003 = vshrl.u32 %v8918, 16
      %v9005 = vrot.slane %v9003, 6
      %v9006 = vshll.u32 %v8918, 16
      %v9008 = vrot.slane %v9006, 7
      %v9009 = vor.u32 %v9005, %v9008
      %v9010 = vsel %vm913, %v9001, %v9009
      %v9011 = vrot.slane %v9009, 4
      %v9013 = vshrl.u32 %v8919, 16
      %v9015 = vrot.slane %v9013, 6
      %v9016 = vshll.u32 %v8919, 16
      %v9018 = vrot.slane %v9016, 7
      %v9019 = vor.u32 %v9015, %v9018
      %v9020 = vsel %vm913, %v9011, %v9019
      %v9021 = vrot.slane %v9019, 4
      %v9023 = vshrl.u32 %v8920, 16
      %v9025 = vrot.slane %v9023, 6
      %v9026 = vshll.u32 %v8920, 16
      %v9028 = vrot.slane %v9026, 7
      %v9029 = vor.u32 %v9025, %v9028
      %v9030 = vsel %vm913, %v9021, %v9029
      %v9031 = vrot.slane %v9029, 4
      %v9033 = vshrl.u32 %v8921, 16
      %v9035 = vrot.slane %v9033, 6
      %v9036 = vshll.u32 %v8921, 16
      %v9038 = vrot.slane %v9036, 7
      %v9039 = vor.u32 %v9035, %v9038
      %v9040 = vsel %vm913, %v9031, %v9039
      %v9041 = vrot.slane %v9039, 4
      %v9043 = vshrl.u32 %v8922, 16
      %v9045 = vrot.slane %v9043, 6
      %v9046 = vshll.u32 %v8922, 16
      %v9048 = vrot.slane %v9046, 7
      %v9049 = vor.u32 %v9045, %v9048
      %v9050 = vsel %vm913, %v9041, %v9049
      %v9064 = vld [vmem:[#allocation2 + $0x4] sm:$0xe]
      %v9065 = vsel %vm1057, %v8930, %v9064
      %9066 = vst [vmem:[#allocation2 + $0x4] sm:$0xe] %v9065
      %9067 = vst.msk [vmem:[#allocation2 + $0x8] sm:$0xf] %vm617, %v8940
      %9068 = vst.msk [vmem:[#allocation2 + $0xc] sm:$0xf] %vm617, %v8950
      %9069 = vst.msk [vmem:[#allocation2 + $0x10] sm:$0xf] %vm617, %v8960
      %9070 = vst.msk [vmem:[#allocation2 + $0x14] sm:$0xf] %vm617, %v8970
      %9071 = vst.msk [vmem:[#allocation2 + $0x18] sm:$0xf] %vm617, %v8980
      %9072 = vst.msk [vmem:[#allocation2 + $0x1c] sm:$0xf] %vm617, %v8990
      %9073 = vst.msk [vmem:[#allocation2 + $0x20] sm:$0xf] %vm617, %v9000
      %9074 = vst.msk [vmem:[#allocation2 + $0x24] sm:$0xf] %vm617, %v9010
      %9075 = vst.msk [vmem:[#allocation2 + $0x28] sm:$0xf] %vm617, %v9020
      %9076 = vst.msk [vmem:[#allocation2 + $0x2c] sm:$0xf] %vm617, %v9030
      %9077 = vst.msk [vmem:[#allocation2 + $0x30] sm:$0xf] %vm617, %v9040
      %v9078 = vld [vmem:[#allocation2 + $0x34] sm:$0xf]
      %v9079 = vsel %vm1074, %v9050, %v9078
      %9080 = vst [vmem:[#allocation2 + $0x34] sm:$0xf] %v9079
      %v9081 = vld [vmem:[#allocation2] sm:$0xf]
      %v9082 = vld [vmem:[#allocation2 + $0x4] sm:$0xf]
      %v9083 = vld [vmem:[#allocation2 + $0x8] sm:$0xf]
      %v9084 = vld [vmem:[#allocation2 + $0xc] sm:$0xf]
      %v9085 = vld [vmem:[#allocation2 + $0x10] sm:$0xf]
      %v9086 = vld [vmem:[#allocation2 + $0x14] sm:$0xf]
      %v9087 = vld [vmem:[#allocation2 + $0x18] sm:$0xf]
      %v9088 = vld [vmem:[#allocation2 + $0x1c] sm:$0xf]
      %v9089 = vld [vmem:[#allocation2 + $0x20] sm:$0xf]
      %v9090 = vld [vmem:[#allocation2 + $0x24] sm:$0xf]
      %v9091 = vld [vmem:[#allocation2 + $0x28] sm:$0xf]
      %v9092 = vld [vmem:[#allocation2 + $0x2c] sm:$0xf]
      %v9093 = vld [vmem:[#allocation2 + $0x30] sm:$0x3]
      %v9094 = vld [vmem:[#allocation2 + $0x30] sm:$0x7]
      %v9095 = vld [vmem:[#allocation2] sm:$0xe]
      %v9096 = vld [vmem:[#allocation2 + $0x4] sm:$0xe]
      %v9097 = vld [vmem:[#allocation2 + $0x30] sm:$0xf]
      %v9098 = vld [vmem:[#allocation2 + $0x34] sm:$0x7]
      %v9099 = vld [vmem:[#allocation2 + $0x34] sm:$0xf]
      %v9100 = vld [vmem:[#allocation2 + $0x4] sm:$0xc]
      %v9101 = vld [vmem:[#allocation2 + $0x8] sm:$0xc]
      %v9102 = vld [vmem:[#allocation2 + $0x38] sm:$0xf]
      %v9103 = vld [vmem:[#allocation2 + $0x3c] sm:$0x1]
      %v9104 = vld [vmem:[#allocation2 + $0x8] sm:$0x8]
      %v9118 = vunpack.c.l.b16 %v9081
      %v9119 = vunpack.c.l.b16 %v9082
      %v9120 = vunpack.c.l.b16 %v9083
      %v9121 = vunpack.c.l.b16 %v9084
      %v9122 = vunpack.c.l.b16 %v9085
      %v9123 = vunpack.c.l.b16 %v9086
      %v9124 = vunpack.c.l.b16 %v9087
      %v9125 = vunpack.c.l.b16 %v9088
      %v9126 = vunpack.c.l.b16 %v9089
      %v9127 = vunpack.c.l.b16 %v9090
      %v9128 = vunpack.c.l.b16 %v9091
      %v9129 = vunpack.c.l.b16 %v9092
      %v9130 = vunpack.c.l.b16 %v9093
      %v9131 = vpack.c.b16 %v9119, %v9118
      %v9132 = vpack.c.b16 %v9121, %v9120
      %v9133 = vpack.c.b16 %v9123, %v9122
      %v9134 = vpack.c.b16 %v9125, %v9124
      %v9135 = vpack.c.b16 %v9127, %v9126
      %v9136 = vpack.c.b16 %v9129, %v9128
      %v9137 = vpack.c.b16 %v9130, %v9130
      %v9139 = vunpack.c.l.b16 %v9094
      %v9140 = vpack.c.b16 %v9139, %v9139
      %v9142 = vshrl.u32 %v9131, 16
      %v9144 = vshll.u32 %v9131, 16
      %v9146 = vrot.slane %v9144, 1
      %v9147 = vor.u32 %v9142, %v9146
      %v9149 = vshll.u32 %v9132, 16
      %v9151 = vrot.slane %v9149, 1
      %v9152 = vsel %vm3593, %v9147, %v9151
      %v9153 = vshrl.u32 %v9132, 16
      %v9155 = vor.u32 %v9153, %v9151
      %v9157 = vshll.u32 %v9133, 16
      %v9159 = vrot.slane %v9157, 1
      %v9160 = vsel %vm3593, %v9155, %v9159
      %v9161 = vshrl.u32 %v9133, 16
      %v9163 = vor.u32 %v9161, %v9159
      %v9165 = vshll.u32 %v9134, 16
      %v9167 = vrot.slane %v9165, 1
      %v9168 = vsel %vm3593, %v9163, %v9167
      %v9169 = vshrl.u32 %v9134, 16
      %v9171 = vor.u32 %v9169, %v9167
      %v9173 = vshll.u32 %v9135, 16
      %v9175 = vrot.slane %v9173, 1
      %v9176 = vsel %vm3593, %v9171, %v9175
      %v9177 = vshrl.u32 %v9135, 16
      %v9179 = vor.u32 %v9177, %v9175
      %v9181 = vshll.u32 %v9136, 16
      %v9183 = vrot.slane %v9181, 1
      %v9184 = vsel %vm3593, %v9179, %v9183
      %v9185 = vshrl.u32 %v9136, 16
      %v9187 = vor.u32 %v9185, %v9183
      %v9189 = vshll.u32 %v9140, 16
      %v9191 = vrot.slane %v9189, 1
      %v9192 = vsel %vm3593, %v9187, %v9191
      %v9193 = vshrl.u32 %v9140, 16
      %v9195 = vor.u32 %v9193, %v9191
      %9196 = vrot.lane.b32.xlu0 %v9152, 64
      %v9197 = vpop.permute.xlu0 %9196
      %9198 = vrot.lane.b32.xlu0 %v9160, 64
      %v9199 = vpop.permute.xlu0 %9198
      %9200 = vrot.lane.b32.xlu0 %v9168, 64
      %v9201 = vpop.permute.xlu0 %9200
      %9202 = vrot.lane.b32.xlu0 %v9176, 64
      %v9203 = vpop.permute.xlu0 %9202
      %9204 = vrot.lane.b32.xlu0 %v9184, 64
      %v9205 = vpop.permute.xlu0 %9204
      %9206 = vrot.lane.b32.xlu0 %v9192, 64
      %v9207 = vpop.permute.xlu0 %9206
      %9208 = vrot.lane.b32.xlu0 %v9195, 64
      %v9209 = vpop.permute.xlu0 %9208
      %v9211 = vunpack.c.l.b16 %v9095
      %v9212 = vpack.c.b16 %v9119, %v9211
      %v9213 = vrot.slane %v9212, 1
      %v9214 = vrot.slane %v9132, 1
      %v9215 = vsel %vm3696, %v9213, %v9214
      %v9216 = vrot.slane %v9133, 1
      %v9217 = vsel %vm3696, %v9214, %v9216
      %v9218 = vrot.slane %v9134, 1
      %v9219 = vsel %vm3696, %v9216, %v9218
      %v9220 = vrot.slane %v9135, 1
      %v9221 = vsel %vm3696, %v9218, %v9220
      %v9222 = vrot.slane %v9136, 1
      %v9223 = vsel %vm3696, %v9220, %v9222
      %v9224 = vrot.slane %v9140, 1
      %v9225 = vsel %vm3696, %v9222, %v9224
      %v9229 = vunpack.c.l.b16 %v9096
      %v9230 = vunpack.c.l.b16 %v9097
      %v9231 = vunpack.c.l.b16 %v9098
      %v9232 = vpack.c.b16 %v9120, %v9229
      %v9233 = vpack.c.b16 %v9122, %v9121
      %v9234 = vpack.c.b16 %v9124, %v9123
      %v9235 = vpack.c.b16 %v9126, %v9125
      %v9236 = vpack.c.b16 %v9128, %v9127
      %v9237 = vpack.c.b16 %v9230, %v9129
      %v9238 = vpack.c.b16 %v9231, %v9231
      %v9239 = vrot.slane %v9232, 1
      %v9240 = vrot.slane %v9233, 1
      %v9241 = vsel %vm3696, %v9239, %v9240
      %v9242 = vrot.slane %v9234, 1
      %v9243 = vsel %vm3696, %v9240, %v9242
      %v9244 = vrot.slane %v9235, 1
      %v9245 = vsel %vm3696, %v9242, %v9244
      %v9246 = vrot.slane %v9236, 1
      %v9247 = vsel %vm3696, %v9244, %v9246
      %v9248 = vrot.slane %v9237, 1
      %v9249 = vsel %vm3696, %v9246, %v9248
      %v9250 = vrot.slane %v9238, 1
      %v9251 = vsel %vm3696, %v9248, %v9250
      %9252 = vrot.lane.b32.xlu0 %v9241, 64
      %v9253 = vpop.permute.xlu0 %9252
      %9254 = vrot.lane.b32.xlu0 %v9243, 64
      %v9255 = vpop.permute.xlu0 %9254
      %9256 = vrot.lane.b32.xlu0 %v9245, 64
      %v9257 = vpop.permute.xlu0 %9256
      %9258 = vrot.lane.b32.xlu0 %v9247, 64
      %v9259 = vpop.permute.xlu0 %9258
      %9260 = vrot.lane.b32.xlu0 %v9249, 64
      %v9261 = vpop.permute.xlu0 %9260
      %9262 = vrot.lane.b32.xlu0 %v9251, 64
      %v9263 = vpop.permute.xlu0 %9262
      %9264 = vrot.lane.b32.xlu0 %v9250, 64
      %v9265 = vpop.permute.xlu0 %9264
      %v9267 = vunpack.c.l.b16 %v9099
      %v9268 = vpack.c.b16 %v9267, %v9267
      %v9270 = vshrl.u32 %v9232, 16
      %v9272 = vrot.slane %v9270, 1
      %v9273 = vshll.u32 %v9232, 16
      %v9275 = vrot.slane %v9273, 2
      %v9276 = vor.u32 %v9272, %v9275
      %v9278 = vshrl.u32 %v9233, 16
      %v9280 = vrot.slane %v9278, 1
      %v9281 = vshll.u32 %v9233, 16
      %v9283 = vrot.slane %v9281, 2
      %v9284 = vor.u32 %v9280, %v9283
      %v9285 = vsel %vm3803, %v9276, %v9284
      %v9287 = vshrl.u32 %v9234, 16
      %v9289 = vrot.slane %v9287, 1
      %v9290 = vshll.u32 %v9234, 16
      %v9292 = vrot.slane %v9290, 2
      %v9293 = vor.u32 %v9289, %v9292
      %v9294 = vsel %vm3803, %v9284, %v9293
      %v9296 = vshrl.u32 %v9235, 16
      %v9298 = vrot.slane %v9296, 1
      %v9299 = vshll.u32 %v9235, 16
      %v9301 = vrot.slane %v9299, 2
      %v9302 = vor.u32 %v9298, %v9301
      %v9303 = vsel %vm3803, %v9293, %v9302
      %v9305 = vshrl.u32 %v9236, 16
      %v9307 = vrot.slane %v9305, 1
      %v9308 = vshll.u32 %v9236, 16
      %v9310 = vrot.slane %v9308, 2
      %v9311 = vor.u32 %v9307, %v9310
      %v9312 = vsel %vm3803, %v9302, %v9311
      %v9314 = vshrl.u32 %v9237, 16
      %v9316 = vrot.slane %v9314, 1
      %v9317 = vshll.u32 %v9237, 16
      %v9319 = vrot.slane %v9317, 2
      %v9320 = vor.u32 %v9316, %v9319
      %v9321 = vsel %vm3803, %v9311, %v9320
      %v9323 = vshrl.u32 %v9268, 16
      %v9325 = vrot.slane %v9323, 1
      %v9326 = vshll.u32 %v9268, 16
      %v9328 = vrot.slane %v9326, 2
      %v9329 = vor.u32 %v9325, %v9328
      %v9330 = vsel %vm3803, %v9320, %v9329
      %v9332 = vunpack.c.l.b16 %v9100
      %v9333 = vpack.c.b16 %v9120, %v9332
      %v9334 = vrot.slane %v9333, 2
      %v9335 = vrot.slane %v9233, 2
      %v9336 = vsel %vm3899, %v9334, %v9335
      %v9337 = vrot.slane %v9234, 2
      %v9338 = vsel %vm3899, %v9335, %v9337
      %v9339 = vrot.slane %v9235, 2
      %v9340 = vsel %vm3899, %v9337, %v9339
      %v9341 = vrot.slane %v9236, 2
      %v9342 = vsel %vm3899, %v9339, %v9341
      %v9343 = vrot.slane %v9237, 2
      %v9344 = vsel %vm3899, %v9341, %v9343
      %v9345 = vrot.slane %v9268, 2
      %v9346 = vsel %vm3899, %v9343, %v9345
      %9347 = vrot.lane.b32.xlu0 %v9336, 64
      %v9348 = vpop.permute.xlu0 %9347
      %9349 = vrot.lane.b32.xlu0 %v9338, 64
      %v9350 = vpop.permute.xlu0 %9349
      %9351 = vrot.lane.b32.xlu0 %v9340, 64
      %v9352 = vpop.permute.xlu0 %9351
      %9353 = vrot.lane.b32.xlu0 %v9342, 64
      %v9354 = vpop.permute.xlu0 %9353
      %9355 = vrot.lane.b32.xlu0 %v9344, 64
      %v9356 = vpop.permute.xlu0 %9355
      %9357 = vrot.lane.b32.xlu0 %v9346, 64
      %v9358 = vpop.permute.xlu0 %9357
      %9359 = vrot.lane.b32.xlu0 %v9345, 64
      %v9360 = vpop.permute.xlu0 %9359
      %v9363 = vunpack.c.l.b16 %v9101
      %v9364 = vunpack.c.l.b16 %v9102
      %v9365 = vpack.c.b16 %v9121, %v9363
      %v9366 = vpack.c.b16 %v9267, %v9230
      %v9367 = vpack.c.b16 %v9364, %v9364
      %v9368 = vrot.slane %v9365, 2
      %v9369 = vrot.slane %v9133, 2
      %v9370 = vsel %vm3899, %v9368, %v9369
      %v9371 = vrot.slane %v9134, 2
      %v9372 = vsel %vm3899, %v9369, %v9371
      %v9373 = vrot.slane %v9135, 2
      %v9374 = vsel %vm3899, %v9371, %v9373
      %v9375 = vrot.slane %v9136, 2
      %v9376 = vsel %vm3899, %v9373, %v9375
      %v9377 = vrot.slane %v9366, 2
      %v9378 = vsel %vm3899, %v9375, %v9377
      %v9379 = vrot.slane %v9367, 2
      %v9380 = vsel %vm3899, %v9377, %v9379
      %v9382 = vunpack.c.l.b16 %v9103
      %v9383 = vpack.c.b16 %v9382, %v9364
      %v9385 = vshrl.u32 %v9365, 16
      %v9387 = vrot.slane %v9385, 2
      %v9388 = vshll.u32 %v9365, 16
      %v9390 = vrot.slane %v9388, 3
      %v9391 = vor.u32 %v9387, %v9390
      %v9392 = vrot.slane %v9161, 2
      %v9393 = vrot.slane %v9157, 3
      %v9394 = vor.u32 %v9392, %v9393
      %v9395 = vsel %vm4008, %v9391, %v9394
      %v9396 = vrot.slane %v9169, 2
      %v9397 = vrot.slane %v9165, 3
      %v9398 = vor.u32 %v9396, %v9397
      %v9399 = vsel %vm4008, %v9394, %v9398
      %v9400 = vrot.slane %v9177, 2
      %v9401 = vrot.slane %v9173, 3
      %v9402 = vor.u32 %v9400, %v9401
      %v9403 = vsel %vm4008, %v9398, %v9402
      %v9404 = vrot.slane %v9185, 2
      %v9405 = vrot.slane %v9181, 3
      %v9406 = vor.u32 %v9404, %v9405
      %v9407 = vsel %vm4008, %v9402, %v9406
      %v9409 = vshrl.u32 %v9366, 16
      %v9411 = vrot.slane %v9409, 2
      %v9412 = vshll.u32 %v9366, 16
      %v9414 = vrot.slane %v9412, 3
      %v9415 = vor.u32 %v9411, %v9414
      %v9416 = vsel %vm4008, %v9406, %v9415
      %v9418 = vshrl.u32 %v9383, 16
      %v9420 = vrot.slane %v9418, 2
      %v9421 = vshll.u32 %v9383, 16
      %v9423 = vrot.slane %v9421, 3
      %v9424 = vor.u32 %v9420, %v9423
      %v9425 = vsel %vm4008, %v9415, %v9424
      %9426 = vrot.lane.b32.xlu0 %v9395, 64
      %v9427 = vpop.permute.xlu0 %9426
      %9428 = vrot.lane.b32.xlu0 %v9399, 64
      %v9429 = vpop.permute.xlu0 %9428
      %9430 = vrot.lane.b32.xlu0 %v9403, 64
      %v9431 = vpop.permute.xlu0 %9430
      %9432 = vrot.lane.b32.xlu0 %v9407, 64
      %v9433 = vpop.permute.xlu0 %9432
      %9434 = vrot.lane.b32.xlu0 %v9416, 64
      %v9435 = vpop.permute.xlu0 %9434
      %9436 = vrot.lane.b32.xlu0 %v9425, 64
      %v9437 = vpop.permute.xlu0 %9436
      %9438 = vrot.lane.b32.xlu0 %v9424, 64
      %v9439 = vpop.permute.xlu0 %9438
      %v9441 = vunpack.c.l.b16 %v9104
      %v9442 = vpack.c.b16 %v9121, %v9441
      %v9443 = vrot.slane %v9442, 3
      %v9444 = vrot.slane %v9133, 3
      %v9445 = vsel %vm4120, %v9443, %v9444
      %v9446 = vrot.slane %v9134, 3
      %v9447 = vsel %vm4120, %v9444, %v9446
      %v9448 = vrot.slane %v9135, 3
      %v9449 = vsel %vm4120, %v9446, %v9448
      %v9450 = vrot.slane %v9136, 3
      %v9451 = vsel %vm4120, %v9448, %v9450
      %v9452 = vrot.slane %v9366, 3
      %v9453 = vsel %vm4120, %v9450, %v9452
      %v9454 = vrot.slane %v9383, 3
      %v9455 = vsel %vm4120, %v9452, %v9454
      %v9457 = vsel %vm4134, %v9131, %v9197
      %v9460 = vsel %vm4134, %v9132, %v9199
      %v9463 = vsel %vm4134, %v9133, %v9201
      %v9466 = vsel %vm4134, %v9134, %v9203
      %v9469 = vsel %vm4134, %v9135, %v9205
      %v9472 = vsel %vm4134, %v9136, %v9207
      %v9476 = vsel %vm4134, %v9137, %v9209
      %v9480 = vsel %vm4134, %v9215, %v9253
      %v9484 = vsel %vm4134, %v9217, %v9255
      %v9488 = vsel %vm4134, %v9219, %v9257
      %v9492 = vsel %vm4134, %v9221, %v9259
      %v9496 = vsel %vm4134, %v9223, %v9261
      %v9500 = vsel %vm4134, %v9225, %v9263
      %v9504 = vsel %vm4134, %v9224, %v9265
      %v9508 = vsel %vm4134, %v9285, %v9348
      %v9512 = vsel %vm4134, %v9294, %v9350
      %v9516 = vsel %vm4134, %v9303, %v9352
      %v9520 = vsel %vm4134, %v9312, %v9354
      %v9524 = vsel %vm4134, %v9321, %v9356
      %v9528 = vsel %vm4134, %v9330, %v9358
      %v9532 = vsel %vm4134, %v9329, %v9360
      %v9536 = vsel %vm4134, %v9370, %v9427
      %v9540 = vsel %vm4134, %v9372, %v9429
      %v9544 = vsel %vm4134, %v9374, %v9431
      %v9548 = vsel %vm4134, %v9376, %v9433
      %v9552 = vsel %vm4134, %v9378, %v9435
      %v9556 = vsel %vm4134, %v9380, %v9437
      %v9560 = vsel %vm4134, %v9379, %v9439
      %v9562 = vld [vmem:[%s10] sm:$0xf]
      %v9563 = vld [vmem:[%s10 + $0x4] sm:$0xf]
      %v9564 = vld [vmem:[%s10 + $0x8] sm:$0xf]
      %v9565 = vld [vmem:[%s10 + $0xc] sm:$0xf]
      %v9566 = vld [vmem:[%s10 + $0x10] sm:$0xf]
      %v9567 = vld [vmem:[%s10 + $0x14] sm:$0xf]
      %v9568 = vld [vmem:[%s10 + $0x18] sm:$0xf]
      %v9569 = vld [vmem:[%s10 + $0x1c] sm:$0xf]
      %v9570 = vld [vmem:[%s10 + $0x20] sm:$0xf]
      %v9571 = vld [vmem:[%s10 + $0x24] sm:$0xf]
      %v9572 = vld [vmem:[%s10 + $0x28] sm:$0xf]
      %v9573 = vld [vmem:[%s10 + $0x2c] sm:$0xf]
      %v9574 = vld [vmem:[%s10 + $0x30] sm:$0xf]
      %v9575 = vld [vmem:[%s10 + $0x34] sm:$0xf]
      %v9576 = vld [vmem:[%s10 + $0x38] sm:$0xf]
      %v9577 = vld [vmem:[%s10 + $0x3c] sm:$0xf]
      %v9578 = vld [vmem:[%s10 + $0x40] sm:$0xf]
      %v9579 = vld [vmem:[%s10 + $0x44] sm:$0xf]
      %v9580 = vld [vmem:[%s10 + $0x48] sm:$0xf]
      %v9581 = vld [vmem:[%s10 + $0x4c] sm:$0xf]
      %v9582 = vld [vmem:[%s10 + $0x50] sm:$0xf]
      %v9583 = vld [vmem:[%s10 + $0x54] sm:$0xf]
      %v9584 = vld [vmem:[%s10 + $0x58] sm:$0xf]
      %v9585 = vld [vmem:[%s10 + $0x5c] sm:$0xf]
      %v9586 = vld [vmem:[%s10 + $0x60] sm:$0xf]
      %v9587 = vld [vmem:[%s10 + $0x64] sm:$0xf]
      %v9588 = vld [vmem:[%s10 + $0x68] sm:$0xf]
      %v9589 = vld [vmem:[%s10 + $0x6c] sm:$0xf]
      %v9590 = vld [vmem:[%s10 + $0x70] sm:$0xf]
      %v9591 = vld [vmem:[%s10 + $0x74] sm:$0xf]
      %v9592 = vld [vmem:[%s10 + $0x78] sm:$0xf]
      %v9593 = vld [vmem:[%s10 + $0x7c] sm:$0xf]
      %v9594 = vld [vmem:[%s10 + $0x80] sm:$0xf]
      %v9595 = vld [vmem:[%s10 + $0x84] sm:$0xf]
      %v9596 = vld [vmem:[%s10 + $0x88] sm:$0xf]
      %v9597 = vld [vmem:[%s10 + $0x8c] sm:$0xf]
      %v9598 = vld [vmem:[%s10 + $0x90] sm:$0xf]
      %v9599 = vld [vmem:[%s10 + $0x94] sm:$0xf]
      %v9600 = vld [vmem:[%s10 + $0x98] sm:$0xf]
      %v9601 = vld [vmem:[%s10 + $0x9c] sm:$0xf]
      %v9602 = vld [vmem:[%s10 + $0xa0] sm:$0xf]
      %v9603 = vld [vmem:[%s10 + $0xa4] sm:$0xf]
      %v9604 = vld [vmem:[%s10 + $0xa8] sm:$0xf]
      %v9605 = vld [vmem:[%s10 + $0xac] sm:$0xf]
      %v9606 = vld [vmem:[%s10 + $0xb0] sm:$0xf]
      %v9607 = vld [vmem:[%s10 + $0xb4] sm:$0xf]
      %v9608 = vld [vmem:[%s10 + $0xb8] sm:$0xf]
      %v9609 = vld [vmem:[%s10 + $0xbc] sm:$0xf]
      %v9610 = vld [vmem:[%s10 + $0xc0] sm:$0xf]
      %v9611 = vld [vmem:[%s10 + $0xc4] sm:$0xf]
      %v9612 = vld [vmem:[%s10 + $0xc8] sm:$0xf]
      %v9613 = vld [vmem:[%s10 + $0xcc] sm:$0xf]
      %v9614 = vld [vmem:[%s10 + $0xd0] sm:$0xf]
      %v9615 = vld [vmem:[%s10 + $0xd4] sm:$0xf]
      %v9616 = vld [vmem:[%s10 + $0xd8] sm:$0xf]
      %v9617 = vld [vmem:[%s10 + $0xdc] sm:$0xf]
      %v9618 = vld [vmem:[%s10 + $0xe0] sm:$0xf]
      %v9619 = vld [vmem:[%s10 + $0xe4] sm:$0xf]
      %v9620 = vld [vmem:[%s10 + $0xe8] sm:$0xf]
      %v9621 = vld [vmem:[%s10 + $0xec] sm:$0xf]
      %v9622 = vld [vmem:[%s10 + $0xf0] sm:$0xf]
      %v9623 = vld [vmem:[%s10 + $0xf4] sm:$0xf]
      %v9624 = vld [vmem:[%s10 + $0xf8] sm:$0xf]
      %v9625 = vld [vmem:[%s10 + $0xfc] sm:$0xf]
      %v9626 = vld [vmem:[%s10 + $0x100] sm:$0xf]
      %v9627 = vld [vmem:[%s10 + $0x104] sm:$0xf]
      %v9628 = vld [vmem:[%s10 + $0x108] sm:$0xf]
      %v9629 = vld [vmem:[%s10 + $0x10c] sm:$0xf]
      %v9630 = vld [vmem:[%s10 + $0x110] sm:$0xf]
      %v9631 = vld [vmem:[%s10 + $0x114] sm:$0xf]
      %v9632 = vld [vmem:[%s10 + $0x118] sm:$0xf]
      %v9633 = vld [vmem:[%s10 + $0x11c] sm:$0xf]
      %v9634 = vld [vmem:[%s11] sm:$0x1]
      %v9636 = vlaneseq
      %v9637 = vshrl.u32 %v9636, 7
      %v9638 = vsub.s32 0, %v9637
      %v9639 = vrot.slane %v9634, %v9638
      %v9713 = vunpack.c.l.b16 %v9562
      %v9714 = vunpack.c.l.b16 %v9563
      %v9715 = vunpack.c.l.b16 %v9564
      %v9716 = vunpack.c.l.b16 %v9565
      %v9717 = vunpack.c.l.b16 %v9566
      %v9718 = vunpack.c.l.b16 %v9567
      %v9719 = vunpack.c.l.b16 %v9568
      %v9720 = vunpack.c.l.b16 %v9569
      %v9721 = vunpack.c.l.b16 %v9570
      %v9722 = vunpack.c.l.b16 %v9571
      %v9723 = vunpack.c.l.b16 %v9572
      %v9724 = vunpack.c.l.b16 %v9573
      %v9725 = vunpack.c.l.b16 %v9574
      %v9726 = vunpack.c.l.b16 %v9575
      %v9727 = vunpack.c.l.b16 %v9576
      %v9728 = vunpack.c.l.b16 %v9577
      %v9729 = vunpack.c.l.b16 %v9578
      %v9730 = vunpack.c.l.b16 %v9579
      %v9731 = vunpack.c.l.b16 %v9580
      %v9732 = vunpack.c.l.b16 %v9581
      %v9733 = vunpack.c.l.b16 %v9582
      %v9734 = vunpack.c.l.b16 %v9583
      %v9735 = vunpack.c.l.b16 %v9584
      %v9736 = vunpack.c.l.b16 %v9585
      %v9737 = vunpack.c.l.b16 %v9586
      %v9738 = vunpack.c.l.b16 %v9587
      %v9739 = vunpack.c.l.b16 %v9588
      %v9740 = vunpack.c.l.b16 %v9589
      %v9741 = vunpack.c.l.b16 %v9590
      %v9742 = vunpack.c.l.b16 %v9591
      %v9743 = vunpack.c.l.b16 %v9592
      %v9744 = vunpack.c.l.b16 %v9593
      %v9745 = vunpack.c.l.b16 %v9594
      %v9746 = vunpack.c.l.b16 %v9595
      %v9747 = vunpack.c.l.b16 %v9596
      %v9748 = vunpack.c.l.b16 %v9597
      %v9749 = vunpack.c.l.b16 %v9598
      %v9750 = vunpack.c.l.b16 %v9599
      %v9751 = vunpack.c.l.b16 %v9600
      %v9752 = vunpack.c.l.b16 %v9601
      %v9753 = vunpack.c.l.b16 %v9602
      %v9754 = vunpack.c.l.b16 %v9603
      %v9755 = vunpack.c.l.b16 %v9604
      %v9756 = vunpack.c.l.b16 %v9605
      %v9757 = vunpack.c.l.b16 %v9606
      %v9758 = vunpack.c.l.b16 %v9607
      %v9759 = vunpack.c.l.b16 %v9608
      %v9760 = vunpack.c.l.b16 %v9609
      %v9761 = vunpack.c.l.b16 %v9610
      %v9762 = vunpack.c.l.b16 %v9611
      %v9763 = vunpack.c.l.b16 %v9612
      %v9764 = vunpack.c.l.b16 %v9613
      %v9765 = vunpack.c.l.b16 %v9614
      %v9766 = vunpack.c.l.b16 %v9615
      %v9767 = vunpack.c.l.b16 %v9616
      %v9768 = vunpack.c.l.b16 %v9617
      %v9769 = vunpack.c.l.b16 %v9618
      %v9770 = vunpack.c.l.b16 %v9619
      %v9771 = vunpack.c.l.b16 %v9620
      %v9772 = vunpack.c.l.b16 %v9621
      %v9773 = vunpack.c.l.b16 %v9622
      %v9774 = vunpack.c.l.b16 %v9623
      %v9775 = vunpack.c.l.b16 %v9624
      %v9776 = vunpack.c.l.b16 %v9625
      %v9777 = vunpack.c.l.b16 %v9626
      %v9778 = vunpack.c.l.b16 %v9627
      %v9779 = vunpack.c.l.b16 %v9628
      %v9780 = vunpack.c.l.b16 %v9629
      %v9781 = vunpack.c.l.b16 %v9630
      %v9782 = vunpack.c.l.b16 %v9631
      %v9783 = vunpack.c.l.b16 %v9632
      %v9784 = vunpack.c.l.b16 %v9633
      %v9785 = vpack.c.b16 %v9714, %v9713
      %v9786 = vpack.c.b16 %v9716, %v9715
      %v9787 = vpack.c.b16 %v9718, %v9717
      %v9788 = vpack.c.b16 %v9720, %v9719
      %v9789 = vpack.c.b16 %v9722, %v9721
      %v9790 = vpack.c.b16 %v9724, %v9723
      %v9791 = vpack.c.b16 %v9726, %v9725
      %v9792 = vpack.c.b16 %v9728, %v9727
      %v9793 = vpack.c.b16 %v9730, %v9729
      %v9794 = vpack.c.b16 %v9732, %v9731
      %v9795 = vpack.c.b16 %v9734, %v9733
      %v9796 = vpack.c.b16 %v9736, %v9735
      %v9797 = vpack.c.b16 %v9738, %v9737
      %v9798 = vpack.c.b16 %v9740, %v9739
      %v9799 = vpack.c.b16 %v9742, %v9741
      %v9800 = vpack.c.b16 %v9744, %v9743
      %v9801 = vpack.c.b16 %v9746, %v9745
      %v9802 = vpack.c.b16 %v9748, %v9747
      %v9803 = vpack.c.b16 %v9750, %v9749
      %v9804 = vpack.c.b16 %v9752, %v9751
      %v9805 = vpack.c.b16 %v9754, %v9753
      %v9806 = vpack.c.b16 %v9756, %v9755
      %v9807 = vpack.c.b16 %v9758, %v9757
      %v9808 = vpack.c.b16 %v9760, %v9759
      %v9809 = vpack.c.b16 %v9762, %v9761
      %v9810 = vpack.c.b16 %v9764, %v9763
      %v9811 = vpack.c.b16 %v9766, %v9765
      %v9812 = vpack.c.b16 %v9768, %v9767
      %v9813 = vpack.c.b16 %v9770, %v9769
      %v9814 = vpack.c.b16 %v9772, %v9771
      %v9815 = vpack.c.b16 %v9774, %v9773
      %v9816 = vpack.c.b16 %v9776, %v9775
      %v9817 = vpack.c.b16 %v9778, %v9777
      %v9818 = vpack.c.b16 %v9780, %v9779
      %v9819 = vpack.c.b16 %v9782, %v9781
      %v9820 = vpack.c.b16 %v9784, %v9783
      %v9858 = vsel %vm4134, %v9445, 0
      %v9861 = vsel %vm4134, %v9447, 0
      %v9864 = vsel %vm4134, %v9449, 0
      %v9867 = vsel %vm4134, %v9451, 0
      %v9870 = vsel %vm4134, %v9453, 0
      %v9873 = vsel %vm4134, %v9455, 0
      %v9876 = vsel %vm4134, %v9454, 0
      %9878 = vmatprep.subr.bf16.mxu0 0
      %9879 = vmatpush1.bf16.msra.mxu0 %v9785
      %9880 = vmatprep.subr.bf16.mxu0 0
      %9881 = vmatpush1.bf16.msra.mxu0 %v9786
      %9882 = vmatprep.subr.bf16.mxu0 0
      %9883 = vmatpush1.bf16.msra.mxu0 %v9787
      %9884 = vmatprep.subr.bf16.mxu0 0
      %9885 = vmatpush1.bf16.msra.mxu0 %v9788
      %9886 = vmatprep.subr.bf16.mxu0 0
      %9887 = vmatpush1.bf16.msra.mxu0 %v9789
      %9888 = vmatprep.subr.bf16.mxu0 0
      %9889 = vmatpush1.bf16.msra.mxu0 %v9790
      %9890 = vmatprep.subr.bf16.mxu0 0
      %9891 = vmatpush1.bf16.msra.mxu0 %v9791
      %9892 = vmatprep.subr.bf16.mxu0 0
      %9893 = vmatpush1.bf16.msra.mxu0 %v9792
      %9894 = vmatprep.subr.bf16.mxu0 0
      %9895 = vmatpush1.bf16.msra.mxu0 %v9793
      %9896 = vmatprep.subr.bf16.mxu0 0
      %9897 = vmatpush1.bf16.msra.mxu0 %v9794
      %9898 = vmatprep.subr.bf16.mxu0 0
      %9899 = vmatpush1.bf16.msra.mxu0 %v9795
      %9900 = vmatprep.subr.bf16.mxu0 0
      %9901 = vmatpush1.bf16.msra.mxu0 %v9796
      %9902 = vmatprep.subr.bf16.mxu0 0
      %9903 = vmatpush1.bf16.msra.mxu0 %v9797
      %9904 = vmatprep.subr.bf16.mxu0 0
      %9905 = vmatpush1.bf16.msra.mxu0 %v9798
      %9906 = vmatprep.subr.bf16.mxu0 0
      %9907 = vmatpush1.bf16.msra.mxu0 %v9799
      %9908 = vmatprep.subr.bf16.mxu0 0
      %9909 = vmatpush1.bf16.msra.mxu0 %v9800
      %9910 = vmatprep.mubr.bf16.mxu0 %v9480
      %9911 = vmatmul.mubr.bf16.gmra.mrb[0].mxu0 %v9457
      %v9912 = vpop.f32.mrb[0].mxu0
      %v9913 = vadd.f32 %v9639, %v9912
      %v9914 = vpop.f32.mrb[0].mxu0
      %v9915 = vpop.f32.mrb[0].mxu0
      %v9916 = vadd.f32 %v9639, %v9915
      %v9917 = vpop.f32.mrb[0].mxu0
      %9918 = vmatprep.mubr.bf16.mxu0 %v9484
      %9919 = vmatmul.mubr.bf16.gmra.mrb[0].mxu0 %v9460
      %v9920 = vpop.f32.mrb[0].mxu0
      %v9921 = vadd.f32 %v9639, %v9920
      %v9922 = vpop.f32.mrb[0].mxu0
      %v9923 = vpop.f32.mrb[0].mxu0
      %v9924 = vadd.f32 %v9639, %v9923
      %v9925 = vpop.f32.mrb[0].mxu0
      %9926 = vmatprep.mubr.bf16.mxu0 %v9488
      %9927 = vmatmul.mubr.bf16.gmra.mrb[0].mxu0 %v9463
      %v9928 = vpop.f32.mrb[0].mxu0
      %v9929 = vadd.f32 %v9639, %v9928
      %v9930 = vpop.f32.mrb[0].mxu0
      %v9931 = vpop.f32.mrb[0].mxu0
      %v9932 = vadd.f32 %v9639, %v9931
      %v9933 = vpop.f32.mrb[0].mxu0
      %9934 = vmatprep.mubr.bf16.mxu0 %v9492
      %9935 = vmatmul.mubr.bf16.gmra.mrb[0].mxu0 %v9466
      %v9936 = vpop.f32.mrb[0].mxu0
      %v9937 = vadd.f32 %v9639, %v9936
      %v9938 = vpop.f32.mrb[0].mxu0
      %v9939 = vpop.f32.mrb[0].mxu0
      %v9940 = vadd.f32 %v9639, %v9939
      %v9941 = vpop.f32.mrb[0].mxu0
      %9942 = vmatprep.mubr.bf16.mxu0 %v9496
      %9943 = vmatmul.mubr.bf16.gmra.mrb[0].mxu0 %v9469
      %v9944 = vpop.f32.mrb[0].mxu0
      %v9945 = vadd.f32 %v9639, %v9944
      %v9946 = vpop.f32.mrb[0].mxu0
      %v9947 = vpop.f32.mrb[0].mxu0
      %v9948 = vadd.f32 %v9639, %v9947
      %v9949 = vpop.f32.mrb[0].mxu0
      %9950 = vmatprep.mubr.bf16.mxu0 %v9500
      %9951 = vmatmul.mubr.bf16.gmra.mrb[0].mxu0 %v9472
      %v9952 = vpop.f32.mrb[0].mxu0
      %v9953 = vadd.f32 %v9639, %v9952
      %v9954 = vpop.f32.mrb[0].mxu0
      %v9955 = vpop.f32.mrb[0].mxu0
      %v9956 = vadd.f32 %v9639, %v9955
      %v9957 = vpop.f32.mrb[0].mxu0
      %9958 = vmatprep.mubr.bf16.mxu0 %v9504
      %9959 = vmatmul.mubr.bf16.gmra.mrb[0].mxu0 %v9476
      %v9960 = vpop.f32.mrb[0].mxu0
      %v9961 = vadd.f32 %v9639, %v9960
      %v9962 = vpop.f32.mrb[0].mxu0
      %v9963 = vpop.f32.mrb[0].mxu0
      %v9964 = vpop.f32.mrb[0].mxu0
      %9965 = vdwg.mxu0
      %9966 = vmatprep.subr.bf16.mxu0 0
      %9967 = vmatpush1.bf16.msra.mxu0 %v9801
      %9968 = vmatprep.subr.bf16.mxu0 0
      %9969 = vmatpush1.bf16.msra.mxu0 %v9802
      %9970 = vmatprep.subr.bf16.mxu0 0
      %9971 = vmatpush1.bf16.msra.mxu0 %v9803
      %9972 = vmatprep.subr.bf16.mxu0 0
      %9973 = vmatpush1.bf16.msra.mxu0 %v9804
      %9974 = vmatprep.subr.bf16.mxu0 0
      %9975 = vmatpush1.bf16.msra.mxu0 %v9805
      %9976 = vmatprep.subr.bf16.mxu0 0
      %9977 = vmatpush1.bf16.msra.mxu0 %v9806
      %9978 = vmatprep.subr.bf16.mxu0 0
      %9979 = vmatpush1.bf16.msra.mxu0 %v9807
      %9980 = vmatprep.subr.bf16.mxu0 0
      %9981 = vmatpush1.bf16.msra.mxu0 %v9808
      %9982 = vmatprep.subr.bf16.mxu0 0
      %9983 = vmatpush1.bf16.msra.mxu0 %v9809
      %9984 = vmatprep.subr.bf16.mxu0 0
      %9985 = vmatpush1.bf16.msra.mxu0 %v9810
      %9986 = vmatprep.subr.bf16.mxu0 0
      %9987 = vmatpush1.bf16.msra.mxu0 %v9811
      %9988 = vmatprep.subr.bf16.mxu0 0
      %9989 = vmatpush1.bf16.msra.mxu0 %v9812
      %9990 = vmatprep.subr.bf16.mxu0 0
      %9991 = vmatpush1.bf16.msra.mxu0 %v9813
      %9992 = vmatprep.subr.bf16.mxu0 0
      %9993 = vmatpush1.bf16.msra.mxu0 %v9814
      %9994 = vmatprep.subr.bf16.mxu0 0
      %9995 = vmatpush1.bf16.msra.mxu0 %v9815
      %9996 = vmatprep.subr.bf16.mxu0 0
      %9997 = vmatpush1.bf16.msra.mxu0 %v9816
      %9998 = vmatprep.mubr.bf16.mxu0 %v9536
      %9999 = vmatmul.mubr.bf16.gmra.mrb[0].mxu0 %v9508
      %v10000 = vpop.f32.mrb[0].mxu0
      %v10001 = vadd.f32 %v9913, %v10000
      %v10002 = vpop.f32.mrb[0].mxu0
      %v10003 = vpop.f32.mrb[0].mxu0
      %v10004 = vadd.f32 %v9916, %v10003
      %v10005 = vpop.f32.mrb[0].mxu0
      %10006 = vmatprep.mubr.bf16.mxu0 %v9540
      %10007 = vmatmul.mubr.bf16.gmra.mrb[0].mxu0 %v9512
      %v10008 = vpop.f32.mrb[0].mxu0
      %v10009 = vadd.f32 %v9921, %v10008
      %v10010 = vpop.f32.mrb[0].mxu0
      %v10011 = vpop.f32.mrb[0].mxu0
      %v10012 = vadd.f32 %v9924, %v10011
      %v10013 = vpop.f32.mrb[0].mxu0
      %10014 = vmatprep.mubr.bf16.mxu0 %v9544
      %10015 = vmatmul.mubr.bf16.gmra.mrb[0].mxu0 %v9516
      %v10016 = vpop.f32.mrb[0].mxu0
      %v10017 = vadd.f32 %v9929, %v10016
      %v10018 = vpop.f32.mrb[0].mxu0
      %v10019 = vpop.f32.mrb[0].mxu0
      %v10020 = vadd.f32 %v9932, %v10019
      %v10021 = vpop.f32.mrb[0].mxu0
      %10022 = vmatprep.mubr.bf16.mxu0 %v9548
      %10023 = vmatmul.mubr.bf16.gmra.mrb[0].mxu0 %v9520
      %v10024 = vpop.f32.mrb[0].mxu0
      %v10025 = vadd.f32 %v9937, %v10024
      %v10026 = vpop.f32.mrb[0].mxu0
      %v10027 = vpop.f32.mrb[0].mxu0
      %v10028 = vadd.f32 %v9940, %v10027
      %v10029 = vpop.f32.mrb[0].mxu0
      %10030 = vmatprep.mubr.bf16.mxu0 %v9552
      %10031 = vmatmul.mubr.bf16.gmra.mrb[0].mxu0 %v9524
      %v10032 = vpop.f32.mrb[0].mxu0
      %v10033 = vadd.f32 %v9945, %v10032
      %v10034 = vpop.f32.mrb[0].mxu0
      %v10035 = vpop.f32.mrb[0].mxu0
      %v10036 = vadd.f32 %v9948, %v10035
      %v10037 = vpop.f32.mrb[0].mxu0
      %10038 = vmatprep.mubr.bf16.mxu0 %v9556
      %10039 = vmatmul.mubr.bf16.gmra.mrb[0].mxu0 %v9528
      %v10040 = vpop.f32.mrb[0].mxu0
      %v10041 = vadd.f32 %v9953, %v10040
      %v10042 = vpop.f32.mrb[0].mxu0
      %v10043 = vpop.f32.mrb[0].mxu0
      %v10044 = vadd.f32 %v9956, %v10043
      %v10045 = vpop.f32.mrb[0].mxu0
      %10046 = vmatprep.mubr.bf16.mxu0 %v9560
      %10047 = vmatmul.mubr.bf16.gmra.mrb[0].mxu0 %v9532
      %v10048 = vpop.f32.mrb[0].mxu0
      %v10049 = vadd.f32 %v9961, %v10048
      %v10050 = vpop.f32.mrb[0].mxu0
      %v10051 = vpop.f32.mrb[0].mxu0
      %v10052 = vpop.f32.mrb[0].mxu0
      %10053 = vdwg.mxu0
      %10054 = vmatprep.subr.bf16.mxu0 0
      %10055 = vmatpush1.bf16.msra.mxu0 %v9817
      %10056 = vmatprep.subr.bf16.mxu0 0
      %10057 = vmatpush1.bf16.msra.mxu0 %v9818
      %10058 = vmatprep.subr.bf16.mxu0 0
      %10059 = vmatpush1.bf16.msra.mxu0 %v9819
      %10060 = vmatprep.subr.bf16.mxu0 0
      %10061 = vmatpush1.bf16.msra.mxu0 %v9820
      %10062 = vmatprep.subr.bf16.mxu0 0
      %10063 = vmatpush1.bf16.msra.mxu0 0
      %10064 = vmatprep.subr.bf16.mxu0 0
      %10065 = vmatpush1.bf16.msra.mxu0 0
      %10066 = vmatprep.subr.bf16.mxu0 0
      %10067 = vmatpush1.bf16.msra.mxu0 0
      %10068 = vmatprep.subr.bf16.mxu0 0
      %10069 = vmatpush1.bf16.msra.mxu0 0
      %10070 = vmatprep.subr.bf16.mxu0 0
      %10071 = vmatpush1.bf16.msra.mxu0 0
      %10072 = vmatprep.subr.bf16.mxu0 0
      %10073 = vmatpush1.bf16.msra.mxu0 0
      %10074 = vmatprep.subr.bf16.mxu0 0
      %10075 = vmatpush1.bf16.msra.mxu0 0
      %10076 = vmatprep.subr.bf16.mxu0 0
      %10077 = vmatpush1.bf16.msra.mxu0 0
      %10078 = vmatprep.subr.bf16.mxu0 0
      %10079 = vmatpush1.bf16.msra.mxu0 0
      %10080 = vmatprep.subr.bf16.mxu0 0
      %10081 = vmatpush1.bf16.msra.mxu0 0
      %10082 = vmatprep.subr.bf16.mxu0 0
      %10083 = vmatpush1.bf16.msra.mxu0 0
      %10084 = vmatprep.subr.bf16.mxu0 0
      %10085 = vmatpush1.bf16.msra.mxu0 0
      %10086 = vmatprep.mubr.bf16.mxu0 0
      %10087 = vmatmul.mubr.bf16.gmra.mrb[0].mxu0 %v9858
      %v10088 = vpop.f32.mrb[0].mxu0
      %v10089 = vadd.f32 %v10001, %v10088
      %v10090 = vpop.f32.mrb[0].mxu0
      %v10091 = vpop.f32.mrb[0].mxu0
      %v10092 = vadd.f32 %v10004, %v10091
      %v10093 = vpop.f32.mrb[0].mxu0
      %10094 = vmatprep.mubr.bf16.mxu0 0
      %10095 = vmatmul.mubr.bf16.gmra.mrb[0].mxu0 %v9861
      %v10096 = vpop.f32.mrb[0].mxu0
      %v10097 = vadd.f32 %v10009, %v10096
      %v10098 = vpop.f32.mrb[0].mxu0
      %v10099 = vpop.f32.mrb[0].mxu0
      %v10100 = vadd.f32 %v10012, %v10099
      %v10101 = vpop.f32.mrb[0].mxu0
      %10102 = vmatprep.mubr.bf16.mxu0 0
      %10103 = vmatmul.mubr.bf16.gmra.mrb[0].mxu0 %v9864
      %v10104 = vpop.f32.mrb[0].mxu0
      %v10105 = vadd.f32 %v10017, %v10104
      %v10106 = vpop.f32.mrb[0].mxu0
      %v10107 = vpop.f32.mrb[0].mxu0
      %v10108 = vadd.f32 %v10020, %v10107
      %v10109 = vpop.f32.mrb[0].mxu0
      %10110 = vmatprep.mubr.bf16.mxu0 0
      %10111 = vmatmul.mubr.bf16.gmra.mrb[0].mxu0 %v9867
      %v10112 = vpop.f32.mrb[0].mxu0
      %v10113 = vadd.f32 %v10025, %v10112
      %v10114 = vpop.f32.mrb[0].mxu0
      %v10115 = vpop.f32.mrb[0].mxu0
      %v10116 = vadd.f32 %v10028, %v10115
      %v10117 = vpop.f32.mrb[0].mxu0
      %10118 = vmatprep.mubr.bf16.mxu0 0
      %10119 = vmatmul.mubr.bf16.gmra.mrb[0].mxu0 %v9870
      %v10120 = vpop.f32.mrb[0].mxu0
      %v10121 = vadd.f32 %v10033, %v10120
      %v10122 = vpop.f32.mrb[0].mxu0
      %v10123 = vpop.f32.mrb[0].mxu0
      %v10124 = vadd.f32 %v10036, %v10123
      %v10125 = vpop.f32.mrb[0].mxu0
      %10126 = vmatprep.mubr.bf16.mxu0 0
      %10127 = vmatmul.mubr.bf16.gmra.mrb[0].mxu0 %v9873
      %v10128 = vpop.f32.mrb[0].mxu0
      %v10129 = vadd.f32 %v10041, %v10128
      %v10130 = vpop.f32.mrb[0].mxu0
      %v10131 = vpop.f32.mrb[0].mxu0
      %v10132 = vadd.f32 %v10044, %v10131
      %v10133 = vpop.f32.mrb[0].mxu0
      %10134 = vmatprep.mubr.bf16.mxu0 0
      %10135 = vmatmul.mubr.bf16.gmra.mrb[0].mxu0 %v9876
      %v10136 = vpop.f32.mrb[0].mxu0
      %v10137 = vadd.f32 %v10049, %v10136
      %v10138 = vpop.f32.mrb[0].mxu0
      %v10139 = vpop.f32.mrb[0].mxu0
      %v10140 = vpop.f32.mrb[0].mxu0
      %10141 = vdwg.mxu0
      %10142 = vst.msk [vmem:[#allocation4] sm:$0xff] %vm4134, %v10089
      %10143 = vst.msk [vmem:[#allocation4 + $0x8] sm:$0xff] %vm4134, %v10092
      %10144 = vst.msk [vmem:[#allocation4 + $0x10] sm:$0xff] %vm4134, %v10097
      %10145 = vst.msk [vmem:[#allocation4 + $0x18] sm:$0xff] %vm4134, %v10100
      %10146 = vst.msk [vmem:[#allocation4 + $0x20] sm:$0xff] %vm4134, %v10105
      %10147 = vst.msk [vmem:[#allocation4 + $0x28] sm:$0xff] %vm4134, %v10108
      %10148 = vst.msk [vmem:[#allocation4 + $0x30] sm:$0xff] %vm4134, %v10113
      %10149 = vst.msk [vmem:[#allocation4 + $0x38] sm:$0xff] %vm4134, %v10116
      %10150 = vst.msk [vmem:[#allocation4 + $0x40] sm:$0xff] %vm4134, %v10121
      %10151 = vst.msk [vmem:[#allocation4 + $0x48] sm:$0xff] %vm4134, %v10124
      %10152 = vst.msk [vmem:[#allocation4 + $0x50] sm:$0xff] %vm4134, %v10129
      %10153 = vst.msk [vmem:[#allocation4 + $0x58] sm:$0xff] %vm4134, %v10132
      %10154 = vst.msk [vmem:[#allocation4 + $0x60] sm:$0xf] %vm617, %v10137
      %v10155 = vld [vmem:[#allocation4 + $0xb] sm:$0x1]
      %v10156 = vld [vmem:[#allocation4 + $0xc] sm:$0x1]
      %v10157 = vld [vmem:[#allocation4 + $0x15] sm:$0x1]
      %v10158 = vld [vmem:[#allocation4 + $0x16] sm:$0x1]
      %v10159 = vmax.f32 %v10155, %v10156
      %v10160 = vmax.f32 %v10157, %v10158
      %v10161 = vmax.f32 %v10159, %v10160
      %v10162 = vmax.f32 %v10161, 0.0
      %v10163 = vld [vmem:[#allocation4 + $0xd] sm:$0x1]
      %v10164 = vld [vmem:[#allocation4 + $0xe] sm:$0x1]
      %v10165 = vld [vmem:[#allocation4 + $0x17] sm:$0x1]
      %v10166 = vld [vmem:[#allocation4 + $0x18] sm:$0x1]
      %v10167 = vmax.f32 %v10163, %v10164
      %v10168 = vmax.f32 %v10165, %v10166
      %v10169 = vmax.f32 %v10167, %v10168
      %v10170 = vmax.f32 %v10169, 0.0
      %v10171 = vld [vmem:[#allocation4 + $0xf] sm:$0x1]
      %v10172 = vld [vmem:[#allocation4 + $0x10] sm:$0x1]
      %v10173 = vld [vmem:[#allocation4 + $0x19] sm:$0x1]
      %v10174 = vld [vmem:[#allocation4 + $0x1a] sm:$0x1]
      %v10175 = vmax.f32 %v10171, %v10172
      %v10176 = vmax.f32 %v10173, %v10174
      %v10177 = vmax.f32 %v10175, %v10176
      %v10178 = vmax.f32 %v10177, 0.0
      %v10179 = vld [vmem:[#allocation4 + $0x11] sm:$0x1]
      %v10180 = vld [vmem:[#allocation4 + $0x12] sm:$0x1]
      %v10181 = vld [vmem:[#allocation4 + $0x1b] sm:$0x1]
      %v10182 = vld [vmem:[#allocation4 + $0x1c] sm:$0x1]
      %v10183 = vmax.f32 %v10179, %v10180
      %v10184 = vmax.f32 %v10181, %v10182
      %v10185 = vmax.f32 %v10183, %v10184
      %v10186 = vmax.f32 %v10185, 0.0
      %v10187 = vld [vmem:[#allocation4 + $0x1f] sm:$0x1]
      %v10188 = vld [vmem:[#allocation4 + $0x20] sm:$0x1]
      %v10189 = vld [vmem:[#allocation4 + $0x29] sm:$0x1]
      %v10190 = vld [vmem:[#allocation4 + $0x2a] sm:$0x1]
      %v10191 = vmax.f32 %v10187, %v10188
      %v10192 = vmax.f32 %v10189, %v10190
      %v10193 = vmax.f32 %v10191, %v10192
      %v10194 = vmax.f32 %v10193, 0.0
      %v10195 = vld [vmem:[#allocation4 + $0x21] sm:$0x1]
      %v10196 = vld [vmem:[#allocation4 + $0x22] sm:$0x1]
      %v10197 = vld [vmem:[#allocation4 + $0x2b] sm:$0x1]
      %v10198 = vld [vmem:[#allocation4 + $0x2c] sm:$0x1]
      %v10199 = vmax.f32 %v10195, %v10196
      %v10200 = vmax.f32 %v10197, %v10198
      %v10201 = vmax.f32 %v10199, %v10200
      %v10202 = vmax.f32 %v10201, 0.0
      %v10203 = vld [vmem:[#allocation4 + $0x23] sm:$0x1]
      %v10204 = vld [vmem:[#allocation4 + $0x24] sm:$0x1]
      %v10205 = vld [vmem:[#allocation4 + $0x2d] sm:$0x1]
      %v10206 = vld [vmem:[#allocation4 + $0x2e] sm:$0x1]
      %v10207 = vmax.f32 %v10203, %v10204
      %v10208 = vmax.f32 %v10205, %v10206
      %v10209 = vmax.f32 %v10207, %v10208
      %v10210 = vmax.f32 %v10209, 0.0
      %v10211 = vld [vmem:[#allocation4 + $0x25] sm:$0x1]
      %v10212 = vld [vmem:[#allocation4 + $0x26] sm:$0x1]
      %v10213 = vld [vmem:[#allocation4 + $0x2f] sm:$0x1]
      %v10214 = vld [vmem:[#allocation4 + $0x30] sm:$0x1]
      %v10215 = vmax.f32 %v10211, %v10212
      %v10216 = vmax.f32 %v10213, %v10214
      %v10217 = vmax.f32 %v10215, %v10216
      %v10218 = vmax.f32 %v10217, 0.0
      %v10219 = vld [vmem:[#allocation4 + $0x33] sm:$0x1]
      %v10220 = vld [vmem:[#allocation4 + $0x34] sm:$0x1]
      %v10221 = vld [vmem:[#allocation4 + $0x3d] sm:$0x1]
      %v10222 = vld [vmem:[#allocation4 + $0x3e] sm:$0x1]
      %v10223 = vmax.f32 %v10219, %v10220
      %v10224 = vmax.f32 %v10221, %v10222
      %v10225 = vmax.f32 %v10223, %v10224
      %v10226 = vmax.f32 %v10225, 0.0
      %v10227 = vld [vmem:[#allocation4 + $0x35] sm:$0x1]
      %v10228 = vld [vmem:[#allocation4 + $0x36] sm:$0x1]
      %v10229 = vld [vmem:[#allocation4 + $0x3f] sm:$0x1]
      %v10230 = vld [vmem:[#allocation4 + $0x40] sm:$0x1]
      %v10231 = vmax.f32 %v10227, %v10228
      %v10232 = vmax.f32 %v10229, %v10230
      %v10233 = vmax.f32 %v10231, %v10232
      %v10234 = vmax.f32 %v10233, 0.0
      %v10235 = vld [vmem:[#allocation4 + $0x37] sm:$0x1]
      %v10236 = vld [vmem:[#allocation4 + $0x38] sm:$0x1]
      %v10237 = vld [vmem:[#allocation4 + $0x41] sm:$0x1]
      %v10238 = vld [vmem:[#allocation4 + $0x42] sm:$0x1]
      %v10239 = vmax.f32 %v10235, %v10236
      %v10240 = vmax.f32 %v10237, %v10238
      %v10241 = vmax.f32 %v10239, %v10240
      %v10242 = vmax.f32 %v10241, 0.0
      %v10243 = vld [vmem:[#allocation4 + $0x39] sm:$0x1]
      %v10244 = vld [vmem:[#allocation4 + $0x3a] sm:$0x1]
      %v10245 = vld [vmem:[#allocation4 + $0x43] sm:$0x1]
      %v10246 = vld [vmem:[#allocation4 + $0x44] sm:$0x1]
      %v10247 = vmax.f32 %v10243, %v10244
      %v10248 = vmax.f32 %v10245, %v10246
      %v10249 = vmax.f32 %v10247, %v10248
      %v10250 = vmax.f32 %v10249, 0.0
      %v10251 = vld [vmem:[#allocation4 + $0x47] sm:$0x1]
      %v10252 = vld [vmem:[#allocation4 + $0x48] sm:$0x1]
      %v10253 = vld [vmem:[#allocation4 + $0x51] sm:$0x1]
      %v10254 = vld [vmem:[#allocation4 + $0x52] sm:$0x1]
      %v10255 = vmax.f32 %v10251, %v10252
      %v10256 = vmax.f32 %v10253, %v10254
      %v10257 = vmax.f32 %v10255, %v10256
      %v10258 = vmax.f32 %v10257, 0.0
      %v10259 = vld [vmem:[#allocation4 + $0x49] sm:$0x1]
      %v10260 = vld [vmem:[#allocation4 + $0x4a] sm:$0x1]
      %v10261 = vld [vmem:[#allocation4 + $0x53] sm:$0x1]
      %v10262 = vld [vmem:[#allocation4 + $0x54] sm:$0x1]
      %v10263 = vmax.f32 %v10259, %v10260
      %v10264 = vmax.f32 %v10261, %v10262
      %v10265 = vmax.f32 %v10263, %v10264
      %v10266 = vmax.f32 %v10265, 0.0
      %v10267 = vld [vmem:[#allocation4 + $0x4b] sm:$0x1]
      %v10268 = vld [vmem:[#allocation4 + $0x4c] sm:$0x1]
      %v10269 = vld [vmem:[#allocation4 + $0x55] sm:$0x1]
      %v10270 = vld [vmem:[#allocation4 + $0x56] sm:$0x1]
      %v10271 = vmax.f32 %v10267, %v10268
      %v10272 = vmax.f32 %v10269, %v10270
      %v10273 = vmax.f32 %v10271, %v10272
      %v10274 = vmax.f32 %v10273, 0.0
      %v10275 = vld [vmem:[#allocation4 + $0x4d] sm:$0x1]
      %v10276 = vld [vmem:[#allocation4 + $0x4e] sm:$0x1]
      %v10277 = vld [vmem:[#allocation4 + $0x57] sm:$0x1]
      %v10278 = vld [vmem:[#allocation4 + $0x58] sm:$0x1]
      %v10279 = vmax.f32 %v10275, %v10276
      %v10280 = vmax.f32 %v10277, %v10278
      %v10281 = vmax.f32 %v10279, %v10280
      %v10282 = vmax.f32 %v10281, 0.0
      %v10283 = vpack.c.bf16 %v10162, %v10162
      %v10285 = vunpack.c.l.b16 %v10283
      %v10286 = vpack.c.b16 %v10285, %v10285
      %v10288 = vshll.u32 %v10286, 16
      %v10290 = vrot.slane %v10288, 6
      %vm10292 = vcmask 518146
      %vm10293 = vmand %vm10292, %vm641
      %v10294 = vld [vmem:[#allocation3] sm:$0x4]
      %v10295 = vsel %vm10293, %v10290, %v10294
      %10296 = vst [vmem:[#allocation3] sm:$0x4] %v10295
      %v10297 = vpack.c.bf16 %v10170, %v10170
      %v10299 = vunpack.c.l.b16 %v10297
      %v10300 = vpack.c.b16 %v10299, %v10299
      %v10301 = vrot.slane %v10300, 5
      %vm10303 = vmand %vm625, %vm1073
      %v10304 = vld [vmem:[#allocation3] sm:$0x8]
      %v10305 = vsel %vm10303, %v10301, %v10304
      %10306 = vst [vmem:[#allocation3] sm:$0x8] %v10305
      %v10307 = vpack.c.bf16 %v10178, %v10178
      %v10309 = vunpack.c.l.b16 %v10307
      %v10310 = vpack.c.b16 %v10309, %v10309
      %v10312 = vshll.u32 %v10310, 16
      %v10314 = vrot.slane %v10312, 5
      %v10316 = vld [vmem:[#allocation3] sm:$0x8]
      %v10317 = vsel %vm627, %v10314, %v10316
      %10318 = vst [vmem:[#allocation3] sm:$0x8] %v10317
      %v10319 = vpack.c.bf16 %v10186, %v10186
      %vm10320 = vcmask 516096
      %vm10321 = vmand %vm10320, %vm1444
      %v10322 = vld [vmem:[#allocation3 + $0x4] sm:$0x1]
      %v10323 = vsel %vm10321, %v10319, %v10322
      %10324 = vst [vmem:[#allocation3 + $0x4] sm:$0x1] %v10323
      %v10325 = vpack.c.bf16 %v10194, %v10194
      %v10327 = vunpack.c.l.b16 %v10325
      %v10328 = vpack.c.b16 %v10327, %v10327
      %v10330 = vshll.u32 %v10328, 16
      %vm10333 = vsmask.f32 7938
      %vm10334 = vmand %vm10320, %vm10333
      %v10335 = vld [vmem:[#allocation3 + $0x4] sm:$0x1]
      %v10336 = vsel %vm10334, %v10330, %v10335
      %10337 = vst [vmem:[#allocation3 + $0x4] sm:$0x1] %v10336
      %v10338 = vpack.c.bf16 %v10202, %v10202
      %v10340 = vunpack.c.l.b16 %v10338
      %v10341 = vpack.c.b16 %v10340, %v10340
      %v10342 = vrot.slane %v10341, 7
      %vm10344 = vcmask 517121
      %vm10345 = vmand %vm10344, %vm620
      %v10346 = vld [vmem:[#allocation3 + $0x4] sm:$0x2]
      %v10347 = vsel %vm10345, %v10342, %v10346
      %10348 = vst [vmem:[#allocation3 + $0x4] sm:$0x2] %v10347
      %v10349 = vpack.c.bf16 %v10210, %v10210
      %v10351 = vunpack.c.l.b16 %v10349
      %v10352 = vpack.c.b16 %v10351, %v10351
      %v10354 = vshll.u32 %v10352, 16
      %v10356 = vrot.slane %v10354, 7
      %vm10358 = vmand %vm10344, %vm1056
      %v10359 = vld [vmem:[#allocation3 + $0x4] sm:$0x2]
      %v10360 = vsel %vm10358, %v10356, %v10359
      %10361 = vst [vmem:[#allocation3 + $0x4] sm:$0x2] %v10360
      %v10362 = vpack.c.bf16 %v10218, %v10218
      %v10364 = vunpack.c.l.b16 %v10362
      %v10365 = vpack.c.b16 %v10364, %v10364
      %v10366 = vrot.slane %v10365, 6
      %vm10368 = vmand %vm10292, %vm635
      %v10369 = vld [vmem:[#allocation3 + $0x4] sm:$0x4]
      %v10370 = vsel %vm10368, %v10366, %v10369
      %10371 = vst [vmem:[#allocation3 + $0x4] sm:$0x4] %v10370
      %v10372 = vpack.c.bf16 %v10226, %v10226
      %v10374 = vunpack.c.l.b16 %v10372
      %v10375 = vpack.c.b16 %v10374, %v10374
      %v10377 = vshll.u32 %v10375, 16
      %v10379 = vrot.slane %v10377, 6
      %v10381 = vld [vmem:[#allocation3 + $0x4] sm:$0x4]
      %v10382 = vsel %vm10293, %v10379, %v10381
      %10383 = vst [vmem:[#allocation3 + $0x4] sm:$0x4] %v10382
      %v10384 = vpack.c.bf16 %v10234, %v10234
      %v10386 = vunpack.c.l.b16 %v10384
      %v10387 = vpack.c.b16 %v10386, %v10386
      %v10388 = vrot.slane %v10387, 5
      %v10390 = vld [vmem:[#allocation3 + $0x4] sm:$0x8]
      %v10391 = vsel %vm10303, %v10388, %v10390
      %10392 = vst [vmem:[#allocation3 + $0x4] sm:$0x8] %v10391
      %v10393 = vpack.c.bf16 %v10242, %v10242
      %v10395 = vunpack.c.l.b16 %v10393
      %v10396 = vpack.c.b16 %v10395, %v10395
      %v10398 = vshll.u32 %v10396, 16
      %v10400 = vrot.slane %v10398, 5
      %v10402 = vld [vmem:[#allocation3 + $0x4] sm:$0x8]
      %v10403 = vsel %vm627, %v10400, %v10402
      %10404 = vst [vmem:[#allocation3 + $0x4] sm:$0x8] %v10403
      %v10405 = vpack.c.bf16 %v10250, %v10250
      %v10406 = vld [vmem:[#allocation3 + $0x8] sm:$0x1]
      %v10407 = vsel %vm10321, %v10405, %v10406
      %10408 = vst [vmem:[#allocation3 + $0x8] sm:$0x1] %v10407
      %v10409 = vpack.c.bf16 %v10258, %v10258
      %v10411 = vunpack.c.l.b16 %v10409
      %v10412 = vpack.c.b16 %v10411, %v10411
      %v10414 = vshll.u32 %v10412, 16
      %v10417 = vld [vmem:[#allocation3 + $0x8] sm:$0x1]
      %v10418 = vsel %vm10334, %v10414, %v10417
      %10419 = vst [vmem:[#allocation3 + $0x8] sm:$0x1] %v10418
      %v10420 = vpack.c.bf16 %v10266, %v10266
      %v10422 = vunpack.c.l.b16 %v10420
      %v10423 = vpack.c.b16 %v10422, %v10422
      %v10424 = vrot.slane %v10423, 7
      %v10426 = vld [vmem:[#allocation3 + $0x8] sm:$0x2]
      %v10427 = vsel %vm10345, %v10424, %v10426
      %10428 = vst [vmem:[#allocation3 + $0x8] sm:$0x2] %v10427
      %v10429 = vpack.c.bf16 %v10274, %v10274
      %v10431 = vunpack.c.l.b16 %v10429
      %v10432 = vpack.c.b16 %v10431, %v10431
      %v10434 = vshll.u32 %v10432, 16
      %v10436 = vrot.slane %v10434, 7
      %v10438 = vld [vmem:[#allocation3 + $0x8] sm:$0x2]
      %v10439 = vsel %vm10358, %v10436, %v10438
      %10440 = vst [vmem:[#allocation3 + $0x8] sm:$0x2] %v10439
      %v10441 = vpack.c.bf16 %v10282, %v10282
      %v10443 = vunpack.c.l.b16 %v10441
      %v10444 = vpack.c.b16 %v10443, %v10443
      %v10445 = vrot.slane %v10444, 6
      %v10447 = vld [vmem:[#allocation3 + $0x8] sm:$0x4]
      %v10448 = vsel %vm10368, %v10445, %v10447
      %10449 = vst [vmem:[#allocation3 + $0x8] sm:$0x4] %v10448
      %v10450 = vld [vmem:[#allocation3] sm:$0xf]
      %v10451 = vld [vmem:[#allocation3 + $0x4] sm:$0xf]
      %v10452 = vld [vmem:[#allocation3 + $0x8] sm:$0x1]
      %v10453 = vld [vmem:[#allocation3] sm:$0xe]
      %v10454 = vld [vmem:[#allocation3] sm:$0xc]
      %v10455 = vld [vmem:[#allocation3 + $0x8] sm:$0x3]
      %v10456 = vld [vmem:[#allocation3 + $0x8] sm:$0x7]
      %v10457 = vld [vmem:[#allocation3] sm:$0x8]
      %v10458 = vld [vmem:[#allocation3 + $0x8] sm:$0xf]
      %v10459 = vld [vmem:[#allocation3 + $0xc] sm:$0x1]
      %v10460 = vld [vmem:[#allocation3 + $0x4] sm:$0xe]
      %v10463 = vunpack.c.l.b16 %v10450
      %v10464 = vunpack.c.l.b16 %v10451
      %v10465 = vpack.c.b16 %v10464, %v10463
      %v10467 = vunpack.c.l.b16 %v10452
      %v10468 = vpack.c.b16 %v10467, %v10467
      %v10470 = vshrl.u32 %v10465, 16
      %v10472 = vshll.u32 %v10465, 16
      %v10474 = vrot.slane %v10472, 1
      %v10475 = vor.u32 %v10470, %v10474
      %v10477 = vshll.u32 %v10468, 16
      %v10479 = vrot.slane %v10477, 1
      %v10480 = vsel %vm3593, %v10475, %v10479
      %10481 = vrot.lane.b32.xlu0 %v10480, 64
      %v10482 = vpop.permute.xlu0 %10481
      %v10484 = vunpack.c.l.b16 %v10453
      %v10485 = vpack.c.b16 %v10464, %v10484
      %v10486 = vrot.slane %v10485, 1
      %v10487 = vrot.slane %v10468, 1
      %v10488 = vsel %vm3696, %v10486, %v10487
      %v10491 = vunpack.c.l.b16 %v10454
      %v10492 = vunpack.c.l.b16 %v10455
      %v10493 = vpack.c.b16 %v10464, %v10491
      %v10494 = vpack.c.b16 %v10492, %v10492
      %v10495 = vrot.slane %v10493, 2
      %v10496 = vrot.slane %v10494, 2
      %v10497 = vsel %vm3899, %v10495, %v10496
      %10498 = vrot.lane.b32.xlu0 %v10497, 64
      %v10499 = vpop.permute.xlu0 %10498
      %v10501 = vunpack.c.l.b16 %v10456
      %v10502 = vpack.c.b16 %v10501, %v10501
      %v10504 = vshrl.u32 %v10493, 16
      %v10506 = vrot.slane %v10504, 2
      %v10507 = vshll.u32 %v10493, 16
      %v10509 = vrot.slane %v10507, 3
      %v10510 = vor.u32 %v10506, %v10509
      %v10512 = vshrl.u32 %v10502, 16
      %v10514 = vrot.slane %v10512, 2
      %v10515 = vshll.u32 %v10502, 16
      %v10517 = vrot.slane %v10515, 3
      %v10518 = vor.u32 %v10514, %v10517
      %v10519 = vsel %vm4008, %v10510, %v10518
      %v10521 = vunpack.c.l.b16 %v10457
      %v10522 = vpack.c.b16 %v10464, %v10521
      %v10523 = vrot.slane %v10522, 3
      %v10524 = vrot.slane %v10502, 3
      %v10525 = vsel %vm4120, %v10523, %v10524
      %10526 = vrot.lane.b32.xlu0 %v10525, 64
      %v10527 = vpop.permute.xlu0 %10526
      %v10529 = vunpack.c.l.b16 %v10458
      %v10530 = vpack.c.b16 %v10529, %v10464
      %v10532 = vunpack.c.l.b16 %v10459
      %v10533 = vpack.c.b16 %v10532, %v10532
      %v10535 = vshrl.u32 %v10530, 16
      %v10537 = vshll.u32 %v10530, 16
      %v10539 = vrot.slane %v10537, 1
      %v10540 = vor.u32 %v10535, %v10539
      %v10542 = vshll.u32 %v10533, 16
      %v10544 = vrot.slane %v10542, 1
      %v10545 = vsel %vm3593, %v10540, %v10544
      %10546 = vrot.lane.b32.xlu0 %v10545, 64
      %v10547 = vpop.permute.xlu0 %10546
      %v10549 = vunpack.c.l.b16 %v10460
      %v10550 = vpack.c.b16 %v10529, %v10549
      %v10551 = vrot.slane %v10550, 1
      %v10552 = vrot.slane %v10533, 1
      %v10553 = vsel %vm3696, %v10551, %v10552
      %v10555 = vsel %vm4134, %v10465, %v10482
      %v10559 = vsel %vm4134, %v10488, %v10499
      %v10563 = vsel %vm4134, %v10519, %v10527
      %v10566 = vsel %vm4134, %v10530, %v10547
      %v10568 = vld [vmem:[%s12] sm:$0xf]
      %v10569 = vld [vmem:[%s12 + $0x4] sm:$0xf]
      %v10570 = vld [vmem:[%s12 + $0x8] sm:$0xf]
      %v10571 = vld [vmem:[%s12 + $0xc] sm:$0xf]
      %v10572 = vld [vmem:[%s12 + $0x10] sm:$0xf]
      %v10573 = vld [vmem:[%s12 + $0x14] sm:$0xf]
      %v10574 = vld [vmem:[%s12 + $0x18] sm:$0xf]
      %v10575 = vld [vmem:[%s12 + $0x1c] sm:$0xf]
      %v10576 = vld [vmem:[%s12 + $0x20] sm:$0xf]
      %v10577 = vld [vmem:[%s12 + $0x24] sm:$0xf]
      %v10578 = vld [vmem:[%s12 + $0x28] sm:$0xf]
      %v10579 = vld [vmem:[%s12 + $0x2c] sm:$0xf]
      %v10580 = vld [vmem:[%s12 + $0x30] sm:$0xf]
      %v10581 = vld [vmem:[%s12 + $0x34] sm:$0xf]
      %v10582 = vld [vmem:[%s12 + $0x38] sm:$0xf]
      %v10583 = vld [vmem:[%s12 + $0x3c] sm:$0xf]
      %v10584 = vld [vmem:[%s12 + $0x40] sm:$0xf]
      %v10585 = vld [vmem:[%s12 + $0x44] sm:$0xf]
      %v10586 = vld [vmem:[%s12 + $0x48] sm:$0xf]
      %v10587 = vld [vmem:[%s12 + $0x4c] sm:$0xf]
      %v10588 = vld [vmem:[%s12 + $0x50] sm:$0xf]
      %v10589 = vld [vmem:[%s12 + $0x54] sm:$0xf]
      %v10590 = vld [vmem:[%s12 + $0x58] sm:$0xf]
      %v10591 = vld [vmem:[%s12 + $0x5c] sm:$0xf]
      %v10592 = vld [vmem:[%s12 + $0x60] sm:$0xf]
      %v10593 = vld [vmem:[%s12 + $0x64] sm:$0xf]
      %v10594 = vld [vmem:[%s12 + $0x68] sm:$0xf]
      %v10595 = vld [vmem:[%s12 + $0x6c] sm:$0xf]
      %v10596 = vld [vmem:[%s12 + $0x70] sm:$0xf]
      %v10597 = vld [vmem:[%s12 + $0x74] sm:$0xf]
      %v10598 = vld [vmem:[%s12 + $0x78] sm:$0xf]
      %v10599 = vld [vmem:[%s12 + $0x7c] sm:$0xf]
      %v10600 = vld [vmem:[%s12 + $0x80] sm:$0xf]
      %v10601 = vld [vmem:[%s12 + $0x84] sm:$0xf]
      %v10602 = vld [vmem:[%s12 + $0x88] sm:$0xf]
      %v10603 = vld [vmem:[%s12 + $0x8c] sm:$0xf]
      %v10604 = vld [vmem:[%s12 + $0x90] sm:$0xf]
      %v10605 = vld [vmem:[%s12 + $0x94] sm:$0xf]
      %v10606 = vld [vmem:[%s12 + $0x98] sm:$0xf]
      %v10607 = vld [vmem:[%s12 + $0x9c] sm:$0xf]
      %v10608 = vld [vmem:[%s12 + $0xa0] sm:$0xf]
      %v10609 = vld [vmem:[%s12 + $0xa4] sm:$0xf]
      %v10610 = vld [vmem:[%s12 + $0xa8] sm:$0xf]
      %v10611 = vld [vmem:[%s12 + $0xac] sm:$0xf]
      %v10612 = vld [vmem:[%s12 + $0xb0] sm:$0xf]
      %v10613 = vld [vmem:[%s12 + $0xb4] sm:$0xf]
      %v10614 = vld [vmem:[%s12 + $0xb8] sm:$0xf]
      %v10615 = vld [vmem:[%s12 + $0xbc] sm:$0xf]
      %v10616 = vld [vmem:[%s12 + $0xc0] sm:$0xf]
      %v10617 = vld [vmem:[%s12 + $0xc4] sm:$0xf]
      %v10618 = vld [vmem:[%s12 + $0xc8] sm:$0xf]
      %v10619 = vld [vmem:[%s12 + $0xcc] sm:$0xf]
      %v10620 = vld [vmem:[%s12 + $0xd0] sm:$0xf]
      %v10621 = vld [vmem:[%s12 + $0xd4] sm:$0xf]
      %v10622 = vld [vmem:[%s12 + $0xd8] sm:$0xf]
      %v10623 = vld [vmem:[%s12 + $0xdc] sm:$0xf]
      %v10624 = vld [vmem:[%s12 + $0xe0] sm:$0xf]
      %v10625 = vld [vmem:[%s12 + $0xe4] sm:$0xf]
      %v10626 = vld [vmem:[%s12 + $0xe8] sm:$0xf]
      %v10627 = vld [vmem:[%s12 + $0xec] sm:$0xf]
      %v10628 = vld [vmem:[%s12 + $0xf0] sm:$0xf]
      %v10629 = vld [vmem:[%s12 + $0xf4] sm:$0xf]
      %v10630 = vld [vmem:[%s12 + $0xf8] sm:$0xf]
      %v10631 = vld [vmem:[%s12 + $0xfc] sm:$0xf]
      %v10632 = vld [vmem:[%s12 + $0x100] sm:$0xf]
      %v10633 = vld [vmem:[%s12 + $0x104] sm:$0xf]
      %v10634 = vld [vmem:[%s12 + $0x108] sm:$0xf]
      %v10635 = vld [vmem:[%s12 + $0x10c] sm:$0xf]
      %v10636 = vld [vmem:[%s12 + $0x110] sm:$0xf]
      %v10637 = vld [vmem:[%s12 + $0x114] sm:$0xf]
      %v10638 = vld [vmem:[%s12 + $0x118] sm:$0xf]
      %v10639 = vld [vmem:[%s12 + $0x11c] sm:$0xf]
      %v10640 = vld [vmem:[%s13] sm:$0x1]
      %v10642 = vlaneseq
      %v10643 = vshrl.u32 %v10642, 7
      %v10644 = vsub.s32 0, %v10643
      %v10645 = vrot.slane %v10640, %v10644
      %v10719 = vunpack.c.l.b16 %v10568
      %v10720 = vunpack.c.l.b16 %v10569
      %v10721 = vunpack.c.l.b16 %v10570
      %v10722 = vunpack.c.l.b16 %v10571
      %v10723 = vunpack.c.l.b16 %v10572
      %v10724 = vunpack.c.l.b16 %v10573
      %v10725 = vunpack.c.l.b16 %v10574
      %v10726 = vunpack.c.l.b16 %v10575
      %v10727 = vunpack.c.l.b16 %v10576
      %v10728 = vunpack.c.l.b16 %v10577
      %v10729 = vunpack.c.l.b16 %v10578
      %v10730 = vunpack.c.l.b16 %v10579
      %v10731 = vunpack.c.l.b16 %v10580
      %v10732 = vunpack.c.l.b16 %v10581
      %v10733 = vunpack.c.l.b16 %v10582
      %v10734 = vunpack.c.l.b16 %v10583
      %v10735 = vunpack.c.l.b16 %v10584
      %v10736 = vunpack.c.l.b16 %v10585
      %v10737 = vunpack.c.l.b16 %v10586
      %v10738 = vunpack.c.l.b16 %v10587
      %v10739 = vunpack.c.l.b16 %v10588
      %v10740 = vunpack.c.l.b16 %v10589
      %v10741 = vunpack.c.l.b16 %v10590
      %v10742 = vunpack.c.l.b16 %v10591
      %v10743 = vunpack.c.l.b16 %v10592
      %v10744 = vunpack.c.l.b16 %v10593
      %v10745 = vunpack.c.l.b16 %v10594
      %v10746 = vunpack.c.l.b16 %v10595
      %v10747 = vunpack.c.l.b16 %v10596
      %v10748 = vunpack.c.l.b16 %v10597
      %v10749 = vunpack.c.l.b16 %v10598
      %v10750 = vunpack.c.l.b16 %v10599
      %v10751 = vunpack.c.l.b16 %v10600
      %v10752 = vunpack.c.l.b16 %v10601
      %v10753 = vunpack.c.l.b16 %v10602
      %v10754 = vunpack.c.l.b16 %v10603
      %v10755 = vunpack.c.l.b16 %v10604
      %v10756 = vunpack.c.l.b16 %v10605
      %v10757 = vunpack.c.l.b16 %v10606
      %v10758 = vunpack.c.l.b16 %v10607
      %v10759 = vunpack.c.l.b16 %v10608
      %v10760 = vunpack.c.l.b16 %v10609
      %v10761 = vunpack.c.l.b16 %v10610
      %v10762 = vunpack.c.l.b16 %v10611
      %v10763 = vunpack.c.l.b16 %v10612
      %v10764 = vunpack.c.l.b16 %v10613
      %v10765 = vunpack.c.l.b16 %v10614
      %v10766 = vunpack.c.l.b16 %v10615
      %v10767 = vunpack.c.l.b16 %v10616
      %v10768 = vunpack.c.l.b16 %v10617
      %v10769 = vunpack.c.l.b16 %v10618
      %v10770 = vunpack.c.l.b16 %v10619
      %v10771 = vunpack.c.l.b16 %v10620
      %v10772 = vunpack.c.l.b16 %v10621
      %v10773 = vunpack.c.l.b16 %v10622
      %v10774 = vunpack.c.l.b16 %v10623
      %v10775 = vunpack.c.l.b16 %v10624
      %v10776 = vunpack.c.l.b16 %v10625
      %v10777 = vunpack.c.l.b16 %v10626
      %v10778 = vunpack.c.l.b16 %v10627
      %v10779 = vunpack.c.l.b16 %v10628
      %v10780 = vunpack.c.l.b16 %v10629
      %v10781 = vunpack.c.l.b16 %v10630
      %v10782 = vunpack.c.l.b16 %v10631
      %v10783 = vunpack.c.l.b16 %v10632
      %v10784 = vunpack.c.l.b16 %v10633
      %v10785 = vunpack.c.l.b16 %v10634
      %v10786 = vunpack.c.l.b16 %v10635
      %v10787 = vunpack.c.l.b16 %v10636
      %v10788 = vunpack.c.l.b16 %v10637
      %v10789 = vunpack.c.l.b16 %v10638
      %v10790 = vunpack.c.l.b16 %v10639
      %v10791 = vpack.c.b16 %v10720, %v10719
      %v10792 = vpack.c.b16 %v10722, %v10721
      %v10793 = vpack.c.b16 %v10724, %v10723
      %v10794 = vpack.c.b16 %v10726, %v10725
      %v10795 = vpack.c.b16 %v10728, %v10727
      %v10796 = vpack.c.b16 %v10730, %v10729
      %v10797 = vpack.c.b16 %v10732, %v10731
      %v10798 = vpack.c.b16 %v10734, %v10733
      %v10799 = vpack.c.b16 %v10736, %v10735
      %v10800 = vpack.c.b16 %v10738, %v10737
      %v10801 = vpack.c.b16 %v10740, %v10739
      %v10802 = vpack.c.b16 %v10742, %v10741
      %v10803 = vpack.c.b16 %v10744, %v10743
      %v10804 = vpack.c.b16 %v10746, %v10745
      %v10805 = vpack.c.b16 %v10748, %v10747
      %v10806 = vpack.c.b16 %v10750, %v10749
      %v10807 = vpack.c.b16 %v10752, %v10751
      %v10808 = vpack.c.b16 %v10754, %v10753
      %v10809 = vpack.c.b16 %v10756, %v10755
      %v10810 = vpack.c.b16 %v10758, %v10757
      %v10811 = vpack.c.b16 %v10760, %v10759
      %v10812 = vpack.c.b16 %v10762, %v10761
      %v10813 = vpack.c.b16 %v10764, %v10763
      %v10814 = vpack.c.b16 %v10766, %v10765
      %v10815 = vpack.c.b16 %v10768, %v10767
      %v10816 = vpack.c.b16 %v10770, %v10769
      %v10817 = vpack.c.b16 %v10772, %v10771
      %v10818 = vpack.c.b16 %v10774, %v10773
      %v10819 = vpack.c.b16 %v10776, %v10775
      %v10820 = vpack.c.b16 %v10778, %v10777
      %v10821 = vpack.c.b16 %v10780, %v10779
      %v10822 = vpack.c.b16 %v10782, %v10781
      %v10823 = vpack.c.b16 %v10784, %v10783
      %v10824 = vpack.c.b16 %v10786, %v10785
      %v10825 = vpack.c.b16 %v10788, %v10787
      %v10826 = vpack.c.b16 %v10790, %v10789
      %v10864 = vsel %vm4134, %v10553, 0
      %10866 = vmatprep.subr.bf16.mxu0 0
      %10867 = vmatpush1.bf16.msra.mxu0 %v10791
      %10868 = vmatprep.subr.bf16.mxu0 0
      %10869 = vmatpush1.bf16.msra.mxu0 %v10792
      %10870 = vmatprep.subr.bf16.mxu0 0
      %10871 = vmatpush1.bf16.msra.mxu0 %v10793
      %10872 = vmatprep.subr.bf16.mxu0 0
      %10873 = vmatpush1.bf16.msra.mxu0 %v10794
      %10874 = vmatprep.subr.bf16.mxu0 0
      %10875 = vmatpush1.bf16.msra.mxu0 %v10795
      %10876 = vmatprep.subr.bf16.mxu0 0
      %10877 = vmatpush1.bf16.msra.mxu0 %v10796
      %10878 = vmatprep.subr.bf16.mxu0 0
      %10879 = vmatpush1.bf16.msra.mxu0 %v10797
      %10880 = vmatprep.subr.bf16.mxu0 0
      %10881 = vmatpush1.bf16.msra.mxu0 %v10798
      %10882 = vmatprep.subr.bf16.mxu0 0
      %10883 = vmatpush1.bf16.msra.mxu0 %v10799
      %10884 = vmatprep.subr.bf16.mxu0 0
      %10885 = vmatpush1.bf16.msra.mxu0 %v10800
      %10886 = vmatprep.subr.bf16.mxu0 0
      %10887 = vmatpush1.bf16.msra.mxu0 %v10801
      %10888 = vmatprep.subr.bf16.mxu0 0
      %10889 = vmatpush1.bf16.msra.mxu0 %v10802
      %10890 = vmatprep.subr.bf16.mxu0 0
      %10891 = vmatpush1.bf16.msra.mxu0 %v10803
      %10892 = vmatprep.subr.bf16.mxu0 0
      %10893 = vmatpush1.bf16.msra.mxu0 %v10804
      %10894 = vmatprep.subr.bf16.mxu0 0
      %10895 = vmatpush1.bf16.msra.mxu0 %v10805
      %10896 = vmatprep.subr.bf16.mxu0 0
      %10897 = vmatpush1.bf16.msra.mxu0 %v10806
      %10898 = vmatprep.mubr.bf16.mxu0 %v10559
      %10899 = vmatmul.mubr.bf16.gmra.mrb[0].mxu0 %v10555
      %v10900 = vpop.f32.mrb[0].mxu0
      %v10901 = vadd.f32 %v10645, %v10900
      %v10902 = vpop.f32.mrb[0].mxu0
      %v10903 = vpop.f32.mrb[0].mxu0
      %v10904 = vadd.f32 %v10645, %v10903
      %v10905 = vpop.f32.mrb[0].mxu0
      %10906 = vdwg.mxu0
      %10907 = vmatprep.subr.bf16.mxu0 0
      %10908 = vmatpush1.bf16.msra.mxu0 %v10807
      %10909 = vmatprep.subr.bf16.mxu0 0
      %10910 = vmatpush1.bf16.msra.mxu0 %v10808
      %10911 = vmatprep.subr.bf16.mxu0 0
      %10912 = vmatpush1.bf16.msra.mxu0 %v10809
      %10913 = vmatprep.subr.bf16.mxu0 0
      %10914 = vmatpush1.bf16.msra.mxu0 %v10810
      %10915 = vmatprep.subr.bf16.mxu0 0
      %10916 = vmatpush1.bf16.msra.mxu0 %v10811
      %10917 = vmatprep.subr.bf16.mxu0 0
      %10918 = vmatpush1.bf16.msra.mxu0 %v10812
      %10919 = vmatprep.subr.bf16.mxu0 0
      %10920 = vmatpush1.bf16.msra.mxu0 %v10813
      %10921 = vmatprep.subr.bf16.mxu0 0
      %10922 = vmatpush1.bf16.msra.mxu0 %v10814
      %10923 = vmatprep.subr.bf16.mxu0 0
      %10924 = vmatpush1.bf16.msra.mxu0 %v10815
      %10925 = vmatprep.subr.bf16.mxu0 0
      %10926 = vmatpush1.bf16.msra.mxu0 %v10816
      %10927 = vmatprep.subr.bf16.mxu0 0
      %10928 = vmatpush1.bf16.msra.mxu0 %v10817
      %10929 = vmatprep.subr.bf16.mxu0 0
      %10930 = vmatpush1.bf16.msra.mxu0 %v10818
      %10931 = vmatprep.subr.bf16.mxu0 0
      %10932 = vmatpush1.bf16.msra.mxu0 %v10819
      %10933 = vmatprep.subr.bf16.mxu0 0
      %10934 = vmatpush1.bf16.msra.mxu0 %v10820
      %10935 = vmatprep.subr.bf16.mxu0 0
      %10936 = vmatpush1.bf16.msra.mxu0 %v10821
      %10937 = vmatprep.subr.bf16.mxu0 0
      %10938 = vmatpush1.bf16.msra.mxu0 %v10822
      %10939 = vmatprep.mubr.bf16.mxu0 %v10566
      %10940 = vmatmul.mubr.bf16.gmra.mrb[0].mxu0 %v10563
      %v10941 = vpop.f32.mrb[0].mxu0
      %v10942 = vadd.f32 %v10901, %v10941
      %v10943 = vpop.f32.mrb[0].mxu0
      %v10944 = vpop.f32.mrb[0].mxu0
      %v10945 = vadd.f32 %v10904, %v10944
      %v10946 = vpop.f32.mrb[0].mxu0
      %10947 = vdwg.mxu0
      %10948 = vmatprep.subr.bf16.mxu0 0
      %10949 = vmatpush1.bf16.msra.mxu0 %v10823
      %10950 = vmatprep.subr.bf16.mxu0 0
      %10951 = vmatpush1.bf16.msra.mxu0 %v10824
      %10952 = vmatprep.subr.bf16.mxu0 0
      %10953 = vmatpush1.bf16.msra.mxu0 %v10825
      %10954 = vmatprep.subr.bf16.mxu0 0
      %10955 = vmatpush1.bf16.msra.mxu0 %v10826
      %10956 = vmatprep.subr.bf16.mxu0 0
      %10957 = vmatpush1.bf16.msra.mxu0 0
      %10958 = vmatprep.subr.bf16.mxu0 0
      %10959 = vmatpush1.bf16.msra.mxu0 0
      %10960 = vmatprep.subr.bf16.mxu0 0
      %10961 = vmatpush1.bf16.msra.mxu0 0
      %10962 = vmatprep.subr.bf16.mxu0 0
      %10963 = vmatpush1.bf16.msra.mxu0 0
      %10964 = vmatprep.subr.bf16.mxu0 0
      %10965 = vmatpush1.bf16.msra.mxu0 0
      %10966 = vmatprep.subr.bf16.mxu0 0
      %10967 = vmatpush1.bf16.msra.mxu0 0
      %10968 = vmatprep.subr.bf16.mxu0 0
      %10969 = vmatpush1.bf16.msra.mxu0 0
      %10970 = vmatprep.subr.bf16.mxu0 0
      %10971 = vmatpush1.bf16.msra.mxu0 0
      %10972 = vmatprep.subr.bf16.mxu0 0
      %10973 = vmatpush1.bf16.msra.mxu0 0
      %10974 = vmatprep.subr.bf16.mxu0 0
      %10975 = vmatpush1.bf16.msra.mxu0 0
      %10976 = vmatprep.subr.bf16.mxu0 0
      %10977 = vmatpush1.bf16.msra.mxu0 0
      %10978 = vmatprep.subr.bf16.mxu0 0
      %10979 = vmatpush1.bf16.msra.mxu0 0
      %10980 = vmatprep.mubr.bf16.mxu0 0
      %10981 = vmatmul.mubr.bf16.gmra.mrb[0].mxu0 %v10864
      %v10982 = vpop.f32.mrb[0].mxu0
      %v10983 = vadd.f32 %v10942, %v10982
      %v10984 = vpop.f32.mrb[0].mxu0
      %v10985 = vpop.f32.mrb[0].mxu0
      %v10986 = vadd.f32 %v10945, %v10985
      %v10987 = vpop.f32.mrb[0].mxu0
      %10988 = vdwg.mxu0
      %10989 = vst.msk [vmem:[#allocation5] sm:$0xff] %vm4134, %v10983
      %10990 = vst.msk [vmem:[#allocation5 + $0x8] sm:$0xff] %vm4134, %v10986
      %v10991 = vld [vmem:[#allocation5 + $0x5] sm:$0x1]
      %v10992 = vld [vmem:[#allocation5 + $0x6] sm:$0x1]
      %v10993 = vld [vmem:[#allocation5 + $0x9] sm:$0x1]
      %v10994 = vld [vmem:[#allocation5 + $0xa] sm:$0x1]
      %v10995 = vmax.f32 %v10991, %v10992
      %v10996 = vmax.f32 %v10993, %v10994
      %v10997 = vmax.f32 %v10995, %v10996
      %v10998 = vmax.f32 %v10997, 0.0
      %v10999 = vpack.c.bf16 %v10998, %v10998
      %v11000 = vld [vmem:[%s14] sm:$0xf]
      %v11001 = vld [vmem:[%s14 + $0x4] sm:$0xf]
      %v11002 = vld [vmem:[%s14 + $0x8] sm:$0xf]
      %v11003 = vld [vmem:[%s14 + $0xc] sm:$0xf]
      %v11004 = vld [vmem:[%s14 + $0x10] sm:$0xf]
      %v11005 = vld [vmem:[%s14 + $0x14] sm:$0xf]
      %v11006 = vld [vmem:[%s14 + $0x18] sm:$0xf]
      %v11007 = vld [vmem:[%s14 + $0x1c] sm:$0xf]
      %v11008 = vld [vmem:[%s15] sm:$0x1]
      %v11017 = vunpack.c.l.b16 %v11000
      %v11018 = vunpack.c.l.b16 %v11001
      %v11019 = vunpack.c.l.b16 %v11002
      %v11020 = vunpack.c.l.b16 %v11003
      %v11021 = vunpack.c.l.b16 %v11004
      %v11022 = vunpack.c.l.b16 %v11005
      %v11023 = vunpack.c.l.b16 %v11006
      %v11024 = vunpack.c.l.b16 %v11007
      %v11025 = vpack.c.b16 %v11018, %v11017
      %v11026 = vpack.c.b16 %v11020, %v11019
      %v11027 = vpack.c.b16 %v11022, %v11021
      %v11028 = vpack.c.b16 %v11024, %v11023
      %v11034 = vsel %vm4134, %v10999, 0
      %11036 = vmatprep.subr.bf16.mxu0 0
      %11037 = vmatpush1.bf16.msra.mxu0 %v11025
      %11038 = vmatprep.subr.bf16.mxu0 0
      %11039 = vmatpush1.bf16.msra.mxu0 %v11026
      %11040 = vmatprep.subr.bf16.mxu0 0
      %11041 = vmatpush1.bf16.msra.mxu0 %v11027
      %11042 = vmatprep.subr.bf16.mxu0 0
      %11043 = vmatpush1.bf16.msra.mxu0 %v11028
      %11044 = vmatprep.subr.bf16.mxu0 0
      %11045 = vmatpush1.bf16.msra.mxu0 0
      %11046 = vmatprep.subr.bf16.mxu0 0
      %11047 = vmatpush1.bf16.msra.mxu0 0
      %11048 = vmatprep.subr.bf16.mxu0 0
      %11049 = vmatpush1.bf16.msra.mxu0 0
      %11050 = vmatprep.subr.bf16.mxu0 0
      %11051 = vmatpush1.bf16.msra.mxu0 0
      %11052 = vmatprep.subr.bf16.mxu0 0
      %11053 = vmatpush1.bf16.msra.mxu0 0
      %11054 = vmatprep.subr.bf16.mxu0 0
      %11055 = vmatpush1.bf16.msra.mxu0 0
      %11056 = vmatprep.subr.bf16.mxu0 0
      %11057 = vmatpush1.bf16.msra.mxu0 0
      %11058 = vmatprep.subr.bf16.mxu0 0
      %11059 = vmatpush1.bf16.msra.mxu0 0
      %11060 = vmatprep.subr.bf16.mxu0 0
      %11061 = vmatpush1.bf16.msra.mxu0 0
      %11062 = vmatprep.subr.bf16.mxu0 0
      %11063 = vmatpush1.bf16.msra.mxu0 0
      %11064 = vmatprep.subr.bf16.mxu0 0
      %11065 = vmatpush1.bf16.msra.mxu0 0
      %11066 = vmatprep.subr.bf16.mxu0 0
      %11067 = vmatpush1.bf16.msra.mxu0 0
      %11068 = vmatprep.mubr.bf16.mxu0 0
      %11069 = vmatmul.mubr.bf16.gmra.mrb[0].mxu0 %v11034
      %v11070 = vpop.f32.mrb[0].mxu0
      %v11071 = vadd.f32 %v11008, %v11070
      %v11072 = vpop.f32.mrb[0].mxu0
      %v11073 = vpop.f32.mrb[0].mxu0
      %v11074 = vpop.f32.mrb[0].mxu0
      %11075 = vdwg.mxu0
      %v11076 = vmax.f32 %v11071, 0.0
      %v11077 = vld [vmem:[%s16] sm:$0x1]
      %v11078 = vmul.f32 %v11076, %v11077
      %vm11079 = vcmask 1040384
      %v11080 = vsel %vm11079, %v11078, 0.0
      %11081 = vadd.xlane.f32.xlu0 %v11080
      %v11082 = vpop.xlane.xlu0 %11081
      %v11083 = vld [vmem:[#allocation7] sm:$0x1]
      %v11084 = vadd.f32 %v11082, %v11083
      %vm11085 = vcmask 0
      %11086 = vst.msk [vmem:[%s615] sm:$0x1] %vm11085, %v11084
      %p11087 = scmp.lt.s32.totalorder %s35, 1
      %s11088 = scalar_select %p11087, %s35, 1
      %s11089 = smul.addr %s11088, 2
      %s11090 = smul.addr %s11089, 8
      %s11091 = scalar_lea.vmem %s18, %s11090
      %p11092 = scmp.lt.s32.totalorder %s35, 1
      %s11093 = scalar_select %p11092, %s35, 1
      %s11094 = scalar_lea.vmem %s19, %s11093
      // Predicated region
      $region93: #{environment_model_forward.1} parent=91 // pred_check
        %p11095 = pneg %p436
      $region94: #{environment_model_forward.1} parent=91 // pred_check_branch
        %11097 = sbr.rel (%p11095) target = $region96
      $region95: #{environment_model_forward.1} parent=91 // pred_region
        _
      $region96: #{environment_model_forward.1} parent=91 // pred_fallthru
        _
      // Predicated region
      $region97: #{environment_model_forward.1} parent=91 // pred_check
        %p11098 = pneg %p462
      $region98: #{environment_model_forward.1} parent=91 // pred_check_branch
        %11100 = sbr.rel (%p11098) target = $region100
      $region99: #{environment_model_forward.1} parent=91 // pred_region
        _
      $region100: #{environment_model_forward.1} parent=91 // pred_fallthru
        _
    $region92: #{environment_model_forward.1} parent=5 // pred_fallthru
      _
    %p11101 = scmp.le.s32.totalorder 2, %s30
    // Predicated region
    $region101: #{environment_model_forward.1} parent=5 // pred_check
      %p11102 = pneg %p11101
    $region102: #{environment_model_forward.1} parent=5 // pred_check_branch
      %11104 = sbr.rel (%p11102) target = $region104
    $region103: #{environment_model_forward.1} parent=5 // pred_region
      %s11105 = ssub.s32 %s30, 2
      // Predicated region
      $region105: #{environment_model_forward.1} parent=103 // pred_check
        %p11106 = pneg %p442
      $region106: #{environment_model_forward.1} parent=103 // pred_check_branch
        %11108 = sbr.rel (%p11106) target = $region108
      $region107: #{environment_model_forward.1} parent=103 // pred_region
        %p11109 = scmp.lt.s32.totalorder %s36, 1
        %s11110 = scalar_select %p11109, %s36, 1
        %s11111 = smul.addr %s11110, 2
        %s11112 = smul.addr %s11111, 8
        %s11113 = scalar_lea.vmem %s18, %s11112
      $region108: #{environment_model_forward.1} parent=103 // pred_fallthru
        _
      // Predicated region
      $region109: #{environment_model_forward.1} parent=103 // pred_check
        %p11114 = pneg %p468
      $region110: #{environment_model_forward.1} parent=103 // pred_check_branch
        %11116 = sbr.rel (%p11114) target = $region112
      $region111: #{environment_model_forward.1} parent=103 // pred_region
        %p11117 = scmp.lt.s32.totalorder %s36, 1
        %s11118 = scalar_select %p11117, %s36, 1
        %s11119 = scalar_lea.vmem %s19, %s11118
      $region112: #{environment_model_forward.1} parent=103 // pred_fallthru
        _
    $region104: #{environment_model_forward.1} parent=5 // pred_fallthru
      _
  $region6: #{environment_model_forward.1} parent=0 // loop_footer
    %s34 = sadd.s32 1, %s30
  $region7: #{environment_model_forward.1} parent=0 // loop_footer_branch
    %29 = sbr.rel target = $region3
  $region8: #{environment_model_forward.1} parent=0 // loop_exit
    _

</llo_original>
